<compile_context>
chip_gen: v5e
topology: v5e:2x2
jax: 0.10.0
libtpu: 0.0.40
codegen_flags: <defaults>
</compile_context>

<pallas_src>
import functools

import jax
import jax.numpy as jnp
from jax import lax
from jax.experimental import pallas as pl
from jax.experimental.pallas import tpu as pltpu


def cca_kernel(xp_ref, xr_ref, w_ref, b_ref, gamma_ref, out_ref, *, H, W, C, C8):
    """One batch element of criss-cross attention.

    xp_ref:    (1, H*W, C)     bf16  x flattened for the fused q|k|v projection
    xr_ref:    (1, H, W*C)     f32   x residual, lane-dense
    w_ref:     (C, 2*C8 + C)   bf16  fused q|k|v 1x1-conv weight
    b_ref:     (1, 2*C8 + C)   f32   fused bias
    gamma_ref: (1, 1)          f32   scalar gamma in SMEM
    out_ref:   (1, H, W*C)     f32   lane-dense output
    """
    # ---- fused q|k|v projection: ONE (H*W, C) x (C, 2*C8+C) MXU matmul -------
    qkv = jnp.dot(xp_ref[0], w_ref[...],
                  preferred_element_type=jnp.float32) + b_ref[...]   # (H*W, 2*C8+C) f32
    q = qkv[:, :C8].reshape(H, W, C8)                                # (H, W, C8)
    k = qkv[:, C8:2 * C8].reshape(H, W, C8)                          # (H, W, C8)
    v = qkv[:, 2 * C8:].reshape(H, W, C)                             # (H, W, C)

    # Column (height) branch works in the (W, H, .) frame: transpose once.
    qT = jnp.swapaxes(q, 0, 1)                                       # (W, H, C8)
    kT = jnp.swapaxes(k, 0, 1)                                       # (W, H, C8)
    vT = jnp.swapaxes(v, 0, 1)                                       # (W, H, C)

    # ---- energies (batched matmuls, leading batch axis = H or W) -------------
    e_w = jnp.einsum('hic,hjc->hij', q, k,
                     preferred_element_type=jnp.float32)             # (H, W, W)
    e_hT = jnp.einsum('wic,wjc->wij', qT, kT,
                      preferred_element_type=jnp.float32)            # (W, Hq, Hk)

    # Diagonal "INF" mask (query row == key row), applied BEFORE the max so the
    # shared softmax max matches the reference exactly (no inf/NaN risk).
    ii = lax.broadcasted_iota(jnp.int32, (1, H, H), 1)
    jj = lax.broadcasted_iota(jnp.int32, (1, H, H), 2)
    e_hT = jnp.where(ii == jj, jnp.float32(-1e30), e_hT)             # (W, Hq, Hk)

    # ---- shared softmax over concat([energy_H, energy_W], -1) ----------------
    # The two frames are coupled only through the per-query (H, W) scalars.
    m_w = jnp.max(e_w, axis=-1)                                      # (H, W)
    m_hT = jnp.max(e_hT, axis=-1)                                    # (W, H)
    m = jnp.maximum(m_w, jnp.swapaxes(m_hT, 0, 1))                   # (H, W)
    mT = jnp.swapaxes(m, 0, 1)                                       # (W, H)

    p_w = jnp.exp(e_w - m[:, :, None])                               # (H, W, W)
    p_hT = jnp.exp(e_hT - mT[:, :, None])                            # (W, Hq, Hk); diag -> 0

    denom = jnp.sum(p_w, axis=-1) + jnp.swapaxes(jnp.sum(p_hT, axis=-1), 0, 1)  # (H, W)
    inv = 1.0 / denom                                                # exact reciprocal
    invT = jnp.swapaxes(inv, 0, 1)                                   # (W, H)

    att_w = p_w * inv[:, :, None]                                    # (H, W, W)
    att_hT = p_hT * invT[:, :, None]                                 # (W, Hq, Hk)

    # ---- attention x V (batched matmuls) --------------------------------------
    out_w = jnp.einsum('hij,hje->hie', att_w, v,
                       preferred_element_type=jnp.float32)           # (H, W, C)
    out_hT = jnp.einsum('wij,wje->wie', att_hT, vT,
                        preferred_element_type=jnp.float32)          # (W, H, C)

    out = jnp.swapaxes(out_hT, 0, 1) + out_w                         # (H, W, C)

    # Lane-dense epilogue: single relayout to (H, W*C), then dense scale/add/store.
    out_flat = out.reshape(H, W * C)                                 # (H, 512)
    gamma = gamma_ref[0, 0]
    out_ref[0] = gamma * out_flat + xr_ref[0]


def criss_cross_attention(x_nchw, wq, bq, wk, bk, wv, bv, gamma):
    """x_nchw: (B, C, H, W) float32. Conv1x1 weights in PyTorch (out, in) layout."""
    B, C, H, W = x_nchw.shape
    C8 = wq.shape[0]
    N = H * W
    WC = W * C
    CF = 2 * C8 + C

    x_nhwc = jnp.transpose(x_nchw, (0, 2, 3, 1)).astype(jnp.float32)
    x_proj = x_nhwc.reshape(B, N, C).astype(jnp.bfloat16)    # projection input (bf16)
    x_res = x_nhwc.reshape(B, H, WC)                          # residual, lane-dense f32

    # Fused q|k|v projection weight (C, 2*C8 + C) bf16 + f32 bias.
    w_fused = jnp.concatenate(
        [jnp.transpose(wq), jnp.transpose(wk), jnp.transpose(wv)],
        axis=1).astype(jnp.bfloat16)                          # (C, CF)
    b_fused = jnp.concatenate([bq, bk, bv]).reshape(1, CF).astype(jnp.float32)
    g2 = jnp.asarray(gamma, jnp.float32).reshape(1, 1)

    kernel = functools.partial(cca_kernel, H=H, W=W, C=C, C8=C8)

    grid_spec = pltpu.PrefetchScalarGridSpec(
        num_scalar_prefetch=0,
        grid=(B,),                                            # one step per batch element
        in_specs=[
            pl.BlockSpec((1, N, C), lambda b: (b, 0, 0)),     # x for projection (bf16)
            pl.BlockSpec((1, H, WC), lambda b: (b, 0, 0)),    # x residual (f32, lane-dense)
            pl.BlockSpec((C, CF), lambda b: (0, 0)),          # fused weight
            pl.BlockSpec((1, CF), lambda b: (0, 0)),          # fused bias
            pl.BlockSpec(memory_space=pltpu.MemorySpace.SMEM),  # gamma scalar
        ],
        out_specs=pl.BlockSpec((1, H, WC), lambda b: (b, 0, 0)),
    )

    out_flat = pl.pallas_call(
        kernel,
        out_shape=jax.ShapeDtypeStruct((B, H, WC), jnp.float32),
        grid_spec=grid_spec,
        compiler_params=pltpu.CompilerParams(
            dimension_semantics=("parallel",),
            vmem_limit_bytes=32 * 1024 * 1024,                # real need << 1 MiB; v7x-safe
        ),
    )(x_proj, x_res, w_fused, b_fused, g2)

    out_nhwc = out_flat.reshape(B, H, W, C)
    return jnp.transpose(out_nhwc, (0, 3, 1, 2))


def cca_reference(x, wq, bq, wk, bk, wv, bv, gamma):
    """Pure-JAX NCHW reference mirroring the PyTorch forward exactly (f32)."""
    B, C, H, W = x.shape
    q = jnp.einsum('bchw,dc->bdhw', x, wq) + bq[None, :, None, None]
    k = jnp.einsum('bchw,dc->bdhw', x, wk) + bk[None, :, None, None]
    v = jnp.einsum('bchw,ec->behw', x, wv) + bv[None, :, None, None]

    e_h = jnp.einsum('bchw,bcjw->bhwj', q, k)
    diag = jnp.eye(H, dtype=bool)[None, :, None, :]          # h == j
    e_h = jnp.where(diag, -jnp.inf, e_h)
    e_w = jnp.einsum('bchw,bchj->bhwj', q, k)

    att = jax.nn.softmax(jnp.concatenate([e_h, e_w], axis=-1), axis=-1)
    att_h = att[..., :H]
    att_w = att[..., H:]

    out_h = jnp.einsum('bhwj,bejw->behw', att_h, v)
    out_w = jnp.einsum('bhwj,behj->behw', att_w, v)
    return gamma * (out_h + out_w) + x


if __name__ == "__main__":
    B, C, H, W = 2, 32, 16, 16
    C8 = C // 8

    key = jax.random.PRNGKey(0)
    k_x, k_wq, k_bq, k_wk, k_bk, k_wv, k_bv = jax.random.split(key, 7)

    x = jax.random.normal(k_x, (B, C, H, W), jnp.float32)
    # Conv2d(kernel_size=1) weights: (out, in); biases: (out,).
    wq = 0.1 * jax.random.normal(k_wq, (C8, C), jnp.float32)
    bq = 0.1 * jax.random.normal(k_bq, (C8,), jnp.float32)
    wk = 0.1 * jax.random.normal(k_wk, (C8, C), jnp.float32)
    bk = 0.1 * jax.random.normal(k_bk, (C8,), jnp.float32)
    wv = 0.1 * jax.random.normal(k_wv, (C, C), jnp.float32)
    bv = 0.1 * jax.random.normal(k_bv, (C,), jnp.float32)
    # nn.Parameter(torch.zeros(1)) in the module; nonzero here so the attention
    # path actually contributes to the output.
    gamma = jnp.float32(0.5)

    cca = jax.jit(criss_cross_attention)
    out = jax.block_until_ready(cca(x, wq, bq, wk, bk, wv, bv, gamma))

    ref = cca_reference(x, wq, bq, wk, bk, wv, bv, gamma)
    max_err = float(jnp.max(jnp.abs(out - ref)))
    # bf16 projection operands (x, fused weight) are the only quantized inputs.
    assert max_err < 5e-2, f"mismatch vs reference: max abs err = {max_err}"

    print("KERNEL_OK")
</pallas_src>

<mosaic_0001>
module attributes {stable_mosaic.version = 11 : i64} {
  func.func @cca_kernel(%arg0: i32, %arg1: memref<1x256x32xbf16, #tpu.memory_space<vmem>>, %arg2: memref<1x16x512xf32, #tpu.memory_space<vmem>>, %arg3: memref<32x40xbf16, #tpu.memory_space<vmem>>, %arg4: memref<1x40xf32, #tpu.memory_space<vmem>>, %arg5: memref<1x1xf32, #tpu.memory_space<smem>>, %arg6: memref<1x16x512xf32, #tpu.memory_space<vmem>>) attributes {dimension_semantics = [#tpu.dimension_semantics<parallel>], iteration_bounds = array<i64: 2>, scalar_prefetch = 0 : i64, scratch_operands = 0 : i64, tpu.core_type = #tpu.core_type<tc>, window_params = [{transform_indices = @transform_0, window_bounds = array<i64: 1, 256, 32>}, {transform_indices = @transform_1, window_bounds = array<i64: 1, 16, 512>}, {pipeline_mode = #tpu.pipeline_mode<synchronous>, transform_indices = @transform_2, window_bounds = array<i64: 32, 40>}, {pipeline_mode = #tpu.pipeline_mode<synchronous>, transform_indices = @transform_3, window_bounds = array<i64: 1, 40>}, {transform_indices = @transform_4, window_bounds = array<i64: 1, 1>}, {transform_indices = @transform_5, window_bounds = array<i64: 1, 16, 512>}]} {
    %c0 = arith.constant 0 : index
    %c0_0 = arith.constant 0 : index
    %c0_1 = arith.constant 0 : index
    %0 = vector.load %arg1[%c0, %c0_0, %c0_1] : memref<1x256x32xbf16, #tpu.memory_space<vmem>>, vector<1x256x32xbf16>
    %1 = vector.shape_cast %0 : vector<1x256x32xbf16> to vector<256x32xbf16>
    %c0_2 = arith.constant 0 : index
    %c0_3 = arith.constant 0 : index
    %2 = vector.load %arg3[%c0_2, %c0_3] : memref<32x40xbf16, #tpu.memory_space<vmem>>, vector<32x40xbf16>
    %cst = arith.constant dense<0.000000e+00> : vector<256x40xf32>
    %3 = tpu.matmul %1, %2, %cst {dimension_numbers = #tpu.dot_dimension_numbers<[1], [0], [0], [1], [0, 0, 1, 1], [], []>} : vector<256x32xbf16>, vector<32x40xbf16>, vector<256x40xf32> -> vector<256x40xf32>
    %c0_4 = arith.constant 0 : index
    %c0_5 = arith.constant 0 : index
    %4 = vector.load %arg4[%c0_4, %c0_5] : memref<1x40xf32, #tpu.memory_space<vmem>>, vector<1x40xf32>
    %5 = vector.broadcast %4 : vector<1x40xf32> to vector<256x40xf32>
    %6 = arith.addf %3, %5 : vector<256x40xf32>
    %7 = vector.extract_strided_slice %6 {offsets = [0, 0], sizes = [256, 4], strides = [1, 1]} : vector<256x40xf32> to vector<256x4xf32>
    %8 = vector.shape_cast %7 : vector<256x4xf32> to vector<16x16x4xf32>
    %9 = vector.extract_strided_slice %6 {offsets = [0, 4], sizes = [256, 4], strides = [1, 1]} : vector<256x40xf32> to vector<256x4xf32>
    %10 = vector.shape_cast %9 : vector<256x4xf32> to vector<16x16x4xf32>
    %11 = vector.extract_strided_slice %6 {offsets = [0, 8], sizes = [256, 32], strides = [1, 1]} : vector<256x40xf32> to vector<256x32xf32>
    %12 = vector.shape_cast %11 : vector<256x32xf32> to vector<16x16x32xf32>
    %13 = tpu.transpose %8, [1, 0, 2] : vector<16x16x4xf32> -> vector<16x16x4xf32>
    %14 = tpu.transpose %10, [1, 0, 2] : vector<16x16x4xf32> -> vector<16x16x4xf32>
    %15 = tpu.transpose %12, [1, 0, 2] : vector<16x16x32xf32> -> vector<16x16x32xf32>
    "tpu.trace_start"() <{level = 10 : i32, message = "hic,hjc->hij"}> : () -> ()
    %cst_6 = arith.constant dense<0.000000e+00> : vector<16x16x16xf32>
    %16 = tpu.matmul %8, %10, %cst_6 {dimension_numbers = #tpu.dot_dimension_numbers<[2], [2], [1], [1], [0, 0, 0, 1, 1, 1], [0], [0]>} : vector<16x16x4xf32>, vector<16x16x4xf32>, vector<16x16x16xf32> -> vector<16x16x16xf32>
    "tpu.trace_stop"() : () -> ()
    "tpu.trace_start"() <{level = 10 : i32, message = "wic,wjc->wij"}> : () -> ()
    %cst_7 = arith.constant dense<0.000000e+00> : vector<16x16x16xf32>
    %17 = tpu.matmul %13, %14, %cst_7 {dimension_numbers = #tpu.dot_dimension_numbers<[2], [2], [1], [1], [0, 0, 0, 1, 1, 1], [0], [0]>} : vector<16x16x4xf32>, vector<16x16x4xf32>, vector<16x16x16xf32> -> vector<16x16x16xf32>
    "tpu.trace_stop"() : () -> ()
    %18 = tpu.iota {dimensions = array<i32: 1>} : vector<1x16x16xi32>
    %19 = tpu.iota {dimensions = array<i32: 2>} : vector<1x16x16xi32>
    %20 = arith.cmpi eq, %18, %19 : vector<1x16x16xi32>
    %cst_8 = arith.constant -1.000000e+30 : f32
    %21 = vector.shape_cast %20 : vector<1x16x16xi1> to vector<1x16x16xi1>
    %22 = vector.broadcast %21 : vector<1x16x16xi1> to vector<16x16x16xi1>
    %23 = vector.broadcast %cst_8 : f32 to vector<16x16x16xf32>
    %24 = arith.select %22, %23, %17 : vector<16x16x16xi1>, vector<16x16x16xf32>
    %cst_9 = arith.constant dense<0xFF800000> : vector<16x16xf32>
    %25 = vector.multi_reduction <maximumf>, %16, %cst_9 [2] : vector<16x16x16xf32> to vector<16x16xf32>
    %cst_10 = arith.constant dense<0xFF800000> : vector<16x16xf32>
    %26 = vector.multi_reduction <maximumf>, %24, %cst_10 [2] : vector<16x16x16xf32> to vector<16x16xf32>
    %27 = tpu.transpose %26, [1, 0] : vector<16x16xf32> -> vector<16x16xf32>
    %28 = arith.maximumf %25, %27 : vector<16x16xf32>
    %29 = tpu.transpose %28, [1, 0] : vector<16x16xf32> -> vector<16x16xf32>
    %30 = vector.shape_cast %28 : vector<16x16xf32> to vector<16x16x1xf32>
    %31 = vector.broadcast %30 : vector<16x16x1xf32> to vector<16x16x16xf32>
    %32 = arith.subf %16, %31 : vector<16x16x16xf32>
    %33 = math.exp %32 : vector<16x16x16xf32>
    %34 = vector.shape_cast %29 : vector<16x16xf32> to vector<16x16x1xf32>
    %35 = vector.broadcast %34 : vector<16x16x1xf32> to vector<16x16x16xf32>
    %36 = arith.subf %24, %35 : vector<16x16x16xf32>
    %37 = math.exp %36 : vector<16x16x16xf32>
    %cst_11 = arith.constant dense<0.000000e+00> : vector<16x16xf32>
    %38 = vector.multi_reduction <add>, %33, %cst_11 [2] : vector<16x16x16xf32> to vector<16x16xf32>
    %cst_12 = arith.constant dense<0.000000e+00> : vector<16x16xf32>
    %39 = vector.multi_reduction <add>, %37, %cst_12 [2] : vector<16x16x16xf32> to vector<16x16xf32>
    %40 = tpu.transpose %39, [1, 0] : vector<16x16xf32> -> vector<16x16xf32>
    %41 = arith.addf %38, %40 : vector<16x16xf32>
    %cst_13 = arith.constant 1.000000e+00 : f32
    %42 = vector.broadcast %cst_13 : f32 to vector<16x16xf32>
    %43 = arith.divf %42, %41 : vector<16x16xf32>
    %44 = tpu.transpose %43, [1, 0] : vector<16x16xf32> -> vector<16x16xf32>
    %45 = vector.shape_cast %43 : vector<16x16xf32> to vector<16x16x1xf32>
    %46 = vector.broadcast %45 : vector<16x16x1xf32> to vector<16x16x16xf32>
    %47 = arith.mulf %33, %46 : vector<16x16x16xf32>
    %48 = vector.shape_cast %44 : vector<16x16xf32> to vector<16x16x1xf32>
    %49 = vector.broadcast %48 : vector<16x16x1xf32> to vector<16x16x16xf32>
    %50 = arith.mulf %37, %49 : vector<16x16x16xf32>
    "tpu.trace_start"() <{level = 10 : i32, message = "hij,hje->hie"}> : () -> ()
    %cst_14 = arith.constant dense<0.000000e+00> : vector<16x16x32xf32>
    %51 = tpu.matmul %47, %12, %cst_14 {dimension_numbers = #tpu.dot_dimension_numbers<[2], [1], [1], [2], [0, 0, 0, 1, 1, 2], [0], [0]>} : vector<16x16x16xf32>, vector<16x16x32xf32>, vector<16x16x32xf32> -> vector<16x16x32xf32>
    "tpu.trace_stop"() : () -> ()
    "tpu.trace_start"() <{level = 10 : i32, message = "wij,wje->wie"}> : () -> ()
    %cst_15 = arith.constant dense<0.000000e+00> : vector<16x16x32xf32>
    %52 = tpu.matmul %50, %15, %cst_15 {dimension_numbers = #tpu.dot_dimension_numbers<[2], [1], [1], [2], [0, 0, 0, 1, 1, 2], [0], [0]>} : vector<16x16x16xf32>, vector<16x16x32xf32>, vector<16x16x32xf32> -> vector<16x16x32xf32>
    "tpu.trace_stop"() : () -> ()
    %53 = tpu.transpose %52, [1, 0, 2] : vector<16x16x32xf32> -> vector<16x16x32xf32>
    %54 = arith.addf %53, %51 : vector<16x16x32xf32>
    %55 = vector.shape_cast %54 : vector<16x16x32xf32> to vector<16x512xf32>
    %c0_16 = arith.constant 0 : index
    %c0_17 = arith.constant 0 : index
    %56 = memref.load %arg5[%c0_16, %c0_17] : memref<1x1xf32, #tpu.memory_space<smem>>
    %57 = vector.broadcast %56 : f32 to vector<16x512xf32>
    %58 = arith.mulf %57, %55 : vector<16x512xf32>
    %c0_18 = arith.constant 0 : index
    %c0_19 = arith.constant 0 : index
    %c0_20 = arith.constant 0 : index
    %59 = vector.load %arg2[%c0_18, %c0_19, %c0_20] : memref<1x16x512xf32, #tpu.memory_space<vmem>>, vector<1x16x512xf32>
    %60 = vector.shape_cast %59 : vector<1x16x512xf32> to vector<16x512xf32>
    %61 = arith.addf %58, %60 : vector<16x512xf32>
    %c0_21 = arith.constant 0 : index
    %c0_22 = arith.constant 0 : index
    %c0_23 = arith.constant 0 : index
    %62 = vector.load %arg6[%c0_21, %c0_22, %c0_23] : memref<1x16x512xf32, #tpu.memory_space<vmem>>, vector<1x16x512xf32>
    %63 = vector.shape_cast %62 : vector<1x16x512xf32> to vector<16x512xf32>
    %64 = vector.shape_cast %61 : vector<16x512xf32> to vector<1x16x512xf32>
    tpu.vector_store %arg6[%c0_21, %c0_22, %c0_23], %64 {strides = array<i32>} : memref<1x16x512xf32, #tpu.memory_space<vmem>>, vector<1x16x512xf32>,
    return
  }
  func.func @transform_0(%arg0: i32) -> (i32, i32, i32) {
    %c0_i32 = arith.constant 0 : i32
    %c0_i32_0 = arith.constant 0 : i32
    %c0_i32_1 = arith.constant 0 : i32
    return %arg0, %c0_i32, %c0_i32_0 : i32, i32, i32
  }
  func.func @transform_1(%arg0: i32) -> (i32, i32, i32) {
    %c0_i32 = arith.constant 0 : i32
    %c0_i32_0 = arith.constant 0 : i32
    %c0_i32_1 = arith.constant 0 : i32
    return %arg0, %c0_i32, %c0_i32_0 : i32, i32, i32
  }
  func.func @transform_2(%arg0: i32) -> (i32, i32) {
    %c0_i32 = arith.constant 0 : i32
    %c0_i32_0 = arith.constant 0 : i32
    %c0_i32_1 = arith.constant 0 : i32
    return %c0_i32, %c0_i32_0 : i32, i32
  }
  func.func @transform_3(%arg0: i32) -> (i32, i32) {
    %c0_i32 = arith.constant 0 : i32
    %c0_i32_0 = arith.constant 0 : i32
    %c0_i32_1 = arith.constant 0 : i32
    return %c0_i32, %c0_i32_0 : i32, i32
  }
  func.func @transform_4(%arg0: i32) -> (i32, i32) {
    %c0_i32 = arith.constant 0 : i32
    %c0_i32_0 = arith.constant 0 : i32
    %c0_i32_1 = arith.constant 0 : i32
    return %c0_i32, %c0_i32_0 : i32, i32
  }
  func.func @transform_5(%arg0: i32) -> (i32, i32, i32) {
    %c0_i32 = arith.constant 0 : i32
    %c0_i32_0 = arith.constant 0 : i32
    %c0_i32_1 = arith.constant 0 : i32
    return %arg0, %c0_i32, %c0_i32_0 : i32, i32, i32
  }
}

</mosaic_0001>

<llo_original>
// kernel: criss_cross_attention.1
$region0: #{criss_cross_attention.1}
  #allocation0 [shape = 'u32[]', space=smem, size = 0x4, offset = 0x4, fixed_abs, tag = 'smem constant byte address 0x4 - core index']
  #allocation1 [shape = 'u32[72,128]{1,0:T(1,128)}', space=vmem, size = 0x9000, scoped, tag = 'internal scratch']
  #allocation2 [shape = 'f32[1,1]{1,0:T(1,128)S(6)}', space=smem, size = 0x200, scoped, tag = 'scoped memory for criss_cross_attention.1']
  %s0 = inlined_call_operand.vmem [shape: bf16[2,256,32], index: 0, kind: input, shape index: {}]
  %s1 = inlined_call_operand.vmem [shape: f32[2,16,512], index: 1, kind: input, shape index: {}]
  %s2 = inlined_call_operand.vmem [shape: bf16[32,40], index: 2, kind: input, shape index: {}]
  %s3 = inlined_call_operand.vmem [shape: f32[1,40], index: 3, kind: input, shape index: {}]
  %s4 = inlined_call_operand.<no memory space> [shape: f32[1,1], index: 4, kind: input, shape index: {}]
  %s5 = inlined_call_operand.vmem [shape: f32[2,16,512], index: 5, kind: output, shape index: {}]
  %s6 = sld [smem:[#allocation0]]
  $region53: #{criss_cross_attention.1} parent=0
    _
  %s8 = ssub.s32 1, %s6
  %s9 = scalar_select 0, %s8, %s6
  %10 = sst [smem:[#allocation2]] %s4
  loop: start=0, step=1, limit=4
  $region2: #{criss_cross_attention.1} parent=0 // loop_pre_header
    _
  $region3: #{criss_cross_attention.1} parent=0 // loop_header
    %s12 = sphi 0, %s16
    %p13 = scmp.ge.s32.totalorder %s12, 4
    %s22 = sphi 0, %s24
    %s25 = sphi 0, %s22
    %s26 = sphi 0, %s25
    %s42 = sphi 0, %s26
    %s48 = sphi 0, %s50
    %s51 = sphi 0, %s48
    %s52 = sphi 0, %s51
    %s68 = sphi 0, %s52
    %s72 = sphi 0, %s72
    %s74 = sphi 0, %s72
    %s75 = sphi 0, %s74
    %s89 = sphi 0, %s75
    %s93 = sphi 0, %s93
    %s95 = sphi 0, %s93
    %s96 = sphi 0, %s95
    %s110 = sphi 0, %s96
    %s114 = sphi 0, %s114
    %s116 = sphi 0, %s114
    %s117 = sphi 0, %s116
    %s131 = sphi 0, %s117
    %s137 = sphi 0, %s139
    %s140 = sphi 0, %s137
    %s141 = sphi 0, %s140
    %s157 = sphi 0, %s141
  $region4: #{criss_cross_attention.1} parent=0 // loop_header_branch
    %15 = sbr.rel (%p13) target = $region8
  $region5: #{criss_cross_attention.1} parent=0 // loop_body
    %s17 = ssub.s32 %s12, 1
    %s18 = ssub.s32 %s12, 2
    %s19 = sadd.s32 %s12, 1
    %s20 = ssub.s32 %s12, %s19
    %p21 = scmp.eq.s32.totalorder %s20, 0
    %s23 = sadd.s32 %s22, 1
    %s24 = scalar_select %p21, %s22, %s23
    %p27 = pneg %p21
    %p28 = scmp.eq.s32.totalorder %s12, 1
    %p29 = por %p27, %p28
    %p30 = scmp.ne.s32.totalorder %s22, %s25
    %p31 = scmp.eq.s32.totalorder %s12, 0
    %p32 = por %p30, %p31
    %p33 = scmp.ne.s32.totalorder %s22, %s25
    %p34 = scmp.eq.s32.totalorder %s17, 1
    %p35 = por %p33, %p34
    %p36 = scmp.ne.s32.totalorder %s25, %s26
    %p37 = scmp.eq.s32.totalorder %s17, 0
    %p38 = por %p36, %p37
    %p39 = scmp.ne.s32.totalorder %s25, %s26
    %p40 = scmp.eq.s32.totalorder %s18, 1
    %p41 = por %p39, %p40
    %p43 = scmp.ne.s32.totalorder %s26, %s42
    %p44 = scmp.eq.s32.totalorder %s18, 0
    %p45 = por %p43, %p44
    %s46 = ssub.s32 %s12, %s19
    %p47 = scmp.eq.s32.totalorder %s46, 0
    %s49 = sadd.s32 %s48, 1
    %s50 = scalar_select %p47, %s48, %s49
    %p53 = pneg %p47
    %p54 = scmp.eq.s32.totalorder %s12, 1
    %p55 = por %p53, %p54
    %p56 = scmp.ne.s32.totalorder %s48, %s51
    %p57 = scmp.eq.s32.totalorder %s12, 0
    %p58 = por %p56, %p57
    %p59 = scmp.ne.s32.totalorder %s48, %s51
    %p60 = scmp.eq.s32.totalorder %s17, 1
    %p61 = por %p59, %p60
    %p62 = scmp.ne.s32.totalorder %s51, %s52
    %p63 = scmp.eq.s32.totalorder %s17, 0
    %p64 = por %p62, %p63
    %p65 = scmp.ne.s32.totalorder %s51, %s52
    %p66 = scmp.eq.s32.totalorder %s18, 1
    %p67 = por %p65, %p66
    %p69 = scmp.ne.s32.totalorder %s52, %s68
    %p70 = scmp.eq.s32.totalorder %s18, 0
    %p71 = por %p69, %p70
    %s73 = sadd.s32 %s72, 1
    %p76 = scmp.eq.s32.totalorder %s12, 1
    %p77 = scmp.ne.s32.totalorder %s72, %s74
    %p78 = scmp.eq.s32.totalorder %s12, 0
    %p79 = por %p77, %p78
    %p80 = scmp.ne.s32.totalorder %s72, %s74
    %p81 = scmp.eq.s32.totalorder %s17, 1
    %p82 = por %p80, %p81
    %p83 = scmp.ne.s32.totalorder %s74, %s75
    %p84 = scmp.eq.s32.totalorder %s17, 0
    %p85 = por %p83, %p84
    %p86 = scmp.ne.s32.totalorder %s74, %s75
    %p87 = scmp.eq.s32.totalorder %s18, 1
    %p88 = por %p86, %p87
    %p90 = scmp.ne.s32.totalorder %s75, %s89
    %p91 = scmp.eq.s32.totalorder %s18, 0
    %p92 = por %p90, %p91
    %s94 = sadd.s32 %s93, 1
    %p97 = scmp.eq.s32.totalorder %s12, 1
    %p98 = scmp.ne.s32.totalorder %s93, %s95
    %p99 = scmp.eq.s32.totalorder %s12, 0
    %p100 = por %p98, %p99
    %p101 = scmp.ne.s32.totalorder %s93, %s95
    %p102 = scmp.eq.s32.totalorder %s17, 1
    %p103 = por %p101, %p102
    %p104 = scmp.ne.s32.totalorder %s95, %s96
    %p105 = scmp.eq.s32.totalorder %s17, 0
    %p106 = por %p104, %p105
    %p107 = scmp.ne.s32.totalorder %s95, %s96
    %p108 = scmp.eq.s32.totalorder %s18, 1
    %p109 = por %p107, %p108
    %p111 = scmp.ne.s32.totalorder %s96, %s110
    %p112 = scmp.eq.s32.totalorder %s18, 0
    %p113 = por %p111, %p112
    %s115 = sadd.s32 %s114, 1
    %p118 = scmp.eq.s32.totalorder %s12, 1
    %p119 = scmp.ne.s32.totalorder %s114, %s116
    %p120 = scmp.eq.s32.totalorder %s12, 0
    %p121 = por %p119, %p120
    %p122 = scmp.ne.s32.totalorder %s114, %s116
    %p123 = scmp.eq.s32.totalorder %s17, 1
    %p124 = por %p122, %p123
    %p125 = scmp.ne.s32.totalorder %s116, %s117
    %p126 = scmp.eq.s32.totalorder %s17, 0
    %p127 = por %p125, %p126
    %p128 = scmp.ne.s32.totalorder %s116, %s117
    %p129 = scmp.eq.s32.totalorder %s18, 1
    %p130 = por %p128, %p129
    %p132 = scmp.ne.s32.totalorder %s117, %s131
    %p133 = scmp.eq.s32.totalorder %s18, 0
    %p134 = por %p132, %p133
    %s135 = ssub.s32 %s12, %s19
    %p136 = scmp.eq.s32.totalorder %s135, 0
    %s138 = sadd.s32 %s137, 1
    %s139 = scalar_select %p136, %s137, %s138
    %p142 = pneg %p136
    %p143 = scmp.eq.s32.totalorder %s12, 1
    %p144 = por %p142, %p143
    %p145 = scmp.ne.s32.totalorder %s137, %s140
    %p146 = scmp.eq.s32.totalorder %s12, 0
    %p147 = por %p145, %p146
    %p148 = scmp.ne.s32.totalorder %s137, %s140
    %p149 = scmp.eq.s32.totalorder %s17, 1
    %p150 = por %p148, %p149
    %p151 = scmp.ne.s32.totalorder %s140, %s141
    %p152 = scmp.eq.s32.totalorder %s17, 0
    %p153 = por %p151, %p152
    %p154 = scmp.ne.s32.totalorder %s140, %s141
    %p155 = scmp.eq.s32.totalorder %s18, 1
    %p156 = por %p154, %p155
    %p158 = scmp.ne.s32.totalorder %s141, %s157
    %p159 = scmp.eq.s32.totalorder %s18, 0
    %p160 = por %p158, %p159
    %p161 = scmp.le.s32.totalorder 1, %s12
    %p162 = scmp.lt.s32.totalorder %s12, 3
    %p163 = pnand %p161, %p162
    %p164 = pneg %p163
    // Predicated region
    $region9: #{criss_cross_attention.1} parent=5 // pred_check
      _
    $region10: #{criss_cross_attention.1} parent=5 // pred_check_branch
      %166 = sbr.rel (%p163) target = $region12
    $region11: #{criss_cross_attention.1} parent=5 // pred_region
      %s167 = ssub.s32 %s12, 1
      // Predicated region
      $region13: #{criss_cross_attention.1} parent=11 // pred_check
        %p168 = pneg %p85
      $region14: #{criss_cross_attention.1} parent=11 // pred_check_branch
        %170 = sbr.rel (%p168) target = $region16
      $region15: #{criss_cross_attention.1} parent=11 // pred_region
        _
      $region16: #{criss_cross_attention.1} parent=11 // pred_fallthru
        _
      // Predicated region
      $region17: #{criss_cross_attention.1} parent=11 // pred_check
        %p171 = pneg %p106
      $region18: #{criss_cross_attention.1} parent=11 // pred_check_branch
        %173 = sbr.rel (%p171) target = $region20
      $region19: #{criss_cross_attention.1} parent=11 // pred_region
        _
      $region20: #{criss_cross_attention.1} parent=11 // pred_fallthru
        _
      // Predicated region
      $region21: #{criss_cross_attention.1} parent=11 // pred_check
        %p174 = pneg %p127
      $region22: #{criss_cross_attention.1} parent=11 // pred_check_branch
        %176 = sbr.rel (%p174) target = $region24
      $region23: #{criss_cross_attention.1} parent=11 // pred_region
        _
      $region24: #{criss_cross_attention.1} parent=11 // pred_fallthru
        _
    $region12: #{criss_cross_attention.1} parent=5 // pred_fallthru
      _
    %p177 = scmp.lt.s32.totalorder %s12, 2
    // Predicated region
    $region25: #{criss_cross_attention.1} parent=5 // pred_check
      %p178 = pneg %p177
    $region26: #{criss_cross_attention.1} parent=5 // pred_check_branch
      %180 = sbr.rel (%p178) target = $region28
    $region27: #{criss_cross_attention.1} parent=5 // pred_region
      // Predicated region
      $region29: #{criss_cross_attention.1} parent=27 // pred_check
        %p181 = pneg %p32
      $region30: #{criss_cross_attention.1} parent=27 // pred_check_branch
        %183 = sbr.rel (%p181) target = $region32
      $region31: #{criss_cross_attention.1} parent=27 // pred_region
        %p184 = scmp.lt.s32.totalorder %s12, 1
        %s185 = scalar_select %p184, %s12, 1
        %s186 = smul.addr %s185, 32
        %s187 = smul.addr %s186, 4
        %s188 = scalar_lea.vmem %s0, %s187
      $region32: #{criss_cross_attention.1} parent=27 // pred_fallthru
        _
      // Predicated region
      $region33: #{criss_cross_attention.1} parent=27 // pred_check
        %p189 = pneg %p58
      $region34: #{criss_cross_attention.1} parent=27 // pred_check_branch
        %191 = sbr.rel (%p189) target = $region36
      $region35: #{criss_cross_attention.1} parent=27 // pred_region
        %p192 = scmp.lt.s32.totalorder %s12, 1
        %s193 = scalar_select %p192, %s12, 1
        %s194 = smul.addr %s193, 8
        %s195 = smul.addr %s194, 8
        %s196 = scalar_lea.vmem %s1, %s195
      $region36: #{criss_cross_attention.1} parent=27 // pred_fallthru
        _
    $region28: #{criss_cross_attention.1} parent=5 // pred_fallthru
      _
    %p197 = scmp.le.s32.totalorder 1, %s12
    %p198 = scmp.lt.s32.totalorder %s12, 3
    %p199 = pnand %p197, %p198
    %p200 = pneg %p199
    // Predicated region
    $region37: #{criss_cross_attention.1} parent=5 // pred_check
      _
    $region38: #{criss_cross_attention.1} parent=5 // pred_check_branch
      %202 = sbr.rel (%p199) target = $region40
    $region39: #{criss_cross_attention.1} parent=5 // pred_region
      %s203 = ssub.s32 %s12, 1
      %p204 = scmp.lt.s32.totalorder %s17, 1
      %s205 = scalar_select %p204, %s17, 1
      %s206 = smul.addr %s205, 32
      %s207 = smul.addr %s206, 4
      %s208 = scalar_lea.vmem %s0, %s207
      %p209 = pneg %p38
      %p210 = pneg %p35
      %p211 = scmp.lt.s32.totalorder %s17, 1
      %s212 = scalar_select %p211, %s17, 1
      %s213 = smul.addr %s212, 8
      %s214 = smul.addr %s213, 8
      %s215 = scalar_lea.vmem %s1, %s214
      %p216 = pneg %p64
      %p217 = pneg %p61
      %p218 = pneg %p85
      %p219 = pneg %p82
      %p220 = pneg %p106
      %p221 = pneg %p103
      %p222 = pneg %p127
      %p223 = pneg %p124
      %p224 = pneg %p153
      %p225 = pneg %p150
      %p226 = scmp.lt.s32.totalorder %s17, 1
      %s227 = scalar_select %p226, %s17, 1
      %s228 = smul.addr %s227, 8
      %s229 = smul.addr %s228, 8
      %s230 = scalar_lea.vmem %s5, %s229
      %p231 = scmp.lt.s32.totalorder %s17, 1
      %s232 = scalar_select %p231, %s17, 1
      %s233 = smul.addr %s232, 32
      %s234 = smul.addr %s233, 4
      %s235 = scalar_lea.vmem %s0, %s234
      %p236 = scmp.lt.s32.totalorder %s17, 1
      %s237 = scalar_select %p236, %s17, 1
      %s238 = smul.addr %s237, 8
      %s239 = smul.addr %s238, 8
      %s240 = scalar_lea.vmem %s1, %s239
      %p241 = scmp.lt.s32.totalorder %s17, 1
      %s242 = scalar_select %p241, %s17, 1
      %s243 = smul.addr %s242, 8
      %s244 = smul.addr %s243, 8
      %s245 = scalar_lea.vmem %s5, %s244
      %v247 = vld [vmem:[%s235] sm:$0xf]
      %v248 = vld [vmem:[%s235 + $0x4] sm:$0xf]
      %v249 = vld [vmem:[%s235 + $0x8] sm:$0xf]
      %v250 = vld [vmem:[%s235 + $0xc] sm:$0xf]
      %v251 = vld [vmem:[%s235 + $0x10] sm:$0xf]
      %v252 = vld [vmem:[%s235 + $0x14] sm:$0xf]
      %v253 = vld [vmem:[%s235 + $0x18] sm:$0xf]
      %v254 = vld [vmem:[%s235 + $0x1c] sm:$0xf]
      %v255 = vld [vmem:[%s235 + $0x20] sm:$0xf]
      %v256 = vld [vmem:[%s235 + $0x24] sm:$0xf]
      %v257 = vld [vmem:[%s235 + $0x28] sm:$0xf]
      %v258 = vld [vmem:[%s235 + $0x2c] sm:$0xf]
      %v259 = vld [vmem:[%s235 + $0x30] sm:$0xf]
      %v260 = vld [vmem:[%s235 + $0x34] sm:$0xf]
      %v261 = vld [vmem:[%s235 + $0x38] sm:$0xf]
      %v262 = vld [vmem:[%s235 + $0x3c] sm:$0xf]
      %v263 = vld [vmem:[%s235 + $0x40] sm:$0xf]
      %v264 = vld [vmem:[%s235 + $0x44] sm:$0xf]
      %v265 = vld [vmem:[%s235 + $0x48] sm:$0xf]
      %v266 = vld [vmem:[%s235 + $0x4c] sm:$0xf]
      %v267 = vld [vmem:[%s235 + $0x50] sm:$0xf]
      %v268 = vld [vmem:[%s235 + $0x54] sm:$0xf]
      %v269 = vld [vmem:[%s235 + $0x58] sm:$0xf]
      %v270 = vld [vmem:[%s235 + $0x5c] sm:$0xf]
      %v271 = vld [vmem:[%s235 + $0x60] sm:$0xf]
      %v272 = vld [vmem:[%s235 + $0x64] sm:$0xf]
      %v273 = vld [vmem:[%s235 + $0x68] sm:$0xf]
      %v274 = vld [vmem:[%s235 + $0x6c] sm:$0xf]
      %v275 = vld [vmem:[%s235 + $0x70] sm:$0xf]
      %v276 = vld [vmem:[%s235 + $0x74] sm:$0xf]
      %v277 = vld [vmem:[%s235 + $0x78] sm:$0xf]
      %v278 = vld [vmem:[%s235 + $0x7c] sm:$0xf]
      %v279 = vld [vmem:[%s2] sm:$0xf]
      %v280 = vld [vmem:[%s2 + $0x4] sm:$0xf]
      %v281 = vld [vmem:[%s2 + $0x8] sm:$0xf]
      %v282 = vld [vmem:[%s2 + $0xc] sm:$0xf]
      %v283 = vld [vmem:[%s3] sm:$0x1]
      %v285 = vperm.slane %v283, 0
      %v319 = vunpack.c.l.b16 %v247
      %v320 = vunpack.c.l.b16 %v248
      %v321 = vunpack.c.l.b16 %v249
      %v322 = vunpack.c.l.b16 %v250
      %v323 = vunpack.c.l.b16 %v251
      %v324 = vunpack.c.l.b16 %v252
      %v325 = vunpack.c.l.b16 %v253
      %v326 = vunpack.c.l.b16 %v254
      %v327 = vunpack.c.l.b16 %v255
      %v328 = vunpack.c.l.b16 %v256
      %v329 = vunpack.c.l.b16 %v257
      %v330 = vunpack.c.l.b16 %v258
      %v331 = vunpack.c.l.b16 %v259
      %v332 = vunpack.c.l.b16 %v260
      %v333 = vunpack.c.l.b16 %v261
      %v334 = vunpack.c.l.b16 %v262
      %v335 = vunpack.c.l.b16 %v263
      %v336 = vunpack.c.l.b16 %v264
      %v337 = vunpack.c.l.b16 %v265
      %v338 = vunpack.c.l.b16 %v266
      %v339 = vunpack.c.l.b16 %v267
      %v340 = vunpack.c.l.b16 %v268
      %v341 = vunpack.c.l.b16 %v269
      %v342 = vunpack.c.l.b16 %v270
      %v343 = vunpack.c.l.b16 %v271
      %v344 = vunpack.c.l.b16 %v272
      %v345 = vunpack.c.l.b16 %v273
      %v346 = vunpack.c.l.b16 %v274
      %v347 = vunpack.c.l.b16 %v275
      %v348 = vunpack.c.l.b16 %v276
      %v349 = vunpack.c.l.b16 %v277
      %v350 = vunpack.c.l.b16 %v278
      %v351 = vpack.c.b16 %v320, %v319
      %v352 = vpack.c.b16 %v322, %v321
      %v353 = vpack.c.b16 %v324, %v323
      %v354 = vpack.c.b16 %v326, %v325
      %v355 = vpack.c.b16 %v328, %v327
      %v356 = vpack.c.b16 %v330, %v329
      %v357 = vpack.c.b16 %v332, %v331
      %v358 = vpack.c.b16 %v334, %v333
      %v359 = vpack.c.b16 %v336, %v335
      %v360 = vpack.c.b16 %v338, %v337
      %v361 = vpack.c.b16 %v340, %v339
      %v362 = vpack.c.b16 %v342, %v341
      %v363 = vpack.c.b16 %v344, %v343
      %v364 = vpack.c.b16 %v346, %v345
      %v365 = vpack.c.b16 %v348, %v347
      %v366 = vpack.c.b16 %v350, %v349
      %v371 = vunpack.c.l.b16 %v279
      %v372 = vunpack.c.l.b16 %v280
      %v373 = vunpack.c.l.b16 %v281
      %v374 = vunpack.c.l.b16 %v282
      %v375 = vpack.c.b16 %v372, %v371
      %v376 = vpack.c.b16 %v374, %v373
      %vm379 = vcmask 261120
      %v381 = vsel %vm379, %v351, 0
      %v384 = vsel %vm379, %v352, 0
      %v387 = vsel %vm379, %v353, 0
      %v390 = vsel %vm379, %v354, 0
      %v393 = vsel %vm379, %v355, 0
      %v396 = vsel %vm379, %v356, 0
      %v399 = vsel %vm379, %v357, 0
      %v402 = vsel %vm379, %v358, 0
      %v405 = vsel %vm379, %v359, 0
      %v408 = vsel %vm379, %v360, 0
      %v411 = vsel %vm379, %v361, 0
      %v414 = vsel %vm379, %v362, 0
      %v417 = vsel %vm379, %v363, 0
      %v420 = vsel %vm379, %v364, 0
      %v423 = vsel %vm379, %v365, 0
      %v426 = vsel %vm379, %v366, 0
      %428 = vmatpush.bf16.msra.mxu0 0
      %429 = vmatpush.bf16.msra.mxu0 0
      %430 = vmatpush.bf16.msra.mxu0 0
      %431 = vmatpush.bf16.msra.mxu0 0
      %432 = vmatpush.bf16.msra.mxu0 0
      %433 = vmatpush.bf16.msra.mxu0 0
      %434 = vmatpush.bf16.msra.mxu0 %v376
      %435 = vmatpush.bf16.msra.mxu0 %v375
      %436 = vmatmul.bf16.gmra.mxu0 %v381
      %v437 = vpop.f32.mrf.mxu0
      %v438 = vadd.f32 %v285, %v437
      %v439 = vpop.f32.mrf.mxu0
      %v440 = vadd.f32 %v285, %v439
      %441 = vmatmul.bf16.gmra.mxu0 %v384
      %v442 = vpop.f32.mrf.mxu0
      %v443 = vadd.f32 %v285, %v442
      %v444 = vpop.f32.mrf.mxu0
      %v445 = vadd.f32 %v285, %v444
      %446 = vmatmul.bf16.gmra.mxu0 %v387
      %v447 = vpop.f32.mrf.mxu0
      %v448 = vadd.f32 %v285, %v447
      %v449 = vpop.f32.mrf.mxu0
      %v450 = vadd.f32 %v285, %v449
      %451 = vmatmul.bf16.gmra.mxu0 %v390
      %v452 = vpop.f32.mrf.mxu0
      %v453 = vadd.f32 %v285, %v452
      %v454 = vpop.f32.mrf.mxu0
      %v455 = vadd.f32 %v285, %v454
      %456 = vmatmul.bf16.gmra.mxu0 %v393
      %v457 = vpop.f32.mrf.mxu0
      %v458 = vadd.f32 %v285, %v457
      %v459 = vpop.f32.mrf.mxu0
      %v460 = vadd.f32 %v285, %v459
      %461 = vmatmul.bf16.gmra.mxu0 %v396
      %v462 = vpop.f32.mrf.mxu0
      %v463 = vadd.f32 %v285, %v462
      %v464 = vpop.f32.mrf.mxu0
      %v465 = vadd.f32 %v285, %v464
      %466 = vmatmul.bf16.gmra.mxu0 %v399
      %v467 = vpop.f32.mrf.mxu0
      %v468 = vadd.f32 %v285, %v467
      %v469 = vpop.f32.mrf.mxu0
      %v470 = vadd.f32 %v285, %v469
      %471 = vmatmul.bf16.gmra.mxu0 %v402
      %v472 = vpop.f32.mrf.mxu0
      %v473 = vadd.f32 %v285, %v472
      %v474 = vpop.f32.mrf.mxu0
      %v475 = vadd.f32 %v285, %v474
      %476 = vmatmul.bf16.gmra.mxu0 %v405
      %v477 = vpop.f32.mrf.mxu0
      %v478 = vadd.f32 %v285, %v477
      %v479 = vpop.f32.mrf.mxu0
      %v480 = vadd.f32 %v285, %v479
      %481 = vmatmul.bf16.gmra.mxu0 %v408
      %v482 = vpop.f32.mrf.mxu0
      %v483 = vadd.f32 %v285, %v482
      %v484 = vpop.f32.mrf.mxu0
      %v485 = vadd.f32 %v285, %v484
      %486 = vmatmul.bf16.gmra.mxu0 %v411
      %v487 = vpop.f32.mrf.mxu0
      %v488 = vadd.f32 %v285, %v487
      %v489 = vpop.f32.mrf.mxu0
      %v490 = vadd.f32 %v285, %v489
      %491 = vmatmul.bf16.gmra.mxu0 %v414
      %v492 = vpop.f32.mrf.mxu0
      %v493 = vadd.f32 %v285, %v492
      %v494 = vpop.f32.mrf.mxu0
      %v495 = vadd.f32 %v285, %v494
      %496 = vmatmul.bf16.gmra.mxu0 %v417
      %v497 = vpop.f32.mrf.mxu0
      %v498 = vadd.f32 %v285, %v497
      %v499 = vpop.f32.mrf.mxu0
      %v500 = vadd.f32 %v285, %v499
      %501 = vmatmul.bf16.gmra.mxu0 %v420
      %v502 = vpop.f32.mrf.mxu0
      %v503 = vadd.f32 %v285, %v502
      %v504 = vpop.f32.mrf.mxu0
      %v505 = vadd.f32 %v285, %v504
      %506 = vmatmul.bf16.gmra.mxu0 %v423
      %v507 = vpop.f32.mrf.mxu0
      %v508 = vadd.f32 %v285, %v507
      %v509 = vpop.f32.mrf.mxu0
      %v510 = vadd.f32 %v285, %v509
      %511 = vmatmul.bf16.gmra.mxu0 %v426
      %v512 = vpop.f32.mrf.mxu0
      %v513 = vadd.f32 %v285, %v512
      %v514 = vpop.f32.mrf.mxu0
      %v515 = vadd.f32 %v285, %v514
      %516 = vdwg.mxu0
      %v517 = vrot.slane %v448, 4
      %vm518 = vcmask 1047556
      %v519 = vsel %vm518, %v517, %v438
      %v520 = vrot.slane %v438, 4
      %v521 = vsel %vm518, %v448, %v520
      %v523 = vunpack.c.l.s4 1983009808
      %v524 = vunpack.c.0.s8 %v523
      %v525 = vperm.slane %v519, %v524
      %v527 = vunpack.c.l.s4 1983009808
      %v528 = vunpack.c.0.s8 %v527
      %v529 = vperm.slane %v521, %v528
      %v530 = vrot.slane %v453, 4
      %v531 = vsel %vm518, %v530, %v443
      %v532 = vrot.slane %v443, 4
      %v533 = vsel %vm518, %v453, %v532
      %v535 = vunpack.c.l.s4 1983009808
      %v536 = vunpack.c.0.s8 %v535
      %v537 = vperm.slane %v531, %v536
      %v539 = vunpack.c.l.s4 1983009808
      %v540 = vunpack.c.0.s8 %v539
      %v541 = vperm.slane %v533, %v540
      %v542 = vrot.slane %v468, 4
      %v543 = vsel %vm518, %v542, %v458
      %v544 = vrot.slane %v458, 4
      %v545 = vsel %vm518, %v468, %v544
      %v547 = vunpack.c.l.s4 1983009808
      %v548 = vunpack.c.0.s8 %v547
      %v549 = vperm.slane %v543, %v548
      %v551 = vunpack.c.l.s4 1983009808
      %v552 = vunpack.c.0.s8 %v551
      %v553 = vperm.slane %v545, %v552
      %v554 = vrot.slane %v473, 4
      %v555 = vsel %vm518, %v554, %v463
      %v556 = vrot.slane %v463, 4
      %v557 = vsel %vm518, %v473, %v556
      %v559 = vunpack.c.l.s4 1983009808
      %v560 = vunpack.c.0.s8 %v559
      %v561 = vperm.slane %v555, %v560
      %v563 = vunpack.c.l.s4 1983009808
      %v564 = vunpack.c.0.s8 %v563
      %v565 = vperm.slane %v557, %v564
      %v566 = vrot.slane %v537, 4
      %v567 = vsel %vm518, %v566, %v525
      %v568 = vrot.slane %v525, 4
      %v569 = vsel %vm518, %v537, %v568
      %v571 = vunpack.c.l.s4 1934713408
      %v572 = vunpack.c.0.s8 %v571
      %v573 = vperm.slane %v567, %v572
      %v575 = vunpack.c.l.s4 1934713408
      %v576 = vunpack.c.0.s8 %v575
      %v577 = vperm.slane %v569, %v576
      %v578 = vrot.slane %v541, 4
      %v579 = vsel %vm518, %v578, %v529
      %v580 = vrot.slane %v529, 4
      %v581 = vsel %vm518, %v541, %v580
      %v583 = vunpack.c.l.s4 1934713408
      %v584 = vunpack.c.0.s8 %v583
      %v585 = vperm.slane %v579, %v584
      %v587 = vunpack.c.l.s4 1934713408
      %v588 = vunpack.c.0.s8 %v587
      %v589 = vperm.slane %v581, %v588
      %v590 = vrot.slane %v561, 4
      %v591 = vsel %vm518, %v590, %v549
      %v592 = vrot.slane %v549, 4
      %v593 = vsel %vm518, %v561, %v592
      %v595 = vunpack.c.l.s4 1934713408
      %v596 = vunpack.c.0.s8 %v595
      %v597 = vperm.slane %v591, %v596
      %v599 = vunpack.c.l.s4 1934713408
      %v600 = vunpack.c.0.s8 %v599
      %v601 = vperm.slane %v593, %v600
      %v602 = vrot.slane %v565, 4
      %v603 = vsel %vm518, %v602, %v553
      %v604 = vrot.slane %v553, 4
      %v605 = vsel %vm518, %v565, %v604
      %v607 = vunpack.c.l.s4 1934713408
      %v608 = vunpack.c.0.s8 %v607
      %v609 = vperm.slane %v603, %v608
      %v611 = vunpack.c.l.s4 1934713408
      %v612 = vunpack.c.0.s8 %v611
      %v613 = vperm.slane %v605, %v612
      %v614 = vrot.slane %v597, 4
      %v615 = vsel %vm518, %v614, %v573
      %v616 = vrot.slane %v573, 4
      %v617 = vsel %vm518, %v597, %v616
      %v618 = vrot.slane %v601, 4
      %v619 = vsel %vm518, %v618, %v577
      %v620 = vrot.slane %v577, 4
      %v621 = vsel %vm518, %v601, %v620
      %v622 = vrot.slane %v609, 4
      %v623 = vsel %vm518, %v622, %v585
      %v624 = vrot.slane %v585, 4
      %v625 = vsel %vm518, %v609, %v624
      %v626 = vrot.slane %v613, 4
      %v627 = vsel %vm518, %v626, %v589
      %v628 = vrot.slane %v589, 4
      %v629 = vsel %vm518, %v613, %v628
      %v630 = vrot.slane %v488, 4
      %v631 = vsel %vm518, %v630, %v478
      %v632 = vrot.slane %v478, 4
      %v633 = vsel %vm518, %v488, %v632
      %v635 = vunpack.c.l.s4 1983009808
      %v636 = vunpack.c.0.s8 %v635
      %v637 = vperm.slane %v631, %v636
      %v639 = vunpack.c.l.s4 1983009808
      %v640 = vunpack.c.0.s8 %v639
      %v641 = vperm.slane %v633, %v640
      %v642 = vrot.slane %v493, 4
      %v643 = vsel %vm518, %v642, %v483
      %v644 = vrot.slane %v483, 4
      %v645 = vsel %vm518, %v493, %v644
      %v647 = vunpack.c.l.s4 1983009808
      %v648 = vunpack.c.0.s8 %v647
      %v649 = vperm.slane %v643, %v648
      %v651 = vunpack.c.l.s4 1983009808
      %v652 = vunpack.c.0.s8 %v651
      %v653 = vperm.slane %v645, %v652
      %v654 = vrot.slane %v508, 4
      %v655 = vsel %vm518, %v654, %v498
      %v656 = vrot.slane %v498, 4
      %v657 = vsel %vm518, %v508, %v656
      %v659 = vunpack.c.l.s4 1983009808
      %v660 = vunpack.c.0.s8 %v659
      %v661 = vperm.slane %v655, %v660
      %v663 = vunpack.c.l.s4 1983009808
      %v664 = vunpack.c.0.s8 %v663
      %v665 = vperm.slane %v657, %v664
      %v666 = vrot.slane %v513, 4
      %v667 = vsel %vm518, %v666, %v503
      %v668 = vrot.slane %v503, 4
      %v669 = vsel %vm518, %v513, %v668
      %v671 = vunpack.c.l.s4 1983009808
      %v672 = vunpack.c.0.s8 %v671
      %v673 = vperm.slane %v667, %v672
      %v675 = vunpack.c.l.s4 1983009808
      %v676 = vunpack.c.0.s8 %v675
      %v677 = vperm.slane %v669, %v676
      %v678 = vrot.slane %v649, 4
      %v679 = vsel %vm518, %v678, %v637
      %v680 = vrot.slane %v637, 4
      %v681 = vsel %vm518, %v649, %v680
      %v683 = vunpack.c.l.s4 1934713408
      %v684 = vunpack.c.0.s8 %v683
      %v685 = vperm.slane %v679, %v684
      %v687 = vunpack.c.l.s4 1934713408
      %v688 = vunpack.c.0.s8 %v687
      %v689 = vperm.slane %v681, %v688
      %v690 = vrot.slane %v653, 4
      %v691 = vsel %vm518, %v690, %v641
      %v692 = vrot.slane %v641, 4
      %v693 = vsel %vm518, %v653, %v692
      %v695 = vunpack.c.l.s4 1934713408
      %v696 = vunpack.c.0.s8 %v695
      %v697 = vperm.slane %v691, %v696
      %v699 = vunpack.c.l.s4 1934713408
      %v700 = vunpack.c.0.s8 %v699
      %v701 = vperm.slane %v693, %v700
      %v702 = vrot.slane %v673, 4
      %v703 = vsel %vm518, %v702, %v661
      %v704 = vrot.slane %v661, 4
      %v705 = vsel %vm518, %v673, %v704
      %v707 = vunpack.c.l.s4 1934713408
      %v708 = vunpack.c.0.s8 %v707
      %v709 = vperm.slane %v703, %v708
      %v711 = vunpack.c.l.s4 1934713408
      %v712 = vunpack.c.0.s8 %v711
      %v713 = vperm.slane %v705, %v712
      %v714 = vrot.slane %v677, 4
      %v715 = vsel %vm518, %v714, %v665
      %v716 = vrot.slane %v665, 4
      %v717 = vsel %vm518, %v677, %v716
      %v719 = vunpack.c.l.s4 1934713408
      %v720 = vunpack.c.0.s8 %v719
      %v721 = vperm.slane %v715, %v720
      %v723 = vunpack.c.l.s4 1934713408
      %v724 = vunpack.c.0.s8 %v723
      %v725 = vperm.slane %v717, %v724
      %v726 = vrot.slane %v709, 4
      %v727 = vsel %vm518, %v726, %v685
      %v728 = vrot.slane %v685, 4
      %v729 = vsel %vm518, %v709, %v728
      %v730 = vrot.slane %v713, 4
      %v731 = vsel %vm518, %v730, %v689
      %v732 = vrot.slane %v689, 4
      %v733 = vsel %vm518, %v713, %v732
      %v734 = vrot.slane %v721, 4
      %v735 = vsel %vm518, %v734, %v697
      %v736 = vrot.slane %v697, 4
      %v737 = vsel %vm518, %v721, %v736
      %v738 = vrot.slane %v725, 4
      %v739 = vsel %vm518, %v738, %v701
      %v740 = vrot.slane %v701, 4
      %v741 = vsel %vm518, %v725, %v740
      %v742 = vrot.slane %v450, 4
      %v743 = vsel %vm518, %v742, %v440
      %v744 = vrot.slane %v440, 4
      %v745 = vsel %vm518, %v450, %v744
      %v747 = vunpack.c.l.s4 1983009808
      %v748 = vunpack.c.0.s8 %v747
      %v749 = vperm.slane %v743, %v748
      %v751 = vunpack.c.l.s4 1983009808
      %v752 = vunpack.c.0.s8 %v751
      %v753 = vperm.slane %v745, %v752
      %v754 = vrot.slane %v455, 4
      %v755 = vsel %vm518, %v754, %v445
      %v756 = vrot.slane %v445, 4
      %v757 = vsel %vm518, %v455, %v756
      %v759 = vunpack.c.l.s4 1983009808
      %v760 = vunpack.c.0.s8 %v759
      %v761 = vperm.slane %v755, %v760
      %v763 = vunpack.c.l.s4 1983009808
      %v764 = vunpack.c.0.s8 %v763
      %v765 = vperm.slane %v757, %v764
      %v766 = vrot.slane %v470, 4
      %v767 = vsel %vm518, %v766, %v460
      %v768 = vrot.slane %v460, 4
      %v769 = vsel %vm518, %v470, %v768
      %v771 = vunpack.c.l.s4 1983009808
      %v772 = vunpack.c.0.s8 %v771
      %v773 = vperm.slane %v767, %v772
      %v775 = vunpack.c.l.s4 1983009808
      %v776 = vunpack.c.0.s8 %v775
      %v777 = vperm.slane %v769, %v776
      %v778 = vrot.slane %v475, 4
      %v779 = vsel %vm518, %v778, %v465
      %v780 = vrot.slane %v465, 4
      %v781 = vsel %vm518, %v475, %v780
      %v783 = vunpack.c.l.s4 1983009808
      %v784 = vunpack.c.0.s8 %v783
      %v785 = vperm.slane %v779, %v784
      %v787 = vunpack.c.l.s4 1983009808
      %v788 = vunpack.c.0.s8 %v787
      %v789 = vperm.slane %v781, %v788
      %v790 = vrot.slane %v761, 4
      %v791 = vsel %vm518, %v790, %v749
      %v792 = vrot.slane %v749, 4
      %v793 = vsel %vm518, %v761, %v792
      %v795 = vunpack.c.l.s4 1934713408
      %v796 = vunpack.c.0.s8 %v795
      %v797 = vperm.slane %v791, %v796
      %v799 = vunpack.c.l.s4 1934713408
      %v800 = vunpack.c.0.s8 %v799
      %v801 = vperm.slane %v793, %v800
      %v802 = vrot.slane %v765, 4
      %v803 = vsel %vm518, %v802, %v753
      %v804 = vrot.slane %v753, 4
      %v805 = vsel %vm518, %v765, %v804
      %v807 = vunpack.c.l.s4 1934713408
      %v808 = vunpack.c.0.s8 %v807
      %v809 = vperm.slane %v803, %v808
      %v811 = vunpack.c.l.s4 1934713408
      %v812 = vunpack.c.0.s8 %v811
      %v813 = vperm.slane %v805, %v812
      %v814 = vrot.slane %v785, 4
      %v815 = vsel %vm518, %v814, %v773
      %v816 = vrot.slane %v773, 4
      %v817 = vsel %vm518, %v785, %v816
      %v819 = vunpack.c.l.s4 1934713408
      %v820 = vunpack.c.0.s8 %v819
      %v821 = vperm.slane %v815, %v820
      %v823 = vunpack.c.l.s4 1934713408
      %v824 = vunpack.c.0.s8 %v823
      %v825 = vperm.slane %v817, %v824
      %v826 = vrot.slane %v789, 4
      %v827 = vsel %vm518, %v826, %v777
      %v828 = vrot.slane %v777, 4
      %v829 = vsel %vm518, %v789, %v828
      %v831 = vunpack.c.l.s4 1934713408
      %v832 = vunpack.c.0.s8 %v831
      %v833 = vperm.slane %v827, %v832
      %v835 = vunpack.c.l.s4 1934713408
      %v836 = vunpack.c.0.s8 %v835
      %v837 = vperm.slane %v829, %v836
      %v838 = vrot.slane %v821, 4
      %v839 = vsel %vm518, %v838, %v797
      %v840 = vrot.slane %v797, 4
      %v841 = vsel %vm518, %v821, %v840
      %v842 = vrot.slane %v825, 4
      %v843 = vsel %vm518, %v842, %v801
      %v844 = vrot.slane %v801, 4
      %v845 = vsel %vm518, %v825, %v844
      %v846 = vrot.slane %v833, 4
      %v847 = vsel %vm518, %v846, %v809
      %v848 = vrot.slane %v809, 4
      %v849 = vsel %vm518, %v833, %v848
      %v850 = vrot.slane %v837, 4
      %v851 = vsel %vm518, %v850, %v813
      %v852 = vrot.slane %v813, 4
      %v853 = vsel %vm518, %v837, %v852
      %v854 = vrot.slane %v490, 4
      %v855 = vsel %vm518, %v854, %v480
      %v856 = vrot.slane %v480, 4
      %v857 = vsel %vm518, %v490, %v856
      %v859 = vunpack.c.l.s4 1983009808
      %v860 = vunpack.c.0.s8 %v859
      %v861 = vperm.slane %v855, %v860
      %v863 = vunpack.c.l.s4 1983009808
      %v864 = vunpack.c.0.s8 %v863
      %v865 = vperm.slane %v857, %v864
      %v866 = vrot.slane %v495, 4
      %v867 = vsel %vm518, %v866, %v485
      %v868 = vrot.slane %v485, 4
      %v869 = vsel %vm518, %v495, %v868
      %v871 = vunpack.c.l.s4 1983009808
      %v872 = vunpack.c.0.s8 %v871
      %v873 = vperm.slane %v867, %v872
      %v875 = vunpack.c.l.s4 1983009808
      %v876 = vunpack.c.0.s8 %v875
      %v877 = vperm.slane %v869, %v876
      %v878 = vrot.slane %v510, 4
      %v879 = vsel %vm518, %v878, %v500
      %v880 = vrot.slane %v500, 4
      %v881 = vsel %vm518, %v510, %v880
      %v883 = vunpack.c.l.s4 1983009808
      %v884 = vunpack.c.0.s8 %v883
      %v885 = vperm.slane %v879, %v884
      %v887 = vunpack.c.l.s4 1983009808
      %v888 = vunpack.c.0.s8 %v887
      %v889 = vperm.slane %v881, %v888
      %v890 = vrot.slane %v515, 4
      %v891 = vsel %vm518, %v890, %v505
      %v892 = vrot.slane %v505, 4
      %v893 = vsel %vm518, %v515, %v892
      %v895 = vunpack.c.l.s4 1983009808
      %v896 = vunpack.c.0.s8 %v895
      %v897 = vperm.slane %v891, %v896
      %v899 = vunpack.c.l.s4 1983009808
      %v900 = vunpack.c.0.s8 %v899
      %v901 = vperm.slane %v893, %v900
      %v902 = vrot.slane %v873, 4
      %v903 = vsel %vm518, %v902, %v861
      %v904 = vrot.slane %v861, 4
      %v905 = vsel %vm518, %v873, %v904
      %v907 = vunpack.c.l.s4 1934713408
      %v908 = vunpack.c.0.s8 %v907
      %v909 = vperm.slane %v903, %v908
      %v911 = vunpack.c.l.s4 1934713408
      %v912 = vunpack.c.0.s8 %v911
      %v913 = vperm.slane %v905, %v912
      %v914 = vrot.slane %v877, 4
      %v915 = vsel %vm518, %v914, %v865
      %v916 = vrot.slane %v865, 4
      %v917 = vsel %vm518, %v877, %v916
      %v919 = vunpack.c.l.s4 1934713408
      %v920 = vunpack.c.0.s8 %v919
      %v921 = vperm.slane %v915, %v920
      %v923 = vunpack.c.l.s4 1934713408
      %v924 = vunpack.c.0.s8 %v923
      %v925 = vperm.slane %v917, %v924
      %v926 = vrot.slane %v897, 4
      %v927 = vsel %vm518, %v926, %v885
      %v928 = vrot.slane %v885, 4
      %v929 = vsel %vm518, %v897, %v928
      %v931 = vunpack.c.l.s4 1934713408
      %v932 = vunpack.c.0.s8 %v931
      %v933 = vperm.slane %v927, %v932
      %v935 = vunpack.c.l.s4 1934713408
      %v936 = vunpack.c.0.s8 %v935
      %v937 = vperm.slane %v929, %v936
      %v938 = vrot.slane %v901, 4
      %v939 = vsel %vm518, %v938, %v889
      %v940 = vrot.slane %v889, 4
      %v941 = vsel %vm518, %v901, %v940
      %v943 = vunpack.c.l.s4 1934713408
      %v944 = vunpack.c.0.s8 %v943
      %v945 = vperm.slane %v939, %v944
      %v947 = vunpack.c.l.s4 1934713408
      %v948 = vunpack.c.0.s8 %v947
      %v949 = vperm.slane %v941, %v948
      %v950 = vrot.slane %v933, 4
      %v951 = vsel %vm518, %v950, %v909
      %v952 = vrot.slane %v909, 4
      %v953 = vsel %vm518, %v933, %v952
      %v954 = vrot.slane %v937, 4
      %v955 = vsel %vm518, %v954, %v913
      %v956 = vrot.slane %v913, 4
      %v957 = vsel %vm518, %v937, %v956
      %v958 = vrot.slane %v945, 4
      %v959 = vsel %vm518, %v958, %v921
      %v960 = vrot.slane %v921, 4
      %v961 = vsel %vm518, %v945, %v960
      %v962 = vrot.slane %v949, 4
      %v963 = vsel %vm518, %v962, %v925
      %v964 = vrot.slane %v925, 4
      %v965 = vsel %vm518, %v949, %v964
      %998 = vrot.lane.b32.xlu0 %v438, 124
      %v999 = vpop.permute.xlu0 %998
      %1000 = vrot.lane.b32.xlu0 %v440, 124
      %v1001 = vpop.permute.xlu0 %1000
      %1002 = vrot.lane.b32.xlu0 %v443, 124
      %v1003 = vpop.permute.xlu0 %1002
      %1004 = vrot.lane.b32.xlu0 %v445, 124
      %v1005 = vpop.permute.xlu0 %1004
      %1006 = vrot.lane.b32.xlu0 %v448, 124
      %v1007 = vpop.permute.xlu0 %1006
      %1008 = vrot.lane.b32.xlu0 %v450, 124
      %v1009 = vpop.permute.xlu0 %1008
      %1010 = vrot.lane.b32.xlu0 %v453, 124
      %v1011 = vpop.permute.xlu0 %1010
      %1012 = vrot.lane.b32.xlu0 %v455, 124
      %v1013 = vpop.permute.xlu0 %1012
      %1014 = vrot.lane.b32.xlu0 %v458, 124
      %v1015 = vpop.permute.xlu0 %1014
      %1016 = vrot.lane.b32.xlu0 %v460, 124
      %v1017 = vpop.permute.xlu0 %1016
      %1018 = vrot.lane.b32.xlu0 %v463, 124
      %v1019 = vpop.permute.xlu0 %1018
      %1020 = vrot.lane.b32.xlu0 %v465, 124
      %v1021 = vpop.permute.xlu0 %1020
      %1022 = vrot.lane.b32.xlu0 %v468, 124
      %v1023 = vpop.permute.xlu0 %1022
      %1024 = vrot.lane.b32.xlu0 %v470, 124
      %v1025 = vpop.permute.xlu0 %1024
      %1026 = vrot.lane.b32.xlu0 %v473, 124
      %v1027 = vpop.permute.xlu0 %1026
      %1028 = vrot.lane.b32.xlu0 %v475, 124
      %v1029 = vpop.permute.xlu0 %1028
      %1030 = vrot.lane.b32.xlu0 %v478, 124
      %v1031 = vpop.permute.xlu0 %1030
      %1032 = vrot.lane.b32.xlu0 %v480, 124
      %v1033 = vpop.permute.xlu0 %1032
      %1034 = vrot.lane.b32.xlu0 %v483, 124
      %v1035 = vpop.permute.xlu0 %1034
      %1036 = vrot.lane.b32.xlu0 %v485, 124
      %v1037 = vpop.permute.xlu0 %1036
      %1038 = vrot.lane.b32.xlu0 %v488, 124
      %v1039 = vpop.permute.xlu0 %1038
      %1040 = vrot.lane.b32.xlu0 %v490, 124
      %v1041 = vpop.permute.xlu0 %1040
      %1042 = vrot.lane.b32.xlu0 %v493, 124
      %v1043 = vpop.permute.xlu0 %1042
      %1044 = vrot.lane.b32.xlu0 %v495, 124
      %v1045 = vpop.permute.xlu0 %1044
      %1046 = vrot.lane.b32.xlu0 %v498, 124
      %v1047 = vpop.permute.xlu0 %1046
      %1048 = vrot.lane.b32.xlu0 %v500, 124
      %v1049 = vpop.permute.xlu0 %1048
      %1050 = vrot.lane.b32.xlu0 %v503, 124
      %v1051 = vpop.permute.xlu0 %1050
      %1052 = vrot.lane.b32.xlu0 %v505, 124
      %v1053 = vpop.permute.xlu0 %1052
      %1054 = vrot.lane.b32.xlu0 %v508, 124
      %v1055 = vpop.permute.xlu0 %1054
      %1056 = vrot.lane.b32.xlu0 %v510, 124
      %v1057 = vpop.permute.xlu0 %1056
      %1058 = vrot.lane.b32.xlu0 %v513, 124
      %v1059 = vpop.permute.xlu0 %1058
      %1060 = vrot.lane.b32.xlu0 %v515, 124
      %v1061 = vpop.permute.xlu0 %1060
      %v1094 = vrot.slane %v1007, 4
      %v1095 = vsel %vm518, %v1094, %v999
      %v1096 = vrot.slane %v999, 4
      %v1097 = vsel %vm518, %v1007, %v1096
      %v1099 = vunpack.c.l.s4 1983009808
      %v1100 = vunpack.c.0.s8 %v1099
      %v1101 = vperm.slane %v1095, %v1100
      %v1103 = vunpack.c.l.s4 1983009808
      %v1104 = vunpack.c.0.s8 %v1103
      %v1105 = vperm.slane %v1097, %v1104
      %v1106 = vrot.slane %v1011, 4
      %v1107 = vsel %vm518, %v1106, %v1003
      %v1108 = vrot.slane %v1003, 4
      %v1109 = vsel %vm518, %v1011, %v1108
      %v1111 = vunpack.c.l.s4 1983009808
      %v1112 = vunpack.c.0.s8 %v1111
      %v1113 = vperm.slane %v1107, %v1112
      %v1115 = vunpack.c.l.s4 1983009808
      %v1116 = vunpack.c.0.s8 %v1115
      %v1117 = vperm.slane %v1109, %v1116
      %v1118 = vrot.slane %v1023, 4
      %v1119 = vsel %vm518, %v1118, %v1015
      %v1120 = vrot.slane %v1015, 4
      %v1121 = vsel %vm518, %v1023, %v1120
      %v1123 = vunpack.c.l.s4 1983009808
      %v1124 = vunpack.c.0.s8 %v1123
      %v1125 = vperm.slane %v1119, %v1124
      %v1127 = vunpack.c.l.s4 1983009808
      %v1128 = vunpack.c.0.s8 %v1127
      %v1129 = vperm.slane %v1121, %v1128
      %v1130 = vrot.slane %v1027, 4
      %v1131 = vsel %vm518, %v1130, %v1019
      %v1132 = vrot.slane %v1019, 4
      %v1133 = vsel %vm518, %v1027, %v1132
      %v1135 = vunpack.c.l.s4 1983009808
      %v1136 = vunpack.c.0.s8 %v1135
      %v1137 = vperm.slane %v1131, %v1136
      %v1139 = vunpack.c.l.s4 1983009808
      %v1140 = vunpack.c.0.s8 %v1139
      %v1141 = vperm.slane %v1133, %v1140
      %v1142 = vrot.slane %v1113, 4
      %v1143 = vsel %vm518, %v1142, %v1101
      %v1144 = vrot.slane %v1101, 4
      %v1145 = vsel %vm518, %v1113, %v1144
      %v1147 = vunpack.c.l.s4 1934713408
      %v1148 = vunpack.c.0.s8 %v1147
      %v1149 = vperm.slane %v1143, %v1148
      %v1151 = vunpack.c.l.s4 1934713408
      %v1152 = vunpack.c.0.s8 %v1151
      %v1153 = vperm.slane %v1145, %v1152
      %v1154 = vrot.slane %v1117, 4
      %v1155 = vsel %vm518, %v1154, %v1105
      %v1156 = vrot.slane %v1105, 4
      %v1157 = vsel %vm518, %v1117, %v1156
      %v1159 = vunpack.c.l.s4 1934713408
      %v1160 = vunpack.c.0.s8 %v1159
      %v1161 = vperm.slane %v1155, %v1160
      %v1163 = vunpack.c.l.s4 1934713408
      %v1164 = vunpack.c.0.s8 %v1163
      %v1165 = vperm.slane %v1157, %v1164
      %v1166 = vrot.slane %v1137, 4
      %v1167 = vsel %vm518, %v1166, %v1125
      %v1168 = vrot.slane %v1125, 4
      %v1169 = vsel %vm518, %v1137, %v1168
      %v1171 = vunpack.c.l.s4 1934713408
      %v1172 = vunpack.c.0.s8 %v1171
      %v1173 = vperm.slane %v1167, %v1172
      %v1175 = vunpack.c.l.s4 1934713408
      %v1176 = vunpack.c.0.s8 %v1175
      %v1177 = vperm.slane %v1169, %v1176
      %v1178 = vrot.slane %v1141, 4
      %v1179 = vsel %vm518, %v1178, %v1129
      %v1180 = vrot.slane %v1129, 4
      %v1181 = vsel %vm518, %v1141, %v1180
      %v1183 = vunpack.c.l.s4 1934713408
      %v1184 = vunpack.c.0.s8 %v1183
      %v1185 = vperm.slane %v1179, %v1184
      %v1187 = vunpack.c.l.s4 1934713408
      %v1188 = vunpack.c.0.s8 %v1187
      %v1189 = vperm.slane %v1181, %v1188
      %v1190 = vrot.slane %v1173, 4
      %v1191 = vsel %vm518, %v1190, %v1149
      %v1192 = vrot.slane %v1149, 4
      %v1193 = vsel %vm518, %v1173, %v1192
      %v1194 = vrot.slane %v1177, 4
      %v1195 = vsel %vm518, %v1194, %v1153
      %v1196 = vrot.slane %v1153, 4
      %v1197 = vsel %vm518, %v1177, %v1196
      %v1198 = vrot.slane %v1185, 4
      %v1199 = vsel %vm518, %v1198, %v1161
      %v1200 = vrot.slane %v1161, 4
      %v1201 = vsel %vm518, %v1185, %v1200
      %v1202 = vrot.slane %v1189, 4
      %v1203 = vsel %vm518, %v1202, %v1165
      %v1204 = vrot.slane %v1165, 4
      %v1205 = vsel %vm518, %v1189, %v1204
      %v1206 = vrot.slane %v1039, 4
      %v1207 = vsel %vm518, %v1206, %v1031
      %v1208 = vrot.slane %v1031, 4
      %v1209 = vsel %vm518, %v1039, %v1208
      %v1211 = vunpack.c.l.s4 1983009808
      %v1212 = vunpack.c.0.s8 %v1211
      %v1213 = vperm.slane %v1207, %v1212
      %v1215 = vunpack.c.l.s4 1983009808
      %v1216 = vunpack.c.0.s8 %v1215
      %v1217 = vperm.slane %v1209, %v1216
      %v1218 = vrot.slane %v1043, 4
      %v1219 = vsel %vm518, %v1218, %v1035
      %v1220 = vrot.slane %v1035, 4
      %v1221 = vsel %vm518, %v1043, %v1220
      %v1223 = vunpack.c.l.s4 1983009808
      %v1224 = vunpack.c.0.s8 %v1223
      %v1225 = vperm.slane %v1219, %v1224
      %v1227 = vunpack.c.l.s4 1983009808
      %v1228 = vunpack.c.0.s8 %v1227
      %v1229 = vperm.slane %v1221, %v1228
      %v1230 = vrot.slane %v1055, 4
      %v1231 = vsel %vm518, %v1230, %v1047
      %v1232 = vrot.slane %v1047, 4
      %v1233 = vsel %vm518, %v1055, %v1232
      %v1235 = vunpack.c.l.s4 1983009808
      %v1236 = vunpack.c.0.s8 %v1235
      %v1237 = vperm.slane %v1231, %v1236
      %v1239 = vunpack.c.l.s4 1983009808
      %v1240 = vunpack.c.0.s8 %v1239
      %v1241 = vperm.slane %v1233, %v1240
      %v1242 = vrot.slane %v1059, 4
      %v1243 = vsel %vm518, %v1242, %v1051
      %v1244 = vrot.slane %v1051, 4
      %v1245 = vsel %vm518, %v1059, %v1244
      %v1247 = vunpack.c.l.s4 1983009808
      %v1248 = vunpack.c.0.s8 %v1247
      %v1249 = vperm.slane %v1243, %v1248
      %v1251 = vunpack.c.l.s4 1983009808
      %v1252 = vunpack.c.0.s8 %v1251
      %v1253 = vperm.slane %v1245, %v1252
      %v1254 = vrot.slane %v1225, 4
      %v1255 = vsel %vm518, %v1254, %v1213
      %v1256 = vrot.slane %v1213, 4
      %v1257 = vsel %vm518, %v1225, %v1256
      %v1259 = vunpack.c.l.s4 1934713408
      %v1260 = vunpack.c.0.s8 %v1259
      %v1261 = vperm.slane %v1255, %v1260
      %v1263 = vunpack.c.l.s4 1934713408
      %v1264 = vunpack.c.0.s8 %v1263
      %v1265 = vperm.slane %v1257, %v1264
      %v1266 = vrot.slane %v1229, 4
      %v1267 = vsel %vm518, %v1266, %v1217
      %v1268 = vrot.slane %v1217, 4
      %v1269 = vsel %vm518, %v1229, %v1268
      %v1271 = vunpack.c.l.s4 1934713408
      %v1272 = vunpack.c.0.s8 %v1271
      %v1273 = vperm.slane %v1267, %v1272
      %v1275 = vunpack.c.l.s4 1934713408
      %v1276 = vunpack.c.0.s8 %v1275
      %v1277 = vperm.slane %v1269, %v1276
      %v1278 = vrot.slane %v1249, 4
      %v1279 = vsel %vm518, %v1278, %v1237
      %v1280 = vrot.slane %v1237, 4
      %v1281 = vsel %vm518, %v1249, %v1280
      %v1283 = vunpack.c.l.s4 1934713408
      %v1284 = vunpack.c.0.s8 %v1283
      %v1285 = vperm.slane %v1279, %v1284
      %v1287 = vunpack.c.l.s4 1934713408
      %v1288 = vunpack.c.0.s8 %v1287
      %v1289 = vperm.slane %v1281, %v1288
      %v1290 = vrot.slane %v1253, 4
      %v1291 = vsel %vm518, %v1290, %v1241
      %v1292 = vrot.slane %v1241, 4
      %v1293 = vsel %vm518, %v1253, %v1292
      %v1295 = vunpack.c.l.s4 1934713408
      %v1296 = vunpack.c.0.s8 %v1295
      %v1297 = vperm.slane %v1291, %v1296
      %v1299 = vunpack.c.l.s4 1934713408
      %v1300 = vunpack.c.0.s8 %v1299
      %v1301 = vperm.slane %v1293, %v1300
      %v1302 = vrot.slane %v1285, 4
      %v1303 = vsel %vm518, %v1302, %v1261
      %v1304 = vrot.slane %v1261, 4
      %v1305 = vsel %vm518, %v1285, %v1304
      %v1306 = vrot.slane %v1289, 4
      %v1307 = vsel %vm518, %v1306, %v1265
      %v1308 = vrot.slane %v1265, 4
      %v1309 = vsel %vm518, %v1289, %v1308
      %v1310 = vrot.slane %v1297, 4
      %v1311 = vsel %vm518, %v1310, %v1273
      %v1312 = vrot.slane %v1273, 4
      %v1313 = vsel %vm518, %v1297, %v1312
      %v1314 = vrot.slane %v1301, 4
      %v1315 = vsel %vm518, %v1314, %v1277
      %v1316 = vrot.slane %v1277, 4
      %v1317 = vsel %vm518, %v1301, %v1316
      %v1318 = vrot.slane %v1009, 4
      %v1319 = vsel %vm518, %v1318, %v1001
      %v1320 = vrot.slane %v1001, 4
      %v1321 = vsel %vm518, %v1009, %v1320
      %v1323 = vunpack.c.l.s4 1983009808
      %v1324 = vunpack.c.0.s8 %v1323
      %v1325 = vperm.slane %v1319, %v1324
      %v1327 = vunpack.c.l.s4 1983009808
      %v1328 = vunpack.c.0.s8 %v1327
      %v1329 = vperm.slane %v1321, %v1328
      %v1330 = vrot.slane %v1013, 4
      %v1331 = vsel %vm518, %v1330, %v1005
      %v1332 = vrot.slane %v1005, 4
      %v1333 = vsel %vm518, %v1013, %v1332
      %v1335 = vunpack.c.l.s4 1983009808
      %v1336 = vunpack.c.0.s8 %v1335
      %v1337 = vperm.slane %v1331, %v1336
      %v1339 = vunpack.c.l.s4 1983009808
      %v1340 = vunpack.c.0.s8 %v1339
      %v1341 = vperm.slane %v1333, %v1340
      %v1342 = vrot.slane %v1025, 4
      %v1343 = vsel %vm518, %v1342, %v1017
      %v1344 = vrot.slane %v1017, 4
      %v1345 = vsel %vm518, %v1025, %v1344
      %v1347 = vunpack.c.l.s4 1983009808
      %v1348 = vunpack.c.0.s8 %v1347
      %v1349 = vperm.slane %v1343, %v1348
      %v1351 = vunpack.c.l.s4 1983009808
      %v1352 = vunpack.c.0.s8 %v1351
      %v1353 = vperm.slane %v1345, %v1352
      %v1354 = vrot.slane %v1029, 4
      %v1355 = vsel %vm518, %v1354, %v1021
      %v1356 = vrot.slane %v1021, 4
      %v1357 = vsel %vm518, %v1029, %v1356
      %v1359 = vunpack.c.l.s4 1983009808
      %v1360 = vunpack.c.0.s8 %v1359
      %v1361 = vperm.slane %v1355, %v1360
      %v1363 = vunpack.c.l.s4 1983009808
      %v1364 = vunpack.c.0.s8 %v1363
      %v1365 = vperm.slane %v1357, %v1364
      %v1366 = vrot.slane %v1337, 4
      %v1367 = vsel %vm518, %v1366, %v1325
      %v1368 = vrot.slane %v1325, 4
      %v1369 = vsel %vm518, %v1337, %v1368
      %v1371 = vunpack.c.l.s4 1934713408
      %v1372 = vunpack.c.0.s8 %v1371
      %v1373 = vperm.slane %v1367, %v1372
      %v1375 = vunpack.c.l.s4 1934713408
      %v1376 = vunpack.c.0.s8 %v1375
      %v1377 = vperm.slane %v1369, %v1376
      %v1378 = vrot.slane %v1341, 4
      %v1379 = vsel %vm518, %v1378, %v1329
      %v1380 = vrot.slane %v1329, 4
      %v1381 = vsel %vm518, %v1341, %v1380
      %v1383 = vunpack.c.l.s4 1934713408
      %v1384 = vunpack.c.0.s8 %v1383
      %v1385 = vperm.slane %v1379, %v1384
      %v1387 = vunpack.c.l.s4 1934713408
      %v1388 = vunpack.c.0.s8 %v1387
      %v1389 = vperm.slane %v1381, %v1388
      %v1390 = vrot.slane %v1361, 4
      %v1391 = vsel %vm518, %v1390, %v1349
      %v1392 = vrot.slane %v1349, 4
      %v1393 = vsel %vm518, %v1361, %v1392
      %v1395 = vunpack.c.l.s4 1934713408
      %v1396 = vunpack.c.0.s8 %v1395
      %v1397 = vperm.slane %v1391, %v1396
      %v1399 = vunpack.c.l.s4 1934713408
      %v1400 = vunpack.c.0.s8 %v1399
      %v1401 = vperm.slane %v1393, %v1400
      %v1402 = vrot.slane %v1365, 4
      %v1403 = vsel %vm518, %v1402, %v1353
      %v1404 = vrot.slane %v1353, 4
      %v1405 = vsel %vm518, %v1365, %v1404
      %v1407 = vunpack.c.l.s4 1934713408
      %v1408 = vunpack.c.0.s8 %v1407
      %v1409 = vperm.slane %v1403, %v1408
      %v1411 = vunpack.c.l.s4 1934713408
      %v1412 = vunpack.c.0.s8 %v1411
      %v1413 = vperm.slane %v1405, %v1412
      %v1414 = vrot.slane %v1397, 4
      %v1415 = vsel %vm518, %v1414, %v1373
      %v1416 = vrot.slane %v1373, 4
      %v1417 = vsel %vm518, %v1397, %v1416
      %v1418 = vrot.slane %v1401, 4
      %v1419 = vsel %vm518, %v1418, %v1377
      %v1420 = vrot.slane %v1377, 4
      %v1421 = vsel %vm518, %v1401, %v1420
      %v1422 = vrot.slane %v1409, 4
      %v1423 = vsel %vm518, %v1422, %v1385
      %v1424 = vrot.slane %v1385, 4
      %v1425 = vsel %vm518, %v1409, %v1424
      %v1426 = vrot.slane %v1413, 4
      %v1427 = vsel %vm518, %v1426, %v1389
      %v1428 = vrot.slane %v1389, 4
      %v1429 = vsel %vm518, %v1413, %v1428
      %v1430 = vrot.slane %v1041, 4
      %v1431 = vsel %vm518, %v1430, %v1033
      %v1432 = vrot.slane %v1033, 4
      %v1433 = vsel %vm518, %v1041, %v1432
      %v1435 = vunpack.c.l.s4 1983009808
      %v1436 = vunpack.c.0.s8 %v1435
      %v1437 = vperm.slane %v1431, %v1436
      %v1439 = vunpack.c.l.s4 1983009808
      %v1440 = vunpack.c.0.s8 %v1439
      %v1441 = vperm.slane %v1433, %v1440
      %v1442 = vrot.slane %v1045, 4
      %v1443 = vsel %vm518, %v1442, %v1037
      %v1444 = vrot.slane %v1037, 4
      %v1445 = vsel %vm518, %v1045, %v1444
      %v1447 = vunpack.c.l.s4 1983009808
      %v1448 = vunpack.c.0.s8 %v1447
      %v1449 = vperm.slane %v1443, %v1448
      %v1451 = vunpack.c.l.s4 1983009808
      %v1452 = vunpack.c.0.s8 %v1451
      %v1453 = vperm.slane %v1445, %v1452
      %v1454 = vrot.slane %v1057, 4
      %v1455 = vsel %vm518, %v1454, %v1049
      %v1456 = vrot.slane %v1049, 4
      %v1457 = vsel %vm518, %v1057, %v1456
      %v1459 = vunpack.c.l.s4 1983009808
      %v1460 = vunpack.c.0.s8 %v1459
      %v1461 = vperm.slane %v1455, %v1460
      %v1463 = vunpack.c.l.s4 1983009808
      %v1464 = vunpack.c.0.s8 %v1463
      %v1465 = vperm.slane %v1457, %v1464
      %v1466 = vrot.slane %v1061, 4
      %v1467 = vsel %vm518, %v1466, %v1053
      %v1468 = vrot.slane %v1053, 4
      %v1469 = vsel %vm518, %v1061, %v1468
      %v1471 = vunpack.c.l.s4 1983009808
      %v1472 = vunpack.c.0.s8 %v1471
      %v1473 = vperm.slane %v1467, %v1472
      %v1475 = vunpack.c.l.s4 1983009808
      %v1476 = vunpack.c.0.s8 %v1475
      %v1477 = vperm.slane %v1469, %v1476
      %v1478 = vrot.slane %v1449, 4
      %v1479 = vsel %vm518, %v1478, %v1437
      %v1480 = vrot.slane %v1437, 4
      %v1481 = vsel %vm518, %v1449, %v1480
      %v1483 = vunpack.c.l.s4 1934713408
      %v1484 = vunpack.c.0.s8 %v1483
      %v1485 = vperm.slane %v1479, %v1484
      %v1487 = vunpack.c.l.s4 1934713408
      %v1488 = vunpack.c.0.s8 %v1487
      %v1489 = vperm.slane %v1481, %v1488
      %v1490 = vrot.slane %v1453, 4
      %v1491 = vsel %vm518, %v1490, %v1441
      %v1492 = vrot.slane %v1441, 4
      %v1493 = vsel %vm518, %v1453, %v1492
      %v1495 = vunpack.c.l.s4 1934713408
      %v1496 = vunpack.c.0.s8 %v1495
      %v1497 = vperm.slane %v1491, %v1496
      %v1499 = vunpack.c.l.s4 1934713408
      %v1500 = vunpack.c.0.s8 %v1499
      %v1501 = vperm.slane %v1493, %v1500
      %v1502 = vrot.slane %v1473, 4
      %v1503 = vsel %vm518, %v1502, %v1461
      %v1504 = vrot.slane %v1461, 4
      %v1505 = vsel %vm518, %v1473, %v1504
      %v1507 = vunpack.c.l.s4 1934713408
      %v1508 = vunpack.c.0.s8 %v1507
      %v1509 = vperm.slane %v1503, %v1508
      %v1511 = vunpack.c.l.s4 1934713408
      %v1512 = vunpack.c.0.s8 %v1511
      %v1513 = vperm.slane %v1505, %v1512
      %v1514 = vrot.slane %v1477, 4
      %v1515 = vsel %vm518, %v1514, %v1465
      %v1516 = vrot.slane %v1465, 4
      %v1517 = vsel %vm518, %v1477, %v1516
      %v1519 = vunpack.c.l.s4 1934713408
      %v1520 = vunpack.c.0.s8 %v1519
      %v1521 = vperm.slane %v1515, %v1520
      %v1523 = vunpack.c.l.s4 1934713408
      %v1524 = vunpack.c.0.s8 %v1523
      %v1525 = vperm.slane %v1517, %v1524
      %v1526 = vrot.slane %v1509, 4
      %v1527 = vsel %vm518, %v1526, %v1485
      %v1528 = vrot.slane %v1485, 4
      %v1529 = vsel %vm518, %v1509, %v1528
      %v1530 = vrot.slane %v1513, 4
      %v1531 = vsel %vm518, %v1530, %v1489
      %v1532 = vrot.slane %v1489, 4
      %v1533 = vsel %vm518, %v1513, %v1532
      %v1534 = vrot.slane %v1521, 4
      %v1535 = vsel %vm518, %v1534, %v1497
      %v1536 = vrot.slane %v1497, 4
      %v1537 = vsel %vm518, %v1521, %v1536
      %v1538 = vrot.slane %v1525, 4
      %v1539 = vsel %vm518, %v1538, %v1501
      %v1540 = vrot.slane %v1501, 4
      %v1541 = vsel %vm518, %v1525, %v1540
      %1542 = vrot.lane.b32.xlu0 %v438, 120
      %v1543 = vpop.permute.xlu0 %1542
      %1544 = vrot.lane.b32.xlu0 %v440, 120
      %v1545 = vpop.permute.xlu0 %1544
      %1546 = vrot.lane.b32.xlu0 %v443, 120
      %v1547 = vpop.permute.xlu0 %1546
      %1548 = vrot.lane.b32.xlu0 %v445, 120
      %v1549 = vpop.permute.xlu0 %1548
      %1550 = vrot.lane.b32.xlu0 %v448, 120
      %v1551 = vpop.permute.xlu0 %1550
      %1552 = vrot.lane.b32.xlu0 %v450, 120
      %v1553 = vpop.permute.xlu0 %1552
      %1554 = vrot.lane.b32.xlu0 %v453, 120
      %v1555 = vpop.permute.xlu0 %1554
      %1556 = vrot.lane.b32.xlu0 %v455, 120
      %v1557 = vpop.permute.xlu0 %1556
      %1558 = vrot.lane.b32.xlu0 %v458, 120
      %v1559 = vpop.permute.xlu0 %1558
      %1560 = vrot.lane.b32.xlu0 %v460, 120
      %v1561 = vpop.permute.xlu0 %1560
      %1562 = vrot.lane.b32.xlu0 %v463, 120
      %v1563 = vpop.permute.xlu0 %1562
      %1564 = vrot.lane.b32.xlu0 %v465, 120
      %v1565 = vpop.permute.xlu0 %1564
      %1566 = vrot.lane.b32.xlu0 %v468, 120
      %v1567 = vpop.permute.xlu0 %1566
      %1568 = vrot.lane.b32.xlu0 %v470, 120
      %v1569 = vpop.permute.xlu0 %1568
      %1570 = vrot.lane.b32.xlu0 %v473, 120
      %v1571 = vpop.permute.xlu0 %1570
      %1572 = vrot.lane.b32.xlu0 %v475, 120
      %v1573 = vpop.permute.xlu0 %1572
      %1574 = vrot.lane.b32.xlu0 %v478, 120
      %v1575 = vpop.permute.xlu0 %1574
      %1576 = vrot.lane.b32.xlu0 %v480, 120
      %v1577 = vpop.permute.xlu0 %1576
      %1578 = vrot.lane.b32.xlu0 %v483, 120
      %v1579 = vpop.permute.xlu0 %1578
      %1580 = vrot.lane.b32.xlu0 %v485, 120
      %v1581 = vpop.permute.xlu0 %1580
      %1582 = vrot.lane.b32.xlu0 %v488, 120
      %v1583 = vpop.permute.xlu0 %1582
      %1584 = vrot.lane.b32.xlu0 %v490, 120
      %v1585 = vpop.permute.xlu0 %1584
      %1586 = vrot.lane.b32.xlu0 %v493, 120
      %v1587 = vpop.permute.xlu0 %1586
      %1588 = vrot.lane.b32.xlu0 %v495, 120
      %v1589 = vpop.permute.xlu0 %1588
      %1590 = vrot.lane.b32.xlu0 %v498, 120
      %v1591 = vpop.permute.xlu0 %1590
      %1592 = vrot.lane.b32.xlu0 %v500, 120
      %v1593 = vpop.permute.xlu0 %1592
      %1594 = vrot.lane.b32.xlu0 %v503, 120
      %v1595 = vpop.permute.xlu0 %1594
      %1596 = vrot.lane.b32.xlu0 %v505, 120
      %v1597 = vpop.permute.xlu0 %1596
      %1598 = vrot.lane.b32.xlu0 %v508, 120
      %v1599 = vpop.permute.xlu0 %1598
      %1600 = vrot.lane.b32.xlu0 %v510, 120
      %v1601 = vpop.permute.xlu0 %1600
      %1602 = vrot.lane.b32.xlu0 %v513, 120
      %v1603 = vpop.permute.xlu0 %1602
      %1604 = vrot.lane.b32.xlu0 %v515, 120
      %v1605 = vpop.permute.xlu0 %1604
      %v1638 = vrot.slane %v1551, 4
      %v1639 = vsel %vm518, %v1638, %v1543
      %v1640 = vrot.slane %v1543, 4
      %v1641 = vsel %vm518, %v1551, %v1640
      %v1643 = vunpack.c.l.s4 1983009808
      %v1644 = vunpack.c.0.s8 %v1643
      %v1645 = vperm.slane %v1639, %v1644
      %v1647 = vunpack.c.l.s4 1983009808
      %v1648 = vunpack.c.0.s8 %v1647
      %v1649 = vperm.slane %v1641, %v1648
      %v1650 = vrot.slane %v1555, 4
      %v1651 = vsel %vm518, %v1650, %v1547
      %v1652 = vrot.slane %v1547, 4
      %v1653 = vsel %vm518, %v1555, %v1652
      %v1655 = vunpack.c.l.s4 1983009808
      %v1656 = vunpack.c.0.s8 %v1655
      %v1657 = vperm.slane %v1651, %v1656
      %v1659 = vunpack.c.l.s4 1983009808
      %v1660 = vunpack.c.0.s8 %v1659
      %v1661 = vperm.slane %v1653, %v1660
      %v1662 = vrot.slane %v1567, 4
      %v1663 = vsel %vm518, %v1662, %v1559
      %v1664 = vrot.slane %v1559, 4
      %v1665 = vsel %vm518, %v1567, %v1664
      %v1667 = vunpack.c.l.s4 1983009808
      %v1668 = vunpack.c.0.s8 %v1667
      %v1669 = vperm.slane %v1663, %v1668
      %v1671 = vunpack.c.l.s4 1983009808
      %v1672 = vunpack.c.0.s8 %v1671
      %v1673 = vperm.slane %v1665, %v1672
      %v1674 = vrot.slane %v1571, 4
      %v1675 = vsel %vm518, %v1674, %v1563
      %v1676 = vrot.slane %v1563, 4
      %v1677 = vsel %vm518, %v1571, %v1676
      %v1679 = vunpack.c.l.s4 1983009808
      %v1680 = vunpack.c.0.s8 %v1679
      %v1681 = vperm.slane %v1675, %v1680
      %v1683 = vunpack.c.l.s4 1983009808
      %v1684 = vunpack.c.0.s8 %v1683
      %v1685 = vperm.slane %v1677, %v1684
      %v1686 = vrot.slane %v1657, 4
      %v1687 = vsel %vm518, %v1686, %v1645
      %v1688 = vrot.slane %v1645, 4
      %v1689 = vsel %vm518, %v1657, %v1688
      %v1691 = vunpack.c.l.s4 1934713408
      %v1692 = vunpack.c.0.s8 %v1691
      %v1693 = vperm.slane %v1687, %v1692
      %v1695 = vunpack.c.l.s4 1934713408
      %v1696 = vunpack.c.0.s8 %v1695
      %v1697 = vperm.slane %v1689, %v1696
      %v1698 = vrot.slane %v1661, 4
      %v1699 = vsel %vm518, %v1698, %v1649
      %v1700 = vrot.slane %v1649, 4
      %v1701 = vsel %vm518, %v1661, %v1700
      %v1703 = vunpack.c.l.s4 1934713408
      %v1704 = vunpack.c.0.s8 %v1703
      %v1705 = vperm.slane %v1699, %v1704
      %v1707 = vunpack.c.l.s4 1934713408
      %v1708 = vunpack.c.0.s8 %v1707
      %v1709 = vperm.slane %v1701, %v1708
      %v1710 = vrot.slane %v1681, 4
      %v1711 = vsel %vm518, %v1710, %v1669
      %v1712 = vrot.slane %v1669, 4
      %v1713 = vsel %vm518, %v1681, %v1712
      %v1715 = vunpack.c.l.s4 1934713408
      %v1716 = vunpack.c.0.s8 %v1715
      %v1717 = vperm.slane %v1711, %v1716
      %v1719 = vunpack.c.l.s4 1934713408
      %v1720 = vunpack.c.0.s8 %v1719
      %v1721 = vperm.slane %v1713, %v1720
      %v1722 = vrot.slane %v1685, 4
      %v1723 = vsel %vm518, %v1722, %v1673
      %v1724 = vrot.slane %v1673, 4
      %v1725 = vsel %vm518, %v1685, %v1724
      %v1727 = vunpack.c.l.s4 1934713408
      %v1728 = vunpack.c.0.s8 %v1727
      %v1729 = vperm.slane %v1723, %v1728
      %v1731 = vunpack.c.l.s4 1934713408
      %v1732 = vunpack.c.0.s8 %v1731
      %v1733 = vperm.slane %v1725, %v1732
      %v1734 = vrot.slane %v1717, 4
      %v1735 = vsel %vm518, %v1734, %v1693
      %v1736 = vrot.slane %v1693, 4
      %v1737 = vsel %vm518, %v1717, %v1736
      %v1738 = vrot.slane %v1721, 4
      %v1739 = vsel %vm518, %v1738, %v1697
      %v1740 = vrot.slane %v1697, 4
      %v1741 = vsel %vm518, %v1721, %v1740
      %v1742 = vrot.slane %v1729, 4
      %v1743 = vsel %vm518, %v1742, %v1705
      %v1744 = vrot.slane %v1705, 4
      %v1745 = vsel %vm518, %v1729, %v1744
      %v1746 = vrot.slane %v1733, 4
      %v1747 = vsel %vm518, %v1746, %v1709
      %v1748 = vrot.slane %v1709, 4
      %v1749 = vsel %vm518, %v1733, %v1748
      %v1750 = vrot.slane %v1583, 4
      %v1751 = vsel %vm518, %v1750, %v1575
      %v1752 = vrot.slane %v1575, 4
      %v1753 = vsel %vm518, %v1583, %v1752
      %v1755 = vunpack.c.l.s4 1983009808
      %v1756 = vunpack.c.0.s8 %v1755
      %v1757 = vperm.slane %v1751, %v1756
      %v1759 = vunpack.c.l.s4 1983009808
      %v1760 = vunpack.c.0.s8 %v1759
      %v1761 = vperm.slane %v1753, %v1760
      %v1762 = vrot.slane %v1587, 4
      %v1763 = vsel %vm518, %v1762, %v1579
      %v1764 = vrot.slane %v1579, 4
      %v1765 = vsel %vm518, %v1587, %v1764
      %v1767 = vunpack.c.l.s4 1983009808
      %v1768 = vunpack.c.0.s8 %v1767
      %v1769 = vperm.slane %v1763, %v1768
      %v1771 = vunpack.c.l.s4 1983009808
      %v1772 = vunpack.c.0.s8 %v1771
      %v1773 = vperm.slane %v1765, %v1772
      %v1774 = vrot.slane %v1599, 4
      %v1775 = vsel %vm518, %v1774, %v1591
      %v1776 = vrot.slane %v1591, 4
      %v1777 = vsel %vm518, %v1599, %v1776
      %v1779 = vunpack.c.l.s4 1983009808
      %v1780 = vunpack.c.0.s8 %v1779
      %v1781 = vperm.slane %v1775, %v1780
      %v1783 = vunpack.c.l.s4 1983009808
      %v1784 = vunpack.c.0.s8 %v1783
      %v1785 = vperm.slane %v1777, %v1784
      %v1786 = vrot.slane %v1603, 4
      %v1787 = vsel %vm518, %v1786, %v1595
      %v1788 = vrot.slane %v1595, 4
      %v1789 = vsel %vm518, %v1603, %v1788
      %v1791 = vunpack.c.l.s4 1983009808
      %v1792 = vunpack.c.0.s8 %v1791
      %v1793 = vperm.slane %v1787, %v1792
      %v1795 = vunpack.c.l.s4 1983009808
      %v1796 = vunpack.c.0.s8 %v1795
      %v1797 = vperm.slane %v1789, %v1796
      %v1798 = vrot.slane %v1769, 4
      %v1799 = vsel %vm518, %v1798, %v1757
      %v1800 = vrot.slane %v1757, 4
      %v1801 = vsel %vm518, %v1769, %v1800
      %v1803 = vunpack.c.l.s4 1934713408
      %v1804 = vunpack.c.0.s8 %v1803
      %v1805 = vperm.slane %v1799, %v1804
      %v1807 = vunpack.c.l.s4 1934713408
      %v1808 = vunpack.c.0.s8 %v1807
      %v1809 = vperm.slane %v1801, %v1808
      %v1810 = vrot.slane %v1773, 4
      %v1811 = vsel %vm518, %v1810, %v1761
      %v1812 = vrot.slane %v1761, 4
      %v1813 = vsel %vm518, %v1773, %v1812
      %v1815 = vunpack.c.l.s4 1934713408
      %v1816 = vunpack.c.0.s8 %v1815
      %v1817 = vperm.slane %v1811, %v1816
      %v1819 = vunpack.c.l.s4 1934713408
      %v1820 = vunpack.c.0.s8 %v1819
      %v1821 = vperm.slane %v1813, %v1820
      %v1822 = vrot.slane %v1793, 4
      %v1823 = vsel %vm518, %v1822, %v1781
      %v1824 = vrot.slane %v1781, 4
      %v1825 = vsel %vm518, %v1793, %v1824
      %v1827 = vunpack.c.l.s4 1934713408
      %v1828 = vunpack.c.0.s8 %v1827
      %v1829 = vperm.slane %v1823, %v1828
      %v1831 = vunpack.c.l.s4 1934713408
      %v1832 = vunpack.c.0.s8 %v1831
      %v1833 = vperm.slane %v1825, %v1832
      %v1834 = vrot.slane %v1797, 4
      %v1835 = vsel %vm518, %v1834, %v1785
      %v1836 = vrot.slane %v1785, 4
      %v1837 = vsel %vm518, %v1797, %v1836
      %v1839 = vunpack.c.l.s4 1934713408
      %v1840 = vunpack.c.0.s8 %v1839
      %v1841 = vperm.slane %v1835, %v1840
      %v1843 = vunpack.c.l.s4 1934713408
      %v1844 = vunpack.c.0.s8 %v1843
      %v1845 = vperm.slane %v1837, %v1844
      %v1846 = vrot.slane %v1829, 4
      %v1847 = vsel %vm518, %v1846, %v1805
      %v1848 = vrot.slane %v1805, 4
      %v1849 = vsel %vm518, %v1829, %v1848
      %v1850 = vrot.slane %v1833, 4
      %v1851 = vsel %vm518, %v1850, %v1809
      %v1852 = vrot.slane %v1809, 4
      %v1853 = vsel %vm518, %v1833, %v1852
      %v1854 = vrot.slane %v1841, 4
      %v1855 = vsel %vm518, %v1854, %v1817
      %v1856 = vrot.slane %v1817, 4
      %v1857 = vsel %vm518, %v1841, %v1856
      %v1858 = vrot.slane %v1845, 4
      %v1859 = vsel %vm518, %v1858, %v1821
      %v1860 = vrot.slane %v1821, 4
      %v1861 = vsel %vm518, %v1845, %v1860
      %v1862 = vrot.slane %v1553, 4
      %v1863 = vsel %vm518, %v1862, %v1545
      %v1864 = vrot.slane %v1545, 4
      %v1865 = vsel %vm518, %v1553, %v1864
      %v1867 = vunpack.c.l.s4 1983009808
      %v1868 = vunpack.c.0.s8 %v1867
      %v1869 = vperm.slane %v1863, %v1868
      %v1871 = vunpack.c.l.s4 1983009808
      %v1872 = vunpack.c.0.s8 %v1871
      %v1873 = vperm.slane %v1865, %v1872
      %v1874 = vrot.slane %v1557, 4
      %v1875 = vsel %vm518, %v1874, %v1549
      %v1876 = vrot.slane %v1549, 4
      %v1877 = vsel %vm518, %v1557, %v1876
      %v1879 = vunpack.c.l.s4 1983009808
      %v1880 = vunpack.c.0.s8 %v1879
      %v1881 = vperm.slane %v1875, %v1880
      %v1883 = vunpack.c.l.s4 1983009808
      %v1884 = vunpack.c.0.s8 %v1883
      %v1885 = vperm.slane %v1877, %v1884
      %v1886 = vrot.slane %v1569, 4
      %v1887 = vsel %vm518, %v1886, %v1561
      %v1888 = vrot.slane %v1561, 4
      %v1889 = vsel %vm518, %v1569, %v1888
      %v1891 = vunpack.c.l.s4 1983009808
      %v1892 = vunpack.c.0.s8 %v1891
      %v1893 = vperm.slane %v1887, %v1892
      %v1895 = vunpack.c.l.s4 1983009808
      %v1896 = vunpack.c.0.s8 %v1895
      %v1897 = vperm.slane %v1889, %v1896
      %v1898 = vrot.slane %v1573, 4
      %v1899 = vsel %vm518, %v1898, %v1565
      %v1900 = vrot.slane %v1565, 4
      %v1901 = vsel %vm518, %v1573, %v1900
      %v1903 = vunpack.c.l.s4 1983009808
      %v1904 = vunpack.c.0.s8 %v1903
      %v1905 = vperm.slane %v1899, %v1904
      %v1907 = vunpack.c.l.s4 1983009808
      %v1908 = vunpack.c.0.s8 %v1907
      %v1909 = vperm.slane %v1901, %v1908
      %v1910 = vrot.slane %v1881, 4
      %v1911 = vsel %vm518, %v1910, %v1869
      %v1912 = vrot.slane %v1869, 4
      %v1913 = vsel %vm518, %v1881, %v1912
      %v1915 = vunpack.c.l.s4 1934713408
      %v1916 = vunpack.c.0.s8 %v1915
      %v1917 = vperm.slane %v1911, %v1916
      %v1919 = vunpack.c.l.s4 1934713408
      %v1920 = vunpack.c.0.s8 %v1919
      %v1921 = vperm.slane %v1913, %v1920
      %v1922 = vrot.slane %v1885, 4
      %v1923 = vsel %vm518, %v1922, %v1873
      %v1924 = vrot.slane %v1873, 4
      %v1925 = vsel %vm518, %v1885, %v1924
      %v1927 = vunpack.c.l.s4 1934713408
      %v1928 = vunpack.c.0.s8 %v1927
      %v1929 = vperm.slane %v1923, %v1928
      %v1931 = vunpack.c.l.s4 1934713408
      %v1932 = vunpack.c.0.s8 %v1931
      %v1933 = vperm.slane %v1925, %v1932
      %v1934 = vrot.slane %v1905, 4
      %v1935 = vsel %vm518, %v1934, %v1893
      %v1936 = vrot.slane %v1893, 4
      %v1937 = vsel %vm518, %v1905, %v1936
      %v1939 = vunpack.c.l.s4 1934713408
      %v1940 = vunpack.c.0.s8 %v1939
      %v1941 = vperm.slane %v1935, %v1940
      %v1943 = vunpack.c.l.s4 1934713408
      %v1944 = vunpack.c.0.s8 %v1943
      %v1945 = vperm.slane %v1937, %v1944
      %v1946 = vrot.slane %v1909, 4
      %v1947 = vsel %vm518, %v1946, %v1897
      %v1948 = vrot.slane %v1897, 4
      %v1949 = vsel %vm518, %v1909, %v1948
      %v1951 = vunpack.c.l.s4 1934713408
      %v1952 = vunpack.c.0.s8 %v1951
      %v1953 = vperm.slane %v1947, %v1952
      %v1955 = vunpack.c.l.s4 1934713408
      %v1956 = vunpack.c.0.s8 %v1955
      %v1957 = vperm.slane %v1949, %v1956
      %v1958 = vrot.slane %v1941, 4
      %v1959 = vsel %vm518, %v1958, %v1917
      %v1960 = vrot.slane %v1917, 4
      %v1961 = vsel %vm518, %v1941, %v1960
      %v1962 = vrot.slane %v1945, 4
      %v1963 = vsel %vm518, %v1962, %v1921
      %v1964 = vrot.slane %v1921, 4
      %v1965 = vsel %vm518, %v1945, %v1964
      %v1966 = vrot.slane %v1953, 4
      %v1967 = vsel %vm518, %v1966, %v1929
      %v1968 = vrot.slane %v1929, 4
      %v1969 = vsel %vm518, %v1953, %v1968
      %v1970 = vrot.slane %v1957, 4
      %v1971 = vsel %vm518, %v1970, %v1933
      %v1972 = vrot.slane %v1933, 4
      %v1973 = vsel %vm518, %v1957, %v1972
      %v1974 = vrot.slane %v1585, 4
      %v1975 = vsel %vm518, %v1974, %v1577
      %v1976 = vrot.slane %v1577, 4
      %v1977 = vsel %vm518, %v1585, %v1976
      %v1979 = vunpack.c.l.s4 1983009808
      %v1980 = vunpack.c.0.s8 %v1979
      %v1981 = vperm.slane %v1975, %v1980
      %v1983 = vunpack.c.l.s4 1983009808
      %v1984 = vunpack.c.0.s8 %v1983
      %v1985 = vperm.slane %v1977, %v1984
      %v1986 = vrot.slane %v1589, 4
      %v1987 = vsel %vm518, %v1986, %v1581
      %v1988 = vrot.slane %v1581, 4
      %v1989 = vsel %vm518, %v1589, %v1988
      %v1991 = vunpack.c.l.s4 1983009808
      %v1992 = vunpack.c.0.s8 %v1991
      %v1993 = vperm.slane %v1987, %v1992
      %v1995 = vunpack.c.l.s4 1983009808
      %v1996 = vunpack.c.0.s8 %v1995
      %v1997 = vperm.slane %v1989, %v1996
      %v1998 = vrot.slane %v1601, 4
      %v1999 = vsel %vm518, %v1998, %v1593
      %v2000 = vrot.slane %v1593, 4
      %v2001 = vsel %vm518, %v1601, %v2000
      %v2003 = vunpack.c.l.s4 1983009808
      %v2004 = vunpack.c.0.s8 %v2003
      %v2005 = vperm.slane %v1999, %v2004
      %v2007 = vunpack.c.l.s4 1983009808
      %v2008 = vunpack.c.0.s8 %v2007
      %v2009 = vperm.slane %v2001, %v2008
      %v2010 = vrot.slane %v1605, 4
      %v2011 = vsel %vm518, %v2010, %v1597
      %v2012 = vrot.slane %v1597, 4
      %v2013 = vsel %vm518, %v1605, %v2012
      %v2015 = vunpack.c.l.s4 1983009808
      %v2016 = vunpack.c.0.s8 %v2015
      %v2017 = vperm.slane %v2011, %v2016
      %v2019 = vunpack.c.l.s4 1983009808
      %v2020 = vunpack.c.0.s8 %v2019
      %v2021 = vperm.slane %v2013, %v2020
      %v2022 = vrot.slane %v1993, 4
      %v2023 = vsel %vm518, %v2022, %v1981
      %v2024 = vrot.slane %v1981, 4
      %v2025 = vsel %vm518, %v1993, %v2024
      %v2027 = vunpack.c.l.s4 1934713408
      %v2028 = vunpack.c.0.s8 %v2027
      %v2029 = vperm.slane %v2023, %v2028
      %v2031 = vunpack.c.l.s4 1934713408
      %v2032 = vunpack.c.0.s8 %v2031
      %v2033 = vperm.slane %v2025, %v2032
      %v2034 = vrot.slane %v1997, 4
      %v2035 = vsel %vm518, %v2034, %v1985
      %v2036 = vrot.slane %v1985, 4
      %v2037 = vsel %vm518, %v1997, %v2036
      %v2039 = vunpack.c.l.s4 1934713408
      %v2040 = vunpack.c.0.s8 %v2039
      %v2041 = vperm.slane %v2035, %v2040
      %v2043 = vunpack.c.l.s4 1934713408
      %v2044 = vunpack.c.0.s8 %v2043
      %v2045 = vperm.slane %v2037, %v2044
      %v2046 = vrot.slane %v2017, 4
      %v2047 = vsel %vm518, %v2046, %v2005
      %v2048 = vrot.slane %v2005, 4
      %v2049 = vsel %vm518, %v2017, %v2048
      %v2051 = vunpack.c.l.s4 1934713408
      %v2052 = vunpack.c.0.s8 %v2051
      %v2053 = vperm.slane %v2047, %v2052
      %v2055 = vunpack.c.l.s4 1934713408
      %v2056 = vunpack.c.0.s8 %v2055
      %v2057 = vperm.slane %v2049, %v2056
      %v2058 = vrot.slane %v2021, 4
      %v2059 = vsel %vm518, %v2058, %v2009
      %v2060 = vrot.slane %v2009, 4
      %v2061 = vsel %vm518, %v2021, %v2060
      %v2063 = vunpack.c.l.s4 1934713408
      %v2064 = vunpack.c.0.s8 %v2063
      %v2065 = vperm.slane %v2059, %v2064
      %v2067 = vunpack.c.l.s4 1934713408
      %v2068 = vunpack.c.0.s8 %v2067
      %v2069 = vperm.slane %v2061, %v2068
      %v2070 = vrot.slane %v2053, 4
      %v2071 = vsel %vm518, %v2070, %v2029
      %v2072 = vrot.slane %v2029, 4
      %v2073 = vsel %vm518, %v2053, %v2072
      %v2074 = vrot.slane %v2057, 4
      %v2075 = vsel %vm518, %v2074, %v2033
      %v2076 = vrot.slane %v2033, 4
      %v2077 = vsel %vm518, %v2057, %v2076
      %v2078 = vrot.slane %v2065, 4
      %v2079 = vsel %vm518, %v2078, %v2041
      %v2080 = vrot.slane %v2041, 4
      %v2081 = vsel %vm518, %v2065, %v2080
      %v2082 = vrot.slane %v2069, 4
      %v2083 = vsel %vm518, %v2082, %v2045
      %v2084 = vrot.slane %v2045, 4
      %v2085 = vsel %vm518, %v2069, %v2084
      %vm2086 = vcmask 31744
      %v2087 = vsel %vm2086, %v438, 0
      %v2089 = vsel %vm2086, %v440, 0
      %v2091 = vsel %vm2086, %v999, 0
      %v2093 = vsel %vm2086, %v1001, 0
      %2095 = vmatpush.xpose.msra.mxu0 0.0
      %2096 = vmatpush.xpose.msra.mxu0 0.0
      %2097 = vmatpush.xpose.msra.mxu0 0.0
      %2098 = vmatpush.xpose.msra.mxu0 0.0
      %2099 = vmatpush.xpose.msra.mxu0 0.0
      %2100 = vmatpush.xpose.msra.mxu0 0.0
      %2101 = vmatpush.xpose.msra.mxu0 0.0
      %2102 = vmatpush.xpose.msra.mxu0 0.0
      %2103 = vmatpush.xpose.msra.mxu0 0.0
      %2104 = vmatpush.xpose.msra.mxu0 0.0
      %2105 = vmatpush.xpose.msra.mxu0 0.0
      %2106 = vmatpush.xpose.msra.mxu0 0.0
      %2107 = vmatpush.xpose.msra.mxu0 0.0
      %2108 = vmatpush.xpose.msra.mxu0 0.0
      %2109 = vmatpush.xpose.msra.mxu0 %v2093
      %2110 = vmatpush.xpose.msra.mxu0 %v2091
      %2111 = vmatmul.f32.gmra.mxu0 %v2087
      %v2112 = vpop.f32.mrf.mxu0
      %v2113 = vadd.f32 0.0, %v2112
      %2114 = vmatmul.f32.gmra.mxu0 %v2089
      %v2115 = vpop.f32.mrf.mxu0
      %v2116 = vadd.f32 0.0, %v2115
      %2117 = vdwg.mxu0
      %v2118 = vsel %vm2086, %v443, 0
      %v2120 = vsel %vm2086, %v445, 0
      %v2122 = vsel %vm2086, %v1003, 0
      %v2124 = vsel %vm2086, %v1005, 0
      %2126 = vmatpush.xpose.msra.mxu0 0.0
      %2127 = vmatpush.xpose.msra.mxu0 0.0
      %2128 = vmatpush.xpose.msra.mxu0 0.0
      %2129 = vmatpush.xpose.msra.mxu0 0.0
      %2130 = vmatpush.xpose.msra.mxu0 0.0
      %2131 = vmatpush.xpose.msra.mxu0 0.0
      %2132 = vmatpush.xpose.msra.mxu0 0.0
      %2133 = vmatpush.xpose.msra.mxu0 0.0
      %2134 = vmatpush.xpose.msra.mxu0 0.0
      %2135 = vmatpush.xpose.msra.mxu0 0.0
      %2136 = vmatpush.xpose.msra.mxu0 0.0
      %2137 = vmatpush.xpose.msra.mxu0 0.0
      %2138 = vmatpush.xpose.msra.mxu0 0.0
      %2139 = vmatpush.xpose.msra.mxu0 0.0
      %2140 = vmatpush.xpose.msra.mxu0 %v2124
      %2141 = vmatpush.xpose.msra.mxu0 %v2122
      %2142 = vmatmul.f32.gmra.mxu0 %v2118
      %v2143 = vpop.f32.mrf.mxu0
      %v2144 = vadd.f32 0.0, %v2143
      %2145 = vmatmul.f32.gmra.mxu0 %v2120
      %v2146 = vpop.f32.mrf.mxu0
      %v2147 = vadd.f32 0.0, %v2146
      %2148 = vdwg.mxu0
      %v2149 = vsel %vm2086, %v448, 0
      %v2151 = vsel %vm2086, %v450, 0
      %v2153 = vsel %vm2086, %v1007, 0
      %v2155 = vsel %vm2086, %v1009, 0
      %2157 = vmatpush.xpose.msra.mxu0 0.0
      %2158 = vmatpush.xpose.msra.mxu0 0.0
      %2159 = vmatpush.xpose.msra.mxu0 0.0
      %2160 = vmatpush.xpose.msra.mxu0 0.0
      %2161 = vmatpush.xpose.msra.mxu0 0.0
      %2162 = vmatpush.xpose.msra.mxu0 0.0
      %2163 = vmatpush.xpose.msra.mxu0 0.0
      %2164 = vmatpush.xpose.msra.mxu0 0.0
      %2165 = vmatpush.xpose.msra.mxu0 0.0
      %2166 = vmatpush.xpose.msra.mxu0 0.0
      %2167 = vmatpush.xpose.msra.mxu0 0.0
      %2168 = vmatpush.xpose.msra.mxu0 0.0
      %2169 = vmatpush.xpose.msra.mxu0 0.0
      %2170 = vmatpush.xpose.msra.mxu0 0.0
      %2171 = vmatpush.xpose.msra.mxu0 %v2155
      %2172 = vmatpush.xpose.msra.mxu0 %v2153
      %2173 = vmatmul.f32.gmra.mxu0 %v2149
      %v2174 = vpop.f32.mrf.mxu0
      %v2175 = vadd.f32 0.0, %v2174
      %2176 = vmatmul.f32.gmra.mxu0 %v2151
      %v2177 = vpop.f32.mrf.mxu0
      %v2178 = vadd.f32 0.0, %v2177
      %2179 = vdwg.mxu0
      %v2180 = vsel %vm2086, %v453, 0
      %v2182 = vsel %vm2086, %v455, 0
      %v2184 = vsel %vm2086, %v1011, 0
      %v2186 = vsel %vm2086, %v1013, 0
      %2188 = vmatpush.xpose.msra.mxu0 0.0
      %2189 = vmatpush.xpose.msra.mxu0 0.0
      %2190 = vmatpush.xpose.msra.mxu0 0.0
      %2191 = vmatpush.xpose.msra.mxu0 0.0
      %2192 = vmatpush.xpose.msra.mxu0 0.0
      %2193 = vmatpush.xpose.msra.mxu0 0.0
      %2194 = vmatpush.xpose.msra.mxu0 0.0
      %2195 = vmatpush.xpose.msra.mxu0 0.0
      %2196 = vmatpush.xpose.msra.mxu0 0.0
      %2197 = vmatpush.xpose.msra.mxu0 0.0
      %2198 = vmatpush.xpose.msra.mxu0 0.0
      %2199 = vmatpush.xpose.msra.mxu0 0.0
      %2200 = vmatpush.xpose.msra.mxu0 0.0
      %2201 = vmatpush.xpose.msra.mxu0 0.0
      %2202 = vmatpush.xpose.msra.mxu0 %v2186
      %2203 = vmatpush.xpose.msra.mxu0 %v2184
      %2204 = vmatmul.f32.gmra.mxu0 %v2180
      %v2205 = vpop.f32.mrf.mxu0
      %v2206 = vadd.f32 0.0, %v2205
      %2207 = vmatmul.f32.gmra.mxu0 %v2182
      %v2208 = vpop.f32.mrf.mxu0
      %v2209 = vadd.f32 0.0, %v2208
      %2210 = vdwg.mxu0
      %v2211 = vsel %vm2086, %v458, 0
      %v2213 = vsel %vm2086, %v460, 0
      %v2215 = vsel %vm2086, %v1015, 0
      %v2217 = vsel %vm2086, %v1017, 0
      %2219 = vmatpush.xpose.msra.mxu0 0.0
      %2220 = vmatpush.xpose.msra.mxu0 0.0
      %2221 = vmatpush.xpose.msra.mxu0 0.0
      %2222 = vmatpush.xpose.msra.mxu0 0.0
      %2223 = vmatpush.xpose.msra.mxu0 0.0
      %2224 = vmatpush.xpose.msra.mxu0 0.0
      %2225 = vmatpush.xpose.msra.mxu0 0.0
      %2226 = vmatpush.xpose.msra.mxu0 0.0
      %2227 = vmatpush.xpose.msra.mxu0 0.0
      %2228 = vmatpush.xpose.msra.mxu0 0.0
      %2229 = vmatpush.xpose.msra.mxu0 0.0
      %2230 = vmatpush.xpose.msra.mxu0 0.0
      %2231 = vmatpush.xpose.msra.mxu0 0.0
      %2232 = vmatpush.xpose.msra.mxu0 0.0
      %2233 = vmatpush.xpose.msra.mxu0 %v2217
      %2234 = vmatpush.xpose.msra.mxu0 %v2215
      %2235 = vmatmul.f32.gmra.mxu0 %v2211
      %v2236 = vpop.f32.mrf.mxu0
      %v2237 = vadd.f32 0.0, %v2236
      %2238 = vmatmul.f32.gmra.mxu0 %v2213
      %v2239 = vpop.f32.mrf.mxu0
      %v2240 = vadd.f32 0.0, %v2239
      %2241 = vdwg.mxu0
      %v2242 = vsel %vm2086, %v463, 0
      %v2244 = vsel %vm2086, %v465, 0
      %v2246 = vsel %vm2086, %v1019, 0
      %v2248 = vsel %vm2086, %v1021, 0
      %2250 = vmatpush.xpose.msra.mxu0 0.0
      %2251 = vmatpush.xpose.msra.mxu0 0.0
      %2252 = vmatpush.xpose.msra.mxu0 0.0
      %2253 = vmatpush.xpose.msra.mxu0 0.0
      %2254 = vmatpush.xpose.msra.mxu0 0.0
      %2255 = vmatpush.xpose.msra.mxu0 0.0
      %2256 = vmatpush.xpose.msra.mxu0 0.0
      %2257 = vmatpush.xpose.msra.mxu0 0.0
      %2258 = vmatpush.xpose.msra.mxu0 0.0
      %2259 = vmatpush.xpose.msra.mxu0 0.0
      %2260 = vmatpush.xpose.msra.mxu0 0.0
      %2261 = vmatpush.xpose.msra.mxu0 0.0
      %2262 = vmatpush.xpose.msra.mxu0 0.0
      %2263 = vmatpush.xpose.msra.mxu0 0.0
      %2264 = vmatpush.xpose.msra.mxu0 %v2248
      %2265 = vmatpush.xpose.msra.mxu0 %v2246
      %2266 = vmatmul.f32.gmra.mxu0 %v2242
      %v2267 = vpop.f32.mrf.mxu0
      %v2268 = vadd.f32 0.0, %v2267
      %2269 = vmatmul.f32.gmra.mxu0 %v2244
      %v2270 = vpop.f32.mrf.mxu0
      %v2271 = vadd.f32 0.0, %v2270
      %2272 = vdwg.mxu0
      %v2273 = vsel %vm2086, %v468, 0
      %v2275 = vsel %vm2086, %v470, 0
      %v2277 = vsel %vm2086, %v1023, 0
      %v2279 = vsel %vm2086, %v1025, 0
      %2281 = vmatpush.xpose.msra.mxu0 0.0
      %2282 = vmatpush.xpose.msra.mxu0 0.0
      %2283 = vmatpush.xpose.msra.mxu0 0.0
      %2284 = vmatpush.xpose.msra.mxu0 0.0
      %2285 = vmatpush.xpose.msra.mxu0 0.0
      %2286 = vmatpush.xpose.msra.mxu0 0.0
      %2287 = vmatpush.xpose.msra.mxu0 0.0
      %2288 = vmatpush.xpose.msra.mxu0 0.0
      %2289 = vmatpush.xpose.msra.mxu0 0.0
      %2290 = vmatpush.xpose.msra.mxu0 0.0
      %2291 = vmatpush.xpose.msra.mxu0 0.0
      %2292 = vmatpush.xpose.msra.mxu0 0.0
      %2293 = vmatpush.xpose.msra.mxu0 0.0
      %2294 = vmatpush.xpose.msra.mxu0 0.0
      %2295 = vmatpush.xpose.msra.mxu0 %v2279
      %2296 = vmatpush.xpose.msra.mxu0 %v2277
      %2297 = vmatmul.f32.gmra.mxu0 %v2273
      %v2298 = vpop.f32.mrf.mxu0
      %v2299 = vadd.f32 0.0, %v2298
      %2300 = vmatmul.f32.gmra.mxu0 %v2275
      %v2301 = vpop.f32.mrf.mxu0
      %v2302 = vadd.f32 0.0, %v2301
      %2303 = vdwg.mxu0
      %v2304 = vsel %vm2086, %v473, 0
      %v2306 = vsel %vm2086, %v475, 0
      %v2308 = vsel %vm2086, %v1027, 0
      %v2310 = vsel %vm2086, %v1029, 0
      %2312 = vmatpush.xpose.msra.mxu0 0.0
      %2313 = vmatpush.xpose.msra.mxu0 0.0
      %2314 = vmatpush.xpose.msra.mxu0 0.0
      %2315 = vmatpush.xpose.msra.mxu0 0.0
      %2316 = vmatpush.xpose.msra.mxu0 0.0
      %2317 = vmatpush.xpose.msra.mxu0 0.0
      %2318 = vmatpush.xpose.msra.mxu0 0.0
      %2319 = vmatpush.xpose.msra.mxu0 0.0
      %2320 = vmatpush.xpose.msra.mxu0 0.0
      %2321 = vmatpush.xpose.msra.mxu0 0.0
      %2322 = vmatpush.xpose.msra.mxu0 0.0
      %2323 = vmatpush.xpose.msra.mxu0 0.0
      %2324 = vmatpush.xpose.msra.mxu0 0.0
      %2325 = vmatpush.xpose.msra.mxu0 0.0
      %2326 = vmatpush.xpose.msra.mxu0 %v2310
      %2327 = vmatpush.xpose.msra.mxu0 %v2308
      %2328 = vmatmul.f32.gmra.mxu0 %v2304
      %v2329 = vpop.f32.mrf.mxu0
      %v2330 = vadd.f32 0.0, %v2329
      %2331 = vmatmul.f32.gmra.mxu0 %v2306
      %v2332 = vpop.f32.mrf.mxu0
      %v2333 = vadd.f32 0.0, %v2332
      %2334 = vdwg.mxu0
      %v2335 = vsel %vm2086, %v478, 0
      %v2337 = vsel %vm2086, %v480, 0
      %v2339 = vsel %vm2086, %v1031, 0
      %v2341 = vsel %vm2086, %v1033, 0
      %2343 = vmatpush.xpose.msra.mxu0 0.0
      %2344 = vmatpush.xpose.msra.mxu0 0.0
      %2345 = vmatpush.xpose.msra.mxu0 0.0
      %2346 = vmatpush.xpose.msra.mxu0 0.0
      %2347 = vmatpush.xpose.msra.mxu0 0.0
      %2348 = vmatpush.xpose.msra.mxu0 0.0
      %2349 = vmatpush.xpose.msra.mxu0 0.0
      %2350 = vmatpush.xpose.msra.mxu0 0.0
      %2351 = vmatpush.xpose.msra.mxu0 0.0
      %2352 = vmatpush.xpose.msra.mxu0 0.0
      %2353 = vmatpush.xpose.msra.mxu0 0.0
      %2354 = vmatpush.xpose.msra.mxu0 0.0
      %2355 = vmatpush.xpose.msra.mxu0 0.0
      %2356 = vmatpush.xpose.msra.mxu0 0.0
      %2357 = vmatpush.xpose.msra.mxu0 %v2341
      %2358 = vmatpush.xpose.msra.mxu0 %v2339
      %2359 = vmatmul.f32.gmra.mxu0 %v2335
      %v2360 = vpop.f32.mrf.mxu0
      %v2361 = vadd.f32 0.0, %v2360
      %2362 = vmatmul.f32.gmra.mxu0 %v2337
      %v2363 = vpop.f32.mrf.mxu0
      %v2364 = vadd.f32 0.0, %v2363
      %2365 = vdwg.mxu0
      %v2366 = vsel %vm2086, %v483, 0
      %v2368 = vsel %vm2086, %v485, 0
      %v2370 = vsel %vm2086, %v1035, 0
      %v2372 = vsel %vm2086, %v1037, 0
      %2374 = vmatpush.xpose.msra.mxu0 0.0
      %2375 = vmatpush.xpose.msra.mxu0 0.0
      %2376 = vmatpush.xpose.msra.mxu0 0.0
      %2377 = vmatpush.xpose.msra.mxu0 0.0
      %2378 = vmatpush.xpose.msra.mxu0 0.0
      %2379 = vmatpush.xpose.msra.mxu0 0.0
      %2380 = vmatpush.xpose.msra.mxu0 0.0
      %2381 = vmatpush.xpose.msra.mxu0 0.0
      %2382 = vmatpush.xpose.msra.mxu0 0.0
      %2383 = vmatpush.xpose.msra.mxu0 0.0
      %2384 = vmatpush.xpose.msra.mxu0 0.0
      %2385 = vmatpush.xpose.msra.mxu0 0.0
      %2386 = vmatpush.xpose.msra.mxu0 0.0
      %2387 = vmatpush.xpose.msra.mxu0 0.0
      %2388 = vmatpush.xpose.msra.mxu0 %v2372
      %2389 = vmatpush.xpose.msra.mxu0 %v2370
      %2390 = vmatmul.f32.gmra.mxu0 %v2366
      %v2391 = vpop.f32.mrf.mxu0
      %v2392 = vadd.f32 0.0, %v2391
      %2393 = vmatmul.f32.gmra.mxu0 %v2368
      %v2394 = vpop.f32.mrf.mxu0
      %v2395 = vadd.f32 0.0, %v2394
      %2396 = vdwg.mxu0
      %v2397 = vsel %vm2086, %v488, 0
      %v2399 = vsel %vm2086, %v490, 0
      %v2401 = vsel %vm2086, %v1039, 0
      %v2403 = vsel %vm2086, %v1041, 0
      %2405 = vmatpush.xpose.msra.mxu0 0.0
      %2406 = vmatpush.xpose.msra.mxu0 0.0
      %2407 = vmatpush.xpose.msra.mxu0 0.0
      %2408 = vmatpush.xpose.msra.mxu0 0.0
      %2409 = vmatpush.xpose.msra.mxu0 0.0
      %2410 = vmatpush.xpose.msra.mxu0 0.0
      %2411 = vmatpush.xpose.msra.mxu0 0.0
      %2412 = vmatpush.xpose.msra.mxu0 0.0
      %2413 = vmatpush.xpose.msra.mxu0 0.0
      %2414 = vmatpush.xpose.msra.mxu0 0.0
      %2415 = vmatpush.xpose.msra.mxu0 0.0
      %2416 = vmatpush.xpose.msra.mxu0 0.0
      %2417 = vmatpush.xpose.msra.mxu0 0.0
      %2418 = vmatpush.xpose.msra.mxu0 0.0
      %2419 = vmatpush.xpose.msra.mxu0 %v2403
      %2420 = vmatpush.xpose.msra.mxu0 %v2401
      %2421 = vmatmul.f32.gmra.mxu0 %v2397
      %v2422 = vpop.f32.mrf.mxu0
      %v2423 = vadd.f32 0.0, %v2422
      %2424 = vmatmul.f32.gmra.mxu0 %v2399
      %v2425 = vpop.f32.mrf.mxu0
      %v2426 = vadd.f32 0.0, %v2425
      %2427 = vdwg.mxu0
      %v2428 = vsel %vm2086, %v493, 0
      %v2430 = vsel %vm2086, %v495, 0
      %v2432 = vsel %vm2086, %v1043, 0
      %v2434 = vsel %vm2086, %v1045, 0
      %2436 = vmatpush.xpose.msra.mxu0 0.0
      %2437 = vmatpush.xpose.msra.mxu0 0.0
      %2438 = vmatpush.xpose.msra.mxu0 0.0
      %2439 = vmatpush.xpose.msra.mxu0 0.0
      %2440 = vmatpush.xpose.msra.mxu0 0.0
      %2441 = vmatpush.xpose.msra.mxu0 0.0
      %2442 = vmatpush.xpose.msra.mxu0 0.0
      %2443 = vmatpush.xpose.msra.mxu0 0.0
      %2444 = vmatpush.xpose.msra.mxu0 0.0
      %2445 = vmatpush.xpose.msra.mxu0 0.0
      %2446 = vmatpush.xpose.msra.mxu0 0.0
      %2447 = vmatpush.xpose.msra.mxu0 0.0
      %2448 = vmatpush.xpose.msra.mxu0 0.0
      %2449 = vmatpush.xpose.msra.mxu0 0.0
      %2450 = vmatpush.xpose.msra.mxu0 %v2434
      %2451 = vmatpush.xpose.msra.mxu0 %v2432
      %2452 = vmatmul.f32.gmra.mxu0 %v2428
      %v2453 = vpop.f32.mrf.mxu0
      %v2454 = vadd.f32 0.0, %v2453
      %2455 = vmatmul.f32.gmra.mxu0 %v2430
      %v2456 = vpop.f32.mrf.mxu0
      %v2457 = vadd.f32 0.0, %v2456
      %2458 = vdwg.mxu0
      %v2459 = vsel %vm2086, %v498, 0
      %v2461 = vsel %vm2086, %v500, 0
      %v2463 = vsel %vm2086, %v1047, 0
      %v2465 = vsel %vm2086, %v1049, 0
      %2467 = vmatpush.xpose.msra.mxu0 0.0
      %2468 = vmatpush.xpose.msra.mxu0 0.0
      %2469 = vmatpush.xpose.msra.mxu0 0.0
      %2470 = vmatpush.xpose.msra.mxu0 0.0
      %2471 = vmatpush.xpose.msra.mxu0 0.0
      %2472 = vmatpush.xpose.msra.mxu0 0.0
      %2473 = vmatpush.xpose.msra.mxu0 0.0
      %2474 = vmatpush.xpose.msra.mxu0 0.0
      %2475 = vmatpush.xpose.msra.mxu0 0.0
      %2476 = vmatpush.xpose.msra.mxu0 0.0
      %2477 = vmatpush.xpose.msra.mxu0 0.0
      %2478 = vmatpush.xpose.msra.mxu0 0.0
      %2479 = vmatpush.xpose.msra.mxu0 0.0
      %2480 = vmatpush.xpose.msra.mxu0 0.0
      %2481 = vmatpush.xpose.msra.mxu0 %v2465
      %2482 = vmatpush.xpose.msra.mxu0 %v2463
      %2483 = vmatmul.f32.gmra.mxu0 %v2459
      %v2484 = vpop.f32.mrf.mxu0
      %v2485 = vadd.f32 0.0, %v2484
      %2486 = vmatmul.f32.gmra.mxu0 %v2461
      %v2487 = vpop.f32.mrf.mxu0
      %v2488 = vadd.f32 0.0, %v2487
      %2489 = vdwg.mxu0
      %v2490 = vsel %vm2086, %v503, 0
      %v2492 = vsel %vm2086, %v505, 0
      %v2494 = vsel %vm2086, %v1051, 0
      %v2496 = vsel %vm2086, %v1053, 0
      %2498 = vmatpush.xpose.msra.mxu0 0.0
      %2499 = vmatpush.xpose.msra.mxu0 0.0
      %2500 = vmatpush.xpose.msra.mxu0 0.0
      %2501 = vmatpush.xpose.msra.mxu0 0.0
      %2502 = vmatpush.xpose.msra.mxu0 0.0
      %2503 = vmatpush.xpose.msra.mxu0 0.0
      %2504 = vmatpush.xpose.msra.mxu0 0.0
      %2505 = vmatpush.xpose.msra.mxu0 0.0
      %2506 = vmatpush.xpose.msra.mxu0 0.0
      %2507 = vmatpush.xpose.msra.mxu0 0.0
      %2508 = vmatpush.xpose.msra.mxu0 0.0
      %2509 = vmatpush.xpose.msra.mxu0 0.0
      %2510 = vmatpush.xpose.msra.mxu0 0.0
      %2511 = vmatpush.xpose.msra.mxu0 0.0
      %2512 = vmatpush.xpose.msra.mxu0 %v2496
      %2513 = vmatpush.xpose.msra.mxu0 %v2494
      %2514 = vmatmul.f32.gmra.mxu0 %v2490
      %v2515 = vpop.f32.mrf.mxu0
      %v2516 = vadd.f32 0.0, %v2515
      %2517 = vmatmul.f32.gmra.mxu0 %v2492
      %v2518 = vpop.f32.mrf.mxu0
      %v2519 = vadd.f32 0.0, %v2518
      %2520 = vdwg.mxu0
      %v2521 = vsel %vm2086, %v508, 0
      %v2523 = vsel %vm2086, %v510, 0
      %v2525 = vsel %vm2086, %v1055, 0
      %v2527 = vsel %vm2086, %v1057, 0
      %2529 = vmatpush.xpose.msra.mxu0 0.0
      %2530 = vmatpush.xpose.msra.mxu0 0.0
      %2531 = vmatpush.xpose.msra.mxu0 0.0
      %2532 = vmatpush.xpose.msra.mxu0 0.0
      %2533 = vmatpush.xpose.msra.mxu0 0.0
      %2534 = vmatpush.xpose.msra.mxu0 0.0
      %2535 = vmatpush.xpose.msra.mxu0 0.0
      %2536 = vmatpush.xpose.msra.mxu0 0.0
      %2537 = vmatpush.xpose.msra.mxu0 0.0
      %2538 = vmatpush.xpose.msra.mxu0 0.0
      %2539 = vmatpush.xpose.msra.mxu0 0.0
      %2540 = vmatpush.xpose.msra.mxu0 0.0
      %2541 = vmatpush.xpose.msra.mxu0 0.0
      %2542 = vmatpush.xpose.msra.mxu0 0.0
      %2543 = vmatpush.xpose.msra.mxu0 %v2527
      %2544 = vmatpush.xpose.msra.mxu0 %v2525
      %2545 = vmatmul.f32.gmra.mxu0 %v2521
      %v2546 = vpop.f32.mrf.mxu0
      %v2547 = vadd.f32 0.0, %v2546
      %2548 = vmatmul.f32.gmra.mxu0 %v2523
      %v2549 = vpop.f32.mrf.mxu0
      %v2550 = vadd.f32 0.0, %v2549
      %2551 = vdwg.mxu0
      %v2552 = vsel %vm2086, %v513, 0
      %v2554 = vsel %vm2086, %v515, 0
      %v2556 = vsel %vm2086, %v1059, 0
      %v2558 = vsel %vm2086, %v1061, 0
      %2560 = vmatpush.xpose.msra.mxu0 0.0
      %2561 = vmatpush.xpose.msra.mxu0 0.0
      %2562 = vmatpush.xpose.msra.mxu0 0.0
      %2563 = vmatpush.xpose.msra.mxu0 0.0
      %2564 = vmatpush.xpose.msra.mxu0 0.0
      %2565 = vmatpush.xpose.msra.mxu0 0.0
      %2566 = vmatpush.xpose.msra.mxu0 0.0
      %2567 = vmatpush.xpose.msra.mxu0 0.0
      %2568 = vmatpush.xpose.msra.mxu0 0.0
      %2569 = vmatpush.xpose.msra.mxu0 0.0
      %2570 = vmatpush.xpose.msra.mxu0 0.0
      %2571 = vmatpush.xpose.msra.mxu0 0.0
      %2572 = vmatpush.xpose.msra.mxu0 0.0
      %2573 = vmatpush.xpose.msra.mxu0 0.0
      %2574 = vmatpush.xpose.msra.mxu0 %v2558
      %2575 = vmatpush.xpose.msra.mxu0 %v2556
      %2576 = vmatmul.f32.gmra.mxu0 %v2552
      %v2577 = vpop.f32.mrf.mxu0
      %v2578 = vadd.f32 0.0, %v2577
      %2579 = vmatmul.f32.gmra.mxu0 %v2554
      %v2580 = vpop.f32.mrf.mxu0
      %v2581 = vadd.f32 0.0, %v2580
      %2582 = vdwg.mxu0
      %v2584 = vsel %vm2086, %v615, 0
      %v2587 = vsel %vm2086, %v727, 0
      %v2590 = vsel %vm2086, %v1191, 0
      %v2593 = vsel %vm2086, %v1303, 0
      %2595 = vmatpush.xpose.msra.mxu0 0.0
      %2596 = vmatpush.xpose.msra.mxu0 0.0
      %2597 = vmatpush.xpose.msra.mxu0 0.0
      %2598 = vmatpush.xpose.msra.mxu0 0.0
      %2599 = vmatpush.xpose.msra.mxu0 0.0
      %2600 = vmatpush.xpose.msra.mxu0 0.0
      %2601 = vmatpush.xpose.msra.mxu0 0.0
      %2602 = vmatpush.xpose.msra.mxu0 0.0
      %2603 = vmatpush.xpose.msra.mxu0 0.0
      %2604 = vmatpush.xpose.msra.mxu0 0.0
      %2605 = vmatpush.xpose.msra.mxu0 0.0
      %2606 = vmatpush.xpose.msra.mxu0 0.0
      %2607 = vmatpush.xpose.msra.mxu0 0.0
      %2608 = vmatpush.xpose.msra.mxu0 0.0
      %2609 = vmatpush.xpose.msra.mxu0 %v2593
      %2610 = vmatpush.xpose.msra.mxu0 %v2590
      %2611 = vmatmul.f32.gmra.mxu0 %v2584
      %v2612 = vpop.f32.mrf.mxu0
      %v2613 = vadd.f32 0.0, %v2612
      %2614 = vmatmul.f32.gmra.mxu0 %v2587
      %v2615 = vpop.f32.mrf.mxu0
      %v2616 = vadd.f32 0.0, %v2615
      %2617 = vdwg.mxu0
      %v2619 = vsel %vm2086, %v617, 0
      %v2622 = vsel %vm2086, %v729, 0
      %v2625 = vsel %vm2086, %v1193, 0
      %v2628 = vsel %vm2086, %v1305, 0
      %2630 = vmatpush.xpose.msra.mxu0 0.0
      %2631 = vmatpush.xpose.msra.mxu0 0.0
      %2632 = vmatpush.xpose.msra.mxu0 0.0
      %2633 = vmatpush.xpose.msra.mxu0 0.0
      %2634 = vmatpush.xpose.msra.mxu0 0.0
      %2635 = vmatpush.xpose.msra.mxu0 0.0
      %2636 = vmatpush.xpose.msra.mxu0 0.0
      %2637 = vmatpush.xpose.msra.mxu0 0.0
      %2638 = vmatpush.xpose.msra.mxu0 0.0
      %2639 = vmatpush.xpose.msra.mxu0 0.0
      %2640 = vmatpush.xpose.msra.mxu0 0.0
      %2641 = vmatpush.xpose.msra.mxu0 0.0
      %2642 = vmatpush.xpose.msra.mxu0 0.0
      %2643 = vmatpush.xpose.msra.mxu0 0.0
      %2644 = vmatpush.xpose.msra.mxu0 %v2628
      %2645 = vmatpush.xpose.msra.mxu0 %v2625
      %2646 = vmatmul.f32.gmra.mxu0 %v2619
      %v2647 = vpop.f32.mrf.mxu0
      %v2648 = vadd.f32 0.0, %v2647
      %2649 = vmatmul.f32.gmra.mxu0 %v2622
      %v2650 = vpop.f32.mrf.mxu0
      %v2651 = vadd.f32 0.0, %v2650
      %2652 = vdwg.mxu0
      %v2654 = vsel %vm2086, %v619, 0
      %v2657 = vsel %vm2086, %v731, 0
      %v2660 = vsel %vm2086, %v1195, 0
      %v2663 = vsel %vm2086, %v1307, 0
      %2665 = vmatpush.xpose.msra.mxu0 0.0
      %2666 = vmatpush.xpose.msra.mxu0 0.0
      %2667 = vmatpush.xpose.msra.mxu0 0.0
      %2668 = vmatpush.xpose.msra.mxu0 0.0
      %2669 = vmatpush.xpose.msra.mxu0 0.0
      %2670 = vmatpush.xpose.msra.mxu0 0.0
      %2671 = vmatpush.xpose.msra.mxu0 0.0
      %2672 = vmatpush.xpose.msra.mxu0 0.0
      %2673 = vmatpush.xpose.msra.mxu0 0.0
      %2674 = vmatpush.xpose.msra.mxu0 0.0
      %2675 = vmatpush.xpose.msra.mxu0 0.0
      %2676 = vmatpush.xpose.msra.mxu0 0.0
      %2677 = vmatpush.xpose.msra.mxu0 0.0
      %2678 = vmatpush.xpose.msra.mxu0 0.0
      %2679 = vmatpush.xpose.msra.mxu0 %v2663
      %2680 = vmatpush.xpose.msra.mxu0 %v2660
      %2681 = vmatmul.f32.gmra.mxu0 %v2654
      %v2682 = vpop.f32.mrf.mxu0
      %v2683 = vadd.f32 0.0, %v2682
      %2684 = vmatmul.f32.gmra.mxu0 %v2657
      %v2685 = vpop.f32.mrf.mxu0
      %v2686 = vadd.f32 0.0, %v2685
      %2687 = vdwg.mxu0
      %v2689 = vsel %vm2086, %v621, 0
      %v2692 = vsel %vm2086, %v733, 0
      %v2695 = vsel %vm2086, %v1197, 0
      %v2698 = vsel %vm2086, %v1309, 0
      %2700 = vmatpush.xpose.msra.mxu0 0.0
      %2701 = vmatpush.xpose.msra.mxu0 0.0
      %2702 = vmatpush.xpose.msra.mxu0 0.0
      %2703 = vmatpush.xpose.msra.mxu0 0.0
      %2704 = vmatpush.xpose.msra.mxu0 0.0
      %2705 = vmatpush.xpose.msra.mxu0 0.0
      %2706 = vmatpush.xpose.msra.mxu0 0.0
      %2707 = vmatpush.xpose.msra.mxu0 0.0
      %2708 = vmatpush.xpose.msra.mxu0 0.0
      %2709 = vmatpush.xpose.msra.mxu0 0.0
      %2710 = vmatpush.xpose.msra.mxu0 0.0
      %2711 = vmatpush.xpose.msra.mxu0 0.0
      %2712 = vmatpush.xpose.msra.mxu0 0.0
      %2713 = vmatpush.xpose.msra.mxu0 0.0
      %2714 = vmatpush.xpose.msra.mxu0 %v2698
      %2715 = vmatpush.xpose.msra.mxu0 %v2695
      %2716 = vmatmul.f32.gmra.mxu0 %v2689
      %v2717 = vpop.f32.mrf.mxu0
      %v2718 = vadd.f32 0.0, %v2717
      %2719 = vmatmul.f32.gmra.mxu0 %v2692
      %v2720 = vpop.f32.mrf.mxu0
      %v2721 = vadd.f32 0.0, %v2720
      %2722 = vdwg.mxu0
      %v2724 = vsel %vm2086, %v623, 0
      %v2727 = vsel %vm2086, %v735, 0
      %v2730 = vsel %vm2086, %v1199, 0
      %v2733 = vsel %vm2086, %v1311, 0
      %2735 = vmatpush.xpose.msra.mxu0 0.0
      %2736 = vmatpush.xpose.msra.mxu0 0.0
      %2737 = vmatpush.xpose.msra.mxu0 0.0
      %2738 = vmatpush.xpose.msra.mxu0 0.0
      %2739 = vmatpush.xpose.msra.mxu0 0.0
      %2740 = vmatpush.xpose.msra.mxu0 0.0
      %2741 = vmatpush.xpose.msra.mxu0 0.0
      %2742 = vmatpush.xpose.msra.mxu0 0.0
      %2743 = vmatpush.xpose.msra.mxu0 0.0
      %2744 = vmatpush.xpose.msra.mxu0 0.0
      %2745 = vmatpush.xpose.msra.mxu0 0.0
      %2746 = vmatpush.xpose.msra.mxu0 0.0
      %2747 = vmatpush.xpose.msra.mxu0 0.0
      %2748 = vmatpush.xpose.msra.mxu0 0.0
      %2749 = vmatpush.xpose.msra.mxu0 %v2733
      %2750 = vmatpush.xpose.msra.mxu0 %v2730
      %2751 = vmatmul.f32.gmra.mxu0 %v2724
      %v2752 = vpop.f32.mrf.mxu0
      %v2753 = vadd.f32 0.0, %v2752
      %2754 = vmatmul.f32.gmra.mxu0 %v2727
      %v2755 = vpop.f32.mrf.mxu0
      %v2756 = vadd.f32 0.0, %v2755
      %2757 = vdwg.mxu0
      %v2759 = vsel %vm2086, %v625, 0
      %v2762 = vsel %vm2086, %v737, 0
      %v2765 = vsel %vm2086, %v1201, 0
      %v2768 = vsel %vm2086, %v1313, 0
      %2770 = vmatpush.xpose.msra.mxu0 0.0
      %2771 = vmatpush.xpose.msra.mxu0 0.0
      %2772 = vmatpush.xpose.msra.mxu0 0.0
      %2773 = vmatpush.xpose.msra.mxu0 0.0
      %2774 = vmatpush.xpose.msra.mxu0 0.0
      %2775 = vmatpush.xpose.msra.mxu0 0.0
      %2776 = vmatpush.xpose.msra.mxu0 0.0
      %2777 = vmatpush.xpose.msra.mxu0 0.0
      %2778 = vmatpush.xpose.msra.mxu0 0.0
      %2779 = vmatpush.xpose.msra.mxu0 0.0
      %2780 = vmatpush.xpose.msra.mxu0 0.0
      %2781 = vmatpush.xpose.msra.mxu0 0.0
      %2782 = vmatpush.xpose.msra.mxu0 0.0
      %2783 = vmatpush.xpose.msra.mxu0 0.0
      %2784 = vmatpush.xpose.msra.mxu0 %v2768
      %2785 = vmatpush.xpose.msra.mxu0 %v2765
      %2786 = vmatmul.f32.gmra.mxu0 %v2759
      %v2787 = vpop.f32.mrf.mxu0
      %v2788 = vadd.f32 0.0, %v2787
      %2789 = vmatmul.f32.gmra.mxu0 %v2762
      %v2790 = vpop.f32.mrf.mxu0
      %v2791 = vadd.f32 0.0, %v2790
      %2792 = vdwg.mxu0
      %v2794 = vsel %vm2086, %v627, 0
      %v2797 = vsel %vm2086, %v739, 0
      %v2800 = vsel %vm2086, %v1203, 0
      %v2803 = vsel %vm2086, %v1315, 0
      %2805 = vmatpush.xpose.msra.mxu0 0.0
      %2806 = vmatpush.xpose.msra.mxu0 0.0
      %2807 = vmatpush.xpose.msra.mxu0 0.0
      %2808 = vmatpush.xpose.msra.mxu0 0.0
      %2809 = vmatpush.xpose.msra.mxu0 0.0
      %2810 = vmatpush.xpose.msra.mxu0 0.0
      %2811 = vmatpush.xpose.msra.mxu0 0.0
      %2812 = vmatpush.xpose.msra.mxu0 0.0
      %2813 = vmatpush.xpose.msra.mxu0 0.0
      %2814 = vmatpush.xpose.msra.mxu0 0.0
      %2815 = vmatpush.xpose.msra.mxu0 0.0
      %2816 = vmatpush.xpose.msra.mxu0 0.0
      %2817 = vmatpush.xpose.msra.mxu0 0.0
      %2818 = vmatpush.xpose.msra.mxu0 0.0
      %2819 = vmatpush.xpose.msra.mxu0 %v2803
      %2820 = vmatpush.xpose.msra.mxu0 %v2800
      %2821 = vmatmul.f32.gmra.mxu0 %v2794
      %v2822 = vpop.f32.mrf.mxu0
      %v2823 = vadd.f32 0.0, %v2822
      %2824 = vmatmul.f32.gmra.mxu0 %v2797
      %v2825 = vpop.f32.mrf.mxu0
      %v2826 = vadd.f32 0.0, %v2825
      %2827 = vdwg.mxu0
      %v2829 = vsel %vm2086, %v629, 0
      %v2832 = vsel %vm2086, %v741, 0
      %v2835 = vsel %vm2086, %v1205, 0
      %v2838 = vsel %vm2086, %v1317, 0
      %2840 = vmatpush.xpose.msra.mxu0 0.0
      %2841 = vmatpush.xpose.msra.mxu0 0.0
      %2842 = vmatpush.xpose.msra.mxu0 0.0
      %2843 = vmatpush.xpose.msra.mxu0 0.0
      %2844 = vmatpush.xpose.msra.mxu0 0.0
      %2845 = vmatpush.xpose.msra.mxu0 0.0
      %2846 = vmatpush.xpose.msra.mxu0 0.0
      %2847 = vmatpush.xpose.msra.mxu0 0.0
      %2848 = vmatpush.xpose.msra.mxu0 0.0
      %2849 = vmatpush.xpose.msra.mxu0 0.0
      %2850 = vmatpush.xpose.msra.mxu0 0.0
      %2851 = vmatpush.xpose.msra.mxu0 0.0
      %2852 = vmatpush.xpose.msra.mxu0 0.0
      %2853 = vmatpush.xpose.msra.mxu0 0.0
      %2854 = vmatpush.xpose.msra.mxu0 %v2838
      %2855 = vmatpush.xpose.msra.mxu0 %v2835
      %2856 = vmatmul.f32.gmra.mxu0 %v2829
      %v2857 = vpop.f32.mrf.mxu0
      %v2858 = vadd.f32 0.0, %v2857
      %2859 = vmatmul.f32.gmra.mxu0 %v2832
      %v2860 = vpop.f32.mrf.mxu0
      %v2861 = vadd.f32 0.0, %v2860
      %2862 = vdwg.mxu0
      %v2864 = vsel %vm2086, %v839, 0
      %v2867 = vsel %vm2086, %v951, 0
      %v2870 = vsel %vm2086, %v1415, 0
      %v2873 = vsel %vm2086, %v1527, 0
      %2875 = vmatpush.xpose.msra.mxu0 0.0
      %2876 = vmatpush.xpose.msra.mxu0 0.0
      %2877 = vmatpush.xpose.msra.mxu0 0.0
      %2878 = vmatpush.xpose.msra.mxu0 0.0
      %2879 = vmatpush.xpose.msra.mxu0 0.0
      %2880 = vmatpush.xpose.msra.mxu0 0.0
      %2881 = vmatpush.xpose.msra.mxu0 0.0
      %2882 = vmatpush.xpose.msra.mxu0 0.0
      %2883 = vmatpush.xpose.msra.mxu0 0.0
      %2884 = vmatpush.xpose.msra.mxu0 0.0
      %2885 = vmatpush.xpose.msra.mxu0 0.0
      %2886 = vmatpush.xpose.msra.mxu0 0.0
      %2887 = vmatpush.xpose.msra.mxu0 0.0
      %2888 = vmatpush.xpose.msra.mxu0 0.0
      %2889 = vmatpush.xpose.msra.mxu0 %v2873
      %2890 = vmatpush.xpose.msra.mxu0 %v2870
      %2891 = vmatmul.f32.gmra.mxu0 %v2864
      %v2892 = vpop.f32.mrf.mxu0
      %v2893 = vadd.f32 0.0, %v2892
      %2894 = vmatmul.f32.gmra.mxu0 %v2867
      %v2895 = vpop.f32.mrf.mxu0
      %v2896 = vadd.f32 0.0, %v2895
      %2897 = vdwg.mxu0
      %v2899 = vsel %vm2086, %v841, 0
      %v2902 = vsel %vm2086, %v953, 0
      %v2905 = vsel %vm2086, %v1417, 0
      %v2908 = vsel %vm2086, %v1529, 0
      %2910 = vmatpush.xpose.msra.mxu0 0.0
      %2911 = vmatpush.xpose.msra.mxu0 0.0
      %2912 = vmatpush.xpose.msra.mxu0 0.0
      %2913 = vmatpush.xpose.msra.mxu0 0.0
      %2914 = vmatpush.xpose.msra.mxu0 0.0
      %2915 = vmatpush.xpose.msra.mxu0 0.0
      %2916 = vmatpush.xpose.msra.mxu0 0.0
      %2917 = vmatpush.xpose.msra.mxu0 0.0
      %2918 = vmatpush.xpose.msra.mxu0 0.0
      %2919 = vmatpush.xpose.msra.mxu0 0.0
      %2920 = vmatpush.xpose.msra.mxu0 0.0
      %2921 = vmatpush.xpose.msra.mxu0 0.0
      %2922 = vmatpush.xpose.msra.mxu0 0.0
      %2923 = vmatpush.xpose.msra.mxu0 0.0
      %2924 = vmatpush.xpose.msra.mxu0 %v2908
      %2925 = vmatpush.xpose.msra.mxu0 %v2905
      %2926 = vmatmul.f32.gmra.mxu0 %v2899
      %v2927 = vpop.f32.mrf.mxu0
      %v2928 = vadd.f32 0.0, %v2927
      %2929 = vmatmul.f32.gmra.mxu0 %v2902
      %v2930 = vpop.f32.mrf.mxu0
      %v2931 = vadd.f32 0.0, %v2930
      %2932 = vdwg.mxu0
      %v2934 = vsel %vm2086, %v843, 0
      %v2937 = vsel %vm2086, %v955, 0
      %v2940 = vsel %vm2086, %v1419, 0
      %v2943 = vsel %vm2086, %v1531, 0
      %2945 = vmatpush.xpose.msra.mxu0 0.0
      %2946 = vmatpush.xpose.msra.mxu0 0.0
      %2947 = vmatpush.xpose.msra.mxu0 0.0
      %2948 = vmatpush.xpose.msra.mxu0 0.0
      %2949 = vmatpush.xpose.msra.mxu0 0.0
      %2950 = vmatpush.xpose.msra.mxu0 0.0
      %2951 = vmatpush.xpose.msra.mxu0 0.0
      %2952 = vmatpush.xpose.msra.mxu0 0.0
      %2953 = vmatpush.xpose.msra.mxu0 0.0
      %2954 = vmatpush.xpose.msra.mxu0 0.0
      %2955 = vmatpush.xpose.msra.mxu0 0.0
      %2956 = vmatpush.xpose.msra.mxu0 0.0
      %2957 = vmatpush.xpose.msra.mxu0 0.0
      %2958 = vmatpush.xpose.msra.mxu0 0.0
      %2959 = vmatpush.xpose.msra.mxu0 %v2943
      %2960 = vmatpush.xpose.msra.mxu0 %v2940
      %2961 = vmatmul.f32.gmra.mxu0 %v2934
      %v2962 = vpop.f32.mrf.mxu0
      %v2963 = vadd.f32 0.0, %v2962
      %2964 = vmatmul.f32.gmra.mxu0 %v2937
      %v2965 = vpop.f32.mrf.mxu0
      %v2966 = vadd.f32 0.0, %v2965
      %2967 = vdwg.mxu0
      %v2969 = vsel %vm2086, %v845, 0
      %v2972 = vsel %vm2086, %v957, 0
      %v2975 = vsel %vm2086, %v1421, 0
      %v2978 = vsel %vm2086, %v1533, 0
      %2980 = vmatpush.xpose.msra.mxu0 0.0
      %2981 = vmatpush.xpose.msra.mxu0 0.0
      %2982 = vmatpush.xpose.msra.mxu0 0.0
      %2983 = vmatpush.xpose.msra.mxu0 0.0
      %2984 = vmatpush.xpose.msra.mxu0 0.0
      %2985 = vmatpush.xpose.msra.mxu0 0.0
      %2986 = vmatpush.xpose.msra.mxu0 0.0
      %2987 = vmatpush.xpose.msra.mxu0 0.0
      %2988 = vmatpush.xpose.msra.mxu0 0.0
      %2989 = vmatpush.xpose.msra.mxu0 0.0
      %2990 = vmatpush.xpose.msra.mxu0 0.0
      %2991 = vmatpush.xpose.msra.mxu0 0.0
      %2992 = vmatpush.xpose.msra.mxu0 0.0
      %2993 = vmatpush.xpose.msra.mxu0 0.0
      %2994 = vmatpush.xpose.msra.mxu0 %v2978
      %2995 = vmatpush.xpose.msra.mxu0 %v2975
      %2996 = vmatmul.f32.gmra.mxu0 %v2969
      %v2997 = vpop.f32.mrf.mxu0
      %v2998 = vadd.f32 0.0, %v2997
      %2999 = vmatmul.f32.gmra.mxu0 %v2972
      %v3000 = vpop.f32.mrf.mxu0
      %v3001 = vadd.f32 0.0, %v3000
      %3002 = vdwg.mxu0
      %v3004 = vsel %vm2086, %v847, 0
      %v3007 = vsel %vm2086, %v959, 0
      %v3010 = vsel %vm2086, %v1423, 0
      %v3013 = vsel %vm2086, %v1535, 0
      %3015 = vmatpush.xpose.msra.mxu0 0.0
      %3016 = vmatpush.xpose.msra.mxu0 0.0
      %3017 = vmatpush.xpose.msra.mxu0 0.0
      %3018 = vmatpush.xpose.msra.mxu0 0.0
      %3019 = vmatpush.xpose.msra.mxu0 0.0
      %3020 = vmatpush.xpose.msra.mxu0 0.0
      %3021 = vmatpush.xpose.msra.mxu0 0.0
      %3022 = vmatpush.xpose.msra.mxu0 0.0
      %3023 = vmatpush.xpose.msra.mxu0 0.0
      %3024 = vmatpush.xpose.msra.mxu0 0.0
      %3025 = vmatpush.xpose.msra.mxu0 0.0
      %3026 = vmatpush.xpose.msra.mxu0 0.0
      %3027 = vmatpush.xpose.msra.mxu0 0.0
      %3028 = vmatpush.xpose.msra.mxu0 0.0
      %3029 = vmatpush.xpose.msra.mxu0 %v3013
      %3030 = vmatpush.xpose.msra.mxu0 %v3010
      %3031 = vmatmul.f32.gmra.mxu0 %v3004
      %v3032 = vpop.f32.mrf.mxu0
      %v3033 = vadd.f32 0.0, %v3032
      %3034 = vmatmul.f32.gmra.mxu0 %v3007
      %v3035 = vpop.f32.mrf.mxu0
      %v3036 = vadd.f32 0.0, %v3035
      %3037 = vdwg.mxu0
      %v3039 = vsel %vm2086, %v849, 0
      %v3042 = vsel %vm2086, %v961, 0
      %v3045 = vsel %vm2086, %v1425, 0
      %v3048 = vsel %vm2086, %v1537, 0
      %3050 = vmatpush.xpose.msra.mxu0 0.0
      %3051 = vmatpush.xpose.msra.mxu0 0.0
      %3052 = vmatpush.xpose.msra.mxu0 0.0
      %3053 = vmatpush.xpose.msra.mxu0 0.0
      %3054 = vmatpush.xpose.msra.mxu0 0.0
      %3055 = vmatpush.xpose.msra.mxu0 0.0
      %3056 = vmatpush.xpose.msra.mxu0 0.0
      %3057 = vmatpush.xpose.msra.mxu0 0.0
      %3058 = vmatpush.xpose.msra.mxu0 0.0
      %3059 = vmatpush.xpose.msra.mxu0 0.0
      %3060 = vmatpush.xpose.msra.mxu0 0.0
      %3061 = vmatpush.xpose.msra.mxu0 0.0
      %3062 = vmatpush.xpose.msra.mxu0 0.0
      %3063 = vmatpush.xpose.msra.mxu0 0.0
      %3064 = vmatpush.xpose.msra.mxu0 %v3048
      %3065 = vmatpush.xpose.msra.mxu0 %v3045
      %3066 = vmatmul.f32.gmra.mxu0 %v3039
      %v3067 = vpop.f32.mrf.mxu0
      %v3068 = vadd.f32 0.0, %v3067
      %3069 = vmatmul.f32.gmra.mxu0 %v3042
      %v3070 = vpop.f32.mrf.mxu0
      %v3071 = vadd.f32 0.0, %v3070
      %3072 = vdwg.mxu0
      %v3074 = vsel %vm2086, %v851, 0
      %v3077 = vsel %vm2086, %v963, 0
      %v3080 = vsel %vm2086, %v1427, 0
      %v3083 = vsel %vm2086, %v1539, 0
      %3085 = vmatpush.xpose.msra.mxu0 0.0
      %3086 = vmatpush.xpose.msra.mxu0 0.0
      %3087 = vmatpush.xpose.msra.mxu0 0.0
      %3088 = vmatpush.xpose.msra.mxu0 0.0
      %3089 = vmatpush.xpose.msra.mxu0 0.0
      %3090 = vmatpush.xpose.msra.mxu0 0.0
      %3091 = vmatpush.xpose.msra.mxu0 0.0
      %3092 = vmatpush.xpose.msra.mxu0 0.0
      %3093 = vmatpush.xpose.msra.mxu0 0.0
      %3094 = vmatpush.xpose.msra.mxu0 0.0
      %3095 = vmatpush.xpose.msra.mxu0 0.0
      %3096 = vmatpush.xpose.msra.mxu0 0.0
      %3097 = vmatpush.xpose.msra.mxu0 0.0
      %3098 = vmatpush.xpose.msra.mxu0 0.0
      %3099 = vmatpush.xpose.msra.mxu0 %v3083
      %3100 = vmatpush.xpose.msra.mxu0 %v3080
      %3101 = vmatmul.f32.gmra.mxu0 %v3074
      %v3102 = vpop.f32.mrf.mxu0
      %v3103 = vadd.f32 0.0, %v3102
      %3104 = vmatmul.f32.gmra.mxu0 %v3077
      %v3105 = vpop.f32.mrf.mxu0
      %v3106 = vadd.f32 0.0, %v3105
      %3107 = vdwg.mxu0
      %v3109 = vsel %vm2086, %v853, 0
      %v3112 = vsel %vm2086, %v965, 0
      %v3115 = vsel %vm2086, %v1429, 0
      %v3118 = vsel %vm2086, %v1541, 0
      %3120 = vmatpush.xpose.msra.mxu0 0.0
      %3121 = vmatpush.xpose.msra.mxu0 0.0
      %3122 = vmatpush.xpose.msra.mxu0 0.0
      %3123 = vmatpush.xpose.msra.mxu0 0.0
      %3124 = vmatpush.xpose.msra.mxu0 0.0
      %3125 = vmatpush.xpose.msra.mxu0 0.0
      %3126 = vmatpush.xpose.msra.mxu0 0.0
      %3127 = vmatpush.xpose.msra.mxu0 0.0
      %3128 = vmatpush.xpose.msra.mxu0 0.0
      %3129 = vmatpush.xpose.msra.mxu0 0.0
      %3130 = vmatpush.xpose.msra.mxu0 0.0
      %3131 = vmatpush.xpose.msra.mxu0 0.0
      %3132 = vmatpush.xpose.msra.mxu0 0.0
      %3133 = vmatpush.xpose.msra.mxu0 0.0
      %3134 = vmatpush.xpose.msra.mxu0 %v3118
      %3135 = vmatpush.xpose.msra.mxu0 %v3115
      %3136 = vmatmul.f32.gmra.mxu0 %v3109
      %v3137 = vpop.f32.mrf.mxu0
      %v3138 = vadd.f32 0.0, %v3137
      %3139 = vmatmul.f32.gmra.mxu0 %v3112
      %v3140 = vpop.f32.mrf.mxu0
      %v3141 = vadd.f32 0.0, %v3140
      %3142 = vdwg.mxu0
      %v3143 = vlaneseq
      %v3144 = vshrl.u32 %v3143, 7
      %v3145 = vadd.s32 %v3144, 8
      %v3146 = vlaneseq
      %v3147 = vand.u32 %v3146, 127
      %vm3148 = vcmp.eq.s32.totalorder %v3144, %v3147
      %vm3149 = vcmp.eq.s32.totalorder %v3145, %v3147
      %v3150 = vsel %vm3148, 1, 0
      %v3151 = vsel %vm3149, 1, 0
      %vm3152 = vcmp.eq.s32.totalorder %v3150, 1
      %vm3153 = vcmp.eq.s32.totalorder %v3151, 1
      %v3154 = vsel %vm3152, -1e+30, %v2613
      %v3155 = vsel %vm3153, -1e+30, %v2616
      %v3156 = vsel %vm3152, -1e+30, %v2648
      %v3157 = vsel %vm3153, -1e+30, %v2651
      %v3158 = vsel %vm3152, -1e+30, %v2683
      %v3159 = vsel %vm3153, -1e+30, %v2686
      %v3160 = vsel %vm3152, -1e+30, %v2718
      %v3161 = vsel %vm3153, -1e+30, %v2721
      %v3162 = vsel %vm3152, -1e+30, %v2753
      %v3163 = vsel %vm3153, -1e+30, %v2756
      %v3164 = vsel %vm3152, -1e+30, %v2788
      %v3165 = vsel %vm3153, -1e+30, %v2791
      %v3166 = vsel %vm3152, -1e+30, %v2823
      %v3167 = vsel %vm3153, -1e+30, %v2826
      %v3168 = vsel %vm3152, -1e+30, %v2858
      %v3169 = vsel %vm3153, -1e+30, %v2861
      %v3170 = vsel %vm3152, -1e+30, %v2893
      %v3171 = vsel %vm3153, -1e+30, %v2896
      %v3172 = vsel %vm3152, -1e+30, %v2928
      %v3173 = vsel %vm3153, -1e+30, %v2931
      %v3174 = vsel %vm3152, -1e+30, %v2963
      %v3175 = vsel %vm3153, -1e+30, %v2966
      %v3176 = vsel %vm3152, -1e+30, %v2998
      %v3177 = vsel %vm3153, -1e+30, %v3001
      %v3178 = vsel %vm3152, -1e+30, %v3033
      %v3179 = vsel %vm3153, -1e+30, %v3036
      %v3180 = vsel %vm3152, -1e+30, %v3068
      %v3181 = vsel %vm3153, -1e+30, %v3071
      %v3182 = vsel %vm3152, -1e+30, %v3103
      %v3183 = vsel %vm3153, -1e+30, %v3106
      %v3184 = vsel %vm3152, -1e+30, %v3138
      %v3185 = vsel %vm3153, -1e+30, %v3141
      %vm3186 = vcmask 130048
      %v3187 = vsel %vm3186, %v2113, -inf
      %3188 = vmax.xlane.f32.xlu0 %v3187
      %v3189 = vpop.xlane.xlu0 %3188
      %v3190 = vsel %vm3186, %v2116, -inf
      %3191 = vmax.xlane.f32.xlu0 %v3190
      %v3192 = vpop.xlane.xlu0 %3191
      %v3193 = vsel %vm3186, %v2144, -inf
      %3194 = vmax.xlane.f32.xlu0 %v3193
      %v3195 = vpop.xlane.xlu0 %3194
      %v3196 = vsel %vm3186, %v2147, -inf
      %3197 = vmax.xlane.f32.xlu0 %v3196
      %v3198 = vpop.xlane.xlu0 %3197
      %v3199 = vsel %vm3186, %v2175, -inf
      %3200 = vmax.xlane.f32.xlu0 %v3199
      %v3201 = vpop.xlane.xlu0 %3200
      %v3202 = vsel %vm3186, %v2178, -inf
      %3203 = vmax.xlane.f32.xlu0 %v3202
      %v3204 = vpop.xlane.xlu0 %3203
      %v3205 = vsel %vm3186, %v2206, -inf
      %3206 = vmax.xlane.f32.xlu0 %v3205
      %v3207 = vpop.xlane.xlu0 %3206
      %v3208 = vsel %vm3186, %v2209, -inf
      %3209 = vmax.xlane.f32.xlu0 %v3208
      %v3210 = vpop.xlane.xlu0 %3209
      %v3211 = vsel %vm3186, %v2237, -inf
      %3212 = vmax.xlane.f32.xlu0 %v3211
      %v3213 = vpop.xlane.xlu0 %3212
      %v3214 = vsel %vm3186, %v2240, -inf
      %3215 = vmax.xlane.f32.xlu0 %v3214
      %v3216 = vpop.xlane.xlu0 %3215
      %v3217 = vsel %vm3186, %v2268, -inf
      %3218 = vmax.xlane.f32.xlu0 %v3217
      %v3219 = vpop.xlane.xlu0 %3218
      %v3220 = vsel %vm3186, %v2271, -inf
      %3221 = vmax.xlane.f32.xlu0 %v3220
      %v3222 = vpop.xlane.xlu0 %3221
      %v3223 = vsel %vm3186, %v2299, -inf
      %3224 = vmax.xlane.f32.xlu0 %v3223
      %v3225 = vpop.xlane.xlu0 %3224
      %v3226 = vsel %vm3186, %v2302, -inf
      %3227 = vmax.xlane.f32.xlu0 %v3226
      %v3228 = vpop.xlane.xlu0 %3227
      %v3229 = vsel %vm3186, %v2330, -inf
      %3230 = vmax.xlane.f32.xlu0 %v3229
      %v3231 = vpop.xlane.xlu0 %3230
      %v3232 = vsel %vm3186, %v2333, -inf
      %3233 = vmax.xlane.f32.xlu0 %v3232
      %v3234 = vpop.xlane.xlu0 %3233
      %v3235 = vsel %vm3186, %v2361, -inf
      %3236 = vmax.xlane.f32.xlu0 %v3235
      %v3237 = vpop.xlane.xlu0 %3236
      %v3238 = vsel %vm3186, %v2364, -inf
      %3239 = vmax.xlane.f32.xlu0 %v3238
      %v3240 = vpop.xlane.xlu0 %3239
      %v3241 = vsel %vm3186, %v2392, -inf
      %3242 = vmax.xlane.f32.xlu0 %v3241
      %v3243 = vpop.xlane.xlu0 %3242
      %v3244 = vsel %vm3186, %v2395, -inf
      %3245 = vmax.xlane.f32.xlu0 %v3244
      %v3246 = vpop.xlane.xlu0 %3245
      %v3247 = vsel %vm3186, %v2423, -inf
      %3248 = vmax.xlane.f32.xlu0 %v3247
      %v3249 = vpop.xlane.xlu0 %3248
      %v3250 = vsel %vm3186, %v2426, -inf
      %3251 = vmax.xlane.f32.xlu0 %v3250
      %v3252 = vpop.xlane.xlu0 %3251
      %v3253 = vsel %vm3186, %v2454, -inf
      %3254 = vmax.xlane.f32.xlu0 %v3253
      %v3255 = vpop.xlane.xlu0 %3254
      %v3256 = vsel %vm3186, %v2457, -inf
      %3257 = vmax.xlane.f32.xlu0 %v3256
      %v3258 = vpop.xlane.xlu0 %3257
      %v3259 = vsel %vm3186, %v2485, -inf
      %3260 = vmax.xlane.f32.xlu0 %v3259
      %v3261 = vpop.xlane.xlu0 %3260
      %v3262 = vsel %vm3186, %v2488, -inf
      %3263 = vmax.xlane.f32.xlu0 %v3262
      %v3264 = vpop.xlane.xlu0 %3263
      %v3265 = vsel %vm3186, %v2516, -inf
      %3266 = vmax.xlane.f32.xlu0 %v3265
      %v3267 = vpop.xlane.xlu0 %3266
      %v3268 = vsel %vm3186, %v2519, -inf
      %3269 = vmax.xlane.f32.xlu0 %v3268
      %v3270 = vpop.xlane.xlu0 %3269
      %v3271 = vsel %vm3186, %v2547, -inf
      %3272 = vmax.xlane.f32.xlu0 %v3271
      %v3273 = vpop.xlane.xlu0 %3272
      %v3274 = vsel %vm3186, %v2550, -inf
      %3275 = vmax.xlane.f32.xlu0 %v3274
      %v3276 = vpop.xlane.xlu0 %3275
      %v3277 = vsel %vm3186, %v2578, -inf
      %3278 = vmax.xlane.f32.xlu0 %v3277
      %v3279 = vpop.xlane.xlu0 %3278
      %v3280 = vsel %vm3186, %v2581, -inf
      %3281 = vmax.xlane.f32.xlu0 %v3280
      %v3282 = vpop.xlane.xlu0 %3281
      %v3283 = vsel %vm3186, %v3154, -inf
      %3284 = vmax.xlane.f32.xlu0 %v3283
      %v3285 = vpop.xlane.xlu0 %3284
      %v3286 = vsel %vm3186, %v3155, -inf
      %3287 = vmax.xlane.f32.xlu0 %v3286
      %v3288 = vpop.xlane.xlu0 %3287
      %v3289 = vsel %vm3186, %v3156, -inf
      %3290 = vmax.xlane.f32.xlu0 %v3289
      %v3291 = vpop.xlane.xlu0 %3290
      %v3292 = vsel %vm3186, %v3157, -inf
      %3293 = vmax.xlane.f32.xlu0 %v3292
      %v3294 = vpop.xlane.xlu0 %3293
      %v3295 = vsel %vm3186, %v3158, -inf
      %3296 = vmax.xlane.f32.xlu0 %v3295
      %v3297 = vpop.xlane.xlu0 %3296
      %v3298 = vsel %vm3186, %v3159, -inf
      %3299 = vmax.xlane.f32.xlu0 %v3298
      %v3300 = vpop.xlane.xlu0 %3299
      %v3301 = vsel %vm3186, %v3160, -inf
      %3302 = vmax.xlane.f32.xlu0 %v3301
      %v3303 = vpop.xlane.xlu0 %3302
      %v3304 = vsel %vm3186, %v3161, -inf
      %3305 = vmax.xlane.f32.xlu0 %v3304
      %v3306 = vpop.xlane.xlu0 %3305
      %v3307 = vsel %vm3186, %v3162, -inf
      %3308 = vmax.xlane.f32.xlu0 %v3307
      %v3309 = vpop.xlane.xlu0 %3308
      %v3310 = vsel %vm3186, %v3163, -inf
      %3311 = vmax.xlane.f32.xlu0 %v3310
      %v3312 = vpop.xlane.xlu0 %3311
      %v3313 = vsel %vm3186, %v3164, -inf
      %3314 = vmax.xlane.f32.xlu0 %v3313
      %v3315 = vpop.xlane.xlu0 %3314
      %v3316 = vsel %vm3186, %v3165, -inf
      %3317 = vmax.xlane.f32.xlu0 %v3316
      %v3318 = vpop.xlane.xlu0 %3317
      %v3319 = vsel %vm3186, %v3166, -inf
      %3320 = vmax.xlane.f32.xlu0 %v3319
      %v3321 = vpop.xlane.xlu0 %3320
      %v3322 = vsel %vm3186, %v3167, -inf
      %3323 = vmax.xlane.f32.xlu0 %v3322
      %v3324 = vpop.xlane.xlu0 %3323
      %v3325 = vsel %vm3186, %v3168, -inf
      %3326 = vmax.xlane.f32.xlu0 %v3325
      %v3327 = vpop.xlane.xlu0 %3326
      %v3328 = vsel %vm3186, %v3169, -inf
      %3329 = vmax.xlane.f32.xlu0 %v3328
      %v3330 = vpop.xlane.xlu0 %3329
      %v3331 = vsel %vm3186, %v3170, -inf
      %3332 = vmax.xlane.f32.xlu0 %v3331
      %v3333 = vpop.xlane.xlu0 %3332
      %v3334 = vsel %vm3186, %v3171, -inf
      %3335 = vmax.xlane.f32.xlu0 %v3334
      %v3336 = vpop.xlane.xlu0 %3335
      %v3337 = vsel %vm3186, %v3172, -inf
      %3338 = vmax.xlane.f32.xlu0 %v3337
      %v3339 = vpop.xlane.xlu0 %3338
      %v3340 = vsel %vm3186, %v3173, -inf
      %3341 = vmax.xlane.f32.xlu0 %v3340
      %v3342 = vpop.xlane.xlu0 %3341
      %v3343 = vsel %vm3186, %v3174, -inf
      %3344 = vmax.xlane.f32.xlu0 %v3343
      %v3345 = vpop.xlane.xlu0 %3344
      %v3346 = vsel %vm3186, %v3175, -inf
      %3347 = vmax.xlane.f32.xlu0 %v3346
      %v3348 = vpop.xlane.xlu0 %3347
      %v3349 = vsel %vm3186, %v3176, -inf
      %3350 = vmax.xlane.f32.xlu0 %v3349
      %v3351 = vpop.xlane.xlu0 %3350
      %v3352 = vsel %vm3186, %v3177, -inf
      %3353 = vmax.xlane.f32.xlu0 %v3352
      %v3354 = vpop.xlane.xlu0 %3353
      %v3355 = vsel %vm3186, %v3178, -inf
      %3356 = vmax.xlane.f32.xlu0 %v3355
      %v3357 = vpop.xlane.xlu0 %3356
      %v3358 = vsel %vm3186, %v3179, -inf
      %3359 = vmax.xlane.f32.xlu0 %v3358
      %v3360 = vpop.xlane.xlu0 %3359
      %v3361 = vsel %vm3186, %v3180, -inf
      %3362 = vmax.xlane.f32.xlu0 %v3361
      %v3363 = vpop.xlane.xlu0 %3362
      %v3364 = vsel %vm3186, %v3181, -inf
      %3365 = vmax.xlane.f32.xlu0 %v3364
      %v3366 = vpop.xlane.xlu0 %3365
      %v3367 = vsel %vm3186, %v3182, -inf
      %3368 = vmax.xlane.f32.xlu0 %v3367
      %v3369 = vpop.xlane.xlu0 %3368
      %v3370 = vsel %vm3186, %v3183, -inf
      %3371 = vmax.xlane.f32.xlu0 %v3370
      %v3372 = vpop.xlane.xlu0 %3371
      %v3373 = vsel %vm3186, %v3184, -inf
      %3374 = vmax.xlane.f32.xlu0 %v3373
      %v3375 = vpop.xlane.xlu0 %3374
      %v3376 = vsel %vm3186, %v3185, -inf
      %3377 = vmax.xlane.f32.xlu0 %v3376
      %v3378 = vpop.xlane.xlu0 %3377
      %v3411 = vperm.slane %v3285, %v3147
      %v3412 = vadd.s32 %v3147, 4294967288
      %v3413 = vperm.slane %v3288, %v3412
      %vm3414 = vcmask 130112
      %v3415 = vsel %vm3414, %v3413, %v3411
      %v3416 = vperm.slane %v3291, %v3147
      %v3417 = vperm.slane %v3294, %v3412
      %v3418 = vsel %vm3414, %v3417, %v3416
      %v3419 = vperm.slane %v3297, %v3147
      %v3420 = vperm.slane %v3300, %v3412
      %v3421 = vsel %vm3414, %v3420, %v3419
      %v3422 = vperm.slane %v3303, %v3147
      %v3423 = vperm.slane %v3306, %v3412
      %v3424 = vsel %vm3414, %v3423, %v3422
      %v3425 = vperm.slane %v3309, %v3147
      %v3426 = vperm.slane %v3312, %v3412
      %v3427 = vsel %vm3414, %v3426, %v3425
      %v3428 = vperm.slane %v3315, %v3147
      %v3429 = vperm.slane %v3318, %v3412
      %v3430 = vsel %vm3414, %v3429, %v3428
      %v3431 = vperm.slane %v3321, %v3147
      %v3432 = vperm.slane %v3324, %v3412
      %v3433 = vsel %vm3414, %v3432, %v3431
      %v3434 = vperm.slane %v3327, %v3147
      %v3435 = vperm.slane %v3330, %v3412
      %v3436 = vsel %vm3414, %v3435, %v3434
      %v3437 = vperm.slane %v3333, %v3147
      %v3438 = vperm.slane %v3336, %v3412
      %v3439 = vsel %vm3414, %v3438, %v3437
      %v3440 = vperm.slane %v3339, %v3147
      %v3441 = vperm.slane %v3342, %v3412
      %v3442 = vsel %vm3414, %v3441, %v3440
      %v3443 = vperm.slane %v3345, %v3147
      %v3444 = vperm.slane %v3348, %v3412
      %v3445 = vsel %vm3414, %v3444, %v3443
      %v3446 = vperm.slane %v3351, %v3147
      %v3447 = vperm.slane %v3354, %v3412
      %v3448 = vsel %vm3414, %v3447, %v3446
      %v3449 = vperm.slane %v3357, %v3147
      %v3450 = vperm.slane %v3360, %v3412
      %v3451 = vsel %vm3414, %v3450, %v3449
      %v3452 = vperm.slane %v3363, %v3147
      %v3453 = vperm.slane %v3366, %v3412
      %v3454 = vsel %vm3414, %v3453, %v3452
      %v3455 = vperm.slane %v3369, %v3147
      %v3456 = vperm.slane %v3372, %v3412
      %v3457 = vsel %vm3414, %v3456, %v3455
      %v3458 = vperm.slane %v3375, %v3147
      %v3459 = vperm.slane %v3378, %v3412
      %v3460 = vsel %vm3414, %v3459, %v3458
      %vm3461 = vcmask 1041409
      %v3462 = vsel %vm3461, %v3418, %v3415
      %vm3463 = vcmask 1042434
      %v3464 = vsel %vm3463, %v3421, %v3462
      %vm3465 = vcmask 1043459
      %v3466 = vsel %vm3465, %v3424, %v3464
      %vm3467 = vcmask 1044484
      %v3468 = vsel %vm3467, %v3427, %v3466
      %vm3469 = vcmask 1045509
      %v3470 = vsel %vm3469, %v3430, %v3468
      %vm3471 = vcmask 1046534
      %v3472 = vsel %vm3471, %v3433, %v3470
      %vm3473 = vcmask 1047559
      %v3474 = vsel %vm3473, %v3436, %v3472
      %v3475 = vsel %vm3461, %v3442, %v3439
      %v3476 = vsel %vm3463, %v3445, %v3475
      %v3477 = vsel %vm3465, %v3448, %v3476
      %v3478 = vsel %vm3467, %v3451, %v3477
      %v3479 = vsel %vm3469, %v3454, %v3478
      %v3480 = vsel %vm3471, %v3457, %v3479
      %v3481 = vsel %vm3473, %v3460, %v3480
      %3484 = vxpose.xlu0.b32.start [1/16] %v3474, 128
      %3485 = vxpose.xlu0.b32.cont [2/16] %v3481, 128
      %3486 = vxpose.xlu0.b32.cont [3/16] 0.0, 128
      %3487 = vxpose.xlu0.b32.cont [4/16] 0.0, 128
      %3488 = vxpose.xlu0.b32.cont [5/16] 0.0, 128
      %3489 = vxpose.xlu0.b32.cont [6/16] 0.0, 128
      %3490 = vxpose.xlu0.b32.cont [7/16] 0.0, 128
      %3491 = vxpose.xlu0.b32.cont [8/16] 0.0, 128
      %3492 = vxpose.xlu0.b32.cont [9/16] 0.0, 128
      %3493 = vxpose.xlu0.b32.cont [10/16] 0.0, 128
      %3494 = vxpose.xlu0.b32.cont [11/16] 0.0, 128
      %3495 = vxpose.xlu0.b32.cont [12/16] 0.0, 128
      %3496 = vxpose.xlu0.b32.cont [13/16] 0.0, 128
      %3497 = vxpose.xlu0.b32.cont [14/16] 0.0, 128
      %3498 = vxpose.xlu0.b32.cont [15/16] 0.0, 128
      %3499 = vxpose.xlu0.b32.end [16/16] 0.0, 128
      %v3500 = vpop.trf.xlu0
      %v3501 = vpop.trf.xlu0
      %v3502 = vpop.trf.xlu0
      %v3503 = vpop.trf.xlu0
      %v3504 = vpop.trf.xlu0
      %v3505 = vpop.trf.xlu0
      %v3506 = vpop.trf.xlu0
      %v3507 = vpop.trf.xlu0
      %v3508 = vpop.trf.xlu0
      %v3509 = vpop.trf.xlu0
      %v3510 = vpop.trf.xlu0
      %v3511 = vpop.trf.xlu0
      %v3512 = vpop.trf.xlu0
      %v3513 = vpop.trf.xlu0
      %v3514 = vpop.trf.xlu0
      %v3515 = vpop.trf.xlu0
      %v3518 = vperm.slane %v3500, 0
      %v3519 = vlaneseq
      %v3520 = vshrl.u32 %v3519, 7
      %3522 = vset.pattern.permute.xlu0 %v3520
      %3523 = vperm.xlu0 %3522, %v3518
      %v3524 = vpop.permute.xlu0 %3523
      %v3525 = vlaneseq
      %v3526 = vshrl.u32 %v3525, 7
      %v3527 = vadd.s32 %v3526, 8
      %3528 = vset.pattern.permute.xlu0 %v3527
      %3529 = vperm.xlu0 %3528, %v3518
      %v3530 = vpop.permute.xlu0 %3529
      %v3531 = vperm.slane %v3500, 1
      %v3532 = vlaneseq
      %v3533 = vshrl.u32 %v3532, 7
      %3535 = vset.pattern.permute.xlu0 %v3533
      %3536 = vperm.xlu0 %3535, %v3531
      %v3537 = vpop.permute.xlu0 %3536
      %v3538 = vlaneseq
      %v3539 = vshrl.u32 %v3538, 7
      %v3540 = vadd.s32 %v3539, 8
      %3541 = vset.pattern.permute.xlu0 %v3540
      %3542 = vperm.xlu0 %3541, %v3531
      %v3543 = vpop.permute.xlu0 %3542
      %v3544 = vperm.slane %v3500, 2
      %v3545 = vlaneseq
      %v3546 = vshrl.u32 %v3545, 7
      %3548 = vset.pattern.permute.xlu0 %v3546
      %3549 = vperm.xlu0 %3548, %v3544
      %v3550 = vpop.permute.xlu0 %3549
      %v3551 = vlaneseq
      %v3552 = vshrl.u32 %v3551, 7
      %v3553 = vadd.s32 %v3552, 8
      %3554 = vset.pattern.permute.xlu0 %v3553
      %3555 = vperm.xlu0 %3554, %v3544
      %v3556 = vpop.permute.xlu0 %3555
      %v3557 = vperm.slane %v3500, 3
      %v3558 = vlaneseq
      %v3559 = vshrl.u32 %v3558, 7
      %3561 = vset.pattern.permute.xlu0 %v3559
      %3562 = vperm.xlu0 %3561, %v3557
      %v3563 = vpop.permute.xlu0 %3562
      %v3564 = vlaneseq
      %v3565 = vshrl.u32 %v3564, 7
      %v3566 = vadd.s32 %v3565, 8
      %3567 = vset.pattern.permute.xlu0 %v3566
      %3568 = vperm.xlu0 %3567, %v3557
      %v3569 = vpop.permute.xlu0 %3568
      %v3570 = vperm.slane %v3500, 4
      %v3571 = vlaneseq
      %v3572 = vshrl.u32 %v3571, 7
      %3574 = vset.pattern.permute.xlu0 %v3572
      %3575 = vperm.xlu0 %3574, %v3570
      %v3576 = vpop.permute.xlu0 %3575
      %v3577 = vlaneseq
      %v3578 = vshrl.u32 %v3577, 7
      %v3579 = vadd.s32 %v3578, 8
      %3580 = vset.pattern.permute.xlu0 %v3579
      %3581 = vperm.xlu0 %3580, %v3570
      %v3582 = vpop.permute.xlu0 %3581
      %v3583 = vperm.slane %v3500, 5
      %v3584 = vlaneseq
      %v3585 = vshrl.u32 %v3584, 7
      %3587 = vset.pattern.permute.xlu0 %v3585
      %3588 = vperm.xlu0 %3587, %v3583
      %v3589 = vpop.permute.xlu0 %3588
      %v3590 = vlaneseq
      %v3591 = vshrl.u32 %v3590, 7
      %v3592 = vadd.s32 %v3591, 8
      %3593 = vset.pattern.permute.xlu0 %v3592
      %3594 = vperm.xlu0 %3593, %v3583
      %v3595 = vpop.permute.xlu0 %3594
      %v3596 = vperm.slane %v3500, 6
      %v3597 = vlaneseq
      %v3598 = vshrl.u32 %v3597, 7
      %3600 = vset.pattern.permute.xlu0 %v3598
      %3601 = vperm.xlu0 %3600, %v3596
      %v3602 = vpop.permute.xlu0 %3601
      %v3603 = vlaneseq
      %v3604 = vshrl.u32 %v3603, 7
      %v3605 = vadd.s32 %v3604, 8
      %3606 = vset.pattern.permute.xlu0 %v3605
      %3607 = vperm.xlu0 %3606, %v3596
      %v3608 = vpop.permute.xlu0 %3607
      %v3609 = vperm.slane %v3500, 7
      %v3610 = vlaneseq
      %v3611 = vshrl.u32 %v3610, 7
      %3613 = vset.pattern.permute.xlu0 %v3611
      %3614 = vperm.xlu0 %3613, %v3609
      %v3615 = vpop.permute.xlu0 %3614
      %v3616 = vlaneseq
      %v3617 = vshrl.u32 %v3616, 7
      %v3618 = vadd.s32 %v3617, 8
      %3619 = vset.pattern.permute.xlu0 %v3618
      %3620 = vperm.xlu0 %3619, %v3609
      %v3621 = vpop.permute.xlu0 %3620
      %v3622 = vperm.slane %v3501, 0
      %v3623 = vlaneseq
      %v3624 = vshrl.u32 %v3623, 7
      %3626 = vset.pattern.permute.xlu0 %v3624
      %3627 = vperm.xlu0 %3626, %v3622
      %v3628 = vpop.permute.xlu0 %3627
      %v3629 = vlaneseq
      %v3630 = vshrl.u32 %v3629, 7
      %v3631 = vadd.s32 %v3630, 8
      %3632 = vset.pattern.permute.xlu0 %v3631
      %3633 = vperm.xlu0 %3632, %v3622
      %v3634 = vpop.permute.xlu0 %3633
      %v3635 = vperm.slane %v3501, 1
      %v3636 = vlaneseq
      %v3637 = vshrl.u32 %v3636, 7
      %3639 = vset.pattern.permute.xlu0 %v3637
      %3640 = vperm.xlu0 %3639, %v3635
      %v3641 = vpop.permute.xlu0 %3640
      %v3642 = vlaneseq
      %v3643 = vshrl.u32 %v3642, 7
      %v3644 = vadd.s32 %v3643, 8
      %3645 = vset.pattern.permute.xlu0 %v3644
      %3646 = vperm.xlu0 %3645, %v3635
      %v3647 = vpop.permute.xlu0 %3646
      %v3648 = vperm.slane %v3501, 2
      %v3649 = vlaneseq
      %v3650 = vshrl.u32 %v3649, 7
      %3652 = vset.pattern.permute.xlu0 %v3650
      %3653 = vperm.xlu0 %3652, %v3648
      %v3654 = vpop.permute.xlu0 %3653
      %v3655 = vlaneseq
      %v3656 = vshrl.u32 %v3655, 7
      %v3657 = vadd.s32 %v3656, 8
      %3658 = vset.pattern.permute.xlu0 %v3657
      %3659 = vperm.xlu0 %3658, %v3648
      %v3660 = vpop.permute.xlu0 %3659
      %v3661 = vperm.slane %v3501, 3
      %v3662 = vlaneseq
      %v3663 = vshrl.u32 %v3662, 7
      %3665 = vset.pattern.permute.xlu0 %v3663
      %3666 = vperm.xlu0 %3665, %v3661
      %v3667 = vpop.permute.xlu0 %3666
      %v3668 = vlaneseq
      %v3669 = vshrl.u32 %v3668, 7
      %v3670 = vadd.s32 %v3669, 8
      %3671 = vset.pattern.permute.xlu0 %v3670
      %3672 = vperm.xlu0 %3671, %v3661
      %v3673 = vpop.permute.xlu0 %3672
      %v3674 = vperm.slane %v3501, 4
      %v3675 = vlaneseq
      %v3676 = vshrl.u32 %v3675, 7
      %3678 = vset.pattern.permute.xlu0 %v3676
      %3679 = vperm.xlu0 %3678, %v3674
      %v3680 = vpop.permute.xlu0 %3679
      %v3681 = vlaneseq
      %v3682 = vshrl.u32 %v3681, 7
      %v3683 = vadd.s32 %v3682, 8
      %3684 = vset.pattern.permute.xlu0 %v3683
      %3685 = vperm.xlu0 %3684, %v3674
      %v3686 = vpop.permute.xlu0 %3685
      %v3687 = vperm.slane %v3501, 5
      %v3688 = vlaneseq
      %v3689 = vshrl.u32 %v3688, 7
      %3691 = vset.pattern.permute.xlu0 %v3689
      %3692 = vperm.xlu0 %3691, %v3687
      %v3693 = vpop.permute.xlu0 %3692
      %v3694 = vlaneseq
      %v3695 = vshrl.u32 %v3694, 7
      %v3696 = vadd.s32 %v3695, 8
      %3697 = vset.pattern.permute.xlu0 %v3696
      %3698 = vperm.xlu0 %3697, %v3687
      %v3699 = vpop.permute.xlu0 %3698
      %v3700 = vperm.slane %v3501, 6
      %v3701 = vlaneseq
      %v3702 = vshrl.u32 %v3701, 7
      %3704 = vset.pattern.permute.xlu0 %v3702
      %3705 = vperm.xlu0 %3704, %v3700
      %v3706 = vpop.permute.xlu0 %3705
      %v3707 = vlaneseq
      %v3708 = vshrl.u32 %v3707, 7
      %v3709 = vadd.s32 %v3708, 8
      %3710 = vset.pattern.permute.xlu0 %v3709
      %3711 = vperm.xlu0 %3710, %v3700
      %v3712 = vpop.permute.xlu0 %3711
      %v3713 = vperm.slane %v3501, 7
      %v3714 = vlaneseq
      %v3715 = vshrl.u32 %v3714, 7
      %3717 = vset.pattern.permute.xlu0 %v3715
      %3718 = vperm.xlu0 %3717, %v3713
      %v3719 = vpop.permute.xlu0 %3718
      %v3720 = vlaneseq
      %v3721 = vshrl.u32 %v3720, 7
      %v3722 = vadd.s32 %v3721, 8
      %3723 = vset.pattern.permute.xlu0 %v3722
      %3724 = vperm.xlu0 %3723, %v3713
      %v3725 = vpop.permute.xlu0 %3724
      %v3758 = vmax.f32 %v3189, %v3524
      %v3759 = vmax.f32 %v3192, %v3530
      %v3760 = vmax.f32 %v3195, %v3537
      %v3761 = vmax.f32 %v3198, %v3543
      %v3762 = vmax.f32 %v3201, %v3550
      %v3763 = vmax.f32 %v3204, %v3556
      %v3764 = vmax.f32 %v3207, %v3563
      %v3765 = vmax.f32 %v3210, %v3569
      %v3766 = vmax.f32 %v3213, %v3576
      %v3767 = vmax.f32 %v3216, %v3582
      %v3768 = vmax.f32 %v3219, %v3589
      %v3769 = vmax.f32 %v3222, %v3595
      %v3770 = vmax.f32 %v3225, %v3602
      %v3771 = vmax.f32 %v3228, %v3608
      %v3772 = vmax.f32 %v3231, %v3615
      %v3773 = vmax.f32 %v3234, %v3621
      %v3774 = vmax.f32 %v3237, %v3628
      %v3775 = vmax.f32 %v3240, %v3634
      %v3776 = vmax.f32 %v3243, %v3641
      %v3777 = vmax.f32 %v3246, %v3647
      %v3778 = vmax.f32 %v3249, %v3654
      %v3779 = vmax.f32 %v3252, %v3660
      %v3780 = vmax.f32 %v3255, %v3667
      %v3781 = vmax.f32 %v3258, %v3673
      %v3782 = vmax.f32 %v3261, %v3680
      %v3783 = vmax.f32 %v3264, %v3686
      %v3784 = vmax.f32 %v3267, %v3693
      %v3785 = vmax.f32 %v3270, %v3699
      %v3786 = vmax.f32 %v3273, %v3706
      %v3787 = vmax.f32 %v3276, %v3712
      %v3788 = vmax.f32 %v3279, %v3719
      %v3789 = vmax.f32 %v3282, %v3725
      %3822 = vset.pattern.permute.xlu0 0
      %3823 = vperm.xlu0 %3822, %v3758
      %v3824 = vpop.permute.xlu0 %3823
      %3825 = vset.pattern.permute.xlu0 0
      %3826 = vperm.xlu0 %3825, %v3759
      %v3827 = vpop.permute.xlu0 %3826
      %3828 = vset.pattern.permute.xlu0 0
      %3829 = vperm.xlu0 %3828, %v3760
      %v3830 = vpop.permute.xlu0 %3829
      %3831 = vset.pattern.permute.xlu0 0
      %3832 = vperm.xlu0 %3831, %v3761
      %v3833 = vpop.permute.xlu0 %3832
      %3834 = vset.pattern.permute.xlu0 0
      %3835 = vperm.xlu0 %3834, %v3762
      %v3836 = vpop.permute.xlu0 %3835
      %3837 = vset.pattern.permute.xlu0 0
      %3838 = vperm.xlu0 %3837, %v3763
      %v3839 = vpop.permute.xlu0 %3838
      %3840 = vset.pattern.permute.xlu0 0
      %3841 = vperm.xlu0 %3840, %v3764
      %v3842 = vpop.permute.xlu0 %3841
      %3843 = vset.pattern.permute.xlu0 0
      %3844 = vperm.xlu0 %3843, %v3765
      %v3845 = vpop.permute.xlu0 %3844
      %3846 = vset.pattern.permute.xlu0 0
      %3847 = vperm.xlu0 %3846, %v3766
      %v3848 = vpop.permute.xlu0 %3847
      %3849 = vset.pattern.permute.xlu0 0
      %3850 = vperm.xlu0 %3849, %v3767
      %v3851 = vpop.permute.xlu0 %3850
      %3852 = vset.pattern.permute.xlu0 0
      %3853 = vperm.xlu0 %3852, %v3768
      %v3854 = vpop.permute.xlu0 %3853
      %3855 = vset.pattern.permute.xlu0 0
      %3856 = vperm.xlu0 %3855, %v3769
      %v3857 = vpop.permute.xlu0 %3856
      %3858 = vset.pattern.permute.xlu0 0
      %3859 = vperm.xlu0 %3858, %v3770
      %v3860 = vpop.permute.xlu0 %3859
      %3861 = vset.pattern.permute.xlu0 0
      %3862 = vperm.xlu0 %3861, %v3771
      %v3863 = vpop.permute.xlu0 %3862
      %3864 = vset.pattern.permute.xlu0 0
      %3865 = vperm.xlu0 %3864, %v3772
      %v3866 = vpop.permute.xlu0 %3865
      %3867 = vset.pattern.permute.xlu0 0
      %3868 = vperm.xlu0 %3867, %v3773
      %v3869 = vpop.permute.xlu0 %3868
      %3870 = vset.pattern.permute.xlu0 0
      %3871 = vperm.xlu0 %3870, %v3774
      %v3872 = vpop.permute.xlu0 %3871
      %3873 = vset.pattern.permute.xlu0 0
      %3874 = vperm.xlu0 %3873, %v3775
      %v3875 = vpop.permute.xlu0 %3874
      %3876 = vset.pattern.permute.xlu0 0
      %3877 = vperm.xlu0 %3876, %v3776
      %v3878 = vpop.permute.xlu0 %3877
      %3879 = vset.pattern.permute.xlu0 0
      %3880 = vperm.xlu0 %3879, %v3777
      %v3881 = vpop.permute.xlu0 %3880
      %3882 = vset.pattern.permute.xlu0 0
      %3883 = vperm.xlu0 %3882, %v3778
      %v3884 = vpop.permute.xlu0 %3883
      %3885 = vset.pattern.permute.xlu0 0
      %3886 = vperm.xlu0 %3885, %v3779
      %v3887 = vpop.permute.xlu0 %3886
      %3888 = vset.pattern.permute.xlu0 0
      %3889 = vperm.xlu0 %3888, %v3780
      %v3890 = vpop.permute.xlu0 %3889
      %3891 = vset.pattern.permute.xlu0 0
      %3892 = vperm.xlu0 %3891, %v3781
      %v3893 = vpop.permute.xlu0 %3892
      %3894 = vset.pattern.permute.xlu0 0
      %3895 = vperm.xlu0 %3894, %v3782
      %v3896 = vpop.permute.xlu0 %3895
      %3897 = vset.pattern.permute.xlu0 0
      %3898 = vperm.xlu0 %3897, %v3783
      %v3899 = vpop.permute.xlu0 %3898
      %3900 = vset.pattern.permute.xlu0 0
      %3901 = vperm.xlu0 %3900, %v3784
      %v3902 = vpop.permute.xlu0 %3901
      %3903 = vset.pattern.permute.xlu0 0
      %3904 = vperm.xlu0 %3903, %v3785
      %v3905 = vpop.permute.xlu0 %3904
      %3906 = vset.pattern.permute.xlu0 0
      %3907 = vperm.xlu0 %3906, %v3786
      %v3908 = vpop.permute.xlu0 %3907
      %3909 = vset.pattern.permute.xlu0 0
      %3910 = vperm.xlu0 %3909, %v3787
      %v3911 = vpop.permute.xlu0 %3910
      %3912 = vset.pattern.permute.xlu0 0
      %3913 = vperm.xlu0 %3912, %v3788
      %v3914 = vpop.permute.xlu0 %3913
      %3915 = vset.pattern.permute.xlu0 0
      %3916 = vperm.xlu0 %3915, %v3789
      %v3917 = vpop.permute.xlu0 %3916
      %v3918 = vperm.slane %v3824, %v3147
      %v3919 = vperm.slane %v3827, %v3412
      %v3920 = vsel %vm3414, %v3919, %v3918
      %v3921 = vperm.slane %v3830, %v3147
      %v3922 = vperm.slane %v3833, %v3412
      %v3923 = vsel %vm3414, %v3922, %v3921
      %v3924 = vperm.slane %v3836, %v3147
      %v3925 = vperm.slane %v3839, %v3412
      %v3926 = vsel %vm3414, %v3925, %v3924
      %v3927 = vperm.slane %v3842, %v3147
      %v3928 = vperm.slane %v3845, %v3412
      %v3929 = vsel %vm3414, %v3928, %v3927
      %v3930 = vperm.slane %v3848, %v3147
      %v3931 = vperm.slane %v3851, %v3412
      %v3932 = vsel %vm3414, %v3931, %v3930
      %v3933 = vperm.slane %v3854, %v3147
      %v3934 = vperm.slane %v3857, %v3412
      %v3935 = vsel %vm3414, %v3934, %v3933
      %v3936 = vperm.slane %v3860, %v3147
      %v3937 = vperm.slane %v3863, %v3412
      %v3938 = vsel %vm3414, %v3937, %v3936
      %v3939 = vperm.slane %v3866, %v3147
      %v3940 = vperm.slane %v3869, %v3412
      %v3941 = vsel %vm3414, %v3940, %v3939
      %v3942 = vperm.slane %v3872, %v3147
      %v3943 = vperm.slane %v3875, %v3412
      %v3944 = vsel %vm3414, %v3943, %v3942
      %v3945 = vperm.slane %v3878, %v3147
      %v3946 = vperm.slane %v3881, %v3412
      %v3947 = vsel %vm3414, %v3946, %v3945
      %v3948 = vperm.slane %v3884, %v3147
      %v3949 = vperm.slane %v3887, %v3412
      %v3950 = vsel %vm3414, %v3949, %v3948
      %v3951 = vperm.slane %v3890, %v3147
      %v3952 = vperm.slane %v3893, %v3412
      %v3953 = vsel %vm3414, %v3952, %v3951
      %v3954 = vperm.slane %v3896, %v3147
      %v3955 = vperm.slane %v3899, %v3412
      %v3956 = vsel %vm3414, %v3955, %v3954
      %v3957 = vperm.slane %v3902, %v3147
      %v3958 = vperm.slane %v3905, %v3412
      %v3959 = vsel %vm3414, %v3958, %v3957
      %v3960 = vperm.slane %v3908, %v3147
      %v3961 = vperm.slane %v3911, %v3412
      %v3962 = vsel %vm3414, %v3961, %v3960
      %v3963 = vperm.slane %v3914, %v3147
      %v3964 = vperm.slane %v3917, %v3412
      %v3965 = vsel %vm3414, %v3964, %v3963
      %v3966 = vsel %vm3461, %v3923, %v3920
      %v3967 = vsel %vm3463, %v3926, %v3966
      %v3968 = vsel %vm3465, %v3929, %v3967
      %v3969 = vsel %vm3467, %v3932, %v3968
      %v3970 = vsel %vm3469, %v3935, %v3969
      %v3971 = vsel %vm3471, %v3938, %v3970
      %v3972 = vsel %vm3473, %v3941, %v3971
      %v3973 = vsel %vm3461, %v3947, %v3944
      %v3974 = vsel %vm3463, %v3950, %v3973
      %v3975 = vsel %vm3465, %v3953, %v3974
      %v3976 = vsel %vm3467, %v3956, %v3975
      %v3977 = vsel %vm3469, %v3959, %v3976
      %v3978 = vsel %vm3471, %v3962, %v3977
      %v3979 = vsel %vm3473, %v3965, %v3978
      %3982 = vxpose.xlu0.b32.start [1/16] %v3972, 128
      %3983 = vxpose.xlu0.b32.cont [2/16] %v3979, 128
      %3984 = vxpose.xlu0.b32.cont [3/16] 0.0, 128
      %3985 = vxpose.xlu0.b32.cont [4/16] 0.0, 128
      %3986 = vxpose.xlu0.b32.cont [5/16] 0.0, 128
      %3987 = vxpose.xlu0.b32.cont [6/16] 0.0, 128
      %3988 = vxpose.xlu0.b32.cont [7/16] 0.0, 128
      %3989 = vxpose.xlu0.b32.cont [8/16] 0.0, 128
      %3990 = vxpose.xlu0.b32.cont [9/16] 0.0, 128
      %3991 = vxpose.xlu0.b32.cont [10/16] 0.0, 128
      %3992 = vxpose.xlu0.b32.cont [11/16] 0.0, 128
      %3993 = vxpose.xlu0.b32.cont [12/16] 0.0, 128
      %3994 = vxpose.xlu0.b32.cont [13/16] 0.0, 128
      %3995 = vxpose.xlu0.b32.cont [14/16] 0.0, 128
      %3996 = vxpose.xlu0.b32.cont [15/16] 0.0, 128
      %3997 = vxpose.xlu0.b32.end [16/16] 0.0, 128
      %v3998 = vpop.trf.xlu0
      %v3999 = vpop.trf.xlu0
      %v4000 = vpop.trf.xlu0
      %v4001 = vpop.trf.xlu0
      %v4002 = vpop.trf.xlu0
      %v4003 = vpop.trf.xlu0
      %v4004 = vpop.trf.xlu0
      %v4005 = vpop.trf.xlu0
      %v4006 = vpop.trf.xlu0
      %v4007 = vpop.trf.xlu0
      %v4008 = vpop.trf.xlu0
      %v4009 = vpop.trf.xlu0
      %v4010 = vpop.trf.xlu0
      %v4011 = vpop.trf.xlu0
      %v4012 = vpop.trf.xlu0
      %v4013 = vpop.trf.xlu0
      %v4046 = vsub.f32 %v2113, %v3824
      %v4047 = vsub.f32 %v2116, %v3827
      %v4048 = vsub.f32 %v2144, %v3830
      %v4049 = vsub.f32 %v2147, %v3833
      %v4050 = vsub.f32 %v2175, %v3836
      %v4051 = vsub.f32 %v2178, %v3839
      %v4052 = vsub.f32 %v2206, %v3842
      %v4053 = vsub.f32 %v2209, %v3845
      %v4054 = vsub.f32 %v2237, %v3848
      %v4055 = vsub.f32 %v2240, %v3851
      %v4056 = vsub.f32 %v2268, %v3854
      %v4057 = vsub.f32 %v2271, %v3857
      %v4058 = vsub.f32 %v2299, %v3860
      %v4059 = vsub.f32 %v2302, %v3863
      %v4060 = vsub.f32 %v2330, %v3866
      %v4061 = vsub.f32 %v2333, %v3869
      %v4062 = vsub.f32 %v2361, %v3872
      %v4063 = vsub.f32 %v2364, %v3875
      %v4064 = vsub.f32 %v2392, %v3878
      %v4065 = vsub.f32 %v2395, %v3881
      %v4066 = vsub.f32 %v2423, %v3884
      %v4067 = vsub.f32 %v2426, %v3887
      %v4068 = vsub.f32 %v2454, %v3890
      %v4069 = vsub.f32 %v2457, %v3893
      %v4070 = vsub.f32 %v2485, %v3896
      %v4071 = vsub.f32 %v2488, %v3899
      %v4072 = vsub.f32 %v2516, %v3902
      %v4073 = vsub.f32 %v2519, %v3905
      %v4074 = vsub.f32 %v2547, %v3908
      %v4075 = vsub.f32 %v2550, %v3911
      %v4076 = vsub.f32 %v2578, %v3914
      %v4077 = vsub.f32 %v2581, %v3917
      %v4078 = vmul.f32 %v4046, 1.442695
      %v4079 = vpow.pop %v4078
      %v4080 = vmul.f32 %v4047, 1.442695
      %v4081 = vpow.pop %v4080
      %v4082 = vmul.f32 %v4048, 1.442695
      %v4083 = vpow.pop %v4082
      %v4084 = vmul.f32 %v4049, 1.442695
      %v4085 = vpow.pop %v4084
      %v4086 = vmul.f32 %v4050, 1.442695
      %v4087 = vpow.pop %v4086
      %v4088 = vmul.f32 %v4051, 1.442695
      %v4089 = vpow.pop %v4088
      %v4090 = vmul.f32 %v4052, 1.442695
      %v4091 = vpow.pop %v4090
      %v4092 = vmul.f32 %v4053, 1.442695
      %v4093 = vpow.pop %v4092
      %v4094 = vmul.f32 %v4054, 1.442695
      %v4095 = vpow.pop %v4094
      %v4096 = vmul.f32 %v4055, 1.442695
      %v4097 = vpow.pop %v4096
      %v4098 = vmul.f32 %v4056, 1.442695
      %v4099 = vpow.pop %v4098
      %v4100 = vmul.f32 %v4057, 1.442695
      %v4101 = vpow.pop %v4100
      %v4102 = vmul.f32 %v4058, 1.442695
      %v4103 = vpow.pop %v4102
      %v4104 = vmul.f32 %v4059, 1.442695
      %v4105 = vpow.pop %v4104
      %v4106 = vmul.f32 %v4060, 1.442695
      %v4107 = vpow.pop %v4106
      %v4108 = vmul.f32 %v4061, 1.442695
      %v4109 = vpow.pop %v4108
      %v4110 = vmul.f32 %v4062, 1.442695
      %v4111 = vpow.pop %v4110
      %v4112 = vmul.f32 %v4063, 1.442695
      %v4113 = vpow.pop %v4112
      %v4114 = vmul.f32 %v4064, 1.442695
      %v4115 = vpow.pop %v4114
      %v4116 = vmul.f32 %v4065, 1.442695
      %v4117 = vpow.pop %v4116
      %v4118 = vmul.f32 %v4066, 1.442695
      %v4119 = vpow.pop %v4118
      %v4120 = vmul.f32 %v4067, 1.442695
      %v4121 = vpow.pop %v4120
      %v4122 = vmul.f32 %v4068, 1.442695
      %v4123 = vpow.pop %v4122
      %v4124 = vmul.f32 %v4069, 1.442695
      %v4125 = vpow.pop %v4124
      %v4126 = vmul.f32 %v4070, 1.442695
      %v4127 = vpow.pop %v4126
      %v4128 = vmul.f32 %v4071, 1.442695
      %v4129 = vpow.pop %v4128
      %v4130 = vmul.f32 %v4072, 1.442695
      %v4131 = vpow.pop %v4130
      %v4132 = vmul.f32 %v4073, 1.442695
      %v4133 = vpow.pop %v4132
      %v4134 = vmul.f32 %v4074, 1.442695
      %v4135 = vpow.pop %v4134
      %v4136 = vmul.f32 %v4075, 1.442695
      %v4137 = vpow.pop %v4136
      %v4138 = vmul.f32 %v4076, 1.442695
      %v4139 = vpow.pop %v4138
      %v4140 = vmul.f32 %v4077, 1.442695
      %v4141 = vpow.pop %v4140
      %v4142 = vperm.slane %v3998, 0
      %v4143 = vlaneseq
      %v4144 = vshrl.u32 %v4143, 7
      %4146 = vset.pattern.permute.xlu0 %v4144
      %4147 = vperm.xlu0 %4146, %v4142
      %v4148 = vpop.permute.xlu0 %4147
      %v4149 = vlaneseq
      %v4150 = vshrl.u32 %v4149, 7
      %v4151 = vadd.s32 %v4150, 8
      %4152 = vset.pattern.permute.xlu0 %v4151
      %4153 = vperm.xlu0 %4152, %v4142
      %v4154 = vpop.permute.xlu0 %4153
      %v4155 = vperm.slane %v3998, 1
      %v4156 = vlaneseq
      %v4157 = vshrl.u32 %v4156, 7
      %4159 = vset.pattern.permute.xlu0 %v4157
      %4160 = vperm.xlu0 %4159, %v4155
      %v4161 = vpop.permute.xlu0 %4160
      %v4162 = vlaneseq
      %v4163 = vshrl.u32 %v4162, 7
      %v4164 = vadd.s32 %v4163, 8
      %4165 = vset.pattern.permute.xlu0 %v4164
      %4166 = vperm.xlu0 %4165, %v4155
      %v4167 = vpop.permute.xlu0 %4166
      %v4168 = vperm.slane %v3998, 2
      %v4169 = vlaneseq
      %v4170 = vshrl.u32 %v4169, 7
      %4172 = vset.pattern.permute.xlu0 %v4170
      %4173 = vperm.xlu0 %4172, %v4168
      %v4174 = vpop.permute.xlu0 %4173
      %v4175 = vlaneseq
      %v4176 = vshrl.u32 %v4175, 7
      %v4177 = vadd.s32 %v4176, 8
      %4178 = vset.pattern.permute.xlu0 %v4177
      %4179 = vperm.xlu0 %4178, %v4168
      %v4180 = vpop.permute.xlu0 %4179
      %v4181 = vperm.slane %v3998, 3
      %v4182 = vlaneseq
      %v4183 = vshrl.u32 %v4182, 7
      %4185 = vset.pattern.permute.xlu0 %v4183
      %4186 = vperm.xlu0 %4185, %v4181
      %v4187 = vpop.permute.xlu0 %4186
      %v4188 = vlaneseq
      %v4189 = vshrl.u32 %v4188, 7
      %v4190 = vadd.s32 %v4189, 8
      %4191 = vset.pattern.permute.xlu0 %v4190
      %4192 = vperm.xlu0 %4191, %v4181
      %v4193 = vpop.permute.xlu0 %4192
      %v4194 = vperm.slane %v3998, 4
      %v4195 = vlaneseq
      %v4196 = vshrl.u32 %v4195, 7
      %4198 = vset.pattern.permute.xlu0 %v4196
      %4199 = vperm.xlu0 %4198, %v4194
      %v4200 = vpop.permute.xlu0 %4199
      %v4201 = vlaneseq
      %v4202 = vshrl.u32 %v4201, 7
      %v4203 = vadd.s32 %v4202, 8
      %4204 = vset.pattern.permute.xlu0 %v4203
      %4205 = vperm.xlu0 %4204, %v4194
      %v4206 = vpop.permute.xlu0 %4205
      %v4207 = vperm.slane %v3998, 5
      %v4208 = vlaneseq
      %v4209 = vshrl.u32 %v4208, 7
      %4211 = vset.pattern.permute.xlu0 %v4209
      %4212 = vperm.xlu0 %4211, %v4207
      %v4213 = vpop.permute.xlu0 %4212
      %v4214 = vlaneseq
      %v4215 = vshrl.u32 %v4214, 7
      %v4216 = vadd.s32 %v4215, 8
      %4217 = vset.pattern.permute.xlu0 %v4216
      %4218 = vperm.xlu0 %4217, %v4207
      %v4219 = vpop.permute.xlu0 %4218
      %v4220 = vperm.slane %v3998, 6
      %v4221 = vlaneseq
      %v4222 = vshrl.u32 %v4221, 7
      %4224 = vset.pattern.permute.xlu0 %v4222
      %4225 = vperm.xlu0 %4224, %v4220
      %v4226 = vpop.permute.xlu0 %4225
      %v4227 = vlaneseq
      %v4228 = vshrl.u32 %v4227, 7
      %v4229 = vadd.s32 %v4228, 8
      %4230 = vset.pattern.permute.xlu0 %v4229
      %4231 = vperm.xlu0 %4230, %v4220
      %v4232 = vpop.permute.xlu0 %4231
      %v4233 = vperm.slane %v3998, 7
      %v4234 = vlaneseq
      %v4235 = vshrl.u32 %v4234, 7
      %4237 = vset.pattern.permute.xlu0 %v4235
      %4238 = vperm.xlu0 %4237, %v4233
      %v4239 = vpop.permute.xlu0 %4238
      %v4240 = vlaneseq
      %v4241 = vshrl.u32 %v4240, 7
      %v4242 = vadd.s32 %v4241, 8
      %4243 = vset.pattern.permute.xlu0 %v4242
      %4244 = vperm.xlu0 %4243, %v4233
      %v4245 = vpop.permute.xlu0 %4244
      %v4246 = vperm.slane %v3999, 0
      %v4247 = vlaneseq
      %v4248 = vshrl.u32 %v4247, 7
      %4250 = vset.pattern.permute.xlu0 %v4248
      %4251 = vperm.xlu0 %4250, %v4246
      %v4252 = vpop.permute.xlu0 %4251
      %v4253 = vlaneseq
      %v4254 = vshrl.u32 %v4253, 7
      %v4255 = vadd.s32 %v4254, 8
      %4256 = vset.pattern.permute.xlu0 %v4255
      %4257 = vperm.xlu0 %4256, %v4246
      %v4258 = vpop.permute.xlu0 %4257
      %v4259 = vperm.slane %v3999, 1
      %v4260 = vlaneseq
      %v4261 = vshrl.u32 %v4260, 7
      %4263 = vset.pattern.permute.xlu0 %v4261
      %4264 = vperm.xlu0 %4263, %v4259
      %v4265 = vpop.permute.xlu0 %4264
      %v4266 = vlaneseq
      %v4267 = vshrl.u32 %v4266, 7
      %v4268 = vadd.s32 %v4267, 8
      %4269 = vset.pattern.permute.xlu0 %v4268
      %4270 = vperm.xlu0 %4269, %v4259
      %v4271 = vpop.permute.xlu0 %4270
      %v4272 = vperm.slane %v3999, 2
      %v4273 = vlaneseq
      %v4274 = vshrl.u32 %v4273, 7
      %4276 = vset.pattern.permute.xlu0 %v4274
      %4277 = vperm.xlu0 %4276, %v4272
      %v4278 = vpop.permute.xlu0 %4277
      %v4279 = vlaneseq
      %v4280 = vshrl.u32 %v4279, 7
      %v4281 = vadd.s32 %v4280, 8
      %4282 = vset.pattern.permute.xlu0 %v4281
      %4283 = vperm.xlu0 %4282, %v4272
      %v4284 = vpop.permute.xlu0 %4283
      %v4285 = vperm.slane %v3999, 3
      %v4286 = vlaneseq
      %v4287 = vshrl.u32 %v4286, 7
      %4289 = vset.pattern.permute.xlu0 %v4287
      %4290 = vperm.xlu0 %4289, %v4285
      %v4291 = vpop.permute.xlu0 %4290
      %v4292 = vlaneseq
      %v4293 = vshrl.u32 %v4292, 7
      %v4294 = vadd.s32 %v4293, 8
      %4295 = vset.pattern.permute.xlu0 %v4294
      %4296 = vperm.xlu0 %4295, %v4285
      %v4297 = vpop.permute.xlu0 %4296
      %v4298 = vperm.slane %v3999, 4
      %v4299 = vlaneseq
      %v4300 = vshrl.u32 %v4299, 7
      %4302 = vset.pattern.permute.xlu0 %v4300
      %4303 = vperm.xlu0 %4302, %v4298
      %v4304 = vpop.permute.xlu0 %4303
      %v4305 = vlaneseq
      %v4306 = vshrl.u32 %v4305, 7
      %v4307 = vadd.s32 %v4306, 8
      %4308 = vset.pattern.permute.xlu0 %v4307
      %4309 = vperm.xlu0 %4308, %v4298
      %v4310 = vpop.permute.xlu0 %4309
      %v4311 = vperm.slane %v3999, 5
      %v4312 = vlaneseq
      %v4313 = vshrl.u32 %v4312, 7
      %4315 = vset.pattern.permute.xlu0 %v4313
      %4316 = vperm.xlu0 %4315, %v4311
      %v4317 = vpop.permute.xlu0 %4316
      %v4318 = vlaneseq
      %v4319 = vshrl.u32 %v4318, 7
      %v4320 = vadd.s32 %v4319, 8
      %4321 = vset.pattern.permute.xlu0 %v4320
      %4322 = vperm.xlu0 %4321, %v4311
      %v4323 = vpop.permute.xlu0 %4322
      %v4324 = vperm.slane %v3999, 6
      %v4325 = vlaneseq
      %v4326 = vshrl.u32 %v4325, 7
      %4328 = vset.pattern.permute.xlu0 %v4326
      %4329 = vperm.xlu0 %4328, %v4324
      %v4330 = vpop.permute.xlu0 %4329
      %v4331 = vlaneseq
      %v4332 = vshrl.u32 %v4331, 7
      %v4333 = vadd.s32 %v4332, 8
      %4334 = vset.pattern.permute.xlu0 %v4333
      %4335 = vperm.xlu0 %4334, %v4324
      %v4336 = vpop.permute.xlu0 %4335
      %v4337 = vperm.slane %v3999, 7
      %v4338 = vlaneseq
      %v4339 = vshrl.u32 %v4338, 7
      %4341 = vset.pattern.permute.xlu0 %v4339
      %4342 = vperm.xlu0 %4341, %v4337
      %v4343 = vpop.permute.xlu0 %4342
      %v4344 = vlaneseq
      %v4345 = vshrl.u32 %v4344, 7
      %v4346 = vadd.s32 %v4345, 8
      %4347 = vset.pattern.permute.xlu0 %v4346
      %4348 = vperm.xlu0 %4347, %v4337
      %v4349 = vpop.permute.xlu0 %4348
      %v4350 = vsub.f32 %v3154, %v4148
      %v4351 = vsub.f32 %v3155, %v4154
      %v4352 = vsub.f32 %v3156, %v4161
      %v4353 = vsub.f32 %v3157, %v4167
      %v4354 = vsub.f32 %v3158, %v4174
      %v4355 = vsub.f32 %v3159, %v4180
      %v4356 = vsub.f32 %v3160, %v4187
      %v4357 = vsub.f32 %v3161, %v4193
      %v4358 = vsub.f32 %v3162, %v4200
      %v4359 = vsub.f32 %v3163, %v4206
      %v4360 = vsub.f32 %v3164, %v4213
      %v4361 = vsub.f32 %v3165, %v4219
      %v4362 = vsub.f32 %v3166, %v4226
      %v4363 = vsub.f32 %v3167, %v4232
      %v4364 = vsub.f32 %v3168, %v4239
      %v4365 = vsub.f32 %v3169, %v4245
      %v4366 = vsub.f32 %v3170, %v4252
      %v4367 = vsub.f32 %v3171, %v4258
      %v4368 = vsub.f32 %v3172, %v4265
      %v4369 = vsub.f32 %v3173, %v4271
      %v4370 = vsub.f32 %v3174, %v4278
      %v4371 = vsub.f32 %v3175, %v4284
      %v4372 = vsub.f32 %v3176, %v4291
      %v4373 = vsub.f32 %v3177, %v4297
      %v4374 = vsub.f32 %v3178, %v4304
      %v4375 = vsub.f32 %v3179, %v4310
      %v4376 = vsub.f32 %v3180, %v4317
      %v4377 = vsub.f32 %v3181, %v4323
      %v4378 = vsub.f32 %v3182, %v4330
      %v4379 = vsub.f32 %v3183, %v4336
      %v4380 = vsub.f32 %v3184, %v4343
      %v4381 = vsub.f32 %v3185, %v4349
      %v4382 = vmul.f32 %v4350, 1.442695
      %v4383 = vpow.pop %v4382
      %v4384 = vmul.f32 %v4351, 1.442695
      %v4385 = vpow.pop %v4384
      %v4386 = vmul.f32 %v4352, 1.442695
      %v4387 = vpow.pop %v4386
      %v4388 = vmul.f32 %v4353, 1.442695
      %v4389 = vpow.pop %v4388
      %v4390 = vmul.f32 %v4354, 1.442695
      %v4391 = vpow.pop %v4390
      %v4392 = vmul.f32 %v4355, 1.442695
      %v4393 = vpow.pop %v4392
      %v4394 = vmul.f32 %v4356, 1.442695
      %v4395 = vpow.pop %v4394
      %v4396 = vmul.f32 %v4357, 1.442695
      %v4397 = vpow.pop %v4396
      %v4398 = vmul.f32 %v4358, 1.442695
      %v4399 = vpow.pop %v4398
      %v4400 = vmul.f32 %v4359, 1.442695
      %v4401 = vpow.pop %v4400
      %v4402 = vmul.f32 %v4360, 1.442695
      %v4403 = vpow.pop %v4402
      %v4404 = vmul.f32 %v4361, 1.442695
      %v4405 = vpow.pop %v4404
      %v4406 = vmul.f32 %v4362, 1.442695
      %v4407 = vpow.pop %v4406
      %v4408 = vmul.f32 %v4363, 1.442695
      %v4409 = vpow.pop %v4408
      %v4410 = vmul.f32 %v4364, 1.442695
      %v4411 = vpow.pop %v4410
      %v4412 = vmul.f32 %v4365, 1.442695
      %v4413 = vpow.pop %v4412
      %v4414 = vmul.f32 %v4366, 1.442695
      %v4415 = vpow.pop %v4414
      %v4416 = vmul.f32 %v4367, 1.442695
      %v4417 = vpow.pop %v4416
      %v4418 = vmul.f32 %v4368, 1.442695
      %v4419 = vpow.pop %v4418
      %v4420 = vmul.f32 %v4369, 1.442695
      %v4421 = vpow.pop %v4420
      %v4422 = vmul.f32 %v4370, 1.442695
      %v4423 = vpow.pop %v4422
      %v4424 = vmul.f32 %v4371, 1.442695
      %v4425 = vpow.pop %v4424
      %v4426 = vmul.f32 %v4372, 1.442695
      %v4427 = vpow.pop %v4426
      %v4428 = vmul.f32 %v4373, 1.442695
      %v4429 = vpow.pop %v4428
      %v4430 = vmul.f32 %v4374, 1.442695
      %v4431 = vpow.pop %v4430
      %v4432 = vmul.f32 %v4375, 1.442695
      %v4433 = vpow.pop %v4432
      %v4434 = vmul.f32 %v4376, 1.442695
      %v4435 = vpow.pop %v4434
      %v4436 = vmul.f32 %v4377, 1.442695
      %v4437 = vpow.pop %v4436
      %v4438 = vmul.f32 %v4378, 1.442695
      %v4439 = vpow.pop %v4438
      %v4440 = vmul.f32 %v4379, 1.442695
      %v4441 = vpow.pop %v4440
      %v4442 = vmul.f32 %v4380, 1.442695
      %v4443 = vpow.pop %v4442
      %v4444 = vmul.f32 %v4381, 1.442695
      %v4445 = vpow.pop %v4444
      %v4446 = vsel %vm3186, %v4079, 0.0
      %4447 = vadd.xlane.f32.xlu0 %v4446
      %v4448 = vpop.xlane.xlu0 %4447
      %v4449 = vsel %vm3186, %v4081, 0.0
      %4450 = vadd.xlane.f32.xlu0 %v4449
      %v4451 = vpop.xlane.xlu0 %4450
      %v4452 = vsel %vm3186, %v4083, 0.0
      %4453 = vadd.xlane.f32.xlu0 %v4452
      %v4454 = vpop.xlane.xlu0 %4453
      %v4455 = vsel %vm3186, %v4085, 0.0
      %4456 = vadd.xlane.f32.xlu0 %v4455
      %v4457 = vpop.xlane.xlu0 %4456
      %v4458 = vsel %vm3186, %v4087, 0.0
      %4459 = vadd.xlane.f32.xlu0 %v4458
      %v4460 = vpop.xlane.xlu0 %4459
      %v4461 = vsel %vm3186, %v4089, 0.0
      %4462 = vadd.xlane.f32.xlu0 %v4461
      %v4463 = vpop.xlane.xlu0 %4462
      %v4464 = vsel %vm3186, %v4091, 0.0
      %4465 = vadd.xlane.f32.xlu0 %v4464
      %v4466 = vpop.xlane.xlu0 %4465
      %v4467 = vsel %vm3186, %v4093, 0.0
      %4468 = vadd.xlane.f32.xlu0 %v4467
      %v4469 = vpop.xlane.xlu0 %4468
      %v4470 = vsel %vm3186, %v4095, 0.0
      %4471 = vadd.xlane.f32.xlu0 %v4470
      %v4472 = vpop.xlane.xlu0 %4471
      %v4473 = vsel %vm3186, %v4097, 0.0
      %4474 = vadd.xlane.f32.xlu0 %v4473
      %v4475 = vpop.xlane.xlu0 %4474
      %v4476 = vsel %vm3186, %v4099, 0.0
      %4477 = vadd.xlane.f32.xlu0 %v4476
      %v4478 = vpop.xlane.xlu0 %4477
      %v4479 = vsel %vm3186, %v4101, 0.0
      %4480 = vadd.xlane.f32.xlu0 %v4479
      %v4481 = vpop.xlane.xlu0 %4480
      %v4482 = vsel %vm3186, %v4103, 0.0
      %4483 = vadd.xlane.f32.xlu0 %v4482
      %v4484 = vpop.xlane.xlu0 %4483
      %v4485 = vsel %vm3186, %v4105, 0.0
      %4486 = vadd.xlane.f32.xlu0 %v4485
      %v4487 = vpop.xlane.xlu0 %4486
      %v4488 = vsel %vm3186, %v4107, 0.0
      %4489 = vadd.xlane.f32.xlu0 %v4488
      %v4490 = vpop.xlane.xlu0 %4489
      %v4491 = vsel %vm3186, %v4109, 0.0
      %4492 = vadd.xlane.f32.xlu0 %v4491
      %v4493 = vpop.xlane.xlu0 %4492
      %v4494 = vsel %vm3186, %v4111, 0.0
      %4495 = vadd.xlane.f32.xlu0 %v4494
      %v4496 = vpop.xlane.xlu0 %4495
      %v4497 = vsel %vm3186, %v4113, 0.0
      %4498 = vadd.xlane.f32.xlu0 %v4497
      %v4499 = vpop.xlane.xlu0 %4498
      %v4500 = vsel %vm3186, %v4115, 0.0
      %4501 = vadd.xlane.f32.xlu0 %v4500
      %v4502 = vpop.xlane.xlu0 %4501
      %v4503 = vsel %vm3186, %v4117, 0.0
      %4504 = vadd.xlane.f32.xlu0 %v4503
      %v4505 = vpop.xlane.xlu0 %4504
      %v4506 = vsel %vm3186, %v4119, 0.0
      %4507 = vadd.xlane.f32.xlu0 %v4506
      %v4508 = vpop.xlane.xlu0 %4507
      %v4509 = vsel %vm3186, %v4121, 0.0
      %4510 = vadd.xlane.f32.xlu0 %v4509
      %v4511 = vpop.xlane.xlu0 %4510
      %v4512 = vsel %vm3186, %v4123, 0.0
      %4513 = vadd.xlane.f32.xlu0 %v4512
      %v4514 = vpop.xlane.xlu0 %4513
      %v4515 = vsel %vm3186, %v4125, 0.0
      %4516 = vadd.xlane.f32.xlu0 %v4515
      %v4517 = vpop.xlane.xlu0 %4516
      %v4518 = vsel %vm3186, %v4127, 0.0
      %4519 = vadd.xlane.f32.xlu0 %v4518
      %v4520 = vpop.xlane.xlu0 %4519
      %v4521 = vsel %vm3186, %v4129, 0.0
      %4522 = vadd.xlane.f32.xlu0 %v4521
      %v4523 = vpop.xlane.xlu0 %4522
      %v4524 = vsel %vm3186, %v4131, 0.0
      %4525 = vadd.xlane.f32.xlu0 %v4524
      %v4526 = vpop.xlane.xlu0 %4525
      %v4527 = vsel %vm3186, %v4133, 0.0
      %4528 = vadd.xlane.f32.xlu0 %v4527
      %v4529 = vpop.xlane.xlu0 %4528
      %v4530 = vsel %vm3186, %v4135, 0.0
      %4531 = vadd.xlane.f32.xlu0 %v4530
      %v4532 = vpop.xlane.xlu0 %4531
      %v4533 = vsel %vm3186, %v4137, 0.0
      %4534 = vadd.xlane.f32.xlu0 %v4533
      %v4535 = vpop.xlane.xlu0 %4534
      %v4536 = vsel %vm3186, %v4139, 0.0
      %4537 = vadd.xlane.f32.xlu0 %v4536
      %v4538 = vpop.xlane.xlu0 %4537
      %v4539 = vsel %vm3186, %v4141, 0.0
      %4540 = vadd.xlane.f32.xlu0 %v4539
      %v4541 = vpop.xlane.xlu0 %4540
      %v4542 = vsel %vm3186, %v4383, 0.0
      %4543 = vadd.xlane.f32.xlu0 %v4542
      %v4544 = vpop.xlane.xlu0 %4543
      %v4545 = vsel %vm3186, %v4385, 0.0
      %4546 = vadd.xlane.f32.xlu0 %v4545
      %v4547 = vpop.xlane.xlu0 %4546
      %v4548 = vsel %vm3186, %v4387, 0.0
      %4549 = vadd.xlane.f32.xlu0 %v4548
      %v4550 = vpop.xlane.xlu0 %4549
      %v4551 = vsel %vm3186, %v4389, 0.0
      %4552 = vadd.xlane.f32.xlu0 %v4551
      %v4553 = vpop.xlane.xlu0 %4552
      %v4554 = vsel %vm3186, %v4391, 0.0
      %4555 = vadd.xlane.f32.xlu0 %v4554
      %v4556 = vpop.xlane.xlu0 %4555
      %v4557 = vsel %vm3186, %v4393, 0.0
      %4558 = vadd.xlane.f32.xlu0 %v4557
      %v4559 = vpop.xlane.xlu0 %4558
      %v4560 = vsel %vm3186, %v4395, 0.0
      %4561 = vadd.xlane.f32.xlu0 %v4560
      %v4562 = vpop.xlane.xlu0 %4561
      %v4563 = vsel %vm3186, %v4397, 0.0
      %4564 = vadd.xlane.f32.xlu0 %v4563
      %v4565 = vpop.xlane.xlu0 %4564
      %v4566 = vsel %vm3186, %v4399, 0.0
      %4567 = vadd.xlane.f32.xlu0 %v4566
      %v4568 = vpop.xlane.xlu0 %4567
      %v4569 = vsel %vm3186, %v4401, 0.0
      %4570 = vadd.xlane.f32.xlu0 %v4569
      %v4571 = vpop.xlane.xlu0 %4570
      %v4572 = vsel %vm3186, %v4403, 0.0
      %4573 = vadd.xlane.f32.xlu0 %v4572
      %v4574 = vpop.xlane.xlu0 %4573
      %v4575 = vsel %vm3186, %v4405, 0.0
      %4576 = vadd.xlane.f32.xlu0 %v4575
      %v4577 = vpop.xlane.xlu0 %4576
      %v4578 = vsel %vm3186, %v4407, 0.0
      %4579 = vadd.xlane.f32.xlu0 %v4578
      %v4580 = vpop.xlane.xlu0 %4579
      %v4581 = vsel %vm3186, %v4409, 0.0
      %4582 = vadd.xlane.f32.xlu0 %v4581
      %v4583 = vpop.xlane.xlu0 %4582
      %v4584 = vsel %vm3186, %v4411, 0.0
      %4585 = vadd.xlane.f32.xlu0 %v4584
      %v4586 = vpop.xlane.xlu0 %4585
      %v4587 = vsel %vm3186, %v4413, 0.0
      %4588 = vadd.xlane.f32.xlu0 %v4587
      %v4589 = vpop.xlane.xlu0 %4588
      %v4590 = vsel %vm3186, %v4415, 0.0
      %4591 = vadd.xlane.f32.xlu0 %v4590
      %v4592 = vpop.xlane.xlu0 %4591
      %v4593 = vsel %vm3186, %v4417, 0.0
      %4594 = vadd.xlane.f32.xlu0 %v4593
      %v4595 = vpop.xlane.xlu0 %4594
      %v4596 = vsel %vm3186, %v4419, 0.0
      %4597 = vadd.xlane.f32.xlu0 %v4596
      %v4598 = vpop.xlane.xlu0 %4597
      %v4599 = vsel %vm3186, %v4421, 0.0
      %4600 = vadd.xlane.f32.xlu0 %v4599
      %v4601 = vpop.xlane.xlu0 %4600
      %v4602 = vsel %vm3186, %v4423, 0.0
      %4603 = vadd.xlane.f32.xlu0 %v4602
      %v4604 = vpop.xlane.xlu0 %4603
      %v4605 = vsel %vm3186, %v4425, 0.0
      %4606 = vadd.xlane.f32.xlu0 %v4605
      %v4607 = vpop.xlane.xlu0 %4606
      %v4608 = vsel %vm3186, %v4427, 0.0
      %4609 = vadd.xlane.f32.xlu0 %v4608
      %v4610 = vpop.xlane.xlu0 %4609
      %v4611 = vsel %vm3186, %v4429, 0.0
      %4612 = vadd.xlane.f32.xlu0 %v4611
      %v4613 = vpop.xlane.xlu0 %4612
      %v4614 = vsel %vm3186, %v4431, 0.0
      %4615 = vadd.xlane.f32.xlu0 %v4614
      %v4616 = vpop.xlane.xlu0 %4615
      %v4617 = vsel %vm3186, %v4433, 0.0
      %4618 = vadd.xlane.f32.xlu0 %v4617
      %v4619 = vpop.xlane.xlu0 %4618
      %v4620 = vsel %vm3186, %v4435, 0.0
      %4621 = vadd.xlane.f32.xlu0 %v4620
      %v4622 = vpop.xlane.xlu0 %4621
      %v4623 = vsel %vm3186, %v4437, 0.0
      %4624 = vadd.xlane.f32.xlu0 %v4623
      %v4625 = vpop.xlane.xlu0 %4624
      %v4626 = vsel %vm3186, %v4439, 0.0
      %4627 = vadd.xlane.f32.xlu0 %v4626
      %v4628 = vpop.xlane.xlu0 %4627
      %v4629 = vsel %vm3186, %v4441, 0.0
      %4630 = vadd.xlane.f32.xlu0 %v4629
      %v4631 = vpop.xlane.xlu0 %4630
      %v4632 = vsel %vm3186, %v4443, 0.0
      %4633 = vadd.xlane.f32.xlu0 %v4632
      %v4634 = vpop.xlane.xlu0 %4633
      %v4635 = vsel %vm3186, %v4445, 0.0
      %4636 = vadd.xlane.f32.xlu0 %v4635
      %v4637 = vpop.xlane.xlu0 %4636
      %v4670 = vperm.slane %v4544, %v3147
      %v4671 = vperm.slane %v4547, %v3412
      %v4672 = vsel %vm3414, %v4671, %v4670
      %v4673 = vperm.slane %v4550, %v3147
      %v4674 = vperm.slane %v4553, %v3412
      %v4675 = vsel %vm3414, %v4674, %v4673
      %v4676 = vperm.slane %v4556, %v3147
      %v4677 = vperm.slane %v4559, %v3412
      %v4678 = vsel %vm3414, %v4677, %v4676
      %v4679 = vperm.slane %v4562, %v3147
      %v4680 = vperm.slane %v4565, %v3412
      %v4681 = vsel %vm3414, %v4680, %v4679
      %v4682 = vperm.slane %v4568, %v3147
      %v4683 = vperm.slane %v4571, %v3412
      %v4684 = vsel %vm3414, %v4683, %v4682
      %v4685 = vperm.slane %v4574, %v3147
      %v4686 = vperm.slane %v4577, %v3412
      %v4687 = vsel %vm3414, %v4686, %v4685
      %v4688 = vperm.slane %v4580, %v3147
      %v4689 = vperm.slane %v4583, %v3412
      %v4690 = vsel %vm3414, %v4689, %v4688
      %v4691 = vperm.slane %v4586, %v3147
      %v4692 = vperm.slane %v4589, %v3412
      %v4693 = vsel %vm3414, %v4692, %v4691
      %v4694 = vperm.slane %v4592, %v3147
      %v4695 = vperm.slane %v4595, %v3412
      %v4696 = vsel %vm3414, %v4695, %v4694
      %v4697 = vperm.slane %v4598, %v3147
      %v4698 = vperm.slane %v4601, %v3412
      %v4699 = vsel %vm3414, %v4698, %v4697
      %v4700 = vperm.slane %v4604, %v3147
      %v4701 = vperm.slane %v4607, %v3412
      %v4702 = vsel %vm3414, %v4701, %v4700
      %v4703 = vperm.slane %v4610, %v3147
      %v4704 = vperm.slane %v4613, %v3412
      %v4705 = vsel %vm3414, %v4704, %v4703
      %v4706 = vperm.slane %v4616, %v3147
      %v4707 = vperm.slane %v4619, %v3412
      %v4708 = vsel %vm3414, %v4707, %v4706
      %v4709 = vperm.slane %v4622, %v3147
      %v4710 = vperm.slane %v4625, %v3412
      %v4711 = vsel %vm3414, %v4710, %v4709
      %v4712 = vperm.slane %v4628, %v3147
      %v4713 = vperm.slane %v4631, %v3412
      %v4714 = vsel %vm3414, %v4713, %v4712
      %v4715 = vperm.slane %v4634, %v3147
      %v4716 = vperm.slane %v4637, %v3412
      %v4717 = vsel %vm3414, %v4716, %v4715
      %v4718 = vsel %vm3461, %v4675, %v4672
      %v4719 = vsel %vm3463, %v4678, %v4718
      %v4720 = vsel %vm3465, %v4681, %v4719
      %v4721 = vsel %vm3467, %v4684, %v4720
      %v4722 = vsel %vm3469, %v4687, %v4721
      %v4723 = vsel %vm3471, %v4690, %v4722
      %v4724 = vsel %vm3473, %v4693, %v4723
      %v4725 = vsel %vm3461, %v4699, %v4696
      %v4726 = vsel %vm3463, %v4702, %v4725
      %v4727 = vsel %vm3465, %v4705, %v4726
      %v4728 = vsel %vm3467, %v4708, %v4727
      %v4729 = vsel %vm3469, %v4711, %v4728
      %v4730 = vsel %vm3471, %v4714, %v4729
      %v4731 = vsel %vm3473, %v4717, %v4730
      %4734 = vxpose.xlu0.b32.start [1/16] %v4724, 128
      %4735 = vxpose.xlu0.b32.cont [2/16] %v4731, 128
      %4736 = vxpose.xlu0.b32.cont [3/16] 0.0, 128
      %4737 = vxpose.xlu0.b32.cont [4/16] 0.0, 128
      %4738 = vxpose.xlu0.b32.cont [5/16] 0.0, 128
      %4739 = vxpose.xlu0.b32.cont [6/16] 0.0, 128
      %4740 = vxpose.xlu0.b32.cont [7/16] 0.0, 128
      %4741 = vxpose.xlu0.b32.cont [8/16] 0.0, 128
      %4742 = vxpose.xlu0.b32.cont [9/16] 0.0, 128
      %4743 = vxpose.xlu0.b32.cont [10/16] 0.0, 128
      %4744 = vxpose.xlu0.b32.cont [11/16] 0.0, 128
      %4745 = vxpose.xlu0.b32.cont [12/16] 0.0, 128
      %4746 = vxpose.xlu0.b32.cont [13/16] 0.0, 128
      %4747 = vxpose.xlu0.b32.cont [14/16] 0.0, 128
      %4748 = vxpose.xlu0.b32.cont [15/16] 0.0, 128
      %4749 = vxpose.xlu0.b32.end [16/16] 0.0, 128
      %v4750 = vpop.trf.xlu0
      %v4751 = vpop.trf.xlu0
      %v4752 = vpop.trf.xlu0
      %v4753 = vpop.trf.xlu0
      %v4754 = vpop.trf.xlu0
      %v4755 = vpop.trf.xlu0
      %v4756 = vpop.trf.xlu0
      %v4757 = vpop.trf.xlu0
      %v4758 = vpop.trf.xlu0
      %v4759 = vpop.trf.xlu0
      %v4760 = vpop.trf.xlu0
      %v4761 = vpop.trf.xlu0
      %v4762 = vpop.trf.xlu0
      %v4763 = vpop.trf.xlu0
      %v4764 = vpop.trf.xlu0
      %v4765 = vpop.trf.xlu0
      %v4768 = vperm.slane %v4750, 0
      %v4769 = vlaneseq
      %v4770 = vshrl.u32 %v4769, 7
      %4772 = vset.pattern.permute.xlu0 %v4770
      %4773 = vperm.xlu0 %4772, %v4768
      %v4774 = vpop.permute.xlu0 %4773
      %v4775 = vlaneseq
      %v4776 = vshrl.u32 %v4775, 7
      %v4777 = vadd.s32 %v4776, 8
      %4778 = vset.pattern.permute.xlu0 %v4777
      %4779 = vperm.xlu0 %4778, %v4768
      %v4780 = vpop.permute.xlu0 %4779
      %v4781 = vperm.slane %v4750, 1
      %v4782 = vlaneseq
      %v4783 = vshrl.u32 %v4782, 7
      %4785 = vset.pattern.permute.xlu0 %v4783
      %4786 = vperm.xlu0 %4785, %v4781
      %v4787 = vpop.permute.xlu0 %4786
      %v4788 = vlaneseq
      %v4789 = vshrl.u32 %v4788, 7
      %v4790 = vadd.s32 %v4789, 8
      %4791 = vset.pattern.permute.xlu0 %v4790
      %4792 = vperm.xlu0 %4791, %v4781
      %v4793 = vpop.permute.xlu0 %4792
      %v4794 = vperm.slane %v4750, 2
      %v4795 = vlaneseq
      %v4796 = vshrl.u32 %v4795, 7
      %4798 = vset.pattern.permute.xlu0 %v4796
      %4799 = vperm.xlu0 %4798, %v4794
      %v4800 = vpop.permute.xlu0 %4799
      %v4801 = vlaneseq
      %v4802 = vshrl.u32 %v4801, 7
      %v4803 = vadd.s32 %v4802, 8
      %4804 = vset.pattern.permute.xlu0 %v4803
      %4805 = vperm.xlu0 %4804, %v4794
      %v4806 = vpop.permute.xlu0 %4805
      %v4807 = vperm.slane %v4750, 3
      %v4808 = vlaneseq
      %v4809 = vshrl.u32 %v4808, 7
      %4811 = vset.pattern.permute.xlu0 %v4809
      %4812 = vperm.xlu0 %4811, %v4807
      %v4813 = vpop.permute.xlu0 %4812
      %v4814 = vlaneseq
      %v4815 = vshrl.u32 %v4814, 7
      %v4816 = vadd.s32 %v4815, 8
      %4817 = vset.pattern.permute.xlu0 %v4816
      %4818 = vperm.xlu0 %4817, %v4807
      %v4819 = vpop.permute.xlu0 %4818
      %v4820 = vperm.slane %v4750, 4
      %v4821 = vlaneseq
      %v4822 = vshrl.u32 %v4821, 7
      %4824 = vset.pattern.permute.xlu0 %v4822
      %4825 = vperm.xlu0 %4824, %v4820
      %v4826 = vpop.permute.xlu0 %4825
      %v4827 = vlaneseq
      %v4828 = vshrl.u32 %v4827, 7
      %v4829 = vadd.s32 %v4828, 8
      %4830 = vset.pattern.permute.xlu0 %v4829
      %4831 = vperm.xlu0 %4830, %v4820
      %v4832 = vpop.permute.xlu0 %4831
      %v4833 = vperm.slane %v4750, 5
      %v4834 = vlaneseq
      %v4835 = vshrl.u32 %v4834, 7
      %4837 = vset.pattern.permute.xlu0 %v4835
      %4838 = vperm.xlu0 %4837, %v4833
      %v4839 = vpop.permute.xlu0 %4838
      %v4840 = vlaneseq
      %v4841 = vshrl.u32 %v4840, 7
      %v4842 = vadd.s32 %v4841, 8
      %4843 = vset.pattern.permute.xlu0 %v4842
      %4844 = vperm.xlu0 %4843, %v4833
      %v4845 = vpop.permute.xlu0 %4844
      %v4846 = vperm.slane %v4750, 6
      %v4847 = vlaneseq
      %v4848 = vshrl.u32 %v4847, 7
      %4850 = vset.pattern.permute.xlu0 %v4848
      %4851 = vperm.xlu0 %4850, %v4846
      %v4852 = vpop.permute.xlu0 %4851
      %v4853 = vlaneseq
      %v4854 = vshrl.u32 %v4853, 7
      %v4855 = vadd.s32 %v4854, 8
      %4856 = vset.pattern.permute.xlu0 %v4855
      %4857 = vperm.xlu0 %4856, %v4846
      %v4858 = vpop.permute.xlu0 %4857
      %v4859 = vperm.slane %v4750, 7
      %v4860 = vlaneseq
      %v4861 = vshrl.u32 %v4860, 7
      %4863 = vset.pattern.permute.xlu0 %v4861
      %4864 = vperm.xlu0 %4863, %v4859
      %v4865 = vpop.permute.xlu0 %4864
      %v4866 = vlaneseq
      %v4867 = vshrl.u32 %v4866, 7
      %v4868 = vadd.s32 %v4867, 8
      %4869 = vset.pattern.permute.xlu0 %v4868
      %4870 = vperm.xlu0 %4869, %v4859
      %v4871 = vpop.permute.xlu0 %4870
      %v4872 = vperm.slane %v4751, 0
      %v4873 = vlaneseq
      %v4874 = vshrl.u32 %v4873, 7
      %4876 = vset.pattern.permute.xlu0 %v4874
      %4877 = vperm.xlu0 %4876, %v4872
      %v4878 = vpop.permute.xlu0 %4877
      %v4879 = vlaneseq
      %v4880 = vshrl.u32 %v4879, 7
      %v4881 = vadd.s32 %v4880, 8
      %4882 = vset.pattern.permute.xlu0 %v4881
      %4883 = vperm.xlu0 %4882, %v4872
      %v4884 = vpop.permute.xlu0 %4883
      %v4885 = vperm.slane %v4751, 1
      %v4886 = vlaneseq
      %v4887 = vshrl.u32 %v4886, 7
      %4889 = vset.pattern.permute.xlu0 %v4887
      %4890 = vperm.xlu0 %4889, %v4885
      %v4891 = vpop.permute.xlu0 %4890
      %v4892 = vlaneseq
      %v4893 = vshrl.u32 %v4892, 7
      %v4894 = vadd.s32 %v4893, 8
      %4895 = vset.pattern.permute.xlu0 %v4894
      %4896 = vperm.xlu0 %4895, %v4885
      %v4897 = vpop.permute.xlu0 %4896
      %v4898 = vperm.slane %v4751, 2
      %v4899 = vlaneseq
      %v4900 = vshrl.u32 %v4899, 7
      %4902 = vset.pattern.permute.xlu0 %v4900
      %4903 = vperm.xlu0 %4902, %v4898
      %v4904 = vpop.permute.xlu0 %4903
      %v4905 = vlaneseq
      %v4906 = vshrl.u32 %v4905, 7
      %v4907 = vadd.s32 %v4906, 8
      %4908 = vset.pattern.permute.xlu0 %v4907
      %4909 = vperm.xlu0 %4908, %v4898
      %v4910 = vpop.permute.xlu0 %4909
      %v4911 = vperm.slane %v4751, 3
      %v4912 = vlaneseq
      %v4913 = vshrl.u32 %v4912, 7
      %4915 = vset.pattern.permute.xlu0 %v4913
      %4916 = vperm.xlu0 %4915, %v4911
      %v4917 = vpop.permute.xlu0 %4916
      %v4918 = vlaneseq
      %v4919 = vshrl.u32 %v4918, 7
      %v4920 = vadd.s32 %v4919, 8
      %4921 = vset.pattern.permute.xlu0 %v4920
      %4922 = vperm.xlu0 %4921, %v4911
      %v4923 = vpop.permute.xlu0 %4922
      %v4924 = vperm.slane %v4751, 4
      %v4925 = vlaneseq
      %v4926 = vshrl.u32 %v4925, 7
      %4928 = vset.pattern.permute.xlu0 %v4926
      %4929 = vperm.xlu0 %4928, %v4924
      %v4930 = vpop.permute.xlu0 %4929
      %v4931 = vlaneseq
      %v4932 = vshrl.u32 %v4931, 7
      %v4933 = vadd.s32 %v4932, 8
      %4934 = vset.pattern.permute.xlu0 %v4933
      %4935 = vperm.xlu0 %4934, %v4924
      %v4936 = vpop.permute.xlu0 %4935
      %v4937 = vperm.slane %v4751, 5
      %v4938 = vlaneseq
      %v4939 = vshrl.u32 %v4938, 7
      %4941 = vset.pattern.permute.xlu0 %v4939
      %4942 = vperm.xlu0 %4941, %v4937
      %v4943 = vpop.permute.xlu0 %4942
      %v4944 = vlaneseq
      %v4945 = vshrl.u32 %v4944, 7
      %v4946 = vadd.s32 %v4945, 8
      %4947 = vset.pattern.permute.xlu0 %v4946
      %4948 = vperm.xlu0 %4947, %v4937
      %v4949 = vpop.permute.xlu0 %4948
      %v4950 = vperm.slane %v4751, 6
      %v4951 = vlaneseq
      %v4952 = vshrl.u32 %v4951, 7
      %4954 = vset.pattern.permute.xlu0 %v4952
      %4955 = vperm.xlu0 %4954, %v4950
      %v4956 = vpop.permute.xlu0 %4955
      %v4957 = vlaneseq
      %v4958 = vshrl.u32 %v4957, 7
      %v4959 = vadd.s32 %v4958, 8
      %4960 = vset.pattern.permute.xlu0 %v4959
      %4961 = vperm.xlu0 %4960, %v4950
      %v4962 = vpop.permute.xlu0 %4961
      %v4963 = vperm.slane %v4751, 7
      %v4964 = vlaneseq
      %v4965 = vshrl.u32 %v4964, 7
      %4967 = vset.pattern.permute.xlu0 %v4965
      %4968 = vperm.xlu0 %4967, %v4963
      %v4969 = vpop.permute.xlu0 %4968
      %v4970 = vlaneseq
      %v4971 = vshrl.u32 %v4970, 7
      %v4972 = vadd.s32 %v4971, 8
      %4973 = vset.pattern.permute.xlu0 %v4972
      %4974 = vperm.xlu0 %4973, %v4963
      %v4975 = vpop.permute.xlu0 %4974
      %v5008 = vadd.f32 %v4448, %v4774
      %v5009 = vadd.f32 %v4451, %v4780
      %v5010 = vadd.f32 %v4454, %v4787
      %v5011 = vadd.f32 %v4457, %v4793
      %v5012 = vadd.f32 %v4460, %v4800
      %v5013 = vadd.f32 %v4463, %v4806
      %v5014 = vadd.f32 %v4466, %v4813
      %v5015 = vadd.f32 %v4469, %v4819
      %v5016 = vadd.f32 %v4472, %v4826
      %v5017 = vadd.f32 %v4475, %v4832
      %v5018 = vadd.f32 %v4478, %v4839
      %v5019 = vadd.f32 %v4481, %v4845
      %v5020 = vadd.f32 %v4484, %v4852
      %v5021 = vadd.f32 %v4487, %v4858
      %v5022 = vadd.f32 %v4490, %v4865
      %v5023 = vadd.f32 %v4493, %v4871
      %v5024 = vadd.f32 %v4496, %v4878
      %v5025 = vadd.f32 %v4499, %v4884
      %v5026 = vadd.f32 %v4502, %v4891
      %v5027 = vadd.f32 %v4505, %v4897
      %v5028 = vadd.f32 %v4508, %v4904
      %v5029 = vadd.f32 %v4511, %v4910
      %v5030 = vadd.f32 %v4514, %v4917
      %v5031 = vadd.f32 %v4517, %v4923
      %v5032 = vadd.f32 %v4520, %v4930
      %v5033 = vadd.f32 %v4523, %v4936
      %v5034 = vadd.f32 %v4526, %v4943
      %v5035 = vadd.f32 %v4529, %v4949
      %v5036 = vadd.f32 %v4532, %v4956
      %v5037 = vadd.f32 %v4535, %v4962
      %v5038 = vadd.f32 %v4538, %v4969
      %v5039 = vadd.f32 %v4541, %v4975
      %v5040 = vrcp.pop %v5008
      %v5041 = vmul.f32 %v5008, %v5040
      %v5042 = vsub.f32 1.0, %v5041
      %v5043 = vmul.f32 %v5040, %v5042
      %v5044 = vadd.f32 %v5040, %v5043
      %vm5045 = vweird.f32 %v5008
      %vm5046 = vweird.f32 %v5040
      %vm5047 = vmor %vm5045, %vm5046
      %v5048 = vsel %vm5047, %v5040, %v5044
      %v5049 = vand.u32 2147483647, %v5008
      %vm5050 = vcmp.eq.f32.partialorder %v5049, 8.507059e+37
      %v5051 = vand.u32 %v5008, 2147483648
      %v5052 = vor.u32 1.1754944e-38, %v5051
      %v5053 = vsel %vm5050, %v5052, %v5048
      %v5054 = vmul.f32 1.0, %v5053
      %v5055 = vrcp.pop %v5009
      %v5056 = vmul.f32 %v5009, %v5055
      %v5057 = vsub.f32 1.0, %v5056
      %v5058 = vmul.f32 %v5055, %v5057
      %v5059 = vadd.f32 %v5055, %v5058
      %vm5060 = vweird.f32 %v5009
      %vm5061 = vweird.f32 %v5055
      %vm5062 = vmor %vm5060, %vm5061
      %v5063 = vsel %vm5062, %v5055, %v5059
      %v5064 = vand.u32 2147483647, %v5009
      %vm5065 = vcmp.eq.f32.partialorder %v5064, 8.507059e+37
      %v5066 = vand.u32 %v5009, 2147483648
      %v5067 = vor.u32 1.1754944e-38, %v5066
      %v5068 = vsel %vm5065, %v5067, %v5063
      %v5069 = vmul.f32 1.0, %v5068
      %v5070 = vrcp.pop %v5010
      %v5071 = vmul.f32 %v5010, %v5070
      %v5072 = vsub.f32 1.0, %v5071
      %v5073 = vmul.f32 %v5070, %v5072
      %v5074 = vadd.f32 %v5070, %v5073
      %vm5075 = vweird.f32 %v5010
      %vm5076 = vweird.f32 %v5070
      %vm5077 = vmor %vm5075, %vm5076
      %v5078 = vsel %vm5077, %v5070, %v5074
      %v5079 = vand.u32 2147483647, %v5010
      %vm5080 = vcmp.eq.f32.partialorder %v5079, 8.507059e+37
      %v5081 = vand.u32 %v5010, 2147483648
      %v5082 = vor.u32 1.1754944e-38, %v5081
      %v5083 = vsel %vm5080, %v5082, %v5078
      %v5084 = vmul.f32 1.0, %v5083
      %v5085 = vrcp.pop %v5011
      %v5086 = vmul.f32 %v5011, %v5085
      %v5087 = vsub.f32 1.0, %v5086
      %v5088 = vmul.f32 %v5085, %v5087
      %v5089 = vadd.f32 %v5085, %v5088
      %vm5090 = vweird.f32 %v5011
      %vm5091 = vweird.f32 %v5085
      %vm5092 = vmor %vm5090, %vm5091
      %v5093 = vsel %vm5092, %v5085, %v5089
      %v5094 = vand.u32 2147483647, %v5011
      %vm5095 = vcmp.eq.f32.partialorder %v5094, 8.507059e+37
      %v5096 = vand.u32 %v5011, 2147483648
      %v5097 = vor.u32 1.1754944e-38, %v5096
      %v5098 = vsel %vm5095, %v5097, %v5093
      %v5099 = vmul.f32 1.0, %v5098
      %v5100 = vrcp.pop %v5012
      %v5101 = vmul.f32 %v5012, %v5100
      %v5102 = vsub.f32 1.0, %v5101
      %v5103 = vmul.f32 %v5100, %v5102
      %v5104 = vadd.f32 %v5100, %v5103
      %vm5105 = vweird.f32 %v5012
      %vm5106 = vweird.f32 %v5100
      %vm5107 = vmor %vm5105, %vm5106
      %v5108 = vsel %vm5107, %v5100, %v5104
      %v5109 = vand.u32 2147483647, %v5012
      %vm5110 = vcmp.eq.f32.partialorder %v5109, 8.507059e+37
      %v5111 = vand.u32 %v5012, 2147483648
      %v5112 = vor.u32 1.1754944e-38, %v5111
      %v5113 = vsel %vm5110, %v5112, %v5108
      %v5114 = vmul.f32 1.0, %v5113
      %v5115 = vrcp.pop %v5013
      %v5116 = vmul.f32 %v5013, %v5115
      %v5117 = vsub.f32 1.0, %v5116
      %v5118 = vmul.f32 %v5115, %v5117
      %v5119 = vadd.f32 %v5115, %v5118
      %vm5120 = vweird.f32 %v5013
      %vm5121 = vweird.f32 %v5115
      %vm5122 = vmor %vm5120, %vm5121
      %v5123 = vsel %vm5122, %v5115, %v5119
      %v5124 = vand.u32 2147483647, %v5013
      %vm5125 = vcmp.eq.f32.partialorder %v5124, 8.507059e+37
      %v5126 = vand.u32 %v5013, 2147483648
      %v5127 = vor.u32 1.1754944e-38, %v5126
      %v5128 = vsel %vm5125, %v5127, %v5123
      %v5129 = vmul.f32 1.0, %v5128
      %v5130 = vrcp.pop %v5014
      %v5131 = vmul.f32 %v5014, %v5130
      %v5132 = vsub.f32 1.0, %v5131
      %v5133 = vmul.f32 %v5130, %v5132
      %v5134 = vadd.f32 %v5130, %v5133
      %vm5135 = vweird.f32 %v5014
      %vm5136 = vweird.f32 %v5130
      %vm5137 = vmor %vm5135, %vm5136
      %v5138 = vsel %vm5137, %v5130, %v5134
      %v5139 = vand.u32 2147483647, %v5014
      %vm5140 = vcmp.eq.f32.partialorder %v5139, 8.507059e+37
      %v5141 = vand.u32 %v5014, 2147483648
      %v5142 = vor.u32 1.1754944e-38, %v5141
      %v5143 = vsel %vm5140, %v5142, %v5138
      %v5144 = vmul.f32 1.0, %v5143
      %v5145 = vrcp.pop %v5015
      %v5146 = vmul.f32 %v5015, %v5145
      %v5147 = vsub.f32 1.0, %v5146
      %v5148 = vmul.f32 %v5145, %v5147
      %v5149 = vadd.f32 %v5145, %v5148
      %vm5150 = vweird.f32 %v5015
      %vm5151 = vweird.f32 %v5145
      %vm5152 = vmor %vm5150, %vm5151
      %v5153 = vsel %vm5152, %v5145, %v5149
      %v5154 = vand.u32 2147483647, %v5015
      %vm5155 = vcmp.eq.f32.partialorder %v5154, 8.507059e+37
      %v5156 = vand.u32 %v5015, 2147483648
      %v5157 = vor.u32 1.1754944e-38, %v5156
      %v5158 = vsel %vm5155, %v5157, %v5153
      %v5159 = vmul.f32 1.0, %v5158
      %v5160 = vrcp.pop %v5016
      %v5161 = vmul.f32 %v5016, %v5160
      %v5162 = vsub.f32 1.0, %v5161
      %v5163 = vmul.f32 %v5160, %v5162
      %v5164 = vadd.f32 %v5160, %v5163
      %vm5165 = vweird.f32 %v5016
      %vm5166 = vweird.f32 %v5160
      %vm5167 = vmor %vm5165, %vm5166
      %v5168 = vsel %vm5167, %v5160, %v5164
      %v5169 = vand.u32 2147483647, %v5016
      %vm5170 = vcmp.eq.f32.partialorder %v5169, 8.507059e+37
      %v5171 = vand.u32 %v5016, 2147483648
      %v5172 = vor.u32 1.1754944e-38, %v5171
      %v5173 = vsel %vm5170, %v5172, %v5168
      %v5174 = vmul.f32 1.0, %v5173
      %v5175 = vrcp.pop %v5017
      %v5176 = vmul.f32 %v5017, %v5175
      %v5177 = vsub.f32 1.0, %v5176
      %v5178 = vmul.f32 %v5175, %v5177
      %v5179 = vadd.f32 %v5175, %v5178
      %vm5180 = vweird.f32 %v5017
      %vm5181 = vweird.f32 %v5175
      %vm5182 = vmor %vm5180, %vm5181
      %v5183 = vsel %vm5182, %v5175, %v5179
      %v5184 = vand.u32 2147483647, %v5017
      %vm5185 = vcmp.eq.f32.partialorder %v5184, 8.507059e+37
      %v5186 = vand.u32 %v5017, 2147483648
      %v5187 = vor.u32 1.1754944e-38, %v5186
      %v5188 = vsel %vm5185, %v5187, %v5183
      %v5189 = vmul.f32 1.0, %v5188
      %v5190 = vrcp.pop %v5018
      %v5191 = vmul.f32 %v5018, %v5190
      %v5192 = vsub.f32 1.0, %v5191
      %v5193 = vmul.f32 %v5190, %v5192
      %v5194 = vadd.f32 %v5190, %v5193
      %vm5195 = vweird.f32 %v5018
      %vm5196 = vweird.f32 %v5190
      %vm5197 = vmor %vm5195, %vm5196
      %v5198 = vsel %vm5197, %v5190, %v5194
      %v5199 = vand.u32 2147483647, %v5018
      %vm5200 = vcmp.eq.f32.partialorder %v5199, 8.507059e+37
      %v5201 = vand.u32 %v5018, 2147483648
      %v5202 = vor.u32 1.1754944e-38, %v5201
      %v5203 = vsel %vm5200, %v5202, %v5198
      %v5204 = vmul.f32 1.0, %v5203
      %v5205 = vrcp.pop %v5019
      %v5206 = vmul.f32 %v5019, %v5205
      %v5207 = vsub.f32 1.0, %v5206
      %v5208 = vmul.f32 %v5205, %v5207
      %v5209 = vadd.f32 %v5205, %v5208
      %vm5210 = vweird.f32 %v5019
      %vm5211 = vweird.f32 %v5205
      %vm5212 = vmor %vm5210, %vm5211
      %v5213 = vsel %vm5212, %v5205, %v5209
      %v5214 = vand.u32 2147483647, %v5019
      %vm5215 = vcmp.eq.f32.partialorder %v5214, 8.507059e+37
      %v5216 = vand.u32 %v5019, 2147483648
      %v5217 = vor.u32 1.1754944e-38, %v5216
      %v5218 = vsel %vm5215, %v5217, %v5213
      %v5219 = vmul.f32 1.0, %v5218
      %v5220 = vrcp.pop %v5020
      %v5221 = vmul.f32 %v5020, %v5220
      %v5222 = vsub.f32 1.0, %v5221
      %v5223 = vmul.f32 %v5220, %v5222
      %v5224 = vadd.f32 %v5220, %v5223
      %vm5225 = vweird.f32 %v5020
      %vm5226 = vweird.f32 %v5220
      %vm5227 = vmor %vm5225, %vm5226
      %v5228 = vsel %vm5227, %v5220, %v5224
      %v5229 = vand.u32 2147483647, %v5020
      %vm5230 = vcmp.eq.f32.partialorder %v5229, 8.507059e+37
      %v5231 = vand.u32 %v5020, 2147483648
      %v5232 = vor.u32 1.1754944e-38, %v5231
      %v5233 = vsel %vm5230, %v5232, %v5228
      %v5234 = vmul.f32 1.0, %v5233
      %v5235 = vrcp.pop %v5021
      %v5236 = vmul.f32 %v5021, %v5235
      %v5237 = vsub.f32 1.0, %v5236
      %v5238 = vmul.f32 %v5235, %v5237
      %v5239 = vadd.f32 %v5235, %v5238
      %vm5240 = vweird.f32 %v5021
      %vm5241 = vweird.f32 %v5235
      %vm5242 = vmor %vm5240, %vm5241
      %v5243 = vsel %vm5242, %v5235, %v5239
      %v5244 = vand.u32 2147483647, %v5021
      %vm5245 = vcmp.eq.f32.partialorder %v5244, 8.507059e+37
      %v5246 = vand.u32 %v5021, 2147483648
      %v5247 = vor.u32 1.1754944e-38, %v5246
      %v5248 = vsel %vm5245, %v5247, %v5243
      %v5249 = vmul.f32 1.0, %v5248
      %v5250 = vrcp.pop %v5022
      %v5251 = vmul.f32 %v5022, %v5250
      %v5252 = vsub.f32 1.0, %v5251
      %v5253 = vmul.f32 %v5250, %v5252
      %v5254 = vadd.f32 %v5250, %v5253
      %vm5255 = vweird.f32 %v5022
      %vm5256 = vweird.f32 %v5250
      %vm5257 = vmor %vm5255, %vm5256
      %v5258 = vsel %vm5257, %v5250, %v5254
      %v5259 = vand.u32 2147483647, %v5022
      %vm5260 = vcmp.eq.f32.partialorder %v5259, 8.507059e+37
      %v5261 = vand.u32 %v5022, 2147483648
      %v5262 = vor.u32 1.1754944e-38, %v5261
      %v5263 = vsel %vm5260, %v5262, %v5258
      %v5264 = vmul.f32 1.0, %v5263
      %v5265 = vrcp.pop %v5023
      %v5266 = vmul.f32 %v5023, %v5265
      %v5267 = vsub.f32 1.0, %v5266
      %v5268 = vmul.f32 %v5265, %v5267
      %v5269 = vadd.f32 %v5265, %v5268
      %vm5270 = vweird.f32 %v5023
      %vm5271 = vweird.f32 %v5265
      %vm5272 = vmor %vm5270, %vm5271
      %v5273 = vsel %vm5272, %v5265, %v5269
      %v5274 = vand.u32 2147483647, %v5023
      %vm5275 = vcmp.eq.f32.partialorder %v5274, 8.507059e+37
      %v5276 = vand.u32 %v5023, 2147483648
      %v5277 = vor.u32 1.1754944e-38, %v5276
      %v5278 = vsel %vm5275, %v5277, %v5273
      %v5279 = vmul.f32 1.0, %v5278
      %v5280 = vrcp.pop %v5024
      %v5281 = vmul.f32 %v5024, %v5280
      %v5282 = vsub.f32 1.0, %v5281
      %v5283 = vmul.f32 %v5280, %v5282
      %v5284 = vadd.f32 %v5280, %v5283
      %vm5285 = vweird.f32 %v5024
      %vm5286 = vweird.f32 %v5280
      %vm5287 = vmor %vm5285, %vm5286
      %v5288 = vsel %vm5287, %v5280, %v5284
      %v5289 = vand.u32 2147483647, %v5024
      %vm5290 = vcmp.eq.f32.partialorder %v5289, 8.507059e+37
      %v5291 = vand.u32 %v5024, 2147483648
      %v5292 = vor.u32 1.1754944e-38, %v5291
      %v5293 = vsel %vm5290, %v5292, %v5288
      %v5294 = vmul.f32 1.0, %v5293
      %v5295 = vrcp.pop %v5025
      %v5296 = vmul.f32 %v5025, %v5295
      %v5297 = vsub.f32 1.0, %v5296
      %v5298 = vmul.f32 %v5295, %v5297
      %v5299 = vadd.f32 %v5295, %v5298
      %vm5300 = vweird.f32 %v5025
      %vm5301 = vweird.f32 %v5295
      %vm5302 = vmor %vm5300, %vm5301
      %v5303 = vsel %vm5302, %v5295, %v5299
      %v5304 = vand.u32 2147483647, %v5025
      %vm5305 = vcmp.eq.f32.partialorder %v5304, 8.507059e+37
      %v5306 = vand.u32 %v5025, 2147483648
      %v5307 = vor.u32 1.1754944e-38, %v5306
      %v5308 = vsel %vm5305, %v5307, %v5303
      %v5309 = vmul.f32 1.0, %v5308
      %v5310 = vrcp.pop %v5026
      %v5311 = vmul.f32 %v5026, %v5310
      %v5312 = vsub.f32 1.0, %v5311
      %v5313 = vmul.f32 %v5310, %v5312
      %v5314 = vadd.f32 %v5310, %v5313
      %vm5315 = vweird.f32 %v5026
      %vm5316 = vweird.f32 %v5310
      %vm5317 = vmor %vm5315, %vm5316
      %v5318 = vsel %vm5317, %v5310, %v5314
      %v5319 = vand.u32 2147483647, %v5026
      %vm5320 = vcmp.eq.f32.partialorder %v5319, 8.507059e+37
      %v5321 = vand.u32 %v5026, 2147483648
      %v5322 = vor.u32 1.1754944e-38, %v5321
      %v5323 = vsel %vm5320, %v5322, %v5318
      %v5324 = vmul.f32 1.0, %v5323
      %v5325 = vrcp.pop %v5027
      %v5326 = vmul.f32 %v5027, %v5325
      %v5327 = vsub.f32 1.0, %v5326
      %v5328 = vmul.f32 %v5325, %v5327
      %v5329 = vadd.f32 %v5325, %v5328
      %vm5330 = vweird.f32 %v5027
      %vm5331 = vweird.f32 %v5325
      %vm5332 = vmor %vm5330, %vm5331
      %v5333 = vsel %vm5332, %v5325, %v5329
      %v5334 = vand.u32 2147483647, %v5027
      %vm5335 = vcmp.eq.f32.partialorder %v5334, 8.507059e+37
      %v5336 = vand.u32 %v5027, 2147483648
      %v5337 = vor.u32 1.1754944e-38, %v5336
      %v5338 = vsel %vm5335, %v5337, %v5333
      %v5339 = vmul.f32 1.0, %v5338
      %v5340 = vrcp.pop %v5028
      %v5341 = vmul.f32 %v5028, %v5340
      %v5342 = vsub.f32 1.0, %v5341
      %v5343 = vmul.f32 %v5340, %v5342
      %v5344 = vadd.f32 %v5340, %v5343
      %vm5345 = vweird.f32 %v5028
      %vm5346 = vweird.f32 %v5340
      %vm5347 = vmor %vm5345, %vm5346
      %v5348 = vsel %vm5347, %v5340, %v5344
      %v5349 = vand.u32 2147483647, %v5028
      %vm5350 = vcmp.eq.f32.partialorder %v5349, 8.507059e+37
      %v5351 = vand.u32 %v5028, 2147483648
      %v5352 = vor.u32 1.1754944e-38, %v5351
      %v5353 = vsel %vm5350, %v5352, %v5348
      %v5354 = vmul.f32 1.0, %v5353
      %v5355 = vrcp.pop %v5029
      %v5356 = vmul.f32 %v5029, %v5355
      %v5357 = vsub.f32 1.0, %v5356
      %v5358 = vmul.f32 %v5355, %v5357
      %v5359 = vadd.f32 %v5355, %v5358
      %vm5360 = vweird.f32 %v5029
      %vm5361 = vweird.f32 %v5355
      %vm5362 = vmor %vm5360, %vm5361
      %v5363 = vsel %vm5362, %v5355, %v5359
      %v5364 = vand.u32 2147483647, %v5029
      %vm5365 = vcmp.eq.f32.partialorder %v5364, 8.507059e+37
      %v5366 = vand.u32 %v5029, 2147483648
      %v5367 = vor.u32 1.1754944e-38, %v5366
      %v5368 = vsel %vm5365, %v5367, %v5363
      %v5369 = vmul.f32 1.0, %v5368
      %v5370 = vrcp.pop %v5030
      %v5371 = vmul.f32 %v5030, %v5370
      %v5372 = vsub.f32 1.0, %v5371
      %v5373 = vmul.f32 %v5370, %v5372
      %v5374 = vadd.f32 %v5370, %v5373
      %vm5375 = vweird.f32 %v5030
      %vm5376 = vweird.f32 %v5370
      %vm5377 = vmor %vm5375, %vm5376
      %v5378 = vsel %vm5377, %v5370, %v5374
      %v5379 = vand.u32 2147483647, %v5030
      %vm5380 = vcmp.eq.f32.partialorder %v5379, 8.507059e+37
      %v5381 = vand.u32 %v5030, 2147483648
      %v5382 = vor.u32 1.1754944e-38, %v5381
      %v5383 = vsel %vm5380, %v5382, %v5378
      %v5384 = vmul.f32 1.0, %v5383
      %v5385 = vrcp.pop %v5031
      %v5386 = vmul.f32 %v5031, %v5385
      %v5387 = vsub.f32 1.0, %v5386
      %v5388 = vmul.f32 %v5385, %v5387
      %v5389 = vadd.f32 %v5385, %v5388
      %vm5390 = vweird.f32 %v5031
      %vm5391 = vweird.f32 %v5385
      %vm5392 = vmor %vm5390, %vm5391
      %v5393 = vsel %vm5392, %v5385, %v5389
      %v5394 = vand.u32 2147483647, %v5031
      %vm5395 = vcmp.eq.f32.partialorder %v5394, 8.507059e+37
      %v5396 = vand.u32 %v5031, 2147483648
      %v5397 = vor.u32 1.1754944e-38, %v5396
      %v5398 = vsel %vm5395, %v5397, %v5393
      %v5399 = vmul.f32 1.0, %v5398
      %v5400 = vrcp.pop %v5032
      %v5401 = vmul.f32 %v5032, %v5400
      %v5402 = vsub.f32 1.0, %v5401
      %v5403 = vmul.f32 %v5400, %v5402
      %v5404 = vadd.f32 %v5400, %v5403
      %vm5405 = vweird.f32 %v5032
      %vm5406 = vweird.f32 %v5400
      %vm5407 = vmor %vm5405, %vm5406
      %v5408 = vsel %vm5407, %v5400, %v5404
      %v5409 = vand.u32 2147483647, %v5032
      %vm5410 = vcmp.eq.f32.partialorder %v5409, 8.507059e+37
      %v5411 = vand.u32 %v5032, 2147483648
      %v5412 = vor.u32 1.1754944e-38, %v5411
      %v5413 = vsel %vm5410, %v5412, %v5408
      %v5414 = vmul.f32 1.0, %v5413
      %v5415 = vrcp.pop %v5033
      %v5416 = vmul.f32 %v5033, %v5415
      %v5417 = vsub.f32 1.0, %v5416
      %v5418 = vmul.f32 %v5415, %v5417
      %v5419 = vadd.f32 %v5415, %v5418
      %vm5420 = vweird.f32 %v5033
      %vm5421 = vweird.f32 %v5415
      %vm5422 = vmor %vm5420, %vm5421
      %v5423 = vsel %vm5422, %v5415, %v5419
      %v5424 = vand.u32 2147483647, %v5033
      %vm5425 = vcmp.eq.f32.partialorder %v5424, 8.507059e+37
      %v5426 = vand.u32 %v5033, 2147483648
      %v5427 = vor.u32 1.1754944e-38, %v5426
      %v5428 = vsel %vm5425, %v5427, %v5423
      %v5429 = vmul.f32 1.0, %v5428
      %v5430 = vrcp.pop %v5034
      %v5431 = vmul.f32 %v5034, %v5430
      %v5432 = vsub.f32 1.0, %v5431
      %v5433 = vmul.f32 %v5430, %v5432
      %v5434 = vadd.f32 %v5430, %v5433
      %vm5435 = vweird.f32 %v5034
      %vm5436 = vweird.f32 %v5430
      %vm5437 = vmor %vm5435, %vm5436
      %v5438 = vsel %vm5437, %v5430, %v5434
      %v5439 = vand.u32 2147483647, %v5034
      %vm5440 = vcmp.eq.f32.partialorder %v5439, 8.507059e+37
      %v5441 = vand.u32 %v5034, 2147483648
      %v5442 = vor.u32 1.1754944e-38, %v5441
      %v5443 = vsel %vm5440, %v5442, %v5438
      %v5444 = vmul.f32 1.0, %v5443
      %v5445 = vrcp.pop %v5035
      %v5446 = vmul.f32 %v5035, %v5445
      %v5447 = vsub.f32 1.0, %v5446
      %v5448 = vmul.f32 %v5445, %v5447
      %v5449 = vadd.f32 %v5445, %v5448
      %vm5450 = vweird.f32 %v5035
      %vm5451 = vweird.f32 %v5445
      %vm5452 = vmor %vm5450, %vm5451
      %v5453 = vsel %vm5452, %v5445, %v5449
      %v5454 = vand.u32 2147483647, %v5035
      %vm5455 = vcmp.eq.f32.partialorder %v5454, 8.507059e+37
      %v5456 = vand.u32 %v5035, 2147483648
      %v5457 = vor.u32 1.1754944e-38, %v5456
      %v5458 = vsel %vm5455, %v5457, %v5453
      %v5459 = vmul.f32 1.0, %v5458
      %v5460 = vrcp.pop %v5036
      %v5461 = vmul.f32 %v5036, %v5460
      %v5462 = vsub.f32 1.0, %v5461
      %v5463 = vmul.f32 %v5460, %v5462
      %v5464 = vadd.f32 %v5460, %v5463
      %vm5465 = vweird.f32 %v5036
      %vm5466 = vweird.f32 %v5460
      %vm5467 = vmor %vm5465, %vm5466
      %v5468 = vsel %vm5467, %v5460, %v5464
      %v5469 = vand.u32 2147483647, %v5036
      %vm5470 = vcmp.eq.f32.partialorder %v5469, 8.507059e+37
      %v5471 = vand.u32 %v5036, 2147483648
      %v5472 = vor.u32 1.1754944e-38, %v5471
      %v5473 = vsel %vm5470, %v5472, %v5468
      %v5474 = vmul.f32 1.0, %v5473
      %v5475 = vrcp.pop %v5037
      %v5476 = vmul.f32 %v5037, %v5475
      %v5477 = vsub.f32 1.0, %v5476
      %v5478 = vmul.f32 %v5475, %v5477
      %v5479 = vadd.f32 %v5475, %v5478
      %vm5480 = vweird.f32 %v5037
      %vm5481 = vweird.f32 %v5475
      %vm5482 = vmor %vm5480, %vm5481
      %v5483 = vsel %vm5482, %v5475, %v5479
      %v5484 = vand.u32 2147483647, %v5037
      %vm5485 = vcmp.eq.f32.partialorder %v5484, 8.507059e+37
      %v5486 = vand.u32 %v5037, 2147483648
      %v5487 = vor.u32 1.1754944e-38, %v5486
      %v5488 = vsel %vm5485, %v5487, %v5483
      %v5489 = vmul.f32 1.0, %v5488
      %v5490 = vrcp.pop %v5038
      %v5491 = vmul.f32 %v5038, %v5490
      %v5492 = vsub.f32 1.0, %v5491
      %v5493 = vmul.f32 %v5490, %v5492
      %v5494 = vadd.f32 %v5490, %v5493
      %vm5495 = vweird.f32 %v5038
      %vm5496 = vweird.f32 %v5490
      %vm5497 = vmor %vm5495, %vm5496
      %v5498 = vsel %vm5497, %v5490, %v5494
      %v5499 = vand.u32 2147483647, %v5038
      %vm5500 = vcmp.eq.f32.partialorder %v5499, 8.507059e+37
      %v5501 = vand.u32 %v5038, 2147483648
      %v5502 = vor.u32 1.1754944e-38, %v5501
      %v5503 = vsel %vm5500, %v5502, %v5498
      %v5504 = vmul.f32 1.0, %v5503
      %v5505 = vrcp.pop %v5039
      %v5506 = vmul.f32 %v5039, %v5505
      %v5507 = vsub.f32 1.0, %v5506
      %v5508 = vmul.f32 %v5505, %v5507
      %v5509 = vadd.f32 %v5505, %v5508
      %vm5510 = vweird.f32 %v5039
      %vm5511 = vweird.f32 %v5505
      %vm5512 = vmor %vm5510, %vm5511
      %v5513 = vsel %vm5512, %v5505, %v5509
      %v5514 = vand.u32 2147483647, %v5039
      %vm5515 = vcmp.eq.f32.partialorder %v5514, 8.507059e+37
      %v5516 = vand.u32 %v5039, 2147483648
      %v5517 = vor.u32 1.1754944e-38, %v5516
      %v5518 = vsel %vm5515, %v5517, %v5513
      %v5519 = vmul.f32 1.0, %v5518
      %5552 = vset.pattern.permute.xlu0 0
      %5553 = vperm.xlu0 %5552, %v5054
      %v5554 = vpop.permute.xlu0 %5553
      %5555 = vset.pattern.permute.xlu0 0
      %5556 = vperm.xlu0 %5555, %v5069
      %v5557 = vpop.permute.xlu0 %5556
      %5558 = vset.pattern.permute.xlu0 0
      %5559 = vperm.xlu0 %5558, %v5084
      %v5560 = vpop.permute.xlu0 %5559
      %5561 = vset.pattern.permute.xlu0 0
      %5562 = vperm.xlu0 %5561, %v5099
      %v5563 = vpop.permute.xlu0 %5562
      %5564 = vset.pattern.permute.xlu0 0
      %5565 = vperm.xlu0 %5564, %v5114
      %v5566 = vpop.permute.xlu0 %5565
      %5567 = vset.pattern.permute.xlu0 0
      %5568 = vperm.xlu0 %5567, %v5129
      %v5569 = vpop.permute.xlu0 %5568
      %5570 = vset.pattern.permute.xlu0 0
      %5571 = vperm.xlu0 %5570, %v5144
      %v5572 = vpop.permute.xlu0 %5571
      %5573 = vset.pattern.permute.xlu0 0
      %5574 = vperm.xlu0 %5573, %v5159
      %v5575 = vpop.permute.xlu0 %5574
      %5576 = vset.pattern.permute.xlu0 0
      %5577 = vperm.xlu0 %5576, %v5174
      %v5578 = vpop.permute.xlu0 %5577
      %5579 = vset.pattern.permute.xlu0 0
      %5580 = vperm.xlu0 %5579, %v5189
      %v5581 = vpop.permute.xlu0 %5580
      %5582 = vset.pattern.permute.xlu0 0
      %5583 = vperm.xlu0 %5582, %v5204
      %v5584 = vpop.permute.xlu0 %5583
      %5585 = vset.pattern.permute.xlu0 0
      %5586 = vperm.xlu0 %5585, %v5219
      %v5587 = vpop.permute.xlu0 %5586
      %5588 = vset.pattern.permute.xlu0 0
      %5589 = vperm.xlu0 %5588, %v5234
      %v5590 = vpop.permute.xlu0 %5589
      %5591 = vset.pattern.permute.xlu0 0
      %5592 = vperm.xlu0 %5591, %v5249
      %v5593 = vpop.permute.xlu0 %5592
      %5594 = vset.pattern.permute.xlu0 0
      %5595 = vperm.xlu0 %5594, %v5264
      %v5596 = vpop.permute.xlu0 %5595
      %5597 = vset.pattern.permute.xlu0 0
      %5598 = vperm.xlu0 %5597, %v5279
      %v5599 = vpop.permute.xlu0 %5598
      %5600 = vset.pattern.permute.xlu0 0
      %5601 = vperm.xlu0 %5600, %v5294
      %v5602 = vpop.permute.xlu0 %5601
      %5603 = vset.pattern.permute.xlu0 0
      %5604 = vperm.xlu0 %5603, %v5309
      %v5605 = vpop.permute.xlu0 %5604
      %5606 = vset.pattern.permute.xlu0 0
      %5607 = vperm.xlu0 %5606, %v5324
      %v5608 = vpop.permute.xlu0 %5607
      %5609 = vset.pattern.permute.xlu0 0
      %5610 = vperm.xlu0 %5609, %v5339
      %v5611 = vpop.permute.xlu0 %5610
      %5612 = vset.pattern.permute.xlu0 0
      %5613 = vperm.xlu0 %5612, %v5354
      %v5614 = vpop.permute.xlu0 %5613
      %5615 = vset.pattern.permute.xlu0 0
      %5616 = vperm.xlu0 %5615, %v5369
      %v5617 = vpop.permute.xlu0 %5616
      %5618 = vset.pattern.permute.xlu0 0
      %5619 = vperm.xlu0 %5618, %v5384
      %v5620 = vpop.permute.xlu0 %5619
      %5621 = vset.pattern.permute.xlu0 0
      %5622 = vperm.xlu0 %5621, %v5399
      %v5623 = vpop.permute.xlu0 %5622
      %5624 = vset.pattern.permute.xlu0 0
      %5625 = vperm.xlu0 %5624, %v5414
      %v5626 = vpop.permute.xlu0 %5625
      %5627 = vset.pattern.permute.xlu0 0
      %5628 = vperm.xlu0 %5627, %v5429
      %v5629 = vpop.permute.xlu0 %5628
      %5630 = vset.pattern.permute.xlu0 0
      %5631 = vperm.xlu0 %5630, %v5444
      %v5632 = vpop.permute.xlu0 %5631
      %5633 = vset.pattern.permute.xlu0 0
      %5634 = vperm.xlu0 %5633, %v5459
      %v5635 = vpop.permute.xlu0 %5634
      %5636 = vset.pattern.permute.xlu0 0
      %5637 = vperm.xlu0 %5636, %v5474
      %v5638 = vpop.permute.xlu0 %5637
      %5639 = vset.pattern.permute.xlu0 0
      %5640 = vperm.xlu0 %5639, %v5489
      %v5641 = vpop.permute.xlu0 %5640
      %5642 = vset.pattern.permute.xlu0 0
      %5643 = vperm.xlu0 %5642, %v5504
      %v5644 = vpop.permute.xlu0 %5643
      %5645 = vset.pattern.permute.xlu0 0
      %5646 = vperm.xlu0 %5645, %v5519
      %v5647 = vpop.permute.xlu0 %5646
      %v5648 = vperm.slane %v5554, %v3147
      %v5649 = vperm.slane %v5557, %v3412
      %v5650 = vsel %vm3414, %v5649, %v5648
      %v5651 = vperm.slane %v5560, %v3147
      %v5652 = vperm.slane %v5563, %v3412
      %v5653 = vsel %vm3414, %v5652, %v5651
      %v5654 = vperm.slane %v5566, %v3147
      %v5655 = vperm.slane %v5569, %v3412
      %v5656 = vsel %vm3414, %v5655, %v5654
      %v5657 = vperm.slane %v5572, %v3147
      %v5658 = vperm.slane %v5575, %v3412
      %v5659 = vsel %vm3414, %v5658, %v5657
      %v5660 = vperm.slane %v5578, %v3147
      %v5661 = vperm.slane %v5581, %v3412
      %v5662 = vsel %vm3414, %v5661, %v5660
      %v5663 = vperm.slane %v5584, %v3147
      %v5664 = vperm.slane %v5587, %v3412
      %v5665 = vsel %vm3414, %v5664, %v5663
      %v5666 = vperm.slane %v5590, %v3147
      %v5667 = vperm.slane %v5593, %v3412
      %v5668 = vsel %vm3414, %v5667, %v5666
      %v5669 = vperm.slane %v5596, %v3147
      %v5670 = vperm.slane %v5599, %v3412
      %v5671 = vsel %vm3414, %v5670, %v5669
      %v5672 = vperm.slane %v5602, %v3147
      %v5673 = vperm.slane %v5605, %v3412
      %v5674 = vsel %vm3414, %v5673, %v5672
      %v5675 = vperm.slane %v5608, %v3147
      %v5676 = vperm.slane %v5611, %v3412
      %v5677 = vsel %vm3414, %v5676, %v5675
      %v5678 = vperm.slane %v5614, %v3147
      %v5679 = vperm.slane %v5617, %v3412
      %v5680 = vsel %vm3414, %v5679, %v5678
      %v5681 = vperm.slane %v5620, %v3147
      %v5682 = vperm.slane %v5623, %v3412
      %v5683 = vsel %vm3414, %v5682, %v5681
      %v5684 = vperm.slane %v5626, %v3147
      %v5685 = vperm.slane %v5629, %v3412
      %v5686 = vsel %vm3414, %v5685, %v5684
      %v5687 = vperm.slane %v5632, %v3147
      %v5688 = vperm.slane %v5635, %v3412
      %v5689 = vsel %vm3414, %v5688, %v5687
      %v5690 = vperm.slane %v5638, %v3147
      %v5691 = vperm.slane %v5641, %v3412
      %v5692 = vsel %vm3414, %v5691, %v5690
      %v5693 = vperm.slane %v5644, %v3147
      %v5694 = vperm.slane %v5647, %v3412
      %v5695 = vsel %vm3414, %v5694, %v5693
      %v5696 = vsel %vm3461, %v5653, %v5650
      %v5697 = vsel %vm3463, %v5656, %v5696
      %v5698 = vsel %vm3465, %v5659, %v5697
      %v5699 = vsel %vm3467, %v5662, %v5698
      %v5700 = vsel %vm3469, %v5665, %v5699
      %v5701 = vsel %vm3471, %v5668, %v5700
      %v5702 = vsel %vm3473, %v5671, %v5701
      %v5703 = vsel %vm3461, %v5677, %v5674
      %v5704 = vsel %vm3463, %v5680, %v5703
      %v5705 = vsel %vm3465, %v5683, %v5704
      %v5706 = vsel %vm3467, %v5686, %v5705
      %v5707 = vsel %vm3469, %v5689, %v5706
      %v5708 = vsel %vm3471, %v5692, %v5707
      %v5709 = vsel %vm3473, %v5695, %v5708
      %5712 = vxpose.xlu0.b32.start [1/16] %v5702, 128
      %5713 = vxpose.xlu0.b32.cont [2/16] %v5709, 128
      %5714 = vxpose.xlu0.b32.cont [3/16] 0.0, 128
      %5715 = vxpose.xlu0.b32.cont [4/16] 0.0, 128
      %5716 = vxpose.xlu0.b32.cont [5/16] 0.0, 128
      %5717 = vxpose.xlu0.b32.cont [6/16] 0.0, 128
      %5718 = vxpose.xlu0.b32.cont [7/16] 0.0, 128
      %5719 = vxpose.xlu0.b32.cont [8/16] 0.0, 128
      %5720 = vxpose.xlu0.b32.cont [9/16] 0.0, 128
      %5721 = vxpose.xlu0.b32.cont [10/16] 0.0, 128
      %5722 = vxpose.xlu0.b32.cont [11/16] 0.0, 128
      %5723 = vxpose.xlu0.b32.cont [12/16] 0.0, 128
      %5724 = vxpose.xlu0.b32.cont [13/16] 0.0, 128
      %5725 = vxpose.xlu0.b32.cont [14/16] 0.0, 128
      %5726 = vxpose.xlu0.b32.cont [15/16] 0.0, 128
      %5727 = vxpose.xlu0.b32.end [16/16] 0.0, 128
      %v5728 = vpop.trf.xlu0
      %v5729 = vpop.trf.xlu0
      %v5730 = vpop.trf.xlu0
      %v5731 = vpop.trf.xlu0
      %v5732 = vpop.trf.xlu0
      %v5733 = vpop.trf.xlu0
      %v5734 = vpop.trf.xlu0
      %v5735 = vpop.trf.xlu0
      %v5736 = vpop.trf.xlu0
      %v5737 = vpop.trf.xlu0
      %v5738 = vpop.trf.xlu0
      %v5739 = vpop.trf.xlu0
      %v5740 = vpop.trf.xlu0
      %v5741 = vpop.trf.xlu0
      %v5742 = vpop.trf.xlu0
      %v5743 = vpop.trf.xlu0
      %v5776 = vmul.f32 %v4079, %v5554
      %v5777 = vmul.f32 %v4081, %v5557
      %v5778 = vmul.f32 %v4083, %v5560
      %v5779 = vmul.f32 %v4085, %v5563
      %v5780 = vmul.f32 %v4087, %v5566
      %v5781 = vmul.f32 %v4089, %v5569
      %v5782 = vmul.f32 %v4091, %v5572
      %v5783 = vmul.f32 %v4093, %v5575
      %v5784 = vmul.f32 %v4095, %v5578
      %v5785 = vmul.f32 %v4097, %v5581
      %v5786 = vmul.f32 %v4099, %v5584
      %v5787 = vmul.f32 %v4101, %v5587
      %v5788 = vmul.f32 %v4103, %v5590
      %v5789 = vmul.f32 %v4105, %v5593
      %v5790 = vmul.f32 %v4107, %v5596
      %v5791 = vmul.f32 %v4109, %v5599
      %v5792 = vmul.f32 %v4111, %v5602
      %v5793 = vmul.f32 %v4113, %v5605
      %v5794 = vmul.f32 %v4115, %v5608
      %v5795 = vmul.f32 %v4117, %v5611
      %v5796 = vmul.f32 %v4119, %v5614
      %v5797 = vmul.f32 %v4121, %v5617
      %v5798 = vmul.f32 %v4123, %v5620
      %v5799 = vmul.f32 %v4125, %v5623
      %v5800 = vmul.f32 %v4127, %v5626
      %v5801 = vmul.f32 %v4129, %v5629
      %v5802 = vmul.f32 %v4131, %v5632
      %v5803 = vmul.f32 %v4133, %v5635
      %v5804 = vmul.f32 %v4135, %v5638
      %v5805 = vmul.f32 %v4137, %v5641
      %v5806 = vmul.f32 %v4139, %v5644
      %v5807 = vmul.f32 %v4141, %v5647
      %v5808 = vperm.slane %v5728, 0
      %v5809 = vlaneseq
      %v5810 = vshrl.u32 %v5809, 7
      %5812 = vset.pattern.permute.xlu0 %v5810
      %5813 = vperm.xlu0 %5812, %v5808
      %v5814 = vpop.permute.xlu0 %5813
      %v5815 = vlaneseq
      %v5816 = vshrl.u32 %v5815, 7
      %v5817 = vadd.s32 %v5816, 8
      %5818 = vset.pattern.permute.xlu0 %v5817
      %5819 = vperm.xlu0 %5818, %v5808
      %v5820 = vpop.permute.xlu0 %5819
      %v5821 = vperm.slane %v5728, 1
      %v5822 = vlaneseq
      %v5823 = vshrl.u32 %v5822, 7
      %5825 = vset.pattern.permute.xlu0 %v5823
      %5826 = vperm.xlu0 %5825, %v5821
      %v5827 = vpop.permute.xlu0 %5826
      %v5828 = vlaneseq
      %v5829 = vshrl.u32 %v5828, 7
      %v5830 = vadd.s32 %v5829, 8
      %5831 = vset.pattern.permute.xlu0 %v5830
      %5832 = vperm.xlu0 %5831, %v5821
      %v5833 = vpop.permute.xlu0 %5832
      %v5834 = vperm.slane %v5728, 2
      %v5835 = vlaneseq
      %v5836 = vshrl.u32 %v5835, 7
      %5838 = vset.pattern.permute.xlu0 %v5836
      %5839 = vperm.xlu0 %5838, %v5834
      %v5840 = vpop.permute.xlu0 %5839
      %v5841 = vlaneseq
      %v5842 = vshrl.u32 %v5841, 7
      %v5843 = vadd.s32 %v5842, 8
      %5844 = vset.pattern.permute.xlu0 %v5843
      %5845 = vperm.xlu0 %5844, %v5834
      %v5846 = vpop.permute.xlu0 %5845
      %v5847 = vperm.slane %v5728, 3
      %v5848 = vlaneseq
      %v5849 = vshrl.u32 %v5848, 7
      %5851 = vset.pattern.permute.xlu0 %v5849
      %5852 = vperm.xlu0 %5851, %v5847
      %v5853 = vpop.permute.xlu0 %5852
      %v5854 = vlaneseq
      %v5855 = vshrl.u32 %v5854, 7
      %v5856 = vadd.s32 %v5855, 8
      %5857 = vset.pattern.permute.xlu0 %v5856
      %5858 = vperm.xlu0 %5857, %v5847
      %v5859 = vpop.permute.xlu0 %5858
      %v5860 = vperm.slane %v5728, 4
      %v5861 = vlaneseq
      %v5862 = vshrl.u32 %v5861, 7
      %5864 = vset.pattern.permute.xlu0 %v5862
      %5865 = vperm.xlu0 %5864, %v5860
      %v5866 = vpop.permute.xlu0 %5865
      %v5867 = vlaneseq
      %v5868 = vshrl.u32 %v5867, 7
      %v5869 = vadd.s32 %v5868, 8
      %5870 = vset.pattern.permute.xlu0 %v5869
      %5871 = vperm.xlu0 %5870, %v5860
      %v5872 = vpop.permute.xlu0 %5871
      %v5873 = vperm.slane %v5728, 5
      %v5874 = vlaneseq
      %v5875 = vshrl.u32 %v5874, 7
      %5877 = vset.pattern.permute.xlu0 %v5875
      %5878 = vperm.xlu0 %5877, %v5873
      %v5879 = vpop.permute.xlu0 %5878
      %v5880 = vlaneseq
      %v5881 = vshrl.u32 %v5880, 7
      %v5882 = vadd.s32 %v5881, 8
      %5883 = vset.pattern.permute.xlu0 %v5882
      %5884 = vperm.xlu0 %5883, %v5873
      %v5885 = vpop.permute.xlu0 %5884
      %v5886 = vperm.slane %v5728, 6
      %v5887 = vlaneseq
      %v5888 = vshrl.u32 %v5887, 7
      %5890 = vset.pattern.permute.xlu0 %v5888
      %5891 = vperm.xlu0 %5890, %v5886
      %v5892 = vpop.permute.xlu0 %5891
      %v5893 = vlaneseq
      %v5894 = vshrl.u32 %v5893, 7
      %v5895 = vadd.s32 %v5894, 8
      %5896 = vset.pattern.permute.xlu0 %v5895
      %5897 = vperm.xlu0 %5896, %v5886
      %v5898 = vpop.permute.xlu0 %5897
      %v5899 = vperm.slane %v5728, 7
      %v5900 = vlaneseq
      %v5901 = vshrl.u32 %v5900, 7
      %5903 = vset.pattern.permute.xlu0 %v5901
      %5904 = vperm.xlu0 %5903, %v5899
      %v5905 = vpop.permute.xlu0 %5904
      %v5906 = vlaneseq
      %v5907 = vshrl.u32 %v5906, 7
      %v5908 = vadd.s32 %v5907, 8
      %5909 = vset.pattern.permute.xlu0 %v5908
      %5910 = vperm.xlu0 %5909, %v5899
      %v5911 = vpop.permute.xlu0 %5910
      %v5912 = vperm.slane %v5729, 0
      %v5913 = vlaneseq
      %v5914 = vshrl.u32 %v5913, 7
      %5916 = vset.pattern.permute.xlu0 %v5914
      %5917 = vperm.xlu0 %5916, %v5912
      %v5918 = vpop.permute.xlu0 %5917
      %v5919 = vlaneseq
      %v5920 = vshrl.u32 %v5919, 7
      %v5921 = vadd.s32 %v5920, 8
      %5922 = vset.pattern.permute.xlu0 %v5921
      %5923 = vperm.xlu0 %5922, %v5912
      %v5924 = vpop.permute.xlu0 %5923
      %v5925 = vperm.slane %v5729, 1
      %v5926 = vlaneseq
      %v5927 = vshrl.u32 %v5926, 7
      %5929 = vset.pattern.permute.xlu0 %v5927
      %5930 = vperm.xlu0 %5929, %v5925
      %v5931 = vpop.permute.xlu0 %5930
      %v5932 = vlaneseq
      %v5933 = vshrl.u32 %v5932, 7
      %v5934 = vadd.s32 %v5933, 8
      %5935 = vset.pattern.permute.xlu0 %v5934
      %5936 = vperm.xlu0 %5935, %v5925
      %v5937 = vpop.permute.xlu0 %5936
      %v5938 = vperm.slane %v5729, 2
      %v5939 = vlaneseq
      %v5940 = vshrl.u32 %v5939, 7
      %5942 = vset.pattern.permute.xlu0 %v5940
      %5943 = vperm.xlu0 %5942, %v5938
      %v5944 = vpop.permute.xlu0 %5943
      %v5945 = vlaneseq
      %v5946 = vshrl.u32 %v5945, 7
      %v5947 = vadd.s32 %v5946, 8
      %5948 = vset.pattern.permute.xlu0 %v5947
      %5949 = vperm.xlu0 %5948, %v5938
      %v5950 = vpop.permute.xlu0 %5949
      %v5951 = vperm.slane %v5729, 3
      %v5952 = vlaneseq
      %v5953 = vshrl.u32 %v5952, 7
      %5955 = vset.pattern.permute.xlu0 %v5953
      %5956 = vperm.xlu0 %5955, %v5951
      %v5957 = vpop.permute.xlu0 %5956
      %v5958 = vlaneseq
      %v5959 = vshrl.u32 %v5958, 7
      %v5960 = vadd.s32 %v5959, 8
      %5961 = vset.pattern.permute.xlu0 %v5960
      %5962 = vperm.xlu0 %5961, %v5951
      %v5963 = vpop.permute.xlu0 %5962
      %v5964 = vperm.slane %v5729, 4
      %v5965 = vlaneseq
      %v5966 = vshrl.u32 %v5965, 7
      %5968 = vset.pattern.permute.xlu0 %v5966
      %5969 = vperm.xlu0 %5968, %v5964
      %v5970 = vpop.permute.xlu0 %5969
      %v5971 = vlaneseq
      %v5972 = vshrl.u32 %v5971, 7
      %v5973 = vadd.s32 %v5972, 8
      %5974 = vset.pattern.permute.xlu0 %v5973
      %5975 = vperm.xlu0 %5974, %v5964
      %v5976 = vpop.permute.xlu0 %5975
      %v5977 = vperm.slane %v5729, 5
      %v5978 = vlaneseq
      %v5979 = vshrl.u32 %v5978, 7
      %5981 = vset.pattern.permute.xlu0 %v5979
      %5982 = vperm.xlu0 %5981, %v5977
      %v5983 = vpop.permute.xlu0 %5982
      %v5984 = vlaneseq
      %v5985 = vshrl.u32 %v5984, 7
      %v5986 = vadd.s32 %v5985, 8
      %5987 = vset.pattern.permute.xlu0 %v5986
      %5988 = vperm.xlu0 %5987, %v5977
      %v5989 = vpop.permute.xlu0 %5988
      %v5990 = vperm.slane %v5729, 6
      %v5991 = vlaneseq
      %v5992 = vshrl.u32 %v5991, 7
      %5994 = vset.pattern.permute.xlu0 %v5992
      %5995 = vperm.xlu0 %5994, %v5990
      %v5996 = vpop.permute.xlu0 %5995
      %v5997 = vlaneseq
      %v5998 = vshrl.u32 %v5997, 7
      %v5999 = vadd.s32 %v5998, 8
      %6000 = vset.pattern.permute.xlu0 %v5999
      %6001 = vperm.xlu0 %6000, %v5990
      %v6002 = vpop.permute.xlu0 %6001
      %v6003 = vperm.slane %v5729, 7
      %v6004 = vlaneseq
      %v6005 = vshrl.u32 %v6004, 7
      %6007 = vset.pattern.permute.xlu0 %v6005
      %6008 = vperm.xlu0 %6007, %v6003
      %v6009 = vpop.permute.xlu0 %6008
      %v6010 = vlaneseq
      %v6011 = vshrl.u32 %v6010, 7
      %v6012 = vadd.s32 %v6011, 8
      %6013 = vset.pattern.permute.xlu0 %v6012
      %6014 = vperm.xlu0 %6013, %v6003
      %v6015 = vpop.permute.xlu0 %6014
      %v6016 = vmul.f32 %v4383, %v5814
      %v6017 = vmul.f32 %v4385, %v5820
      %v6018 = vmul.f32 %v4387, %v5827
      %v6019 = vmul.f32 %v4389, %v5833
      %v6020 = vmul.f32 %v4391, %v5840
      %v6021 = vmul.f32 %v4393, %v5846
      %v6022 = vmul.f32 %v4395, %v5853
      %v6023 = vmul.f32 %v4397, %v5859
      %v6024 = vmul.f32 %v4399, %v5866
      %v6025 = vmul.f32 %v4401, %v5872
      %v6026 = vmul.f32 %v4403, %v5879
      %v6027 = vmul.f32 %v4405, %v5885
      %v6028 = vmul.f32 %v4407, %v5892
      %v6029 = vmul.f32 %v4409, %v5898
      %v6030 = vmul.f32 %v4411, %v5905
      %v6031 = vmul.f32 %v4413, %v5911
      %v6032 = vmul.f32 %v4415, %v5918
      %v6033 = vmul.f32 %v4417, %v5924
      %v6034 = vmul.f32 %v4419, %v5931
      %v6035 = vmul.f32 %v4421, %v5937
      %v6036 = vmul.f32 %v4423, %v5944
      %v6037 = vmul.f32 %v4425, %v5950
      %v6038 = vmul.f32 %v4427, %v5957
      %v6039 = vmul.f32 %v4429, %v5963
      %v6040 = vmul.f32 %v4431, %v5970
      %v6041 = vmul.f32 %v4433, %v5976
      %v6042 = vmul.f32 %v4435, %v5983
      %v6043 = vmul.f32 %v4437, %v5989
      %v6044 = vmul.f32 %v4439, %v5996
      %v6045 = vmul.f32 %v4441, %v6002
      %v6046 = vmul.f32 %v4443, %v6009
      %v6047 = vmul.f32 %v4445, %v6015
      %v6049 = vsel %vm3186, %v5776, 0
      %v6052 = vsel %vm3186, %v5777, 0
      %6054 = vmatpush.msra.mxu0 0.0
      %6055 = vmatpush.msra.mxu0 0.0
      %6056 = vmatpush.msra.mxu0 0.0
      %6057 = vmatpush.msra.mxu0 0.0
      %6058 = vmatpush.msra.mxu0 0.0
      %6059 = vmatpush.msra.mxu0 0.0
      %6060 = vmatpush.msra.mxu0 0.0
      %6061 = vmatpush.msra.mxu0 0.0
      %6062 = vmatpush.msra.mxu0 0.0
      %6063 = vmatpush.msra.mxu0 0.0
      %6064 = vmatpush.msra.mxu0 0.0
      %6065 = vmatpush.msra.mxu0 0.0
      %6066 = vmatpush.msra.mxu0 0.0
      %6067 = vmatpush.msra.mxu0 0.0
      %6068 = vmatpush.msra.mxu0 %v1545
      %6069 = vmatpush.msra.mxu0 %v1543
      %6070 = vmatmul.f32.gmra.mxu0 %v6049
      %v6071 = vpop.f32.mrf.mxu0
      %v6072 = vadd.f32 0.0, %v6071
      %6073 = vmatmul.f32.gmra.mxu0 %v6052
      %v6074 = vpop.f32.mrf.mxu0
      %v6075 = vadd.f32 0.0, %v6074
      %6076 = vdwg.mxu0
      %v6078 = vsel %vm3186, %v5778, 0
      %v6081 = vsel %vm3186, %v5779, 0
      %6083 = vmatpush.msra.mxu0 0.0
      %6084 = vmatpush.msra.mxu0 0.0
      %6085 = vmatpush.msra.mxu0 0.0
      %6086 = vmatpush.msra.mxu0 0.0
      %6087 = vmatpush.msra.mxu0 0.0
      %6088 = vmatpush.msra.mxu0 0.0
      %6089 = vmatpush.msra.mxu0 0.0
      %6090 = vmatpush.msra.mxu0 0.0
      %6091 = vmatpush.msra.mxu0 0.0
      %6092 = vmatpush.msra.mxu0 0.0
      %6093 = vmatpush.msra.mxu0 0.0
      %6094 = vmatpush.msra.mxu0 0.0
      %6095 = vmatpush.msra.mxu0 0.0
      %6096 = vmatpush.msra.mxu0 0.0
      %6097 = vmatpush.msra.mxu0 %v1549
      %6098 = vmatpush.msra.mxu0 %v1547
      %6099 = vmatmul.f32.gmra.mxu0 %v6078
      %v6100 = vpop.f32.mrf.mxu0
      %v6101 = vadd.f32 0.0, %v6100
      %6102 = vmatmul.f32.gmra.mxu0 %v6081
      %v6103 = vpop.f32.mrf.mxu0
      %v6104 = vadd.f32 0.0, %v6103
      %6105 = vdwg.mxu0
      %v6107 = vsel %vm3186, %v5780, 0
      %v6110 = vsel %vm3186, %v5781, 0
      %6112 = vmatpush.msra.mxu0 0.0
      %6113 = vmatpush.msra.mxu0 0.0
      %6114 = vmatpush.msra.mxu0 0.0
      %6115 = vmatpush.msra.mxu0 0.0
      %6116 = vmatpush.msra.mxu0 0.0
      %6117 = vmatpush.msra.mxu0 0.0
      %6118 = vmatpush.msra.mxu0 0.0
      %6119 = vmatpush.msra.mxu0 0.0
      %6120 = vmatpush.msra.mxu0 0.0
      %6121 = vmatpush.msra.mxu0 0.0
      %6122 = vmatpush.msra.mxu0 0.0
      %6123 = vmatpush.msra.mxu0 0.0
      %6124 = vmatpush.msra.mxu0 0.0
      %6125 = vmatpush.msra.mxu0 0.0
      %6126 = vmatpush.msra.mxu0 %v1553
      %6127 = vmatpush.msra.mxu0 %v1551
      %6128 = vmatmul.f32.gmra.mxu0 %v6107
      %v6129 = vpop.f32.mrf.mxu0
      %v6130 = vadd.f32 0.0, %v6129
      %6131 = vmatmul.f32.gmra.mxu0 %v6110
      %v6132 = vpop.f32.mrf.mxu0
      %v6133 = vadd.f32 0.0, %v6132
      %6134 = vdwg.mxu0
      %v6136 = vsel %vm3186, %v5782, 0
      %v6139 = vsel %vm3186, %v5783, 0
      %6141 = vmatpush.msra.mxu0 0.0
      %6142 = vmatpush.msra.mxu0 0.0
      %6143 = vmatpush.msra.mxu0 0.0
      %6144 = vmatpush.msra.mxu0 0.0
      %6145 = vmatpush.msra.mxu0 0.0
      %6146 = vmatpush.msra.mxu0 0.0
      %6147 = vmatpush.msra.mxu0 0.0
      %6148 = vmatpush.msra.mxu0 0.0
      %6149 = vmatpush.msra.mxu0 0.0
      %6150 = vmatpush.msra.mxu0 0.0
      %6151 = vmatpush.msra.mxu0 0.0
      %6152 = vmatpush.msra.mxu0 0.0
      %6153 = vmatpush.msra.mxu0 0.0
      %6154 = vmatpush.msra.mxu0 0.0
      %6155 = vmatpush.msra.mxu0 %v1557
      %6156 = vmatpush.msra.mxu0 %v1555
      %6157 = vmatmul.f32.gmra.mxu0 %v6136
      %v6158 = vpop.f32.mrf.mxu0
      %v6159 = vadd.f32 0.0, %v6158
      %6160 = vmatmul.f32.gmra.mxu0 %v6139
      %v6161 = vpop.f32.mrf.mxu0
      %v6162 = vadd.f32 0.0, %v6161
      %6163 = vdwg.mxu0
      %v6165 = vsel %vm3186, %v5784, 0
      %v6168 = vsel %vm3186, %v5785, 0
      %6170 = vmatpush.msra.mxu0 0.0
      %6171 = vmatpush.msra.mxu0 0.0
      %6172 = vmatpush.msra.mxu0 0.0
      %6173 = vmatpush.msra.mxu0 0.0
      %6174 = vmatpush.msra.mxu0 0.0
      %6175 = vmatpush.msra.mxu0 0.0
      %6176 = vmatpush.msra.mxu0 0.0
      %6177 = vmatpush.msra.mxu0 0.0
      %6178 = vmatpush.msra.mxu0 0.0
      %6179 = vmatpush.msra.mxu0 0.0
      %6180 = vmatpush.msra.mxu0 0.0
      %6181 = vmatpush.msra.mxu0 0.0
      %6182 = vmatpush.msra.mxu0 0.0
      %6183 = vmatpush.msra.mxu0 0.0
      %6184 = vmatpush.msra.mxu0 %v1561
      %6185 = vmatpush.msra.mxu0 %v1559
      %6186 = vmatmul.f32.gmra.mxu0 %v6165
      %v6187 = vpop.f32.mrf.mxu0
      %v6188 = vadd.f32 0.0, %v6187
      %6189 = vmatmul.f32.gmra.mxu0 %v6168
      %v6190 = vpop.f32.mrf.mxu0
      %v6191 = vadd.f32 0.0, %v6190
      %6192 = vdwg.mxu0
      %v6194 = vsel %vm3186, %v5786, 0
      %v6197 = vsel %vm3186, %v5787, 0
      %6199 = vmatpush.msra.mxu0 0.0
      %6200 = vmatpush.msra.mxu0 0.0
      %6201 = vmatpush.msra.mxu0 0.0
      %6202 = vmatpush.msra.mxu0 0.0
      %6203 = vmatpush.msra.mxu0 0.0
      %6204 = vmatpush.msra.mxu0 0.0
      %6205 = vmatpush.msra.mxu0 0.0
      %6206 = vmatpush.msra.mxu0 0.0
      %6207 = vmatpush.msra.mxu0 0.0
      %6208 = vmatpush.msra.mxu0 0.0
      %6209 = vmatpush.msra.mxu0 0.0
      %6210 = vmatpush.msra.mxu0 0.0
      %6211 = vmatpush.msra.mxu0 0.0
      %6212 = vmatpush.msra.mxu0 0.0
      %6213 = vmatpush.msra.mxu0 %v1565
      %6214 = vmatpush.msra.mxu0 %v1563
      %6215 = vmatmul.f32.gmra.mxu0 %v6194
      %v6216 = vpop.f32.mrf.mxu0
      %v6217 = vadd.f32 0.0, %v6216
      %6218 = vmatmul.f32.gmra.mxu0 %v6197
      %v6219 = vpop.f32.mrf.mxu0
      %v6220 = vadd.f32 0.0, %v6219
      %6221 = vdwg.mxu0
      %v6223 = vsel %vm3186, %v5788, 0
      %v6226 = vsel %vm3186, %v5789, 0
      %6228 = vmatpush.msra.mxu0 0.0
      %6229 = vmatpush.msra.mxu0 0.0
      %6230 = vmatpush.msra.mxu0 0.0
      %6231 = vmatpush.msra.mxu0 0.0
      %6232 = vmatpush.msra.mxu0 0.0
      %6233 = vmatpush.msra.mxu0 0.0
      %6234 = vmatpush.msra.mxu0 0.0
      %6235 = vmatpush.msra.mxu0 0.0
      %6236 = vmatpush.msra.mxu0 0.0
      %6237 = vmatpush.msra.mxu0 0.0
      %6238 = vmatpush.msra.mxu0 0.0
      %6239 = vmatpush.msra.mxu0 0.0
      %6240 = vmatpush.msra.mxu0 0.0
      %6241 = vmatpush.msra.mxu0 0.0
      %6242 = vmatpush.msra.mxu0 %v1569
      %6243 = vmatpush.msra.mxu0 %v1567
      %6244 = vmatmul.f32.gmra.mxu0 %v6223
      %v6245 = vpop.f32.mrf.mxu0
      %v6246 = vadd.f32 0.0, %v6245
      %6247 = vmatmul.f32.gmra.mxu0 %v6226
      %v6248 = vpop.f32.mrf.mxu0
      %v6249 = vadd.f32 0.0, %v6248
      %6250 = vdwg.mxu0
      %v6252 = vsel %vm3186, %v5790, 0
      %v6255 = vsel %vm3186, %v5791, 0
      %6257 = vmatpush.msra.mxu0 0.0
      %6258 = vmatpush.msra.mxu0 0.0
      %6259 = vmatpush.msra.mxu0 0.0
      %6260 = vmatpush.msra.mxu0 0.0
      %6261 = vmatpush.msra.mxu0 0.0
      %6262 = vmatpush.msra.mxu0 0.0
      %6263 = vmatpush.msra.mxu0 0.0
      %6264 = vmatpush.msra.mxu0 0.0
      %6265 = vmatpush.msra.mxu0 0.0
      %6266 = vmatpush.msra.mxu0 0.0
      %6267 = vmatpush.msra.mxu0 0.0
      %6268 = vmatpush.msra.mxu0 0.0
      %6269 = vmatpush.msra.mxu0 0.0
      %6270 = vmatpush.msra.mxu0 0.0
      %6271 = vmatpush.msra.mxu0 %v1573
      %6272 = vmatpush.msra.mxu0 %v1571
      %6273 = vmatmul.f32.gmra.mxu0 %v6252
      %v6274 = vpop.f32.mrf.mxu0
      %v6275 = vadd.f32 0.0, %v6274
      %6276 = vmatmul.f32.gmra.mxu0 %v6255
      %v6277 = vpop.f32.mrf.mxu0
      %v6278 = vadd.f32 0.0, %v6277
      %6279 = vdwg.mxu0
      %v6281 = vsel %vm3186, %v5792, 0
      %v6284 = vsel %vm3186, %v5793, 0
      %6286 = vmatpush.msra.mxu0 0.0
      %6287 = vmatpush.msra.mxu0 0.0
      %6288 = vmatpush.msra.mxu0 0.0
      %6289 = vmatpush.msra.mxu0 0.0
      %6290 = vmatpush.msra.mxu0 0.0
      %6291 = vmatpush.msra.mxu0 0.0
      %6292 = vmatpush.msra.mxu0 0.0
      %6293 = vmatpush.msra.mxu0 0.0
      %6294 = vmatpush.msra.mxu0 0.0
      %6295 = vmatpush.msra.mxu0 0.0
      %6296 = vmatpush.msra.mxu0 0.0
      %6297 = vmatpush.msra.mxu0 0.0
      %6298 = vmatpush.msra.mxu0 0.0
      %6299 = vmatpush.msra.mxu0 0.0
      %6300 = vmatpush.msra.mxu0 %v1577
      %6301 = vmatpush.msra.mxu0 %v1575
      %6302 = vmatmul.f32.gmra.mxu0 %v6281
      %v6303 = vpop.f32.mrf.mxu0
      %v6304 = vadd.f32 0.0, %v6303
      %6305 = vmatmul.f32.gmra.mxu0 %v6284
      %v6306 = vpop.f32.mrf.mxu0
      %v6307 = vadd.f32 0.0, %v6306
      %6308 = vdwg.mxu0
      %v6310 = vsel %vm3186, %v5794, 0
      %v6313 = vsel %vm3186, %v5795, 0
      %6315 = vmatpush.msra.mxu0 0.0
      %6316 = vmatpush.msra.mxu0 0.0
      %6317 = vmatpush.msra.mxu0 0.0
      %6318 = vmatpush.msra.mxu0 0.0
      %6319 = vmatpush.msra.mxu0 0.0
      %6320 = vmatpush.msra.mxu0 0.0
      %6321 = vmatpush.msra.mxu0 0.0
      %6322 = vmatpush.msra.mxu0 0.0
      %6323 = vmatpush.msra.mxu0 0.0
      %6324 = vmatpush.msra.mxu0 0.0
      %6325 = vmatpush.msra.mxu0 0.0
      %6326 = vmatpush.msra.mxu0 0.0
      %6327 = vmatpush.msra.mxu0 0.0
      %6328 = vmatpush.msra.mxu0 0.0
      %6329 = vmatpush.msra.mxu0 %v1581
      %6330 = vmatpush.msra.mxu0 %v1579
      %6331 = vmatmul.f32.gmra.mxu0 %v6310
      %v6332 = vpop.f32.mrf.mxu0
      %v6333 = vadd.f32 0.0, %v6332
      %6334 = vmatmul.f32.gmra.mxu0 %v6313
      %v6335 = vpop.f32.mrf.mxu0
      %v6336 = vadd.f32 0.0, %v6335
      %6337 = vdwg.mxu0
      %v6339 = vsel %vm3186, %v5796, 0
      %v6342 = vsel %vm3186, %v5797, 0
      %6344 = vmatpush.msra.mxu0 0.0
      %6345 = vmatpush.msra.mxu0 0.0
      %6346 = vmatpush.msra.mxu0 0.0
      %6347 = vmatpush.msra.mxu0 0.0
      %6348 = vmatpush.msra.mxu0 0.0
      %6349 = vmatpush.msra.mxu0 0.0
      %6350 = vmatpush.msra.mxu0 0.0
      %6351 = vmatpush.msra.mxu0 0.0
      %6352 = vmatpush.msra.mxu0 0.0
      %6353 = vmatpush.msra.mxu0 0.0
      %6354 = vmatpush.msra.mxu0 0.0
      %6355 = vmatpush.msra.mxu0 0.0
      %6356 = vmatpush.msra.mxu0 0.0
      %6357 = vmatpush.msra.mxu0 0.0
      %6358 = vmatpush.msra.mxu0 %v1585
      %6359 = vmatpush.msra.mxu0 %v1583
      %6360 = vmatmul.f32.gmra.mxu0 %v6339
      %v6361 = vpop.f32.mrf.mxu0
      %v6362 = vadd.f32 0.0, %v6361
      %6363 = vmatmul.f32.gmra.mxu0 %v6342
      %v6364 = vpop.f32.mrf.mxu0
      %v6365 = vadd.f32 0.0, %v6364
      %6366 = vdwg.mxu0
      %v6368 = vsel %vm3186, %v5798, 0
      %v6371 = vsel %vm3186, %v5799, 0
      %6373 = vmatpush.msra.mxu0 0.0
      %6374 = vmatpush.msra.mxu0 0.0
      %6375 = vmatpush.msra.mxu0 0.0
      %6376 = vmatpush.msra.mxu0 0.0
      %6377 = vmatpush.msra.mxu0 0.0
      %6378 = vmatpush.msra.mxu0 0.0
      %6379 = vmatpush.msra.mxu0 0.0
      %6380 = vmatpush.msra.mxu0 0.0
      %6381 = vmatpush.msra.mxu0 0.0
      %6382 = vmatpush.msra.mxu0 0.0
      %6383 = vmatpush.msra.mxu0 0.0
      %6384 = vmatpush.msra.mxu0 0.0
      %6385 = vmatpush.msra.mxu0 0.0
      %6386 = vmatpush.msra.mxu0 0.0
      %6387 = vmatpush.msra.mxu0 %v1589
      %6388 = vmatpush.msra.mxu0 %v1587
      %6389 = vmatmul.f32.gmra.mxu0 %v6368
      %v6390 = vpop.f32.mrf.mxu0
      %v6391 = vadd.f32 0.0, %v6390
      %6392 = vmatmul.f32.gmra.mxu0 %v6371
      %v6393 = vpop.f32.mrf.mxu0
      %v6394 = vadd.f32 0.0, %v6393
      %6395 = vdwg.mxu0
      %v6397 = vsel %vm3186, %v5800, 0
      %v6400 = vsel %vm3186, %v5801, 0
      %6402 = vmatpush.msra.mxu0 0.0
      %6403 = vmatpush.msra.mxu0 0.0
      %6404 = vmatpush.msra.mxu0 0.0
      %6405 = vmatpush.msra.mxu0 0.0
      %6406 = vmatpush.msra.mxu0 0.0
      %6407 = vmatpush.msra.mxu0 0.0
      %6408 = vmatpush.msra.mxu0 0.0
      %6409 = vmatpush.msra.mxu0 0.0
      %6410 = vmatpush.msra.mxu0 0.0
      %6411 = vmatpush.msra.mxu0 0.0
      %6412 = vmatpush.msra.mxu0 0.0
      %6413 = vmatpush.msra.mxu0 0.0
      %6414 = vmatpush.msra.mxu0 0.0
      %6415 = vmatpush.msra.mxu0 0.0
      %6416 = vmatpush.msra.mxu0 %v1593
      %6417 = vmatpush.msra.mxu0 %v1591
      %6418 = vmatmul.f32.gmra.mxu0 %v6397
      %v6419 = vpop.f32.mrf.mxu0
      %v6420 = vadd.f32 0.0, %v6419
      %6421 = vmatmul.f32.gmra.mxu0 %v6400
      %v6422 = vpop.f32.mrf.mxu0
      %v6423 = vadd.f32 0.0, %v6422
      %6424 = vdwg.mxu0
      %v6426 = vsel %vm3186, %v5802, 0
      %v6429 = vsel %vm3186, %v5803, 0
      %6431 = vmatpush.msra.mxu0 0.0
      %6432 = vmatpush.msra.mxu0 0.0
      %6433 = vmatpush.msra.mxu0 0.0
      %6434 = vmatpush.msra.mxu0 0.0
      %6435 = vmatpush.msra.mxu0 0.0
      %6436 = vmatpush.msra.mxu0 0.0
      %6437 = vmatpush.msra.mxu0 0.0
      %6438 = vmatpush.msra.mxu0 0.0
      %6439 = vmatpush.msra.mxu0 0.0
      %6440 = vmatpush.msra.mxu0 0.0
      %6441 = vmatpush.msra.mxu0 0.0
      %6442 = vmatpush.msra.mxu0 0.0
      %6443 = vmatpush.msra.mxu0 0.0
      %6444 = vmatpush.msra.mxu0 0.0
      %6445 = vmatpush.msra.mxu0 %v1597
      %6446 = vmatpush.msra.mxu0 %v1595
      %6447 = vmatmul.f32.gmra.mxu0 %v6426
      %v6448 = vpop.f32.mrf.mxu0
      %v6449 = vadd.f32 0.0, %v6448
      %6450 = vmatmul.f32.gmra.mxu0 %v6429
      %v6451 = vpop.f32.mrf.mxu0
      %v6452 = vadd.f32 0.0, %v6451
      %6453 = vdwg.mxu0
      %v6455 = vsel %vm3186, %v5804, 0
      %v6458 = vsel %vm3186, %v5805, 0
      %6460 = vmatpush.msra.mxu0 0.0
      %6461 = vmatpush.msra.mxu0 0.0
      %6462 = vmatpush.msra.mxu0 0.0
      %6463 = vmatpush.msra.mxu0 0.0
      %6464 = vmatpush.msra.mxu0 0.0
      %6465 = vmatpush.msra.mxu0 0.0
      %6466 = vmatpush.msra.mxu0 0.0
      %6467 = vmatpush.msra.mxu0 0.0
      %6468 = vmatpush.msra.mxu0 0.0
      %6469 = vmatpush.msra.mxu0 0.0
      %6470 = vmatpush.msra.mxu0 0.0
      %6471 = vmatpush.msra.mxu0 0.0
      %6472 = vmatpush.msra.mxu0 0.0
      %6473 = vmatpush.msra.mxu0 0.0
      %6474 = vmatpush.msra.mxu0 %v1601
      %6475 = vmatpush.msra.mxu0 %v1599
      %6476 = vmatmul.f32.gmra.mxu0 %v6455
      %v6477 = vpop.f32.mrf.mxu0
      %v6478 = vadd.f32 0.0, %v6477
      %6479 = vmatmul.f32.gmra.mxu0 %v6458
      %v6480 = vpop.f32.mrf.mxu0
      %v6481 = vadd.f32 0.0, %v6480
      %6482 = vdwg.mxu0
      %v6484 = vsel %vm3186, %v5806, 0
      %v6487 = vsel %vm3186, %v5807, 0
      %6489 = vmatpush.msra.mxu0 0.0
      %6490 = vmatpush.msra.mxu0 0.0
      %6491 = vmatpush.msra.mxu0 0.0
      %6492 = vmatpush.msra.mxu0 0.0
      %6493 = vmatpush.msra.mxu0 0.0
      %6494 = vmatpush.msra.mxu0 0.0
      %6495 = vmatpush.msra.mxu0 0.0
      %6496 = vmatpush.msra.mxu0 0.0
      %6497 = vmatpush.msra.mxu0 0.0
      %6498 = vmatpush.msra.mxu0 0.0
      %6499 = vmatpush.msra.mxu0 0.0
      %6500 = vmatpush.msra.mxu0 0.0
      %6501 = vmatpush.msra.mxu0 0.0
      %6502 = vmatpush.msra.mxu0 0.0
      %6503 = vmatpush.msra.mxu0 %v1605
      %6504 = vmatpush.msra.mxu0 %v1603
      %6505 = vmatmul.f32.gmra.mxu0 %v6484
      %v6506 = vpop.f32.mrf.mxu0
      %v6507 = vadd.f32 0.0, %v6506
      %6508 = vmatmul.f32.gmra.mxu0 %v6487
      %v6509 = vpop.f32.mrf.mxu0
      %v6510 = vadd.f32 0.0, %v6509
      %6511 = vdwg.mxu0
      %v6513 = vsel %vm3186, %v6016, 0
      %v6516 = vsel %vm3186, %v6017, 0
      %6518 = vmatpush.msra.mxu0 0.0
      %6519 = vmatpush.msra.mxu0 0.0
      %6520 = vmatpush.msra.mxu0 0.0
      %6521 = vmatpush.msra.mxu0 0.0
      %6522 = vmatpush.msra.mxu0 0.0
      %6523 = vmatpush.msra.mxu0 0.0
      %6524 = vmatpush.msra.mxu0 0.0
      %6525 = vmatpush.msra.mxu0 0.0
      %6526 = vmatpush.msra.mxu0 0.0
      %6527 = vmatpush.msra.mxu0 0.0
      %6528 = vmatpush.msra.mxu0 0.0
      %6529 = vmatpush.msra.mxu0 0.0
      %6530 = vmatpush.msra.mxu0 0.0
      %6531 = vmatpush.msra.mxu0 0.0
      %6532 = vmatpush.msra.mxu0 %v1847
      %6533 = vmatpush.msra.mxu0 %v1735
      %6534 = vmatmul.f32.gmra.mxu0 %v6513
      %v6535 = vpop.f32.mrf.mxu0
      %v6536 = vadd.f32 0.0, %v6535
      %6537 = vmatmul.f32.gmra.mxu0 %v6516
      %v6538 = vpop.f32.mrf.mxu0
      %v6539 = vadd.f32 0.0, %v6538
      %6540 = vdwg.mxu0
      %v6542 = vsel %vm3186, %v6018, 0
      %v6545 = vsel %vm3186, %v6019, 0
      %6547 = vmatpush.msra.mxu0 0.0
      %6548 = vmatpush.msra.mxu0 0.0
      %6549 = vmatpush.msra.mxu0 0.0
      %6550 = vmatpush.msra.mxu0 0.0
      %6551 = vmatpush.msra.mxu0 0.0
      %6552 = vmatpush.msra.mxu0 0.0
      %6553 = vmatpush.msra.mxu0 0.0
      %6554 = vmatpush.msra.mxu0 0.0
      %6555 = vmatpush.msra.mxu0 0.0
      %6556 = vmatpush.msra.mxu0 0.0
      %6557 = vmatpush.msra.mxu0 0.0
      %6558 = vmatpush.msra.mxu0 0.0
      %6559 = vmatpush.msra.mxu0 0.0
      %6560 = vmatpush.msra.mxu0 0.0
      %6561 = vmatpush.msra.mxu0 %v1849
      %6562 = vmatpush.msra.mxu0 %v1737
      %6563 = vmatmul.f32.gmra.mxu0 %v6542
      %v6564 = vpop.f32.mrf.mxu0
      %v6565 = vadd.f32 0.0, %v6564
      %6566 = vmatmul.f32.gmra.mxu0 %v6545
      %v6567 = vpop.f32.mrf.mxu0
      %v6568 = vadd.f32 0.0, %v6567
      %6569 = vdwg.mxu0
      %v6571 = vsel %vm3186, %v6020, 0
      %v6574 = vsel %vm3186, %v6021, 0
      %6576 = vmatpush.msra.mxu0 0.0
      %6577 = vmatpush.msra.mxu0 0.0
      %6578 = vmatpush.msra.mxu0 0.0
      %6579 = vmatpush.msra.mxu0 0.0
      %6580 = vmatpush.msra.mxu0 0.0
      %6581 = vmatpush.msra.mxu0 0.0
      %6582 = vmatpush.msra.mxu0 0.0
      %6583 = vmatpush.msra.mxu0 0.0
      %6584 = vmatpush.msra.mxu0 0.0
      %6585 = vmatpush.msra.mxu0 0.0
      %6586 = vmatpush.msra.mxu0 0.0
      %6587 = vmatpush.msra.mxu0 0.0
      %6588 = vmatpush.msra.mxu0 0.0
      %6589 = vmatpush.msra.mxu0 0.0
      %6590 = vmatpush.msra.mxu0 %v1851
      %6591 = vmatpush.msra.mxu0 %v1739
      %6592 = vmatmul.f32.gmra.mxu0 %v6571
      %v6593 = vpop.f32.mrf.mxu0
      %v6594 = vadd.f32 0.0, %v6593
      %6595 = vmatmul.f32.gmra.mxu0 %v6574
      %v6596 = vpop.f32.mrf.mxu0
      %v6597 = vadd.f32 0.0, %v6596
      %6598 = vdwg.mxu0
      %v6600 = vsel %vm3186, %v6022, 0
      %v6603 = vsel %vm3186, %v6023, 0
      %6605 = vmatpush.msra.mxu0 0.0
      %6606 = vmatpush.msra.mxu0 0.0
      %6607 = vmatpush.msra.mxu0 0.0
      %6608 = vmatpush.msra.mxu0 0.0
      %6609 = vmatpush.msra.mxu0 0.0
      %6610 = vmatpush.msra.mxu0 0.0
      %6611 = vmatpush.msra.mxu0 0.0
      %6612 = vmatpush.msra.mxu0 0.0
      %6613 = vmatpush.msra.mxu0 0.0
      %6614 = vmatpush.msra.mxu0 0.0
      %6615 = vmatpush.msra.mxu0 0.0
      %6616 = vmatpush.msra.mxu0 0.0
      %6617 = vmatpush.msra.mxu0 0.0
      %6618 = vmatpush.msra.mxu0 0.0
      %6619 = vmatpush.msra.mxu0 %v1853
      %6620 = vmatpush.msra.mxu0 %v1741
      %6621 = vmatmul.f32.gmra.mxu0 %v6600
      %v6622 = vpop.f32.mrf.mxu0
      %v6623 = vadd.f32 0.0, %v6622
      %6624 = vmatmul.f32.gmra.mxu0 %v6603
      %v6625 = vpop.f32.mrf.mxu0
      %v6626 = vadd.f32 0.0, %v6625
      %6627 = vdwg.mxu0
      %v6629 = vsel %vm3186, %v6024, 0
      %v6632 = vsel %vm3186, %v6025, 0
      %6634 = vmatpush.msra.mxu0 0.0
      %6635 = vmatpush.msra.mxu0 0.0
      %6636 = vmatpush.msra.mxu0 0.0
      %6637 = vmatpush.msra.mxu0 0.0
      %6638 = vmatpush.msra.mxu0 0.0
      %6639 = vmatpush.msra.mxu0 0.0
      %6640 = vmatpush.msra.mxu0 0.0
      %6641 = vmatpush.msra.mxu0 0.0
      %6642 = vmatpush.msra.mxu0 0.0
      %6643 = vmatpush.msra.mxu0 0.0
      %6644 = vmatpush.msra.mxu0 0.0
      %6645 = vmatpush.msra.mxu0 0.0
      %6646 = vmatpush.msra.mxu0 0.0
      %6647 = vmatpush.msra.mxu0 0.0
      %6648 = vmatpush.msra.mxu0 %v1855
      %6649 = vmatpush.msra.mxu0 %v1743
      %6650 = vmatmul.f32.gmra.mxu0 %v6629
      %v6651 = vpop.f32.mrf.mxu0
      %v6652 = vadd.f32 0.0, %v6651
      %6653 = vmatmul.f32.gmra.mxu0 %v6632
      %v6654 = vpop.f32.mrf.mxu0
      %v6655 = vadd.f32 0.0, %v6654
      %6656 = vdwg.mxu0
      %v6658 = vsel %vm3186, %v6026, 0
      %v6661 = vsel %vm3186, %v6027, 0
      %6663 = vmatpush.msra.mxu0 0.0
      %6664 = vmatpush.msra.mxu0 0.0
      %6665 = vmatpush.msra.mxu0 0.0
      %6666 = vmatpush.msra.mxu0 0.0
      %6667 = vmatpush.msra.mxu0 0.0
      %6668 = vmatpush.msra.mxu0 0.0
      %6669 = vmatpush.msra.mxu0 0.0
      %6670 = vmatpush.msra.mxu0 0.0
      %6671 = vmatpush.msra.mxu0 0.0
      %6672 = vmatpush.msra.mxu0 0.0
      %6673 = vmatpush.msra.mxu0 0.0
      %6674 = vmatpush.msra.mxu0 0.0
      %6675 = vmatpush.msra.mxu0 0.0
      %6676 = vmatpush.msra.mxu0 0.0
      %6677 = vmatpush.msra.mxu0 %v1857
      %6678 = vmatpush.msra.mxu0 %v1745
      %6679 = vmatmul.f32.gmra.mxu0 %v6658
      %v6680 = vpop.f32.mrf.mxu0
      %v6681 = vadd.f32 0.0, %v6680
      %6682 = vmatmul.f32.gmra.mxu0 %v6661
      %v6683 = vpop.f32.mrf.mxu0
      %v6684 = vadd.f32 0.0, %v6683
      %6685 = vdwg.mxu0
      %v6687 = vsel %vm3186, %v6028, 0
      %v6690 = vsel %vm3186, %v6029, 0
      %6692 = vmatpush.msra.mxu0 0.0
      %6693 = vmatpush.msra.mxu0 0.0
      %6694 = vmatpush.msra.mxu0 0.0
      %6695 = vmatpush.msra.mxu0 0.0
      %6696 = vmatpush.msra.mxu0 0.0
      %6697 = vmatpush.msra.mxu0 0.0
      %6698 = vmatpush.msra.mxu0 0.0
      %6699 = vmatpush.msra.mxu0 0.0
      %6700 = vmatpush.msra.mxu0 0.0
      %6701 = vmatpush.msra.mxu0 0.0
      %6702 = vmatpush.msra.mxu0 0.0
      %6703 = vmatpush.msra.mxu0 0.0
      %6704 = vmatpush.msra.mxu0 0.0
      %6705 = vmatpush.msra.mxu0 0.0
      %6706 = vmatpush.msra.mxu0 %v1859
      %6707 = vmatpush.msra.mxu0 %v1747
      %6708 = vmatmul.f32.gmra.mxu0 %v6687
      %v6709 = vpop.f32.mrf.mxu0
      %v6710 = vadd.f32 0.0, %v6709
      %6711 = vmatmul.f32.gmra.mxu0 %v6690
      %v6712 = vpop.f32.mrf.mxu0
      %v6713 = vadd.f32 0.0, %v6712
      %6714 = vdwg.mxu0
      %v6716 = vsel %vm3186, %v6030, 0
      %v6719 = vsel %vm3186, %v6031, 0
      %6721 = vmatpush.msra.mxu0 0.0
      %6722 = vmatpush.msra.mxu0 0.0
      %6723 = vmatpush.msra.mxu0 0.0
      %6724 = vmatpush.msra.mxu0 0.0
      %6725 = vmatpush.msra.mxu0 0.0
      %6726 = vmatpush.msra.mxu0 0.0
      %6727 = vmatpush.msra.mxu0 0.0
      %6728 = vmatpush.msra.mxu0 0.0
      %6729 = vmatpush.msra.mxu0 0.0
      %6730 = vmatpush.msra.mxu0 0.0
      %6731 = vmatpush.msra.mxu0 0.0
      %6732 = vmatpush.msra.mxu0 0.0
      %6733 = vmatpush.msra.mxu0 0.0
      %6734 = vmatpush.msra.mxu0 0.0
      %6735 = vmatpush.msra.mxu0 %v1861
      %6736 = vmatpush.msra.mxu0 %v1749
      %6737 = vmatmul.f32.gmra.mxu0 %v6716
      %v6738 = vpop.f32.mrf.mxu0
      %v6739 = vadd.f32 0.0, %v6738
      %6740 = vmatmul.f32.gmra.mxu0 %v6719
      %v6741 = vpop.f32.mrf.mxu0
      %v6742 = vadd.f32 0.0, %v6741
      %6743 = vdwg.mxu0
      %v6745 = vsel %vm3186, %v6032, 0
      %v6748 = vsel %vm3186, %v6033, 0
      %6750 = vmatpush.msra.mxu0 0.0
      %6751 = vmatpush.msra.mxu0 0.0
      %6752 = vmatpush.msra.mxu0 0.0
      %6753 = vmatpush.msra.mxu0 0.0
      %6754 = vmatpush.msra.mxu0 0.0
      %6755 = vmatpush.msra.mxu0 0.0
      %6756 = vmatpush.msra.mxu0 0.0
      %6757 = vmatpush.msra.mxu0 0.0
      %6758 = vmatpush.msra.mxu0 0.0
      %6759 = vmatpush.msra.mxu0 0.0
      %6760 = vmatpush.msra.mxu0 0.0
      %6761 = vmatpush.msra.mxu0 0.0
      %6762 = vmatpush.msra.mxu0 0.0
      %6763 = vmatpush.msra.mxu0 0.0
      %6764 = vmatpush.msra.mxu0 %v2071
      %6765 = vmatpush.msra.mxu0 %v1959
      %6766 = vmatmul.f32.gmra.mxu0 %v6745
      %v6767 = vpop.f32.mrf.mxu0
      %v6768 = vadd.f32 0.0, %v6767
      %6769 = vmatmul.f32.gmra.mxu0 %v6748
      %v6770 = vpop.f32.mrf.mxu0
      %v6771 = vadd.f32 0.0, %v6770
      %6772 = vdwg.mxu0
      %v6774 = vsel %vm3186, %v6034, 0
      %v6777 = vsel %vm3186, %v6035, 0
      %6779 = vmatpush.msra.mxu0 0.0
      %6780 = vmatpush.msra.mxu0 0.0
      %6781 = vmatpush.msra.mxu0 0.0
      %6782 = vmatpush.msra.mxu0 0.0
      %6783 = vmatpush.msra.mxu0 0.0
      %6784 = vmatpush.msra.mxu0 0.0
      %6785 = vmatpush.msra.mxu0 0.0
      %6786 = vmatpush.msra.mxu0 0.0
      %6787 = vmatpush.msra.mxu0 0.0
      %6788 = vmatpush.msra.mxu0 0.0
      %6789 = vmatpush.msra.mxu0 0.0
      %6790 = vmatpush.msra.mxu0 0.0
      %6791 = vmatpush.msra.mxu0 0.0
      %6792 = vmatpush.msra.mxu0 0.0
      %6793 = vmatpush.msra.mxu0 %v2073
      %6794 = vmatpush.msra.mxu0 %v1961
      %6795 = vmatmul.f32.gmra.mxu0 %v6774
      %v6796 = vpop.f32.mrf.mxu0
      %v6797 = vadd.f32 0.0, %v6796
      %6798 = vmatmul.f32.gmra.mxu0 %v6777
      %v6799 = vpop.f32.mrf.mxu0
      %v6800 = vadd.f32 0.0, %v6799
      %6801 = vdwg.mxu0
      %v6803 = vsel %vm3186, %v6036, 0
      %v6806 = vsel %vm3186, %v6037, 0
      %6808 = vmatpush.msra.mxu0 0.0
      %6809 = vmatpush.msra.mxu0 0.0
      %6810 = vmatpush.msra.mxu0 0.0
      %6811 = vmatpush.msra.mxu0 0.0
      %6812 = vmatpush.msra.mxu0 0.0
      %6813 = vmatpush.msra.mxu0 0.0
      %6814 = vmatpush.msra.mxu0 0.0
      %6815 = vmatpush.msra.mxu0 0.0
      %6816 = vmatpush.msra.mxu0 0.0
      %6817 = vmatpush.msra.mxu0 0.0
      %6818 = vmatpush.msra.mxu0 0.0
      %6819 = vmatpush.msra.mxu0 0.0
      %6820 = vmatpush.msra.mxu0 0.0
      %6821 = vmatpush.msra.mxu0 0.0
      %6822 = vmatpush.msra.mxu0 %v2075
      %6823 = vmatpush.msra.mxu0 %v1963
      %6824 = vmatmul.f32.gmra.mxu0 %v6803
      %v6825 = vpop.f32.mrf.mxu0
      %v6826 = vadd.f32 0.0, %v6825
      %6827 = vmatmul.f32.gmra.mxu0 %v6806
      %v6828 = vpop.f32.mrf.mxu0
      %v6829 = vadd.f32 0.0, %v6828
      %6830 = vdwg.mxu0
      %v6832 = vsel %vm3186, %v6038, 0
      %v6835 = vsel %vm3186, %v6039, 0
      %6837 = vmatpush.msra.mxu0 0.0
      %6838 = vmatpush.msra.mxu0 0.0
      %6839 = vmatpush.msra.mxu0 0.0
      %6840 = vmatpush.msra.mxu0 0.0
      %6841 = vmatpush.msra.mxu0 0.0
      %6842 = vmatpush.msra.mxu0 0.0
      %6843 = vmatpush.msra.mxu0 0.0
      %6844 = vmatpush.msra.mxu0 0.0
      %6845 = vmatpush.msra.mxu0 0.0
      %6846 = vmatpush.msra.mxu0 0.0
      %6847 = vmatpush.msra.mxu0 0.0
      %6848 = vmatpush.msra.mxu0 0.0
      %6849 = vmatpush.msra.mxu0 0.0
      %6850 = vmatpush.msra.mxu0 0.0
      %6851 = vmatpush.msra.mxu0 %v2077
      %6852 = vmatpush.msra.mxu0 %v1965
      %6853 = vmatmul.f32.gmra.mxu0 %v6832
      %v6854 = vpop.f32.mrf.mxu0
      %v6855 = vadd.f32 0.0, %v6854
      %6856 = vmatmul.f32.gmra.mxu0 %v6835
      %v6857 = vpop.f32.mrf.mxu0
      %v6858 = vadd.f32 0.0, %v6857
      %6859 = vdwg.mxu0
      %v6861 = vsel %vm3186, %v6040, 0
      %v6864 = vsel %vm3186, %v6041, 0
      %6866 = vmatpush.msra.mxu0 0.0
      %6867 = vmatpush.msra.mxu0 0.0
      %6868 = vmatpush.msra.mxu0 0.0
      %6869 = vmatpush.msra.mxu0 0.0
      %6870 = vmatpush.msra.mxu0 0.0
      %6871 = vmatpush.msra.mxu0 0.0
      %6872 = vmatpush.msra.mxu0 0.0
      %6873 = vmatpush.msra.mxu0 0.0
      %6874 = vmatpush.msra.mxu0 0.0
      %6875 = vmatpush.msra.mxu0 0.0
      %6876 = vmatpush.msra.mxu0 0.0
      %6877 = vmatpush.msra.mxu0 0.0
      %6878 = vmatpush.msra.mxu0 0.0
      %6879 = vmatpush.msra.mxu0 0.0
      %6880 = vmatpush.msra.mxu0 %v2079
      %6881 = vmatpush.msra.mxu0 %v1967
      %6882 = vmatmul.f32.gmra.mxu0 %v6861
      %v6883 = vpop.f32.mrf.mxu0
      %v6884 = vadd.f32 0.0, %v6883
      %6885 = vmatmul.f32.gmra.mxu0 %v6864
      %v6886 = vpop.f32.mrf.mxu0
      %v6887 = vadd.f32 0.0, %v6886
      %6888 = vdwg.mxu0
      %v6890 = vsel %vm3186, %v6042, 0
      %v6893 = vsel %vm3186, %v6043, 0
      %6895 = vmatpush.msra.mxu0 0.0
      %6896 = vmatpush.msra.mxu0 0.0
      %6897 = vmatpush.msra.mxu0 0.0
      %6898 = vmatpush.msra.mxu0 0.0
      %6899 = vmatpush.msra.mxu0 0.0
      %6900 = vmatpush.msra.mxu0 0.0
      %6901 = vmatpush.msra.mxu0 0.0
      %6902 = vmatpush.msra.mxu0 0.0
      %6903 = vmatpush.msra.mxu0 0.0
      %6904 = vmatpush.msra.mxu0 0.0
      %6905 = vmatpush.msra.mxu0 0.0
      %6906 = vmatpush.msra.mxu0 0.0
      %6907 = vmatpush.msra.mxu0 0.0
      %6908 = vmatpush.msra.mxu0 0.0
      %6909 = vmatpush.msra.mxu0 %v2081
      %6910 = vmatpush.msra.mxu0 %v1969
      %6911 = vmatmul.f32.gmra.mxu0 %v6890
      %v6912 = vpop.f32.mrf.mxu0
      %v6913 = vadd.f32 0.0, %v6912
      %6914 = vmatmul.f32.gmra.mxu0 %v6893
      %v6915 = vpop.f32.mrf.mxu0
      %v6916 = vadd.f32 0.0, %v6915
      %6917 = vdwg.mxu0
      %v6919 = vsel %vm3186, %v6044, 0
      %v6922 = vsel %vm3186, %v6045, 0
      %6924 = vmatpush.msra.mxu0 0.0
      %6925 = vmatpush.msra.mxu0 0.0
      %6926 = vmatpush.msra.mxu0 0.0
      %6927 = vmatpush.msra.mxu0 0.0
      %6928 = vmatpush.msra.mxu0 0.0
      %6929 = vmatpush.msra.mxu0 0.0
      %6930 = vmatpush.msra.mxu0 0.0
      %6931 = vmatpush.msra.mxu0 0.0
      %6932 = vmatpush.msra.mxu0 0.0
      %6933 = vmatpush.msra.mxu0 0.0
      %6934 = vmatpush.msra.mxu0 0.0
      %6935 = vmatpush.msra.mxu0 0.0
      %6936 = vmatpush.msra.mxu0 0.0
      %6937 = vmatpush.msra.mxu0 0.0
      %6938 = vmatpush.msra.mxu0 %v2083
      %6939 = vmatpush.msra.mxu0 %v1971
      %6940 = vmatmul.f32.gmra.mxu0 %v6919
      %v6941 = vpop.f32.mrf.mxu0
      %v6942 = vadd.f32 0.0, %v6941
      %6943 = vmatmul.f32.gmra.mxu0 %v6922
      %v6944 = vpop.f32.mrf.mxu0
      %v6945 = vadd.f32 0.0, %v6944
      %6946 = vdwg.mxu0
      %v6948 = vsel %vm3186, %v6046, 0
      %v6951 = vsel %vm3186, %v6047, 0
      %6953 = vmatpush.msra.mxu0 0.0
      %6954 = vmatpush.msra.mxu0 0.0
      %6955 = vmatpush.msra.mxu0 0.0
      %6956 = vmatpush.msra.mxu0 0.0
      %6957 = vmatpush.msra.mxu0 0.0
      %6958 = vmatpush.msra.mxu0 0.0
      %6959 = vmatpush.msra.mxu0 0.0
      %6960 = vmatpush.msra.mxu0 0.0
      %6961 = vmatpush.msra.mxu0 0.0
      %6962 = vmatpush.msra.mxu0 0.0
      %6963 = vmatpush.msra.mxu0 0.0
      %6964 = vmatpush.msra.mxu0 0.0
      %6965 = vmatpush.msra.mxu0 0.0
      %6966 = vmatpush.msra.mxu0 0.0
      %6967 = vmatpush.msra.mxu0 %v2085
      %6968 = vmatpush.msra.mxu0 %v1973
      %6969 = vmatmul.f32.gmra.mxu0 %v6948
      %v6970 = vpop.f32.mrf.mxu0
      %v6971 = vadd.f32 0.0, %v6970
      %6972 = vmatmul.f32.gmra.mxu0 %v6951
      %v6973 = vpop.f32.mrf.mxu0
      %v6974 = vadd.f32 0.0, %v6973
      %6975 = vdwg.mxu0
      %v6976 = vrot.slane %v6594, 4
      %v6977 = vsel %vm518, %v6976, %v6536
      %v6978 = vrot.slane %v6536, 4
      %v6979 = vsel %vm518, %v6594, %v6978
      %v6981 = vunpack.c.l.s4 1983009808
      %v6982 = vunpack.c.0.s8 %v6981
      %v6983 = vperm.slane %v6977, %v6982
      %v6985 = vunpack.c.l.s4 1983009808
      %v6986 = vunpack.c.0.s8 %v6985
      %v6987 = vperm.slane %v6979, %v6986
      %v6988 = vrot.slane %v6623, 4
      %v6989 = vsel %vm518, %v6988, %v6565
      %v6990 = vrot.slane %v6565, 4
      %v6991 = vsel %vm518, %v6623, %v6990
      %v6993 = vunpack.c.l.s4 1983009808
      %v6994 = vunpack.c.0.s8 %v6993
      %v6995 = vperm.slane %v6989, %v6994
      %v6997 = vunpack.c.l.s4 1983009808
      %v6998 = vunpack.c.0.s8 %v6997
      %v6999 = vperm.slane %v6991, %v6998
      %v7000 = vrot.slane %v6710, 4
      %v7001 = vsel %vm518, %v7000, %v6652
      %v7002 = vrot.slane %v6652, 4
      %v7003 = vsel %vm518, %v6710, %v7002
      %v7005 = vunpack.c.l.s4 1983009808
      %v7006 = vunpack.c.0.s8 %v7005
      %v7007 = vperm.slane %v7001, %v7006
      %v7009 = vunpack.c.l.s4 1983009808
      %v7010 = vunpack.c.0.s8 %v7009
      %v7011 = vperm.slane %v7003, %v7010
      %v7012 = vrot.slane %v6739, 4
      %v7013 = vsel %vm518, %v7012, %v6681
      %v7014 = vrot.slane %v6681, 4
      %v7015 = vsel %vm518, %v6739, %v7014
      %v7017 = vunpack.c.l.s4 1983009808
      %v7018 = vunpack.c.0.s8 %v7017
      %v7019 = vperm.slane %v7013, %v7018
      %v7021 = vunpack.c.l.s4 1983009808
      %v7022 = vunpack.c.0.s8 %v7021
      %v7023 = vperm.slane %v7015, %v7022
      %v7024 = vrot.slane %v6995, 4
      %v7025 = vsel %vm518, %v7024, %v6983
      %v7026 = vrot.slane %v6983, 4
      %v7027 = vsel %vm518, %v6995, %v7026
      %v7029 = vunpack.c.l.s4 1934713408
      %v7030 = vunpack.c.0.s8 %v7029
      %v7031 = vperm.slane %v7025, %v7030
      %v7033 = vunpack.c.l.s4 1934713408
      %v7034 = vunpack.c.0.s8 %v7033
      %v7035 = vperm.slane %v7027, %v7034
      %v7036 = vrot.slane %v6999, 4
      %v7037 = vsel %vm518, %v7036, %v6987
      %v7038 = vrot.slane %v6987, 4
      %v7039 = vsel %vm518, %v6999, %v7038
      %v7041 = vunpack.c.l.s4 1934713408
      %v7042 = vunpack.c.0.s8 %v7041
      %v7043 = vperm.slane %v7037, %v7042
      %v7045 = vunpack.c.l.s4 1934713408
      %v7046 = vunpack.c.0.s8 %v7045
      %v7047 = vperm.slane %v7039, %v7046
      %v7048 = vrot.slane %v7019, 4
      %v7049 = vsel %vm518, %v7048, %v7007
      %v7050 = vrot.slane %v7007, 4
      %v7051 = vsel %vm518, %v7019, %v7050
      %v7053 = vunpack.c.l.s4 1934713408
      %v7054 = vunpack.c.0.s8 %v7053
      %v7055 = vperm.slane %v7049, %v7054
      %v7057 = vunpack.c.l.s4 1934713408
      %v7058 = vunpack.c.0.s8 %v7057
      %v7059 = vperm.slane %v7051, %v7058
      %v7060 = vrot.slane %v7023, 4
      %v7061 = vsel %vm518, %v7060, %v7011
      %v7062 = vrot.slane %v7011, 4
      %v7063 = vsel %vm518, %v7023, %v7062
      %v7065 = vunpack.c.l.s4 1934713408
      %v7066 = vunpack.c.0.s8 %v7065
      %v7067 = vperm.slane %v7061, %v7066
      %v7069 = vunpack.c.l.s4 1934713408
      %v7070 = vunpack.c.0.s8 %v7069
      %v7071 = vperm.slane %v7063, %v7070
      %v7072 = vrot.slane %v7055, 4
      %v7073 = vsel %vm518, %v7072, %v7031
      %v7074 = vrot.slane %v7031, 4
      %v7075 = vsel %vm518, %v7055, %v7074
      %v7076 = vrot.slane %v7059, 4
      %v7077 = vsel %vm518, %v7076, %v7035
      %v7078 = vrot.slane %v7035, 4
      %v7079 = vsel %vm518, %v7059, %v7078
      %v7080 = vrot.slane %v7067, 4
      %v7081 = vsel %vm518, %v7080, %v7043
      %v7082 = vrot.slane %v7043, 4
      %v7083 = vsel %vm518, %v7067, %v7082
      %v7084 = vrot.slane %v7071, 4
      %v7085 = vsel %vm518, %v7084, %v7047
      %v7086 = vrot.slane %v7047, 4
      %v7087 = vsel %vm518, %v7071, %v7086
      %v7088 = vrot.slane %v6826, 4
      %v7089 = vsel %vm518, %v7088, %v6768
      %v7090 = vrot.slane %v6768, 4
      %v7091 = vsel %vm518, %v6826, %v7090
      %v7093 = vunpack.c.l.s4 1983009808
      %v7094 = vunpack.c.0.s8 %v7093
      %v7095 = vperm.slane %v7089, %v7094
      %v7097 = vunpack.c.l.s4 1983009808
      %v7098 = vunpack.c.0.s8 %v7097
      %v7099 = vperm.slane %v7091, %v7098
      %v7100 = vrot.slane %v6855, 4
      %v7101 = vsel %vm518, %v7100, %v6797
      %v7102 = vrot.slane %v6797, 4
      %v7103 = vsel %vm518, %v6855, %v7102
      %v7105 = vunpack.c.l.s4 1983009808
      %v7106 = vunpack.c.0.s8 %v7105
      %v7107 = vperm.slane %v7101, %v7106
      %v7109 = vunpack.c.l.s4 1983009808
      %v7110 = vunpack.c.0.s8 %v7109
      %v7111 = vperm.slane %v7103, %v7110
      %v7112 = vrot.slane %v6942, 4
      %v7113 = vsel %vm518, %v7112, %v6884
      %v7114 = vrot.slane %v6884, 4
      %v7115 = vsel %vm518, %v6942, %v7114
      %v7117 = vunpack.c.l.s4 1983009808
      %v7118 = vunpack.c.0.s8 %v7117
      %v7119 = vperm.slane %v7113, %v7118
      %v7121 = vunpack.c.l.s4 1983009808
      %v7122 = vunpack.c.0.s8 %v7121
      %v7123 = vperm.slane %v7115, %v7122
      %v7124 = vrot.slane %v6971, 4
      %v7125 = vsel %vm518, %v7124, %v6913
      %v7126 = vrot.slane %v6913, 4
      %v7127 = vsel %vm518, %v6971, %v7126
      %v7129 = vunpack.c.l.s4 1983009808
      %v7130 = vunpack.c.0.s8 %v7129
      %v7131 = vperm.slane %v7125, %v7130
      %v7133 = vunpack.c.l.s4 1983009808
      %v7134 = vunpack.c.0.s8 %v7133
      %v7135 = vperm.slane %v7127, %v7134
      %v7136 = vrot.slane %v7107, 4
      %v7137 = vsel %vm518, %v7136, %v7095
      %v7138 = vrot.slane %v7095, 4
      %v7139 = vsel %vm518, %v7107, %v7138
      %v7141 = vunpack.c.l.s4 1934713408
      %v7142 = vunpack.c.0.s8 %v7141
      %v7143 = vperm.slane %v7137, %v7142
      %v7145 = vunpack.c.l.s4 1934713408
      %v7146 = vunpack.c.0.s8 %v7145
      %v7147 = vperm.slane %v7139, %v7146
      %v7148 = vrot.slane %v7111, 4
      %v7149 = vsel %vm518, %v7148, %v7099
      %v7150 = vrot.slane %v7099, 4
      %v7151 = vsel %vm518, %v7111, %v7150
      %v7153 = vunpack.c.l.s4 1934713408
      %v7154 = vunpack.c.0.s8 %v7153
      %v7155 = vperm.slane %v7149, %v7154
      %v7157 = vunpack.c.l.s4 1934713408
      %v7158 = vunpack.c.0.s8 %v7157
      %v7159 = vperm.slane %v7151, %v7158
      %v7160 = vrot.slane %v7131, 4
      %v7161 = vsel %vm518, %v7160, %v7119
      %v7162 = vrot.slane %v7119, 4
      %v7163 = vsel %vm518, %v7131, %v7162
      %v7165 = vunpack.c.l.s4 1934713408
      %v7166 = vunpack.c.0.s8 %v7165
      %v7167 = vperm.slane %v7161, %v7166
      %v7169 = vunpack.c.l.s4 1934713408
      %v7170 = vunpack.c.0.s8 %v7169
      %v7171 = vperm.slane %v7163, %v7170
      %v7172 = vrot.slane %v7135, 4
      %v7173 = vsel %vm518, %v7172, %v7123
      %v7174 = vrot.slane %v7123, 4
      %v7175 = vsel %vm518, %v7135, %v7174
      %v7177 = vunpack.c.l.s4 1934713408
      %v7178 = vunpack.c.0.s8 %v7177
      %v7179 = vperm.slane %v7173, %v7178
      %v7181 = vunpack.c.l.s4 1934713408
      %v7182 = vunpack.c.0.s8 %v7181
      %v7183 = vperm.slane %v7175, %v7182
      %v7184 = vrot.slane %v7167, 4
      %v7185 = vsel %vm518, %v7184, %v7143
      %v7186 = vrot.slane %v7143, 4
      %v7187 = vsel %vm518, %v7167, %v7186
      %v7188 = vrot.slane %v7171, 4
      %v7189 = vsel %vm518, %v7188, %v7147
      %v7190 = vrot.slane %v7147, 4
      %v7191 = vsel %vm518, %v7171, %v7190
      %v7192 = vrot.slane %v7179, 4
      %v7193 = vsel %vm518, %v7192, %v7155
      %v7194 = vrot.slane %v7155, 4
      %v7195 = vsel %vm518, %v7179, %v7194
      %v7196 = vrot.slane %v7183, 4
      %v7197 = vsel %vm518, %v7196, %v7159
      %v7198 = vrot.slane %v7159, 4
      %v7199 = vsel %vm518, %v7183, %v7198
      %v7200 = vrot.slane %v6597, 4
      %v7201 = vsel %vm518, %v7200, %v6539
      %v7202 = vrot.slane %v6539, 4
      %v7203 = vsel %vm518, %v6597, %v7202
      %v7205 = vunpack.c.l.s4 1983009808
      %v7206 = vunpack.c.0.s8 %v7205
      %v7207 = vperm.slane %v7201, %v7206
      %v7209 = vunpack.c.l.s4 1983009808
      %v7210 = vunpack.c.0.s8 %v7209
      %v7211 = vperm.slane %v7203, %v7210
      %v7212 = vrot.slane %v6626, 4
      %v7213 = vsel %vm518, %v7212, %v6568
      %v7214 = vrot.slane %v6568, 4
      %v7215 = vsel %vm518, %v6626, %v7214
      %v7217 = vunpack.c.l.s4 1983009808
      %v7218 = vunpack.c.0.s8 %v7217
      %v7219 = vperm.slane %v7213, %v7218
      %v7221 = vunpack.c.l.s4 1983009808
      %v7222 = vunpack.c.0.s8 %v7221
      %v7223 = vperm.slane %v7215, %v7222
      %v7224 = vrot.slane %v6713, 4
      %v7225 = vsel %vm518, %v7224, %v6655
      %v7226 = vrot.slane %v6655, 4
      %v7227 = vsel %vm518, %v6713, %v7226
      %v7229 = vunpack.c.l.s4 1983009808
      %v7230 = vunpack.c.0.s8 %v7229
      %v7231 = vperm.slane %v7225, %v7230
      %v7233 = vunpack.c.l.s4 1983009808
      %v7234 = vunpack.c.0.s8 %v7233
      %v7235 = vperm.slane %v7227, %v7234
      %v7236 = vrot.slane %v6742, 4
      %v7237 = vsel %vm518, %v7236, %v6684
      %v7238 = vrot.slane %v6684, 4
      %v7239 = vsel %vm518, %v6742, %v7238
      %v7241 = vunpack.c.l.s4 1983009808
      %v7242 = vunpack.c.0.s8 %v7241
      %v7243 = vperm.slane %v7237, %v7242
      %v7245 = vunpack.c.l.s4 1983009808
      %v7246 = vunpack.c.0.s8 %v7245
      %v7247 = vperm.slane %v7239, %v7246
      %v7248 = vrot.slane %v7219, 4
      %v7249 = vsel %vm518, %v7248, %v7207
      %v7250 = vrot.slane %v7207, 4
      %v7251 = vsel %vm518, %v7219, %v7250
      %v7253 = vunpack.c.l.s4 1934713408
      %v7254 = vunpack.c.0.s8 %v7253
      %v7255 = vperm.slane %v7249, %v7254
      %v7257 = vunpack.c.l.s4 1934713408
      %v7258 = vunpack.c.0.s8 %v7257
      %v7259 = vperm.slane %v7251, %v7258
      %v7260 = vrot.slane %v7223, 4
      %v7261 = vsel %vm518, %v7260, %v7211
      %v7262 = vrot.slane %v7211, 4
      %v7263 = vsel %vm518, %v7223, %v7262
      %v7265 = vunpack.c.l.s4 1934713408
      %v7266 = vunpack.c.0.s8 %v7265
      %v7267 = vperm.slane %v7261, %v7266
      %v7269 = vunpack.c.l.s4 1934713408
      %v7270 = vunpack.c.0.s8 %v7269
      %v7271 = vperm.slane %v7263, %v7270
      %v7272 = vrot.slane %v7243, 4
      %v7273 = vsel %vm518, %v7272, %v7231
      %v7274 = vrot.slane %v7231, 4
      %v7275 = vsel %vm518, %v7243, %v7274
      %v7277 = vunpack.c.l.s4 1934713408
      %v7278 = vunpack.c.0.s8 %v7277
      %v7279 = vperm.slane %v7273, %v7278
      %v7281 = vunpack.c.l.s4 1934713408
      %v7282 = vunpack.c.0.s8 %v7281
      %v7283 = vperm.slane %v7275, %v7282
      %v7284 = vrot.slane %v7247, 4
      %v7285 = vsel %vm518, %v7284, %v7235
      %v7286 = vrot.slane %v7235, 4
      %v7287 = vsel %vm518, %v7247, %v7286
      %v7289 = vunpack.c.l.s4 1934713408
      %v7290 = vunpack.c.0.s8 %v7289
      %v7291 = vperm.slane %v7285, %v7290
      %v7293 = vunpack.c.l.s4 1934713408
      %v7294 = vunpack.c.0.s8 %v7293
      %v7295 = vperm.slane %v7287, %v7294
      %v7296 = vrot.slane %v7279, 4
      %v7297 = vsel %vm518, %v7296, %v7255
      %v7298 = vrot.slane %v7255, 4
      %v7299 = vsel %vm518, %v7279, %v7298
      %v7300 = vrot.slane %v7283, 4
      %v7301 = vsel %vm518, %v7300, %v7259
      %v7302 = vrot.slane %v7259, 4
      %v7303 = vsel %vm518, %v7283, %v7302
      %v7304 = vrot.slane %v7291, 4
      %v7305 = vsel %vm518, %v7304, %v7267
      %v7306 = vrot.slane %v7267, 4
      %v7307 = vsel %vm518, %v7291, %v7306
      %v7308 = vrot.slane %v7295, 4
      %v7309 = vsel %vm518, %v7308, %v7271
      %v7310 = vrot.slane %v7271, 4
      %v7311 = vsel %vm518, %v7295, %v7310
      %v7312 = vrot.slane %v6829, 4
      %v7313 = vsel %vm518, %v7312, %v6771
      %v7314 = vrot.slane %v6771, 4
      %v7315 = vsel %vm518, %v6829, %v7314
      %v7317 = vunpack.c.l.s4 1983009808
      %v7318 = vunpack.c.0.s8 %v7317
      %v7319 = vperm.slane %v7313, %v7318
      %v7321 = vunpack.c.l.s4 1983009808
      %v7322 = vunpack.c.0.s8 %v7321
      %v7323 = vperm.slane %v7315, %v7322
      %v7324 = vrot.slane %v6858, 4
      %v7325 = vsel %vm518, %v7324, %v6800
      %v7326 = vrot.slane %v6800, 4
      %v7327 = vsel %vm518, %v6858, %v7326
      %v7329 = vunpack.c.l.s4 1983009808
      %v7330 = vunpack.c.0.s8 %v7329
      %v7331 = vperm.slane %v7325, %v7330
      %v7333 = vunpack.c.l.s4 1983009808
      %v7334 = vunpack.c.0.s8 %v7333
      %v7335 = vperm.slane %v7327, %v7334
      %v7336 = vrot.slane %v6945, 4
      %v7337 = vsel %vm518, %v7336, %v6887
      %v7338 = vrot.slane %v6887, 4
      %v7339 = vsel %vm518, %v6945, %v7338
      %v7341 = vunpack.c.l.s4 1983009808
      %v7342 = vunpack.c.0.s8 %v7341
      %v7343 = vperm.slane %v7337, %v7342
      %v7345 = vunpack.c.l.s4 1983009808
      %v7346 = vunpack.c.0.s8 %v7345
      %v7347 = vperm.slane %v7339, %v7346
      %v7348 = vrot.slane %v6974, 4
      %v7349 = vsel %vm518, %v7348, %v6916
      %v7350 = vrot.slane %v6916, 4
      %v7351 = vsel %vm518, %v6974, %v7350
      %v7353 = vunpack.c.l.s4 1983009808
      %v7354 = vunpack.c.0.s8 %v7353
      %v7355 = vperm.slane %v7349, %v7354
      %v7357 = vunpack.c.l.s4 1983009808
      %v7358 = vunpack.c.0.s8 %v7357
      %v7359 = vperm.slane %v7351, %v7358
      %v7360 = vrot.slane %v7331, 4
      %v7361 = vsel %vm518, %v7360, %v7319
      %v7362 = vrot.slane %v7319, 4
      %v7363 = vsel %vm518, %v7331, %v7362
      %v7365 = vunpack.c.l.s4 1934713408
      %v7366 = vunpack.c.0.s8 %v7365
      %v7367 = vperm.slane %v7361, %v7366
      %v7369 = vunpack.c.l.s4 1934713408
      %v7370 = vunpack.c.0.s8 %v7369
      %v7371 = vperm.slane %v7363, %v7370
      %v7372 = vrot.slane %v7335, 4
      %v7373 = vsel %vm518, %v7372, %v7323
      %v7374 = vrot.slane %v7323, 4
      %v7375 = vsel %vm518, %v7335, %v7374
      %v7377 = vunpack.c.l.s4 1934713408
      %v7378 = vunpack.c.0.s8 %v7377
      %v7379 = vperm.slane %v7373, %v7378
      %v7381 = vunpack.c.l.s4 1934713408
      %v7382 = vunpack.c.0.s8 %v7381
      %v7383 = vperm.slane %v7375, %v7382
      %v7384 = vrot.slane %v7355, 4
      %v7385 = vsel %vm518, %v7384, %v7343
      %v7386 = vrot.slane %v7343, 4
      %v7387 = vsel %vm518, %v7355, %v7386
      %v7389 = vunpack.c.l.s4 1934713408
      %v7390 = vunpack.c.0.s8 %v7389
      %v7391 = vperm.slane %v7385, %v7390
      %v7393 = vunpack.c.l.s4 1934713408
      %v7394 = vunpack.c.0.s8 %v7393
      %v7395 = vperm.slane %v7387, %v7394
      %v7396 = vrot.slane %v7359, 4
      %v7397 = vsel %vm518, %v7396, %v7347
      %v7398 = vrot.slane %v7347, 4
      %v7399 = vsel %vm518, %v7359, %v7398
      %v7401 = vunpack.c.l.s4 1934713408
      %v7402 = vunpack.c.0.s8 %v7401
      %v7403 = vperm.slane %v7397, %v7402
      %v7405 = vunpack.c.l.s4 1934713408
      %v7406 = vunpack.c.0.s8 %v7405
      %v7407 = vperm.slane %v7399, %v7406
      %v7408 = vrot.slane %v7391, 4
      %v7409 = vsel %vm518, %v7408, %v7367
      %v7410 = vrot.slane %v7367, 4
      %v7411 = vsel %vm518, %v7391, %v7410
      %v7412 = vrot.slane %v7395, 4
      %v7413 = vsel %vm518, %v7412, %v7371
      %v7414 = vrot.slane %v7371, 4
      %v7415 = vsel %vm518, %v7395, %v7414
      %v7416 = vrot.slane %v7403, 4
      %v7417 = vsel %vm518, %v7416, %v7379
      %v7418 = vrot.slane %v7379, 4
      %v7419 = vsel %vm518, %v7403, %v7418
      %v7420 = vrot.slane %v7407, 4
      %v7421 = vsel %vm518, %v7420, %v7383
      %v7422 = vrot.slane %v7383, 4
      %v7423 = vsel %vm518, %v7407, %v7422
      %v7424 = vadd.f32 %v7073, %v6072
      %v7425 = vadd.f32 %v7185, %v6075
      %v7426 = vadd.f32 %v7075, %v6101
      %v7427 = vadd.f32 %v7187, %v6104
      %v7428 = vadd.f32 %v7077, %v6130
      %v7429 = vadd.f32 %v7189, %v6133
      %v7430 = vadd.f32 %v7079, %v6159
      %v7431 = vadd.f32 %v7191, %v6162
      %v7432 = vadd.f32 %v7081, %v6188
      %v7433 = vadd.f32 %v7193, %v6191
      %v7434 = vadd.f32 %v7083, %v6217
      %v7435 = vadd.f32 %v7195, %v6220
      %v7436 = vadd.f32 %v7085, %v6246
      %v7437 = vadd.f32 %v7197, %v6249
      %v7438 = vadd.f32 %v7087, %v6275
      %v7439 = vadd.f32 %v7199, %v6278
      %v7440 = vadd.f32 %v7297, %v6304
      %v7441 = vadd.f32 %v7409, %v6307
      %v7442 = vadd.f32 %v7299, %v6333
      %v7443 = vadd.f32 %v7411, %v6336
      %v7444 = vadd.f32 %v7301, %v6362
      %v7445 = vadd.f32 %v7413, %v6365
      %v7446 = vadd.f32 %v7303, %v6391
      %v7447 = vadd.f32 %v7415, %v6394
      %v7448 = vadd.f32 %v7305, %v6420
      %v7449 = vadd.f32 %v7417, %v6423
      %v7450 = vadd.f32 %v7307, %v6449
      %v7451 = vadd.f32 %v7419, %v6452
      %v7452 = vadd.f32 %v7309, %v6478
      %v7453 = vadd.f32 %v7421, %v6481
      %v7454 = vadd.f32 %v7311, %v6507
      %v7455 = vadd.f32 %v7423, %v6510
      %v7456 = vrot.slane %v7428, 4
      %v7457 = vsel %vm518, %v7456, %v7424
      %v7458 = vrot.slane %v7424, 4
      %v7459 = vsel %vm518, %v7428, %v7458
      %v7461 = vunpack.c.l.s4 1983009808
      %v7462 = vunpack.c.0.s8 %v7461
      %v7463 = vperm.slane %v7457, %v7462
      %v7465 = vunpack.c.l.s4 1983009808
      %v7466 = vunpack.c.0.s8 %v7465
      %v7467 = vperm.slane %v7459, %v7466
      %v7468 = vrot.slane %v7430, 4
      %v7469 = vsel %vm518, %v7468, %v7426
      %v7470 = vrot.slane %v7426, 4
      %v7471 = vsel %vm518, %v7430, %v7470
      %v7473 = vunpack.c.l.s4 1983009808
      %v7474 = vunpack.c.0.s8 %v7473
      %v7475 = vperm.slane %v7469, %v7474
      %v7477 = vunpack.c.l.s4 1983009808
      %v7478 = vunpack.c.0.s8 %v7477
      %v7479 = vperm.slane %v7471, %v7478
      %v7480 = vrot.slane %v7436, 4
      %v7481 = vsel %vm518, %v7480, %v7432
      %v7482 = vrot.slane %v7432, 4
      %v7483 = vsel %vm518, %v7436, %v7482
      %v7485 = vunpack.c.l.s4 1983009808
      %v7486 = vunpack.c.0.s8 %v7485
      %v7487 = vperm.slane %v7481, %v7486
      %v7489 = vunpack.c.l.s4 1983009808
      %v7490 = vunpack.c.0.s8 %v7489
      %v7491 = vperm.slane %v7483, %v7490
      %v7492 = vrot.slane %v7438, 4
      %v7493 = vsel %vm518, %v7492, %v7434
      %v7494 = vrot.slane %v7434, 4
      %v7495 = vsel %vm518, %v7438, %v7494
      %v7497 = vunpack.c.l.s4 1983009808
      %v7498 = vunpack.c.0.s8 %v7497
      %v7499 = vperm.slane %v7493, %v7498
      %v7501 = vunpack.c.l.s4 1983009808
      %v7502 = vunpack.c.0.s8 %v7501
      %v7503 = vperm.slane %v7495, %v7502
      %v7504 = vrot.slane %v7475, 4
      %v7505 = vsel %vm518, %v7504, %v7463
      %v7506 = vrot.slane %v7463, 4
      %v7507 = vsel %vm518, %v7475, %v7506
      %v7509 = vunpack.c.l.s4 1934713408
      %v7510 = vunpack.c.0.s8 %v7509
      %v7511 = vperm.slane %v7505, %v7510
      %v7513 = vunpack.c.l.s4 1934713408
      %v7514 = vunpack.c.0.s8 %v7513
      %v7515 = vperm.slane %v7507, %v7514
      %v7516 = vrot.slane %v7479, 4
      %v7517 = vsel %vm518, %v7516, %v7467
      %v7518 = vrot.slane %v7467, 4
      %v7519 = vsel %vm518, %v7479, %v7518
      %v7521 = vunpack.c.l.s4 1934713408
      %v7522 = vunpack.c.0.s8 %v7521
      %v7523 = vperm.slane %v7517, %v7522
      %v7525 = vunpack.c.l.s4 1934713408
      %v7526 = vunpack.c.0.s8 %v7525
      %v7527 = vperm.slane %v7519, %v7526
      %v7528 = vrot.slane %v7499, 4
      %v7529 = vsel %vm518, %v7528, %v7487
      %v7530 = vrot.slane %v7487, 4
      %v7531 = vsel %vm518, %v7499, %v7530
      %v7533 = vunpack.c.l.s4 1934713408
      %v7534 = vunpack.c.0.s8 %v7533
      %v7535 = vperm.slane %v7529, %v7534
      %v7537 = vunpack.c.l.s4 1934713408
      %v7538 = vunpack.c.0.s8 %v7537
      %v7539 = vperm.slane %v7531, %v7538
      %v7540 = vrot.slane %v7503, 4
      %v7541 = vsel %vm518, %v7540, %v7491
      %v7542 = vrot.slane %v7491, 4
      %v7543 = vsel %vm518, %v7503, %v7542
      %v7545 = vunpack.c.l.s4 1934713408
      %v7546 = vunpack.c.0.s8 %v7545
      %v7547 = vperm.slane %v7541, %v7546
      %v7549 = vunpack.c.l.s4 1934713408
      %v7550 = vunpack.c.0.s8 %v7549
      %v7551 = vperm.slane %v7543, %v7550
      %v7552 = vrot.slane %v7535, 4
      %v7553 = vsel %vm518, %v7552, %v7511
      %v7554 = vrot.slane %v7511, 4
      %v7555 = vsel %vm518, %v7535, %v7554
      %v7556 = vrot.slane %v7539, 4
      %v7557 = vsel %vm518, %v7556, %v7515
      %v7558 = vrot.slane %v7515, 4
      %v7559 = vsel %vm518, %v7539, %v7558
      %v7560 = vrot.slane %v7547, 4
      %v7561 = vsel %vm518, %v7560, %v7523
      %v7562 = vrot.slane %v7523, 4
      %v7563 = vsel %vm518, %v7547, %v7562
      %v7564 = vrot.slane %v7551, 4
      %v7565 = vsel %vm518, %v7564, %v7527
      %v7566 = vrot.slane %v7527, 4
      %v7567 = vsel %vm518, %v7551, %v7566
      %v7568 = vrot.slane %v7444, 4
      %v7569 = vsel %vm518, %v7568, %v7440
      %v7570 = vrot.slane %v7440, 4
      %v7571 = vsel %vm518, %v7444, %v7570
      %v7573 = vunpack.c.l.s4 1983009808
      %v7574 = vunpack.c.0.s8 %v7573
      %v7575 = vperm.slane %v7569, %v7574
      %v7577 = vunpack.c.l.s4 1983009808
      %v7578 = vunpack.c.0.s8 %v7577
      %v7579 = vperm.slane %v7571, %v7578
      %v7580 = vrot.slane %v7446, 4
      %v7581 = vsel %vm518, %v7580, %v7442
      %v7582 = vrot.slane %v7442, 4
      %v7583 = vsel %vm518, %v7446, %v7582
      %v7585 = vunpack.c.l.s4 1983009808
      %v7586 = vunpack.c.0.s8 %v7585
      %v7587 = vperm.slane %v7581, %v7586
      %v7589 = vunpack.c.l.s4 1983009808
      %v7590 = vunpack.c.0.s8 %v7589
      %v7591 = vperm.slane %v7583, %v7590
      %v7592 = vrot.slane %v7452, 4
      %v7593 = vsel %vm518, %v7592, %v7448
      %v7594 = vrot.slane %v7448, 4
      %v7595 = vsel %vm518, %v7452, %v7594
      %v7597 = vunpack.c.l.s4 1983009808
      %v7598 = vunpack.c.0.s8 %v7597
      %v7599 = vperm.slane %v7593, %v7598
      %v7601 = vunpack.c.l.s4 1983009808
      %v7602 = vunpack.c.0.s8 %v7601
      %v7603 = vperm.slane %v7595, %v7602
      %v7604 = vrot.slane %v7454, 4
      %v7605 = vsel %vm518, %v7604, %v7450
      %v7606 = vrot.slane %v7450, 4
      %v7607 = vsel %vm518, %v7454, %v7606
      %v7609 = vunpack.c.l.s4 1983009808
      %v7610 = vunpack.c.0.s8 %v7609
      %v7611 = vperm.slane %v7605, %v7610
      %v7613 = vunpack.c.l.s4 1983009808
      %v7614 = vunpack.c.0.s8 %v7613
      %v7615 = vperm.slane %v7607, %v7614
      %v7616 = vrot.slane %v7587, 4
      %v7617 = vsel %vm518, %v7616, %v7575
      %v7618 = vrot.slane %v7575, 4
      %v7619 = vsel %vm518, %v7587, %v7618
      %v7621 = vunpack.c.l.s4 1934713408
      %v7622 = vunpack.c.0.s8 %v7621
      %v7623 = vperm.slane %v7617, %v7622
      %v7625 = vunpack.c.l.s4 1934713408
      %v7626 = vunpack.c.0.s8 %v7625
      %v7627 = vperm.slane %v7619, %v7626
      %v7628 = vrot.slane %v7591, 4
      %v7629 = vsel %vm518, %v7628, %v7579
      %v7630 = vrot.slane %v7579, 4
      %v7631 = vsel %vm518, %v7591, %v7630
      %v7633 = vunpack.c.l.s4 1934713408
      %v7634 = vunpack.c.0.s8 %v7633
      %v7635 = vperm.slane %v7629, %v7634
      %v7637 = vunpack.c.l.s4 1934713408
      %v7638 = vunpack.c.0.s8 %v7637
      %v7639 = vperm.slane %v7631, %v7638
      %v7640 = vrot.slane %v7611, 4
      %v7641 = vsel %vm518, %v7640, %v7599
      %v7642 = vrot.slane %v7599, 4
      %v7643 = vsel %vm518, %v7611, %v7642
      %v7645 = vunpack.c.l.s4 1934713408
      %v7646 = vunpack.c.0.s8 %v7645
      %v7647 = vperm.slane %v7641, %v7646
      %v7649 = vunpack.c.l.s4 1934713408
      %v7650 = vunpack.c.0.s8 %v7649
      %v7651 = vperm.slane %v7643, %v7650
      %v7652 = vrot.slane %v7615, 4
      %v7653 = vsel %vm518, %v7652, %v7603
      %v7654 = vrot.slane %v7603, 4
      %v7655 = vsel %vm518, %v7615, %v7654
      %v7657 = vunpack.c.l.s4 1934713408
      %v7658 = vunpack.c.0.s8 %v7657
      %v7659 = vperm.slane %v7653, %v7658
      %v7661 = vunpack.c.l.s4 1934713408
      %v7662 = vunpack.c.0.s8 %v7661
      %v7663 = vperm.slane %v7655, %v7662
      %v7664 = vrot.slane %v7647, 4
      %v7665 = vsel %vm518, %v7664, %v7623
      %v7666 = vrot.slane %v7623, 4
      %v7667 = vsel %vm518, %v7647, %v7666
      %v7668 = vrot.slane %v7651, 4
      %v7669 = vsel %vm518, %v7668, %v7627
      %v7670 = vrot.slane %v7627, 4
      %v7671 = vsel %vm518, %v7651, %v7670
      %v7672 = vrot.slane %v7659, 4
      %v7673 = vsel %vm518, %v7672, %v7635
      %v7674 = vrot.slane %v7635, 4
      %v7675 = vsel %vm518, %v7659, %v7674
      %v7676 = vrot.slane %v7663, 4
      %v7677 = vsel %vm518, %v7676, %v7639
      %v7678 = vrot.slane %v7639, 4
      %v7679 = vsel %vm518, %v7663, %v7678
      %v7680 = vrot.slane %v7429, 4
      %v7681 = vsel %vm518, %v7680, %v7425
      %v7682 = vrot.slane %v7425, 4
      %v7683 = vsel %vm518, %v7429, %v7682
      %v7685 = vunpack.c.l.s4 1983009808
      %v7686 = vunpack.c.0.s8 %v7685
      %v7687 = vperm.slane %v7681, %v7686
      %v7689 = vunpack.c.l.s4 1983009808
      %v7690 = vunpack.c.0.s8 %v7689
      %v7691 = vperm.slane %v7683, %v7690
      %v7692 = vrot.slane %v7431, 4
      %v7693 = vsel %vm518, %v7692, %v7427
      %v7694 = vrot.slane %v7427, 4
      %v7695 = vsel %vm518, %v7431, %v7694
      %v7697 = vunpack.c.l.s4 1983009808
      %v7698 = vunpack.c.0.s8 %v7697
      %v7699 = vperm.slane %v7693, %v7698
      %v7701 = vunpack.c.l.s4 1983009808
      %v7702 = vunpack.c.0.s8 %v7701
      %v7703 = vperm.slane %v7695, %v7702
      %v7704 = vrot.slane %v7437, 4
      %v7705 = vsel %vm518, %v7704, %v7433
      %v7706 = vrot.slane %v7433, 4
      %v7707 = vsel %vm518, %v7437, %v7706
      %v7709 = vunpack.c.l.s4 1983009808
      %v7710 = vunpack.c.0.s8 %v7709
      %v7711 = vperm.slane %v7705, %v7710
      %v7713 = vunpack.c.l.s4 1983009808
      %v7714 = vunpack.c.0.s8 %v7713
      %v7715 = vperm.slane %v7707, %v7714
      %v7716 = vrot.slane %v7439, 4
      %v7717 = vsel %vm518, %v7716, %v7435
      %v7718 = vrot.slane %v7435, 4
      %v7719 = vsel %vm518, %v7439, %v7718
      %v7721 = vunpack.c.l.s4 1983009808
      %v7722 = vunpack.c.0.s8 %v7721
      %v7723 = vperm.slane %v7717, %v7722
      %v7725 = vunpack.c.l.s4 1983009808
      %v7726 = vunpack.c.0.s8 %v7725
      %v7727 = vperm.slane %v7719, %v7726
      %v7728 = vrot.slane %v7699, 4
      %v7729 = vsel %vm518, %v7728, %v7687
      %v7730 = vrot.slane %v7687, 4
      %v7731 = vsel %vm518, %v7699, %v7730
      %v7733 = vunpack.c.l.s4 1934713408
      %v7734 = vunpack.c.0.s8 %v7733
      %v7735 = vperm.slane %v7729, %v7734
      %v7737 = vunpack.c.l.s4 1934713408
      %v7738 = vunpack.c.0.s8 %v7737
      %v7739 = vperm.slane %v7731, %v7738
      %v7740 = vrot.slane %v7703, 4
      %v7741 = vsel %vm518, %v7740, %v7691
      %v7742 = vrot.slane %v7691, 4
      %v7743 = vsel %vm518, %v7703, %v7742
      %v7745 = vunpack.c.l.s4 1934713408
      %v7746 = vunpack.c.0.s8 %v7745
      %v7747 = vperm.slane %v7741, %v7746
      %v7749 = vunpack.c.l.s4 1934713408
      %v7750 = vunpack.c.0.s8 %v7749
      %v7751 = vperm.slane %v7743, %v7750
      %v7752 = vrot.slane %v7723, 4
      %v7753 = vsel %vm518, %v7752, %v7711
      %v7754 = vrot.slane %v7711, 4
      %v7755 = vsel %vm518, %v7723, %v7754
      %v7757 = vunpack.c.l.s4 1934713408
      %v7758 = vunpack.c.0.s8 %v7757
      %v7759 = vperm.slane %v7753, %v7758
      %v7761 = vunpack.c.l.s4 1934713408
      %v7762 = vunpack.c.0.s8 %v7761
      %v7763 = vperm.slane %v7755, %v7762
      %v7764 = vrot.slane %v7727, 4
      %v7765 = vsel %vm518, %v7764, %v7715
      %v7766 = vrot.slane %v7715, 4
      %v7767 = vsel %vm518, %v7727, %v7766
      %v7769 = vunpack.c.l.s4 1934713408
      %v7770 = vunpack.c.0.s8 %v7769
      %v7771 = vperm.slane %v7765, %v7770
      %v7773 = vunpack.c.l.s4 1934713408
      %v7774 = vunpack.c.0.s8 %v7773
      %v7775 = vperm.slane %v7767, %v7774
      %v7776 = vrot.slane %v7759, 4
      %v7777 = vsel %vm518, %v7776, %v7735
      %v7778 = vrot.slane %v7735, 4
      %v7779 = vsel %vm518, %v7759, %v7778
      %v7780 = vrot.slane %v7763, 4
      %v7781 = vsel %vm518, %v7780, %v7739
      %v7782 = vrot.slane %v7739, 4
      %v7783 = vsel %vm518, %v7763, %v7782
      %v7784 = vrot.slane %v7771, 4
      %v7785 = vsel %vm518, %v7784, %v7747
      %v7786 = vrot.slane %v7747, 4
      %v7787 = vsel %vm518, %v7771, %v7786
      %v7788 = vrot.slane %v7775, 4
      %v7789 = vsel %vm518, %v7788, %v7751
      %v7790 = vrot.slane %v7751, 4
      %v7791 = vsel %vm518, %v7775, %v7790
      %v7792 = vrot.slane %v7445, 4
      %v7793 = vsel %vm518, %v7792, %v7441
      %v7794 = vrot.slane %v7441, 4
      %v7795 = vsel %vm518, %v7445, %v7794
      %v7797 = vunpack.c.l.s4 1983009808
      %v7798 = vunpack.c.0.s8 %v7797
      %v7799 = vperm.slane %v7793, %v7798
      %v7801 = vunpack.c.l.s4 1983009808
      %v7802 = vunpack.c.0.s8 %v7801
      %v7803 = vperm.slane %v7795, %v7802
      %v7804 = vrot.slane %v7447, 4
      %v7805 = vsel %vm518, %v7804, %v7443
      %v7806 = vrot.slane %v7443, 4
      %v7807 = vsel %vm518, %v7447, %v7806
      %v7809 = vunpack.c.l.s4 1983009808
      %v7810 = vunpack.c.0.s8 %v7809
      %v7811 = vperm.slane %v7805, %v7810
      %v7813 = vunpack.c.l.s4 1983009808
      %v7814 = vunpack.c.0.s8 %v7813
      %v7815 = vperm.slane %v7807, %v7814
      %v7816 = vrot.slane %v7453, 4
      %v7817 = vsel %vm518, %v7816, %v7449
      %v7818 = vrot.slane %v7449, 4
      %v7819 = vsel %vm518, %v7453, %v7818
      %v7821 = vunpack.c.l.s4 1983009808
      %v7822 = vunpack.c.0.s8 %v7821
      %v7823 = vperm.slane %v7817, %v7822
      %v7825 = vunpack.c.l.s4 1983009808
      %v7826 = vunpack.c.0.s8 %v7825
      %v7827 = vperm.slane %v7819, %v7826
      %v7828 = vrot.slane %v7455, 4
      %v7829 = vsel %vm518, %v7828, %v7451
      %v7830 = vrot.slane %v7451, 4
      %v7831 = vsel %vm518, %v7455, %v7830
      %v7833 = vunpack.c.l.s4 1983009808
      %v7834 = vunpack.c.0.s8 %v7833
      %v7835 = vperm.slane %v7829, %v7834
      %v7837 = vunpack.c.l.s4 1983009808
      %v7838 = vunpack.c.0.s8 %v7837
      %v7839 = vperm.slane %v7831, %v7838
      %v7840 = vrot.slane %v7811, 4
      %v7841 = vsel %vm518, %v7840, %v7799
      %v7842 = vrot.slane %v7799, 4
      %v7843 = vsel %vm518, %v7811, %v7842
      %v7845 = vunpack.c.l.s4 1934713408
      %v7846 = vunpack.c.0.s8 %v7845
      %v7847 = vperm.slane %v7841, %v7846
      %v7849 = vunpack.c.l.s4 1934713408
      %v7850 = vunpack.c.0.s8 %v7849
      %v7851 = vperm.slane %v7843, %v7850
      %v7852 = vrot.slane %v7815, 4
      %v7853 = vsel %vm518, %v7852, %v7803
      %v7854 = vrot.slane %v7803, 4
      %v7855 = vsel %vm518, %v7815, %v7854
      %v7857 = vunpack.c.l.s4 1934713408
      %v7858 = vunpack.c.0.s8 %v7857
      %v7859 = vperm.slane %v7853, %v7858
      %v7861 = vunpack.c.l.s4 1934713408
      %v7862 = vunpack.c.0.s8 %v7861
      %v7863 = vperm.slane %v7855, %v7862
      %v7864 = vrot.slane %v7835, 4
      %v7865 = vsel %vm518, %v7864, %v7823
      %v7866 = vrot.slane %v7823, 4
      %v7867 = vsel %vm518, %v7835, %v7866
      %v7869 = vunpack.c.l.s4 1934713408
      %v7870 = vunpack.c.0.s8 %v7869
      %v7871 = vperm.slane %v7865, %v7870
      %v7873 = vunpack.c.l.s4 1934713408
      %v7874 = vunpack.c.0.s8 %v7873
      %v7875 = vperm.slane %v7867, %v7874
      %v7876 = vrot.slane %v7839, 4
      %v7877 = vsel %vm518, %v7876, %v7827
      %v7878 = vrot.slane %v7827, 4
      %v7879 = vsel %vm518, %v7839, %v7878
      %v7881 = vunpack.c.l.s4 1934713408
      %v7882 = vunpack.c.0.s8 %v7881
      %v7883 = vperm.slane %v7877, %v7882
      %v7885 = vunpack.c.l.s4 1934713408
      %v7886 = vunpack.c.0.s8 %v7885
      %v7887 = vperm.slane %v7879, %v7886
      %v7888 = vrot.slane %v7871, 4
      %v7889 = vsel %vm518, %v7888, %v7847
      %v7890 = vrot.slane %v7847, 4
      %v7891 = vsel %vm518, %v7871, %v7890
      %v7892 = vrot.slane %v7875, 4
      %v7893 = vsel %vm518, %v7892, %v7851
      %v7894 = vrot.slane %v7851, 4
      %v7895 = vsel %vm518, %v7875, %v7894
      %v7896 = vrot.slane %v7883, 4
      %v7897 = vsel %vm518, %v7896, %v7859
      %v7898 = vrot.slane %v7859, 4
      %v7899 = vsel %vm518, %v7883, %v7898
      %v7900 = vrot.slane %v7887, 4
      %v7901 = vsel %vm518, %v7900, %v7863
      %v7902 = vrot.slane %v7863, 4
      %v7903 = vsel %vm518, %v7887, %v7902
      %7906 = vrot.lane.b32.xlu0 %v7555, 32
      %v7907 = vpop.permute.xlu0 %7906
      %7908 = vrot.lane.b32.xlu0 %v7667, 32
      %v7909 = vpop.permute.xlu0 %7908
      %7914 = vrot.lane.b32.xlu0 %v7557, 64
      %v7915 = vpop.permute.xlu0 %7914
      %7916 = vrot.lane.b32.xlu0 %v7669, 64
      %v7917 = vpop.permute.xlu0 %7916
      %7922 = vrot.lane.b32.xlu0 %v7559, 96
      %v7923 = vpop.permute.xlu0 %7922
      %7924 = vrot.lane.b32.xlu0 %v7671, 96
      %v7925 = vpop.permute.xlu0 %7924
      %7930 = vrot.lane.b32.xlu0 %v7563, 32
      %v7931 = vpop.permute.xlu0 %7930
      %7932 = vrot.lane.b32.xlu0 %v7675, 32
      %v7933 = vpop.permute.xlu0 %7932
      %7938 = vrot.lane.b32.xlu0 %v7565, 64
      %v7939 = vpop.permute.xlu0 %7938
      %7940 = vrot.lane.b32.xlu0 %v7677, 64
      %v7941 = vpop.permute.xlu0 %7940
      %7946 = vrot.lane.b32.xlu0 %v7567, 96
      %v7947 = vpop.permute.xlu0 %7946
      %7948 = vrot.lane.b32.xlu0 %v7679, 96
      %v7949 = vpop.permute.xlu0 %7948
      %7954 = vrot.lane.b32.xlu0 %v7779, 32
      %v7955 = vpop.permute.xlu0 %7954
      %7956 = vrot.lane.b32.xlu0 %v7891, 32
      %v7957 = vpop.permute.xlu0 %7956
      %7962 = vrot.lane.b32.xlu0 %v7781, 64
      %v7963 = vpop.permute.xlu0 %7962
      %7964 = vrot.lane.b32.xlu0 %v7893, 64
      %v7965 = vpop.permute.xlu0 %7964
      %7970 = vrot.lane.b32.xlu0 %v7783, 96
      %v7971 = vpop.permute.xlu0 %7970
      %7972 = vrot.lane.b32.xlu0 %v7895, 96
      %v7973 = vpop.permute.xlu0 %7972
      %7978 = vrot.lane.b32.xlu0 %v7787, 32
      %v7979 = vpop.permute.xlu0 %7978
      %7980 = vrot.lane.b32.xlu0 %v7899, 32
      %v7981 = vpop.permute.xlu0 %7980
      %7986 = vrot.lane.b32.xlu0 %v7789, 64
      %v7987 = vpop.permute.xlu0 %7986
      %7988 = vrot.lane.b32.xlu0 %v7901, 64
      %v7989 = vpop.permute.xlu0 %7988
      %7994 = vrot.lane.b32.xlu0 %v7791, 96
      %v7995 = vpop.permute.xlu0 %7994
      %7996 = vrot.lane.b32.xlu0 %v7903, 96
      %v7997 = vpop.permute.xlu0 %7996
      %v8000 = vsel %vm379, %v7553, %v7907
      %v8001 = vsel %vm379, %v7665, %v7909
      %vm8002 = vcmask 523264
      %v8003 = vsel %vm8002, %v8000, %v7915
      %v8004 = vsel %vm8002, %v8001, %v7917
      %vm8005 = vcmask 785408
      %v8006 = vsel %vm8005, %v8003, %v7923
      %v8007 = vsel %vm8005, %v8004, %v7925
      %v8008 = vsel %vm379, %v7561, %v7931
      %v8009 = vsel %vm379, %v7673, %v7933
      %v8010 = vsel %vm8002, %v8008, %v7939
      %v8011 = vsel %vm8002, %v8009, %v7941
      %v8012 = vsel %vm8005, %v8010, %v7947
      %v8013 = vsel %vm8005, %v8011, %v7949
      %v8014 = vsel %vm379, %v7777, %v7955
      %v8015 = vsel %vm379, %v7889, %v7957
      %v8016 = vsel %vm8002, %v8014, %v7963
      %v8017 = vsel %vm8002, %v8015, %v7965
      %v8018 = vsel %vm8005, %v8016, %v7971
      %v8019 = vsel %vm8005, %v8017, %v7973
      %v8020 = vsel %vm379, %v7785, %v7979
      %v8021 = vsel %vm379, %v7897, %v7981
      %v8022 = vsel %vm8002, %v8020, %v7987
      %v8023 = vsel %vm8002, %v8021, %v7989
      %v8024 = vsel %vm8005, %v8022, %v7995
      %v8025 = vsel %vm8005, %v8023, %v7997
      %s8026 = sld [smem:[#allocation2]]
      %v8027 = vstv %s8026
      %v8028 = vmul.f32 %v8027, %v8006
      %v8029 = vmul.f32 %v8027, %v8012
      %v8030 = vmul.f32 %v8027, %v8018
      %v8031 = vmul.f32 %v8027, %v8024
      %v8032 = vmul.f32 %v8027, %v8007
      %v8033 = vmul.f32 %v8027, %v8013
      %v8034 = vmul.f32 %v8027, %v8019
      %v8035 = vmul.f32 %v8027, %v8025
      %v8036 = vld [vmem:[%s240] sm:$0xff]
      %v8037 = vld [vmem:[%s240 + $0x8] sm:$0xff]
      %v8038 = vld [vmem:[%s240 + $0x10] sm:$0xff]
      %v8039 = vld [vmem:[%s240 + $0x18] sm:$0xff]
      %v8040 = vld [vmem:[%s240 + $0x20] sm:$0xff]
      %v8041 = vld [vmem:[%s240 + $0x28] sm:$0xff]
      %v8042 = vld [vmem:[%s240 + $0x30] sm:$0xff]
      %v8043 = vld [vmem:[%s240 + $0x38] sm:$0xff]
      %v8044 = vadd.f32 %v8028, %v8036
      %v8045 = vadd.f32 %v8029, %v8037
      %v8046 = vadd.f32 %v8030, %v8038
      %v8047 = vadd.f32 %v8031, %v8039
      %v8048 = vadd.f32 %v8032, %v8040
      %v8049 = vadd.f32 %v8033, %v8041
      %v8050 = vadd.f32 %v8034, %v8042
      %v8051 = vadd.f32 %v8035, %v8043
      %8052 = vst [vmem:[%s245] sm:$0xff] %v8044
      %8053 = vst [vmem:[%s245 + $0x8] sm:$0xff] %v8045
      %8054 = vst [vmem:[%s245 + $0x10] sm:$0xff] %v8046
      %8055 = vst [vmem:[%s245 + $0x18] sm:$0xff] %v8047
      %8056 = vst [vmem:[%s245 + $0x20] sm:$0xff] %v8048
      %8057 = vst [vmem:[%s245 + $0x28] sm:$0xff] %v8049
      %8058 = vst [vmem:[%s245 + $0x30] sm:$0xff] %v8050
      %8059 = vst [vmem:[%s245 + $0x38] sm:$0xff] %v8051
      %p8060 = scmp.lt.s32.totalorder %s17, 1
      %s8061 = scalar_select %p8060, %s17, 1
      %s8062 = smul.addr %s8061, 8
      %s8063 = smul.addr %s8062, 8
      %s8064 = scalar_lea.vmem %s5, %s8063
      // Predicated region
      $region41: #{criss_cross_attention.1} parent=39 // pred_check
        %p8065 = pneg %p150
      $region42: #{criss_cross_attention.1} parent=39 // pred_check_branch
        %8067 = sbr.rel (%p8065) target = $region44
      $region43: #{criss_cross_attention.1} parent=39 // pred_region
        _
      $region44: #{criss_cross_attention.1} parent=39 // pred_fallthru
        _
    $region40: #{criss_cross_attention.1} parent=5 // pred_fallthru
      _
    %p8068 = scmp.le.s32.totalorder 2, %s12
    // Predicated region
    $region45: #{criss_cross_attention.1} parent=5 // pred_check
      %p8069 = pneg %p8068
    $region46: #{criss_cross_attention.1} parent=5 // pred_check_branch
      %8071 = sbr.rel (%p8069) target = $region48
    $region47: #{criss_cross_attention.1} parent=5 // pred_region
      %s8072 = ssub.s32 %s12, 2
      // Predicated region
      $region49: #{criss_cross_attention.1} parent=47 // pred_check
        %p8073 = pneg %p156
      $region50: #{criss_cross_attention.1} parent=47 // pred_check_branch
        %8075 = sbr.rel (%p8073) target = $region52
      $region51: #{criss_cross_attention.1} parent=47 // pred_region
        %p8076 = scmp.lt.s32.totalorder %s18, 1
        %s8077 = scalar_select %p8076, %s18, 1
        %s8078 = smul.addr %s8077, 8
        %s8079 = smul.addr %s8078, 8
        %s8080 = scalar_lea.vmem %s5, %s8079
      $region52: #{criss_cross_attention.1} parent=47 // pred_fallthru
        _
    $region48: #{criss_cross_attention.1} parent=5 // pred_fallthru
      _
  $region6: #{criss_cross_attention.1} parent=0 // loop_footer
    %s16 = sadd.s32 1, %s12
  $region7: #{criss_cross_attention.1} parent=0 // loop_footer_branch
    %11 = sbr.rel target = $region3
  $region8: #{criss_cross_attention.1} parent=0 // loop_exit
    _

</llo_original>
